<compile_context>
chip_gen: v5e
topology: v5e:2x2
jax: 0.10.0
libtpu: 0.0.40
codegen_flags: <defaults>
</compile_context>

<pallas_src>
import functools

import numpy as np
import jax
import jax.numpy as jnp
from jax.experimental import pallas as pl
from jax.experimental.pallas import tpu as pltpu


# ----------------------------------------------------------------------------
# Pallas kernel: both LSTM directions, grid=(direction, time-chunk),
# recurrent state carried in VMEM scratch across the time-chunk axis.
# ----------------------------------------------------------------------------
def _bilstm_kernel(len_ref, pg_ref, whh_ref, h0_ref, c0_ref, out_ref,
                   h_sc, c_sc, *, unroll):
    d = pl.program_id(0)          # direction: 0 = forward, 1 = backward
    tc = pl.program_id(1)         # time chunk (in this direction's order)
    nc = pl.num_programs(1)

    T = out_ref.shape[1]
    H = h_sc.shape[-1]            # padded hidden size (multiple of 128)

    @pl.when(tc == 0)
    def _():
        h_sc[...] = h0_ref[0]
        c_sc[...] = c0_ref[0]

    len_col = len_ref[...]        # (B, 1) int32

    def step(s, t_base, h_prev, c_prev):
        # pre-gates stored bf16; upcast only when adding to the f32 accumulator
        gates = pg_ref[0, s].astype(jnp.float32) + jnp.dot(
            h_prev.astype(jnp.bfloat16), whh_ref[0],
            preferred_element_type=jnp.float32)
        # gate order along 4H (packed offline): [i, f, o | g], each H wide
        ifo = jax.nn.sigmoid(gates[:, :3 * H])
        g_g = jnp.tanh(gates[:, 3 * H:])
        i_g, f_g, o_g = ifo[:, :H], ifo[:, H:2 * H], ifo[:, 2 * H:]
        c_new = f_g * c_prev + i_g * g_g
        h_new = o_g * jnp.tanh(c_new)
        # pack_padded_sequence semantics: freeze state / zero output past end.
        valid = (t_base + s) < len_col                      # (B, 1) bool
        out_ref[0, s] = jnp.where(valid, h_new, 0.0).astype(out_ref.dtype)
        return (jnp.where(valid, h_new, h_prev),
                jnp.where(valid, c_new, c_prev))

    def run_chunk(t_base, idx_fn):
        def outer(blk, carry):
            h_prev, c_prev = carry
            base = pl.multiple_of(blk * unroll, unroll)
            for j in range(unroll):                         # static offsets
                s = idx_fn(base + j)
                h_prev, c_prev = step(s, t_base, h_prev, c_prev)
            return h_prev, c_prev
        h_fin, c_fin = jax.lax.fori_loop(0, T // unroll, outer,
                                         (h_sc[...], c_sc[...]))
        h_sc[...] = h_fin
        c_sc[...] = c_fin

    @pl.when(d == 0)
    def _():
        # forward: chunks walk 0..nc-1 (index_map), steps ascend within chunk
        run_chunk(tc * T, lambda s: s)

    @pl.when(d == 1)
    def _():
        # backward: chunks walk nc-1..0 (index_map), steps descend within chunk
        run_chunk((nc - 1 - tc) * T, lambda s: T - 1 - s)


def _run_bilstm(pre_gates, w_hh, h0, c0, lengths, time_chunk, unroll):
    """pre_gates: (2, S_pad, B, 4H) bf16, w_hh: (2, H, 4H) bf16,
    h0/c0: (2, B, H) f32, lengths: (B, 1) int32 -> (2, S_pad, B, H) f32."""
    _, S_pad, B, G = pre_gates.shape
    H = w_hh.shape[1]
    T = time_chunk
    NC = S_pad // T

    def t_map(d, t):
        # forward walks chunks 0..NC-1, backward walks NC-1..0
        return t + d * (NC - 1 - 2 * t)

    # Explicit VMEM budget: double-buffered streaming blocks + (double-buffered)
    # resident operands + fp32 state scratch, with 2x headroom.
    vmem_bytes = (2 * (T * B * G * pre_gates.dtype.itemsize        # pre-gate blk
                       + T * B * H * 4)                            # output blk
                  + 2 * (H * G * w_hh.dtype.itemsize               # W_hh
                         + 2 * B * H * 4                           # h0, c0
                         + B * 4)                                  # lengths
                  + 2 * B * H * 4)                                 # h/c scratch
    vmem_bytes = int(min(max(2 * vmem_bytes, 8 << 20), 64 << 20))

    kernel = functools.partial(_bilstm_kernel, unroll=unroll)
    return pl.pallas_call(
        kernel,
        out_shape=jax.ShapeDtypeStruct((2, S_pad, B, H), jnp.float32),
        grid_spec=pltpu.PrefetchScalarGridSpec(
            num_scalar_prefetch=0,
            grid=(2, NC),
            in_specs=[
                pl.BlockSpec((B, 1), lambda d, t: (0, 0)),                 # lengths
                pl.BlockSpec((1, T, B, G),
                             lambda d, t: (d, t_map(d, t), 0, 0)),         # pre-gates
                pl.BlockSpec((1, H, G), lambda d, t: (d, 0, 0)),           # W_hh bf16
                pl.BlockSpec((1, B, H), lambda d, t: (d, 0, 0)),           # h0
                pl.BlockSpec((1, B, H), lambda d, t: (d, 0, 0)),           # c0
            ],
            out_specs=pl.BlockSpec((1, T, B, H),
                                   lambda d, t: (d, t_map(d, t), 0, 0)),
            scratch_shapes=[pltpu.VMEM((B, H), jnp.float32),               # h state
                            pltpu.VMEM((B, H), jnp.float32)],              # c state
        ),
        compiler_params=pltpu.CompilerParams(
            dimension_semantics=("parallel", "arbitrary"),
            vmem_limit_bytes=vmem_bytes),
    )(lengths, pre_gates, w_hh, h0, c0)


# ----------------------------------------------------------------------------
# Forward pass (projection + layout in plain JAX, recurrence in the kernel).
# ----------------------------------------------------------------------------
def bilstm_forward(inputs, masks, ignore_length, params, h0, c0,
                   time_chunk=32, unroll=8):
    """
    inputs: (B, S, input_size)  masks: (B, S)  -> ((B, S, 2H), 1)
    Matches Bilstm.forward in eval mode (dropout is identity when not training).
    """
    B, S, D = inputs.shape
    H = h0.shape[-1]
    assert time_chunk % unroll == 0

    context_mask = masks[:, ignore_length:]
    length = context_mask.sum(axis=1).astype(jnp.int32) + ignore_length   # (B,)

    # PyTorch consumes the (xavier-initialized) h0/c0 columns in length-sorted
    # order; map them back to original batch positions by rank (stable sorts).
    indices = jnp.argsort(-length, stable=True)
    rank = jnp.argsort(indices, stable=True)
    h0_k = jnp.stack([h0[0][rank], h0[1][rank]])          # (2, B, H)
    c0_k = jnp.stack([c0[0][rank], c0[1][rank]])

    # Lane/sublane alignment: pad batch to x8 and each gate block (and H) to
    # x128 so gate slices and the per-step (B,H) stores are tile aligned.
    B_pad = -(-B // 8) * 8
    H_pad = -(-H // 128) * 128

    def reorder_pad(w, pad_rows=None):
        # PyTorch gate order [i, f, g, o] -> [i, f, o, g]; each block padded
        # H -> H_pad with zeros; optionally zero-pad the row (h) dim too.
        blocks = [w[..., 0:H], w[..., H:2 * H], w[..., 3 * H:4 * H],
                  w[..., 2 * H:3 * H]]
        pad = [(0, 0)] * (w.ndim - 1) + [(0, H_pad - H)]
        w2 = jnp.concatenate([jnp.pad(b, pad) for b in blocks], axis=-1)
        if pad_rows is not None:
            rp = [(0, 0)] * (w.ndim - 2) + [(0, pad_rows - w.shape[-2]), (0, 0)]
            w2 = jnp.pad(w2, rp)
        return w2

    w_ih = jnp.stack([reorder_pad(params["w_ih_f"]),
                      reorder_pad(params["w_ih_b"])]).astype(jnp.bfloat16)  # (2,D,4Hp)
    w_hh = jnp.stack([reorder_pad(params["w_hh_f"], pad_rows=H_pad),
                      reorder_pad(params["w_hh_b"], pad_rows=H_pad)]
                     ).astype(jnp.bfloat16)                                 # (2,Hp,4Hp)
    bias = jnp.stack([reorder_pad(params["b_f"]),
                      reorder_pad(params["b_b"])])                          # (2,1,4Hp)

    def pad_bh(x):   # (2, B, H) -> (2, B_pad, H_pad), zeros
        return jnp.pad(x, ((0, 0), (0, B_pad - B), (0, H_pad - H)))

    h0_k = pad_bh(h0_k)
    c0_k = pad_bh(c0_k)

    # Hoisted input projection: one bf16 matmul over all timesteps of both
    # directions, output directly in time-major layout, f32 accumulation,
    # then stored as bf16 (halves the dominant HBM stream).
    x = jnp.pad(inputs, ((0, B_pad - B), (0, 0), (0, 0))).astype(jnp.bfloat16)
    pre_gates = jnp.einsum("bsd,kdg->ksbg", x, w_ih,
                           preferred_element_type=jnp.float32)
    pre_gates = pre_gates + bias[:, None, :, :]            # (2, S, B_pad, 4Hp)

    T = time_chunk
    NC = -(-S // T)
    S_pad = NC * T
    if S_pad != S:
        pre_gates = jnp.pad(pre_gates, ((0, 0), (0, S_pad - S), (0, 0), (0, 0)))
    pre_gates = pre_gates.astype(jnp.bfloat16)

    lengths = jnp.pad(length, (0, B_pad - B))[:, None]     # (B_pad, 1) int32

    out = _run_bilstm(pre_gates, w_hh, h0_k, c0_k, lengths, T, unroll)
    out = out[:, :S, :B, :H]                               # (2, S, B, H)
    output = jnp.transpose(out, (2, 1, 0, 3)).reshape(B, S, 2 * H)

    # F.dropout(output, drop_rate, self.training): identity in eval mode.
    # TODO(synk): training-mode (random) dropout intentionally not applied.
    return output, 1


# ----------------------------------------------------------------------------
# Deterministic parameter / hidden-state initialization.
# ----------------------------------------------------------------------------
def init_params(key, input_size, hidden_size):
    k = 1.0 / np.sqrt(hidden_size)           # PyTorch nn.LSTM default init
    keys = jax.random.split(key, 8)

    def u(kk, shape):
        return jax.random.uniform(kk, shape, jnp.float32, -k, k)

    return {
        "w_ih_f": u(keys[0], (input_size, 4 * hidden_size)),
        "w_hh_f": u(keys[1], (hidden_size, 4 * hidden_size)),
        "b_f":    u(keys[2], (1, 4 * hidden_size)) + u(keys[3], (1, 4 * hidden_size)),
        "w_ih_b": u(keys[4], (input_size, 4 * hidden_size)),
        "w_hh_b": u(keys[5], (hidden_size, 4 * hidden_size)),
        "b_b":    u(keys[6], (1, 4 * hidden_size)) + u(keys[7], (1, 4 * hidden_size)),
    }


def init_hidden_state(key, batch_size, hidden_size):
    # xavier_normal_ on a (2, B, H) tensor: fan_in = B*H, fan_out = 2*H
    std = np.sqrt(2.0 / (batch_size * hidden_size + 2 * hidden_size))
    k1, k2 = jax.random.split(key)
    h0 = std * jax.random.normal(k1, (2, batch_size, hidden_size), jnp.float32)
    c0 = std * jax.random.normal(k2, (2, batch_size, hidden_size), jnp.float32)
    return h0, c0


if __name__ == "__main__":
    B, S, D, H = 4, 16, 8, 32
    ignore_length = 4
    drop_rate = 0.1  # unused at eval time

    key = jax.random.PRNGKey(0)
    k_in, k_par, k_hid = jax.random.split(key, 3)

    inputs = jax.random.normal(k_in, (B, S, D), jnp.float32)
    seq_lens = np.array([16, 13, 10, 6], dtype=np.int32)        # >= ignore_length
    masks_np = (np.arange(S)[None, :] < seq_lens[:, None]).astype(np.float32)
    masks = jnp.asarray(masks_np)

    params = init_params(k_par, D, H)
    h0, c0 = init_hidden_state(k_hid, B, H)

    output, flag = bilstm_forward(inputs, masks, ignore_length, params, h0, c0,
                                  time_chunk=32, unroll=8)

    # pad_packed_sequence pads only up to the longest sequence in the batch.
    max_len = int(masks_np[:, ignore_length:].sum(1).max()) + ignore_length
    output = output[:, :max_len]
    output = jax.block_until_ready(output)

    assert output.shape == (B, max_len, 2 * H), output.shape
    assert flag == 1
    out_np = np.asarray(output)
    assert np.all(np.isfinite(out_np))

    # padded positions must be exactly zero (pad_packed_sequence semantics)
    pad_mask = (np.arange(max_len)[None, :] >= seq_lens[:, None])
    assert float(np.abs(out_np * pad_mask[:, :, None]).max()) == 0.0

    # numerical check against a plain float64 LSTM reference
    def _sigmoid(v):
        return 1.0 / (1.0 + np.exp(-v))

    def _ref_dir(x, lens, w_ih, w_hh, b, h0d, c0d, reverse):
        out = np.zeros((B, S, H), np.float64)
        for bi in range(B):
            h = h0d[bi].astype(np.float64).copy()
            c = c0d[bi].astype(np.float64).copy()
            L = int(lens[bi])
            ts = range(L - 1, -1, -1) if reverse else range(L)
            for t in ts:
                g = x[bi, t] @ w_ih + h @ w_hh + b
                i, f = _sigmoid(g[:H]), _sigmoid(g[H:2 * H])
                gg, o = np.tanh(g[2 * H:3 * H]), _sigmoid(g[3 * H:])
                c = f * c + i * gg
                h = o * np.tanh(c)
                out[bi, t] = h
        return out

    x_np = np.asarray(inputs, np.float64)
    rank = np.argsort(np.argsort(-seq_lens, kind="stable"), kind="stable")
    h0_np, c0_np = np.asarray(h0, np.float64), np.asarray(c0, np.float64)
    ref_f = _ref_dir(x_np, seq_lens, np.asarray(params["w_ih_f"], np.float64),
                     np.asarray(params["w_hh_f"], np.float64),
                     np.asarray(params["b_f"], np.float64)[0],
                     h0_np[0][rank], c0_np[0][rank], reverse=False)
    ref_b = _ref_dir(x_np, seq_lens, np.asarray(params["w_ih_b"], np.float64),
                     np.asarray(params["w_hh_b"], np.float64),
                     np.asarray(params["b_b"], np.float64)[0],
                     h0_np[1][rank], c0_np[1][rank], reverse=True)
    ref = np.concatenate([ref_f, ref_b], axis=-1)[:, :max_len]
    err = float(np.abs(ref - out_np).max())
    assert err < 5e-2, err

    print("KERNEL_OK")
</pallas_src>

<mosaic_0001>
module attributes {stable_mosaic.version = 11 : i64} {
  func.func @_bilstm_kernel(%arg0: i32, %arg1: i32, %arg2: memref<8x1xi32, #tpu.memory_space<vmem>>, %arg3: memref<1x32x8x512xbf16, #tpu.memory_space<vmem>>, %arg4: memref<1x128x512xbf16, #tpu.memory_space<vmem>>, %arg5: memref<1x8x128xf32, #tpu.memory_space<vmem>>, %arg6: memref<1x8x128xf32, #tpu.memory_space<vmem>>, %arg7: memref<1x32x8x128xf32, #tpu.memory_space<vmem>>, %arg8: memref<8x128xf32, #tpu.memory_space<vmem>>, %arg9: memref<8x128xf32, #tpu.memory_space<vmem>>) attributes {dimension_semantics = [#tpu.dimension_semantics<parallel>, #tpu.dimension_semantics<arbitrary>], iteration_bounds = array<i64: 2, 1>, scalar_prefetch = 0 : i64, scratch_operands = 2 : i64, tpu.core_type = #tpu.core_type<tc>, window_params = [{pipeline_mode = #tpu.pipeline_mode<synchronous>, transform_indices = @transform_0, window_bounds = array<i64: 8, 1>}, {transform_indices = @transform_1, window_bounds = array<i64: 1, 32, 8, 512>}, {transform_indices = @transform_2, window_bounds = array<i64: 1, 128, 512>}, {transform_indices = @transform_3, window_bounds = array<i64: 1, 8, 128>}, {transform_indices = @transform_4, window_bounds = array<i64: 1, 8, 128>}, {transform_indices = @transform_5, window_bounds = array<i64: 1, 32, 8, 128>}]} {
    %c0_i32 = arith.constant 0 : i32
    %0 = arith.cmpi eq, %arg1, %c0_i32 : i32
    %1 = arith.extui %0 : i1 to i32
    %c0_i32_0 = arith.constant 0 : i32
    %2 = arith.cmpi ne, %1, %c0_i32_0 : i32
    scf.if %2 {
      %c0_5 = arith.constant 0 : index
      %c0_6 = arith.constant 0 : index
      %c0_7 = arith.constant 0 : index
      %10 = vector.load %arg5[%c0_5, %c0_6, %c0_7] : memref<1x8x128xf32, #tpu.memory_space<vmem>>, vector<1x8x128xf32>
      %11 = vector.shape_cast %10 : vector<1x8x128xf32> to vector<8x128xf32>
      %c0_8 = arith.constant 0 : index
      %c0_9 = arith.constant 0 : index
      %12 = vector.load %arg8[%c0_8, %c0_9] : memref<8x128xf32, #tpu.memory_space<vmem>>, vector<8x128xf32>
      tpu.vector_store %arg8[%c0_8, %c0_9], %11 {strides = array<i32>} : memref<8x128xf32, #tpu.memory_space<vmem>>, vector<8x128xf32>,
      %c0_10 = arith.constant 0 : index
      %c0_11 = arith.constant 0 : index
      %c0_12 = arith.constant 0 : index
      %13 = vector.load %arg6[%c0_10, %c0_11, %c0_12] : memref<1x8x128xf32, #tpu.memory_space<vmem>>, vector<1x8x128xf32>
      %14 = vector.shape_cast %13 : vector<1x8x128xf32> to vector<8x128xf32>
      %c0_13 = arith.constant 0 : index
      %c0_14 = arith.constant 0 : index
      %15 = vector.load %arg9[%c0_13, %c0_14] : memref<8x128xf32, #tpu.memory_space<vmem>>, vector<8x128xf32>
      tpu.vector_store %arg9[%c0_13, %c0_14], %14 {strides = array<i32>} : memref<8x128xf32, #tpu.memory_space<vmem>>, vector<8x128xf32>,
    } else {
    }
    %c0 = arith.constant 0 : index
    %c0_1 = arith.constant 0 : index
    %3 = vector.load %arg2[%c0, %c0_1] : memref<8x1xi32, #tpu.memory_space<vmem>>, vector<8x1xi32>
    %c0_i32_2 = arith.constant 0 : i32
    %4 = arith.cmpi eq, %arg0, %c0_i32_2 : i32
    %5 = arith.extui %4 : i1 to i32
    %c0_i32_3 = arith.constant 0 : i32
    %6 = arith.cmpi ne, %5, %c0_i32_3 : i32
    scf.if %6 {
      %c32_i32 = arith.constant 32 : i32
      %10 = arith.muli %arg1, %c32_i32 : i32
      %c0_5 = arith.constant 0 : index
      %c0_6 = arith.constant 0 : index
      %11 = vector.load %arg8[%c0_5, %c0_6] : memref<8x128xf32, #tpu.memory_space<vmem>>, vector<8x128xf32>
      %c0_7 = arith.constant 0 : index
      %c0_8 = arith.constant 0 : index
      %12 = vector.load %arg9[%c0_7, %c0_8] : memref<8x128xf32, #tpu.memory_space<vmem>>, vector<8x128xf32>
      %c0_i32_9 = arith.constant 0 : i32
      %c4_i32 = arith.constant 4 : i32
      %13 = arith.addi %c0_i32_9, %c4_i32 : i32
      %c1_i32_10 = arith.constant 1 : i32
      %14:2 = scf.for %arg10 = %c0_i32_9 to %13 step %c1_i32_10 iter_args(%arg11 = %11, %arg12 = %12) -> (vector<8x128xf32>, vector<8x128xf32>)  : i32 {
        %c8_i32 = arith.constant 8 : i32
        %17 = arith.muli %arg10, %c8_i32 : i32
        %18 = tpu.assume_multiple %17, 8 : i32
        %c0_i32_16 = arith.constant 0 : i32
        %19 = arith.addi %18, %c0_i32_16 : i32
        %c0_17 = arith.constant 0 : index
        %20 = arith.index_cast %19 : i32 to index
        %c0_18 = arith.constant 0 : index
        %c0_19 = arith.constant 0 : index
        %21 = vector.load %arg3[%c0_17, %20, %c0_18, %c0_19] : memref<1x32x8x512xbf16, #tpu.memory_space<vmem>>, vector<1x1x8x512xbf16>
        %22 = vector.shape_cast %21 : vector<1x1x8x512xbf16> to vector<8x512xbf16>
        %23 = arith.extf %22 : vector<8x512xbf16> to vector<8x512xf32>
        %24 = arith.truncf %arg11 : vector<8x128xf32> to vector<8x128xbf16>
        %c0_20 = arith.constant 0 : index
        %c0_21 = arith.constant 0 : index
        %c0_22 = arith.constant 0 : index
        %25 = vector.load %arg4[%c0_20, %c0_21, %c0_22] : memref<1x128x512xbf16, #tpu.memory_space<vmem>>, vector<1x128x512xbf16>
        %26 = vector.shape_cast %25 : vector<1x128x512xbf16> to vector<128x512xbf16>
        %cst = arith.constant dense<0.000000e+00> : vector<8x512xf32>
        %27 = tpu.matmul %24, %26, %cst {dimension_numbers = #tpu.dot_dimension_numbers<[1], [0], [0], [1], [0, 0, 1, 1], [], []>} : vector<8x128xbf16>, vector<128x512xbf16>, vector<8x512xf32> -> vector<8x512xf32>
        %28 = arith.addf %23, %27 : vector<8x512xf32>
        %29 = vector.extract_strided_slice %28 {offsets = [0, 0], sizes = [8, 384], strides = [1, 1]} : vector<8x512xf32> to vector<8x384xf32>
        %30 = arith.negf %29 : vector<8x384xf32>
        %31 = math.exp %30 : vector<8x384xf32>
        %cst_23 = arith.constant 1.000000e+00 : f32
        %32 = vector.broadcast %cst_23 : f32 to vector<8x384xf32>
        %33 = arith.addf %32, %31 : vector<8x384xf32>
        %34 = arith.divf %32, %33 : vector<8x384xf32>
        %35 = vector.extract_strided_slice %28 {offsets = [0, 384], sizes = [8, 128], strides = [1, 1]} : vector<8x512xf32> to vector<8x128xf32>
        %36 = math.tanh %35 : vector<8x128xf32>
        %37 = vector.extract_strided_slice %34 {offsets = [0, 0], sizes = [8, 128], strides = [1, 1]} : vector<8x384xf32> to vector<8x128xf32>
        %38 = vector.extract_strided_slice %34 {offsets = [0, 128], sizes = [8, 128], strides = [1, 1]} : vector<8x384xf32> to vector<8x128xf32>
        %39 = vector.extract_strided_slice %34 {offsets = [0, 256], sizes = [8, 128], strides = [1, 1]} : vector<8x384xf32> to vector<8x128xf32>
        %40 = arith.mulf %38, %arg12 : vector<8x128xf32>
        %41 = arith.mulf %37, %36 : vector<8x128xf32>
        %42 = arith.addf %40, %41 : vector<8x128xf32>
        %43 = math.tanh %42 : vector<8x128xf32>
        %44 = arith.mulf %39, %43 : vector<8x128xf32>
        %45 = arith.addi %10, %19 : i32
        %46 = vector.broadcast %45 : i32 to vector<8x1xi32>
        %47 = arith.cmpi slt, %46, %3 : vector<8x1xi32>
        %cst_24 = arith.constant 0.000000e+00 : f32
        %48 = vector.shape_cast %47 : vector<8x1xi1> to vector<8x1xi1>
        %49 = vector.broadcast %48 : vector<8x1xi1> to vector<8x128xi1>
        %50 = vector.broadcast %cst_24 : f32 to vector<8x128xf32>
        %51 = arith.select %49, %44, %50 : vector<8x128xi1>, vector<8x128xf32>
        %c0_25 = arith.constant 0 : index
        %52 = arith.index_cast %19 : i32 to index
        %c0_26 = arith.constant 0 : index
        %c0_27 = arith.constant 0 : index
        %53 = vector.load %arg7[%c0_25, %52, %c0_26, %c0_27] : memref<1x32x8x128xf32, #tpu.memory_space<vmem>>, vector<1x1x8x128xf32>
        %54 = vector.shape_cast %53 : vector<1x1x8x128xf32> to vector<8x128xf32>
        %55 = vector.shape_cast %51 : vector<8x128xf32> to vector<1x1x8x128xf32>
        tpu.vector_store %arg7[%c0_25, %52, %c0_26, %c0_27], %55 {strides = array<i32>} : memref<1x32x8x128xf32, #tpu.memory_space<vmem>>, vector<1x1x8x128xf32>,
        %56 = vector.shape_cast %47 : vector<8x1xi1> to vector<8x1xi1>
        %57 = vector.broadcast %56 : vector<8x1xi1> to vector<8x128xi1>
        %58 = arith.select %57, %44, %arg11 : vector<8x128xi1>, vector<8x128xf32>
        %59 = vector.shape_cast %47 : vector<8x1xi1> to vector<8x1xi1>
        %60 = vector.broadcast %59 : vector<8x1xi1> to vector<8x128xi1>
        %61 = arith.select %60, %42, %arg12 : vector<8x128xi1>, vector<8x128xf32>
        %c1_i32_28 = arith.constant 1 : i32
        %62 = arith.addi %18, %c1_i32_28 : i32
        %c0_29 = arith.constant 0 : index
        %63 = arith.index_cast %62 : i32 to index
        %c0_30 = arith.constant 0 : index
        %c0_31 = arith.constant 0 : index
        %64 = vector.load %arg3[%c0_29, %63, %c0_30, %c0_31] : memref<1x32x8x512xbf16, #tpu.memory_space<vmem>>, vector<1x1x8x512xbf16>
        %65 = vector.shape_cast %64 : vector<1x1x8x512xbf16> to vector<8x512xbf16>
        %66 = arith.extf %65 : vector<8x512xbf16> to vector<8x512xf32>
        %67 = arith.truncf %58 : vector<8x128xf32> to vector<8x128xbf16>
        %c0_32 = arith.constant 0 : index
        %c0_33 = arith.constant 0 : index
        %c0_34 = arith.constant 0 : index
        %68 = vector.load %arg4[%c0_32, %c0_33, %c0_34] : memref<1x128x512xbf16, #tpu.memory_space<vmem>>, vector<1x128x512xbf16>
        %69 = vector.shape_cast %68 : vector<1x128x512xbf16> to vector<128x512xbf16>
        %cst_35 = arith.constant dense<0.000000e+00> : vector<8x512xf32>
        %70 = tpu.matmul %67, %69, %cst_35 {dimension_numbers = #tpu.dot_dimension_numbers<[1], [0], [0], [1], [0, 0, 1, 1], [], []>} : vector<8x128xbf16>, vector<128x512xbf16>, vector<8x512xf32> -> vector<8x512xf32>
        %71 = arith.addf %66, %70 : vector<8x512xf32>
        %72 = vector.extract_strided_slice %71 {offsets = [0, 0], sizes = [8, 384], strides = [1, 1]} : vector<8x512xf32> to vector<8x384xf32>
        %73 = arith.negf %72 : vector<8x384xf32>
        %74 = math.exp %73 : vector<8x384xf32>
        %cst_36 = arith.constant 1.000000e+00 : f32
        %75 = vector.broadcast %cst_36 : f32 to vector<8x384xf32>
        %76 = arith.addf %75, %74 : vector<8x384xf32>
        %77 = arith.divf %75, %76 : vector<8x384xf32>
        %78 = vector.extract_strided_slice %71 {offsets = [0, 384], sizes = [8, 128], strides = [1, 1]} : vector<8x512xf32> to vector<8x128xf32>
        %79 = math.tanh %78 : vector<8x128xf32>
        %80 = vector.extract_strided_slice %77 {offsets = [0, 0], sizes = [8, 128], strides = [1, 1]} : vector<8x384xf32> to vector<8x128xf32>
        %81 = vector.extract_strided_slice %77 {offsets = [0, 128], sizes = [8, 128], strides = [1, 1]} : vector<8x384xf32> to vector<8x128xf32>
        %82 = vector.extract_strided_slice %77 {offsets = [0, 256], sizes = [8, 128], strides = [1, 1]} : vector<8x384xf32> to vector<8x128xf32>
        %83 = arith.mulf %81, %61 : vector<8x128xf32>
        %84 = arith.mulf %80, %79 : vector<8x128xf32>
        %85 = arith.addf %83, %84 : vector<8x128xf32>
        %86 = math.tanh %85 : vector<8x128xf32>
        %87 = arith.mulf %82, %86 : vector<8x128xf32>
        %88 = arith.addi %10, %62 : i32
        %89 = vector.broadcast %88 : i32 to vector<8x1xi32>
        %90 = arith.cmpi slt, %89, %3 : vector<8x1xi32>
        %cst_37 = arith.constant 0.000000e+00 : f32
        %91 = vector.shape_cast %90 : vector<8x1xi1> to vector<8x1xi1>
        %92 = vector.broadcast %91 : vector<8x1xi1> to vector<8x128xi1>
        %93 = vector.broadcast %cst_37 : f32 to vector<8x128xf32>
        %94 = arith.select %92, %87, %93 : vector<8x128xi1>, vector<8x128xf32>
        %c0_38 = arith.constant 0 : index
        %95 = arith.index_cast %62 : i32 to index
        %c0_39 = arith.constant 0 : index
        %c0_40 = arith.constant 0 : index
        %96 = vector.load %arg7[%c0_38, %95, %c0_39, %c0_40] : memref<1x32x8x128xf32, #tpu.memory_space<vmem>>, vector<1x1x8x128xf32>
        %97 = vector.shape_cast %96 : vector<1x1x8x128xf32> to vector<8x128xf32>
        %98 = vector.shape_cast %94 : vector<8x128xf32> to vector<1x1x8x128xf32>
        tpu.vector_store %arg7[%c0_38, %95, %c0_39, %c0_40], %98 {strides = array<i32>} : memref<1x32x8x128xf32, #tpu.memory_space<vmem>>, vector<1x1x8x128xf32>,
        %99 = vector.shape_cast %90 : vector<8x1xi1> to vector<8x1xi1>
        %100 = vector.broadcast %99 : vector<8x1xi1> to vector<8x128xi1>
        %101 = arith.select %100, %87, %58 : vector<8x128xi1>, vector<8x128xf32>
        %102 = vector.shape_cast %90 : vector<8x1xi1> to vector<8x1xi1>
        %103 = vector.broadcast %102 : vector<8x1xi1> to vector<8x128xi1>
        %104 = arith.select %103, %85, %61 : vector<8x128xi1>, vector<8x128xf32>
        %c2_i32 = arith.constant 2 : i32
        %105 = arith.addi %18, %c2_i32 : i32
        %c0_41 = arith.constant 0 : index
        %106 = arith.index_cast %105 : i32 to index
        %c0_42 = arith.constant 0 : index
        %c0_43 = arith.constant 0 : index
        %107 = vector.load %arg3[%c0_41, %106, %c0_42, %c0_43] : memref<1x32x8x512xbf16, #tpu.memory_space<vmem>>, vector<1x1x8x512xbf16>
        %108 = vector.shape_cast %107 : vector<1x1x8x512xbf16> to vector<8x512xbf16>
        %109 = arith.extf %108 : vector<8x512xbf16> to vector<8x512xf32>
        %110 = arith.truncf %101 : vector<8x128xf32> to vector<8x128xbf16>
        %c0_44 = arith.constant 0 : index
        %c0_45 = arith.constant 0 : index
        %c0_46 = arith.constant 0 : index
        %111 = vector.load %arg4[%c0_44, %c0_45, %c0_46] : memref<1x128x512xbf16, #tpu.memory_space<vmem>>, vector<1x128x512xbf16>
        %112 = vector.shape_cast %111 : vector<1x128x512xbf16> to vector<128x512xbf16>
        %cst_47 = arith.constant dense<0.000000e+00> : vector<8x512xf32>
        %113 = tpu.matmul %110, %112, %cst_47 {dimension_numbers = #tpu.dot_dimension_numbers<[1], [0], [0], [1], [0, 0, 1, 1], [], []>} : vector<8x128xbf16>, vector<128x512xbf16>, vector<8x512xf32> -> vector<8x512xf32>
        %114 = arith.addf %109, %113 : vector<8x512xf32>
        %115 = vector.extract_strided_slice %114 {offsets = [0, 0], sizes = [8, 384], strides = [1, 1]} : vector<8x512xf32> to vector<8x384xf32>
        %116 = arith.negf %115 : vector<8x384xf32>
        %117 = math.exp %116 : vector<8x384xf32>
        %cst_48 = arith.constant 1.000000e+00 : f32
        %118 = vector.broadcast %cst_48 : f32 to vector<8x384xf32>
        %119 = arith.addf %118, %117 : vector<8x384xf32>
        %120 = arith.divf %118, %119 : vector<8x384xf32>
        %121 = vector.extract_strided_slice %114 {offsets = [0, 384], sizes = [8, 128], strides = [1, 1]} : vector<8x512xf32> to vector<8x128xf32>
        %122 = math.tanh %121 : vector<8x128xf32>
        %123 = vector.extract_strided_slice %120 {offsets = [0, 0], sizes = [8, 128], strides = [1, 1]} : vector<8x384xf32> to vector<8x128xf32>
        %124 = vector.extract_strided_slice %120 {offsets = [0, 128], sizes = [8, 128], strides = [1, 1]} : vector<8x384xf32> to vector<8x128xf32>
        %125 = vector.extract_strided_slice %120 {offsets = [0, 256], sizes = [8, 128], strides = [1, 1]} : vector<8x384xf32> to vector<8x128xf32>
        %126 = arith.mulf %124, %104 : vector<8x128xf32>
        %127 = arith.mulf %123, %122 : vector<8x128xf32>
        %128 = arith.addf %126, %127 : vector<8x128xf32>
        %129 = math.tanh %128 : vector<8x128xf32>
        %130 = arith.mulf %125, %129 : vector<8x128xf32>
        %131 = arith.addi %10, %105 : i32
        %132 = vector.broadcast %131 : i32 to vector<8x1xi32>
        %133 = arith.cmpi slt, %132, %3 : vector<8x1xi32>
        %cst_49 = arith.constant 0.000000e+00 : f32
        %134 = vector.shape_cast %133 : vector<8x1xi1> to vector<8x1xi1>
        %135 = vector.broadcast %134 : vector<8x1xi1> to vector<8x128xi1>
        %136 = vector.broadcast %cst_49 : f32 to vector<8x128xf32>
        %137 = arith.select %135, %130, %136 : vector<8x128xi1>, vector<8x128xf32>
        %c0_50 = arith.constant 0 : index
        %138 = arith.index_cast %105 : i32 to index
        %c0_51 = arith.constant 0 : index
        %c0_52 = arith.constant 0 : index
        %139 = vector.load %arg7[%c0_50, %138, %c0_51, %c0_52] : memref<1x32x8x128xf32, #tpu.memory_space<vmem>>, vector<1x1x8x128xf32>
        %140 = vector.shape_cast %139 : vector<1x1x8x128xf32> to vector<8x128xf32>
        %141 = vector.shape_cast %137 : vector<8x128xf32> to vector<1x1x8x128xf32>
        tpu.vector_store %arg7[%c0_50, %138, %c0_51, %c0_52], %141 {strides = array<i32>} : memref<1x32x8x128xf32, #tpu.memory_space<vmem>>, vector<1x1x8x128xf32>,
        %142 = vector.shape_cast %133 : vector<8x1xi1> to vector<8x1xi1>
        %143 = vector.broadcast %142 : vector<8x1xi1> to vector<8x128xi1>
        %144 = arith.select %143, %130, %101 : vector<8x128xi1>, vector<8x128xf32>
        %145 = vector.shape_cast %133 : vector<8x1xi1> to vector<8x1xi1>
        %146 = vector.broadcast %145 : vector<8x1xi1> to vector<8x128xi1>
        %147 = arith.select %146, %128, %104 : vector<8x128xi1>, vector<8x128xf32>
        %c3_i32 = arith.constant 3 : i32
        %148 = arith.addi %18, %c3_i32 : i32
        %c0_53 = arith.constant 0 : index
        %149 = arith.index_cast %148 : i32 to index
        %c0_54 = arith.constant 0 : index
        %c0_55 = arith.constant 0 : index
        %150 = vector.load %arg3[%c0_53, %149, %c0_54, %c0_55] : memref<1x32x8x512xbf16, #tpu.memory_space<vmem>>, vector<1x1x8x512xbf16>
        %151 = vector.shape_cast %150 : vector<1x1x8x512xbf16> to vector<8x512xbf16>
        %152 = arith.extf %151 : vector<8x512xbf16> to vector<8x512xf32>
        %153 = arith.truncf %144 : vector<8x128xf32> to vector<8x128xbf16>
        %c0_56 = arith.constant 0 : index
        %c0_57 = arith.constant 0 : index
        %c0_58 = arith.constant 0 : index
        %154 = vector.load %arg4[%c0_56, %c0_57, %c0_58] : memref<1x128x512xbf16, #tpu.memory_space<vmem>>, vector<1x128x512xbf16>
        %155 = vector.shape_cast %154 : vector<1x128x512xbf16> to vector<128x512xbf16>
        %cst_59 = arith.constant dense<0.000000e+00> : vector<8x512xf32>
        %156 = tpu.matmul %153, %155, %cst_59 {dimension_numbers = #tpu.dot_dimension_numbers<[1], [0], [0], [1], [0, 0, 1, 1], [], []>} : vector<8x128xbf16>, vector<128x512xbf16>, vector<8x512xf32> -> vector<8x512xf32>
        %157 = arith.addf %152, %156 : vector<8x512xf32>
        %158 = vector.extract_strided_slice %157 {offsets = [0, 0], sizes = [8, 384], strides = [1, 1]} : vector<8x512xf32> to vector<8x384xf32>
        %159 = arith.negf %158 : vector<8x384xf32>
        %160 = math.exp %159 : vector<8x384xf32>
        %cst_60 = arith.constant 1.000000e+00 : f32
        %161 = vector.broadcast %cst_60 : f32 to vector<8x384xf32>
        %162 = arith.addf %161, %160 : vector<8x384xf32>
        %163 = arith.divf %161, %162 : vector<8x384xf32>
        %164 = vector.extract_strided_slice %157 {offsets = [0, 384], sizes = [8, 128], strides = [1, 1]} : vector<8x512xf32> to vector<8x128xf32>
        %165 = math.tanh %164 : vector<8x128xf32>
        %166 = vector.extract_strided_slice %163 {offsets = [0, 0], sizes = [8, 128], strides = [1, 1]} : vector<8x384xf32> to vector<8x128xf32>
        %167 = vector.extract_strided_slice %163 {offsets = [0, 128], sizes = [8, 128], strides = [1, 1]} : vector<8x384xf32> to vector<8x128xf32>
        %168 = vector.extract_strided_slice %163 {offsets = [0, 256], sizes = [8, 128], strides = [1, 1]} : vector<8x384xf32> to vector<8x128xf32>
        %169 = arith.mulf %167, %147 : vector<8x128xf32>
        %170 = arith.mulf %166, %165 : vector<8x128xf32>
        %171 = arith.addf %169, %170 : vector<8x128xf32>
        %172 = math.tanh %171 : vector<8x128xf32>
        %173 = arith.mulf %168, %172 : vector<8x128xf32>
        %174 = arith.addi %10, %148 : i32
        %175 = vector.broadcast %174 : i32 to vector<8x1xi32>
        %176 = arith.cmpi slt, %175, %3 : vector<8x1xi32>
        %cst_61 = arith.constant 0.000000e+00 : f32
        %177 = vector.shape_cast %176 : vector<8x1xi1> to vector<8x1xi1>
        %178 = vector.broadcast %177 : vector<8x1xi1> to vector<8x128xi1>
        %179 = vector.broadcast %cst_61 : f32 to vector<8x128xf32>
        %180 = arith.select %178, %173, %179 : vector<8x128xi1>, vector<8x128xf32>
        %c0_62 = arith.constant 0 : index
        %181 = arith.index_cast %148 : i32 to index
        %c0_63 = arith.constant 0 : index
        %c0_64 = arith.constant 0 : index
        %182 = vector.load %arg7[%c0_62, %181, %c0_63, %c0_64] : memref<1x32x8x128xf32, #tpu.memory_space<vmem>>, vector<1x1x8x128xf32>
        %183 = vector.shape_cast %182 : vector<1x1x8x128xf32> to vector<8x128xf32>
        %184 = vector.shape_cast %180 : vector<8x128xf32> to vector<1x1x8x128xf32>
        tpu.vector_store %arg7[%c0_62, %181, %c0_63, %c0_64], %184 {strides = array<i32>} : memref<1x32x8x128xf32, #tpu.memory_space<vmem>>, vector<1x1x8x128xf32>,
        %185 = vector.shape_cast %176 : vector<8x1xi1> to vector<8x1xi1>
        %186 = vector.broadcast %185 : vector<8x1xi1> to vector<8x128xi1>
        %187 = arith.select %186, %173, %144 : vector<8x128xi1>, vector<8x128xf32>
        %188 = vector.shape_cast %176 : vector<8x1xi1> to vector<8x1xi1>
        %189 = vector.broadcast %188 : vector<8x1xi1> to vector<8x128xi1>
        %190 = arith.select %189, %171, %147 : vector<8x128xi1>, vector<8x128xf32>
        %c4_i32_65 = arith.constant 4 : i32
        %191 = arith.addi %18, %c4_i32_65 : i32
        %c0_66 = arith.constant 0 : index
        %192 = arith.index_cast %191 : i32 to index
        %c0_67 = arith.constant 0 : index
        %c0_68 = arith.constant 0 : index
        %193 = vector.load %arg3[%c0_66, %192, %c0_67, %c0_68] : memref<1x32x8x512xbf16, #tpu.memory_space<vmem>>, vector<1x1x8x512xbf16>
        %194 = vector.shape_cast %193 : vector<1x1x8x512xbf16> to vector<8x512xbf16>
        %195 = arith.extf %194 : vector<8x512xbf16> to vector<8x512xf32>
        %196 = arith.truncf %187 : vector<8x128xf32> to vector<8x128xbf16>
        %c0_69 = arith.constant 0 : index
        %c0_70 = arith.constant 0 : index
        %c0_71 = arith.constant 0 : index
        %197 = vector.load %arg4[%c0_69, %c0_70, %c0_71] : memref<1x128x512xbf16, #tpu.memory_space<vmem>>, vector<1x128x512xbf16>
        %198 = vector.shape_cast %197 : vector<1x128x512xbf16> to vector<128x512xbf16>
        %cst_72 = arith.constant dense<0.000000e+00> : vector<8x512xf32>
        %199 = tpu.matmul %196, %198, %cst_72 {dimension_numbers = #tpu.dot_dimension_numbers<[1], [0], [0], [1], [0, 0, 1, 1], [], []>} : vector<8x128xbf16>, vector<128x512xbf16>, vector<8x512xf32> -> vector<8x512xf32>
        %200 = arith.addf %195, %199 : vector<8x512xf32>
        %201 = vector.extract_strided_slice %200 {offsets = [0, 0], sizes = [8, 384], strides = [1, 1]} : vector<8x512xf32> to vector<8x384xf32>
        %202 = arith.negf %201 : vector<8x384xf32>
        %203 = math.exp %202 : vector<8x384xf32>
        %cst_73 = arith.constant 1.000000e+00 : f32
        %204 = vector.broadcast %cst_73 : f32 to vector<8x384xf32>
        %205 = arith.addf %204, %203 : vector<8x384xf32>
        %206 = arith.divf %204, %205 : vector<8x384xf32>
        %207 = vector.extract_strided_slice %200 {offsets = [0, 384], sizes = [8, 128], strides = [1, 1]} : vector<8x512xf32> to vector<8x128xf32>
        %208 = math.tanh %207 : vector<8x128xf32>
        %209 = vector.extract_strided_slice %206 {offsets = [0, 0], sizes = [8, 128], strides = [1, 1]} : vector<8x384xf32> to vector<8x128xf32>
        %210 = vector.extract_strided_slice %206 {offsets = [0, 128], sizes = [8, 128], strides = [1, 1]} : vector<8x384xf32> to vector<8x128xf32>
        %211 = vector.extract_strided_slice %206 {offsets = [0, 256], sizes = [8, 128], strides = [1, 1]} : vector<8x384xf32> to vector<8x128xf32>
        %212 = arith.mulf %210, %190 : vector<8x128xf32>
        %213 = arith.mulf %209, %208 : vector<8x128xf32>
        %214 = arith.addf %212, %213 : vector<8x128xf32>
        %215 = math.tanh %214 : vector<8x128xf32>
        %216 = arith.mulf %211, %215 : vector<8x128xf32>
        %217 = arith.addi %10, %191 : i32
        %218 = vector.broadcast %217 : i32 to vector<8x1xi32>
        %219 = arith.cmpi slt, %218, %3 : vector<8x1xi32>
        %cst_74 = arith.constant 0.000000e+00 : f32
        %220 = vector.shape_cast %219 : vector<8x1xi1> to vector<8x1xi1>
        %221 = vector.broadcast %220 : vector<8x1xi1> to vector<8x128xi1>
        %222 = vector.broadcast %cst_74 : f32 to vector<8x128xf32>
        %223 = arith.select %221, %216, %222 : vector<8x128xi1>, vector<8x128xf32>
        %c0_75 = arith.constant 0 : index
        %224 = arith.index_cast %191 : i32 to index
        %c0_76 = arith.constant 0 : index
        %c0_77 = arith.constant 0 : index
        %225 = vector.load %arg7[%c0_75, %224, %c0_76, %c0_77] : memref<1x32x8x128xf32, #tpu.memory_space<vmem>>, vector<1x1x8x128xf32>
        %226 = vector.shape_cast %225 : vector<1x1x8x128xf32> to vector<8x128xf32>
        %227 = vector.shape_cast %223 : vector<8x128xf32> to vector<1x1x8x128xf32>
        tpu.vector_store %arg7[%c0_75, %224, %c0_76, %c0_77], %227 {strides = array<i32>} : memref<1x32x8x128xf32, #tpu.memory_space<vmem>>, vector<1x1x8x128xf32>,
        %228 = vector.shape_cast %219 : vector<8x1xi1> to vector<8x1xi1>
        %229 = vector.broadcast %228 : vector<8x1xi1> to vector<8x128xi1>
        %230 = arith.select %229, %216, %187 : vector<8x128xi1>, vector<8x128xf32>
        %231 = vector.shape_cast %219 : vector<8x1xi1> to vector<8x1xi1>
        %232 = vector.broadcast %231 : vector<8x1xi1> to vector<8x128xi1>
        %233 = arith.select %232, %214, %190 : vector<8x128xi1>, vector<8x128xf32>
        %c5_i32 = arith.constant 5 : i32
        %234 = arith.addi %18, %c5_i32 : i32
        %c0_78 = arith.constant 0 : index
        %235 = arith.index_cast %234 : i32 to index
        %c0_79 = arith.constant 0 : index
        %c0_80 = arith.constant 0 : index
        %236 = vector.load %arg3[%c0_78, %235, %c0_79, %c0_80] : memref<1x32x8x512xbf16, #tpu.memory_space<vmem>>, vector<1x1x8x512xbf16>
        %237 = vector.shape_cast %236 : vector<1x1x8x512xbf16> to vector<8x512xbf16>
        %238 = arith.extf %237 : vector<8x512xbf16> to vector<8x512xf32>
        %239 = arith.truncf %230 : vector<8x128xf32> to vector<8x128xbf16>
        %c0_81 = arith.constant 0 : index
        %c0_82 = arith.constant 0 : index
        %c0_83 = arith.constant 0 : index
        %240 = vector.load %arg4[%c0_81, %c0_82, %c0_83] : memref<1x128x512xbf16, #tpu.memory_space<vmem>>, vector<1x128x512xbf16>
        %241 = vector.shape_cast %240 : vector<1x128x512xbf16> to vector<128x512xbf16>
        %cst_84 = arith.constant dense<0.000000e+00> : vector<8x512xf32>
        %242 = tpu.matmul %239, %241, %cst_84 {dimension_numbers = #tpu.dot_dimension_numbers<[1], [0], [0], [1], [0, 0, 1, 1], [], []>} : vector<8x128xbf16>, vector<128x512xbf16>, vector<8x512xf32> -> vector<8x512xf32>
        %243 = arith.addf %238, %242 : vector<8x512xf32>
        %244 = vector.extract_strided_slice %243 {offsets = [0, 0], sizes = [8, 384], strides = [1, 1]} : vector<8x512xf32> to vector<8x384xf32>
        %245 = arith.negf %244 : vector<8x384xf32>
        %246 = math.exp %245 : vector<8x384xf32>
        %cst_85 = arith.constant 1.000000e+00 : f32
        %247 = vector.broadcast %cst_85 : f32 to vector<8x384xf32>
        %248 = arith.addf %247, %246 : vector<8x384xf32>
        %249 = arith.divf %247, %248 : vector<8x384xf32>
        %250 = vector.extract_strided_slice %243 {offsets = [0, 384], sizes = [8, 128], strides = [1, 1]} : vector<8x512xf32> to vector<8x128xf32>
        %251 = math.tanh %250 : vector<8x128xf32>
        %252 = vector.extract_strided_slice %249 {offsets = [0, 0], sizes = [8, 128], strides = [1, 1]} : vector<8x384xf32> to vector<8x128xf32>
        %253 = vector.extract_strided_slice %249 {offsets = [0, 128], sizes = [8, 128], strides = [1, 1]} : vector<8x384xf32> to vector<8x128xf32>
        %254 = vector.extract_strided_slice %249 {offsets = [0, 256], sizes = [8, 128], strides = [1, 1]} : vector<8x384xf32> to vector<8x128xf32>
        %255 = arith.mulf %253, %233 : vector<8x128xf32>
        %256 = arith.mulf %252, %251 : vector<8x128xf32>
        %257 = arith.addf %255, %256 : vector<8x128xf32>
        %258 = math.tanh %257 : vector<8x128xf32>
        %259 = arith.mulf %254, %258 : vector<8x128xf32>
        %260 = arith.addi %10, %234 : i32
        %261 = vector.broadcast %260 : i32 to vector<8x1xi32>
        %262 = arith.cmpi slt, %261, %3 : vector<8x1xi32>
        %cst_86 = arith.constant 0.000000e+00 : f32
        %263 = vector.shape_cast %262 : vector<8x1xi1> to vector<8x1xi1>
        %264 = vector.broadcast %263 : vector<8x1xi1> to vector<8x128xi1>
        %265 = vector.broadcast %cst_86 : f32 to vector<8x128xf32>
        %266 = arith.select %264, %259, %265 : vector<8x128xi1>, vector<8x128xf32>
        %c0_87 = arith.constant 0 : index
        %267 = arith.index_cast %234 : i32 to index
        %c0_88 = arith.constant 0 : index
        %c0_89 = arith.constant 0 : index
        %268 = vector.load %arg7[%c0_87, %267, %c0_88, %c0_89] : memref<1x32x8x128xf32, #tpu.memory_space<vmem>>, vector<1x1x8x128xf32>
        %269 = vector.shape_cast %268 : vector<1x1x8x128xf32> to vector<8x128xf32>
        %270 = vector.shape_cast %266 : vector<8x128xf32> to vector<1x1x8x128xf32>
        tpu.vector_store %arg7[%c0_87, %267, %c0_88, %c0_89], %270 {strides = array<i32>} : memref<1x32x8x128xf32, #tpu.memory_space<vmem>>, vector<1x1x8x128xf32>,
        %271 = vector.shape_cast %262 : vector<8x1xi1> to vector<8x1xi1>
        %272 = vector.broadcast %271 : vector<8x1xi1> to vector<8x128xi1>
        %273 = arith.select %272, %259, %230 : vector<8x128xi1>, vector<8x128xf32>
        %274 = vector.shape_cast %262 : vector<8x1xi1> to vector<8x1xi1>
        %275 = vector.broadcast %274 : vector<8x1xi1> to vector<8x128xi1>
        %276 = arith.select %275, %257, %233 : vector<8x128xi1>, vector<8x128xf32>
        %c6_i32 = arith.constant 6 : i32
        %277 = arith.addi %18, %c6_i32 : i32
        %c0_90 = arith.constant 0 : index
        %278 = arith.index_cast %277 : i32 to index
        %c0_91 = arith.constant 0 : index
        %c0_92 = arith.constant 0 : index
        %279 = vector.load %arg3[%c0_90, %278, %c0_91, %c0_92] : memref<1x32x8x512xbf16, #tpu.memory_space<vmem>>, vector<1x1x8x512xbf16>
        %280 = vector.shape_cast %279 : vector<1x1x8x512xbf16> to vector<8x512xbf16>
        %281 = arith.extf %280 : vector<8x512xbf16> to vector<8x512xf32>
        %282 = arith.truncf %273 : vector<8x128xf32> to vector<8x128xbf16>
        %c0_93 = arith.constant 0 : index
        %c0_94 = arith.constant 0 : index
        %c0_95 = arith.constant 0 : index
        %283 = vector.load %arg4[%c0_93, %c0_94, %c0_95] : memref<1x128x512xbf16, #tpu.memory_space<vmem>>, vector<1x128x512xbf16>
        %284 = vector.shape_cast %283 : vector<1x128x512xbf16> to vector<128x512xbf16>
        %cst_96 = arith.constant dense<0.000000e+00> : vector<8x512xf32>
        %285 = tpu.matmul %282, %284, %cst_96 {dimension_numbers = #tpu.dot_dimension_numbers<[1], [0], [0], [1], [0, 0, 1, 1], [], []>} : vector<8x128xbf16>, vector<128x512xbf16>, vector<8x512xf32> -> vector<8x512xf32>
        %286 = arith.addf %281, %285 : vector<8x512xf32>
        %287 = vector.extract_strided_slice %286 {offsets = [0, 0], sizes = [8, 384], strides = [1, 1]} : vector<8x512xf32> to vector<8x384xf32>
        %288 = arith.negf %287 : vector<8x384xf32>
        %289 = math.exp %288 : vector<8x384xf32>
        %cst_97 = arith.constant 1.000000e+00 : f32
        %290 = vector.broadcast %cst_97 : f32 to vector<8x384xf32>
        %291 = arith.addf %290, %289 : vector<8x384xf32>
        %292 = arith.divf %290, %291 : vector<8x384xf32>
        %293 = vector.extract_strided_slice %286 {offsets = [0, 384], sizes = [8, 128], strides = [1, 1]} : vector<8x512xf32> to vector<8x128xf32>
        %294 = math.tanh %293 : vector<8x128xf32>
        %295 = vector.extract_strided_slice %292 {offsets = [0, 0], sizes = [8, 128], strides = [1, 1]} : vector<8x384xf32> to vector<8x128xf32>
        %296 = vector.extract_strided_slice %292 {offsets = [0, 128], sizes = [8, 128], strides = [1, 1]} : vector<8x384xf32> to vector<8x128xf32>
        %297 = vector.extract_strided_slice %292 {offsets = [0, 256], sizes = [8, 128], strides = [1, 1]} : vector<8x384xf32> to vector<8x128xf32>
        %298 = arith.mulf %296, %276 : vector<8x128xf32>
        %299 = arith.mulf %295, %294 : vector<8x128xf32>
        %300 = arith.addf %298, %299 : vector<8x128xf32>
        %301 = math.tanh %300 : vector<8x128xf32>
        %302 = arith.mulf %297, %301 : vector<8x128xf32>
        %303 = arith.addi %10, %277 : i32
        %304 = vector.broadcast %303 : i32 to vector<8x1xi32>
        %305 = arith.cmpi slt, %304, %3 : vector<8x1xi32>
        %cst_98 = arith.constant 0.000000e+00 : f32
        %306 = vector.shape_cast %305 : vector<8x1xi1> to vector<8x1xi1>
        %307 = vector.broadcast %306 : vector<8x1xi1> to vector<8x128xi1>
        %308 = vector.broadcast %cst_98 : f32 to vector<8x128xf32>
        %309 = arith.select %307, %302, %308 : vector<8x128xi1>, vector<8x128xf32>
        %c0_99 = arith.constant 0 : index
        %310 = arith.index_cast %277 : i32 to index
        %c0_100 = arith.constant 0 : index
        %c0_101 = arith.constant 0 : index
        %311 = vector.load %arg7[%c0_99, %310, %c0_100, %c0_101] : memref<1x32x8x128xf32, #tpu.memory_space<vmem>>, vector<1x1x8x128xf32>
        %312 = vector.shape_cast %311 : vector<1x1x8x128xf32> to vector<8x128xf32>
        %313 = vector.shape_cast %309 : vector<8x128xf32> to vector<1x1x8x128xf32>
        tpu.vector_store %arg7[%c0_99, %310, %c0_100, %c0_101], %313 {strides = array<i32>} : memref<1x32x8x128xf32, #tpu.memory_space<vmem>>, vector<1x1x8x128xf32>,
        %314 = vector.shape_cast %305 : vector<8x1xi1> to vector<8x1xi1>
        %315 = vector.broadcast %314 : vector<8x1xi1> to vector<8x128xi1>
        %316 = arith.select %315, %302, %273 : vector<8x128xi1>, vector<8x128xf32>
        %317 = vector.shape_cast %305 : vector<8x1xi1> to vector<8x1xi1>
        %318 = vector.broadcast %317 : vector<8x1xi1> to vector<8x128xi1>
        %319 = arith.select %318, %300, %276 : vector<8x128xi1>, vector<8x128xf32>
        %c7_i32 = arith.constant 7 : i32
        %320 = arith.addi %18, %c7_i32 : i32
        %c0_102 = arith.constant 0 : index
        %321 = arith.index_cast %320 : i32 to index
        %c0_103 = arith.constant 0 : index
        %c0_104 = arith.constant 0 : index
        %322 = vector.load %arg3[%c0_102, %321, %c0_103, %c0_104] : memref<1x32x8x512xbf16, #tpu.memory_space<vmem>>, vector<1x1x8x512xbf16>
        %323 = vector.shape_cast %322 : vector<1x1x8x512xbf16> to vector<8x512xbf16>
        %324 = arith.extf %323 : vector<8x512xbf16> to vector<8x512xf32>
        %325 = arith.truncf %316 : vector<8x128xf32> to vector<8x128xbf16>
        %c0_105 = arith.constant 0 : index
        %c0_106 = arith.constant 0 : index
        %c0_107 = arith.constant 0 : index
        %326 = vector.load %arg4[%c0_105, %c0_106, %c0_107] : memref<1x128x512xbf16, #tpu.memory_space<vmem>>, vector<1x128x512xbf16>
        %327 = vector.shape_cast %326 : vector<1x128x512xbf16> to vector<128x512xbf16>
        %cst_108 = arith.constant dense<0.000000e+00> : vector<8x512xf32>
        %328 = tpu.matmul %325, %327, %cst_108 {dimension_numbers = #tpu.dot_dimension_numbers<[1], [0], [0], [1], [0, 0, 1, 1], [], []>} : vector<8x128xbf16>, vector<128x512xbf16>, vector<8x512xf32> -> vector<8x512xf32>
        %329 = arith.addf %324, %328 : vector<8x512xf32>
        %330 = vector.extract_strided_slice %329 {offsets = [0, 0], sizes = [8, 384], strides = [1, 1]} : vector<8x512xf32> to vector<8x384xf32>
        %331 = arith.negf %330 : vector<8x384xf32>
        %332 = math.exp %331 : vector<8x384xf32>
        %cst_109 = arith.constant 1.000000e+00 : f32
        %333 = vector.broadcast %cst_109 : f32 to vector<8x384xf32>
        %334 = arith.addf %333, %332 : vector<8x384xf32>
        %335 = arith.divf %333, %334 : vector<8x384xf32>
        %336 = vector.extract_strided_slice %329 {offsets = [0, 384], sizes = [8, 128], strides = [1, 1]} : vector<8x512xf32> to vector<8x128xf32>
        %337 = math.tanh %336 : vector<8x128xf32>
        %338 = vector.extract_strided_slice %335 {offsets = [0, 0], sizes = [8, 128], strides = [1, 1]} : vector<8x384xf32> to vector<8x128xf32>
        %339 = vector.extract_strided_slice %335 {offsets = [0, 128], sizes = [8, 128], strides = [1, 1]} : vector<8x384xf32> to vector<8x128xf32>
        %340 = vector.extract_strided_slice %335 {offsets = [0, 256], sizes = [8, 128], strides = [1, 1]} : vector<8x384xf32> to vector<8x128xf32>
        %341 = arith.mulf %339, %319 : vector<8x128xf32>
        %342 = arith.mulf %338, %337 : vector<8x128xf32>
        %343 = arith.addf %341, %342 : vector<8x128xf32>
        %344 = math.tanh %343 : vector<8x128xf32>
        %345 = arith.mulf %340, %344 : vector<8x128xf32>
        %346 = arith.addi %10, %320 : i32
        %347 = vector.broadcast %346 : i32 to vector<8x1xi32>
        %348 = arith.cmpi slt, %347, %3 : vector<8x1xi32>
        %cst_110 = arith.constant 0.000000e+00 : f32
        %349 = vector.shape_cast %348 : vector<8x1xi1> to vector<8x1xi1>
        %350 = vector.broadcast %349 : vector<8x1xi1> to vector<8x128xi1>
        %351 = vector.broadcast %cst_110 : f32 to vector<8x128xf32>
        %352 = arith.select %350, %345, %351 : vector<8x128xi1>, vector<8x128xf32>
        %c0_111 = arith.constant 0 : index
        %353 = arith.index_cast %320 : i32 to index
        %c0_112 = arith.constant 0 : index
        %c0_113 = arith.constant 0 : index
        %354 = vector.load %arg7[%c0_111, %353, %c0_112, %c0_113] : memref<1x32x8x128xf32, #tpu.memory_space<vmem>>, vector<1x1x8x128xf32>
        %355 = vector.shape_cast %354 : vector<1x1x8x128xf32> to vector<8x128xf32>
        %356 = vector.shape_cast %352 : vector<8x128xf32> to vector<1x1x8x128xf32>
        tpu.vector_store %arg7[%c0_111, %353, %c0_112, %c0_113], %356 {strides = array<i32>} : memref<1x32x8x128xf32, #tpu.memory_space<vmem>>, vector<1x1x8x128xf32>,
        %357 = vector.shape_cast %348 : vector<8x1xi1> to vector<8x1xi1>
        %358 = vector.broadcast %357 : vector<8x1xi1> to vector<8x128xi1>
        %359 = arith.select %358, %345, %316 : vector<8x128xi1>, vector<8x128xf32>
        %360 = vector.shape_cast %348 : vector<8x1xi1> to vector<8x1xi1>
        %361 = vector.broadcast %360 : vector<8x1xi1> to vector<8x128xi1>
        %362 = arith.select %361, %343, %319 : vector<8x128xi1>, vector<8x128xf32>
        scf.yield %359, %362 : vector<8x128xf32>, vector<8x128xf32>
      }
      %c4_i32_11 = arith.constant 4 : i32
      %c0_12 = arith.constant 0 : index
      %c0_13 = arith.constant 0 : index
      %15 = vector.load %arg8[%c0_12, %c0_13] : memref<8x128xf32, #tpu.memory_space<vmem>>, vector<8x128xf32>
      tpu.vector_store %arg8[%c0_12, %c0_13], %14#0 {strides = array<i32>} : memref<8x128xf32, #tpu.memory_space<vmem>>, vector<8x128xf32>,
      %c0_14 = arith.constant 0 : index
      %c0_15 = arith.constant 0 : index
      %16 = vector.load %arg9[%c0_14, %c0_15] : memref<8x128xf32, #tpu.memory_space<vmem>>, vector<8x128xf32>
      tpu.vector_store %arg9[%c0_14, %c0_15], %14#1 {strides = array<i32>} : memref<8x128xf32, #tpu.memory_space<vmem>>, vector<8x128xf32>,
    } else {
    }
    %c1_i32 = arith.constant 1 : i32
    %7 = arith.cmpi eq, %arg0, %c1_i32 : i32
    %8 = arith.extui %7 : i1 to i32
    %c0_i32_4 = arith.constant 0 : i32
    %9 = arith.cmpi ne, %8, %c0_i32_4 : i32
    scf.if %9 {
      %c0_i32_5 = arith.constant 0 : i32
      %10 = arith.subi %c0_i32_5, %arg1 : i32
      %c32_i32 = arith.constant 32 : i32
      %11 = arith.muli %10, %c32_i32 : i32
      %c0_6 = arith.constant 0 : index
      %c0_7 = arith.constant 0 : index
      %12 = vector.load %arg8[%c0_6, %c0_7] : memref<8x128xf32, #tpu.memory_space<vmem>>, vector<8x128xf32>
      %c0_8 = arith.constant 0 : index
      %c0_9 = arith.constant 0 : index
      %13 = vector.load %arg9[%c0_8, %c0_9] : memref<8x128xf32, #tpu.memory_space<vmem>>, vector<8x128xf32>
      %c0_i32_10 = arith.constant 0 : i32
      %c4_i32 = arith.constant 4 : i32
      %14 = arith.addi %c0_i32_10, %c4_i32 : i32
      %c1_i32_11 = arith.constant 1 : i32
      %15:2 = scf.for %arg10 = %c0_i32_10 to %14 step %c1_i32_11 iter_args(%arg11 = %12, %arg12 = %13) -> (vector<8x128xf32>, vector<8x128xf32>)  : i32 {
        %c8_i32 = arith.constant 8 : i32
        %18 = arith.muli %arg10, %c8_i32 : i32
        %19 = tpu.assume_multiple %18, 8 : i32
        %c0_i32_17 = arith.constant 0 : i32
        %20 = arith.addi %19, %c0_i32_17 : i32
        %c31_i32 = arith.constant 31 : i32
        %21 = arith.subi %c31_i32, %20 : i32
        %c0_18 = arith.constant 0 : index
        %22 = arith.index_cast %21 : i32 to index
        %c0_19 = arith.constant 0 : index
        %c0_20 = arith.constant 0 : index
        %23 = vector.load %arg3[%c0_18, %22, %c0_19, %c0_20] : memref<1x32x8x512xbf16, #tpu.memory_space<vmem>>, vector<1x1x8x512xbf16>
        %24 = vector.shape_cast %23 : vector<1x1x8x512xbf16> to vector<8x512xbf16>
        %25 = arith.extf %24 : vector<8x512xbf16> to vector<8x512xf32>
        %26 = arith.truncf %arg11 : vector<8x128xf32> to vector<8x128xbf16>
        %c0_21 = arith.constant 0 : index
        %c0_22 = arith.constant 0 : index
        %c0_23 = arith.constant 0 : index
        %27 = vector.load %arg4[%c0_21, %c0_22, %c0_23] : memref<1x128x512xbf16, #tpu.memory_space<vmem>>, vector<1x128x512xbf16>
        %28 = vector.shape_cast %27 : vector<1x128x512xbf16> to vector<128x512xbf16>
        %cst = arith.constant dense<0.000000e+00> : vector<8x512xf32>
        %29 = tpu.matmul %26, %28, %cst {dimension_numbers = #tpu.dot_dimension_numbers<[1], [0], [0], [1], [0, 0, 1, 1], [], []>} : vector<8x128xbf16>, vector<128x512xbf16>, vector<8x512xf32> -> vector<8x512xf32>
        %30 = arith.addf %25, %29 : vector<8x512xf32>
        %31 = vector.extract_strided_slice %30 {offsets = [0, 0], sizes = [8, 384], strides = [1, 1]} : vector<8x512xf32> to vector<8x384xf32>
        %32 = arith.negf %31 : vector<8x384xf32>
        %33 = math.exp %32 : vector<8x384xf32>
        %cst_24 = arith.constant 1.000000e+00 : f32
        %34 = vector.broadcast %cst_24 : f32 to vector<8x384xf32>
        %35 = arith.addf %34, %33 : vector<8x384xf32>
        %36 = arith.divf %34, %35 : vector<8x384xf32>
        %37 = vector.extract_strided_slice %30 {offsets = [0, 384], sizes = [8, 128], strides = [1, 1]} : vector<8x512xf32> to vector<8x128xf32>
        %38 = math.tanh %37 : vector<8x128xf32>
        %39 = vector.extract_strided_slice %36 {offsets = [0, 0], sizes = [8, 128], strides = [1, 1]} : vector<8x384xf32> to vector<8x128xf32>
        %40 = vector.extract_strided_slice %36 {offsets = [0, 128], sizes = [8, 128], strides = [1, 1]} : vector<8x384xf32> to vector<8x128xf32>
        %41 = vector.extract_strided_slice %36 {offsets = [0, 256], sizes = [8, 128], strides = [1, 1]} : vector<8x384xf32> to vector<8x128xf32>
        %42 = arith.mulf %40, %arg12 : vector<8x128xf32>
        %43 = arith.mulf %39, %38 : vector<8x128xf32>
        %44 = arith.addf %42, %43 : vector<8x128xf32>
        %45 = math.tanh %44 : vector<8x128xf32>
        %46 = arith.mulf %41, %45 : vector<8x128xf32>
        %47 = arith.addi %11, %21 : i32
        %48 = vector.broadcast %47 : i32 to vector<8x1xi32>
        %49 = arith.cmpi slt, %48, %3 : vector<8x1xi32>
        %cst_25 = arith.constant 0.000000e+00 : f32
        %50 = vector.shape_cast %49 : vector<8x1xi1> to vector<8x1xi1>
        %51 = vector.broadcast %50 : vector<8x1xi1> to vector<8x128xi1>
        %52 = vector.broadcast %cst_25 : f32 to vector<8x128xf32>
        %53 = arith.select %51, %46, %52 : vector<8x128xi1>, vector<8x128xf32>
        %c0_26 = arith.constant 0 : index
        %54 = arith.index_cast %21 : i32 to index
        %c0_27 = arith.constant 0 : index
        %c0_28 = arith.constant 0 : index
        %55 = vector.load %arg7[%c0_26, %54, %c0_27, %c0_28] : memref<1x32x8x128xf32, #tpu.memory_space<vmem>>, vector<1x1x8x128xf32>
        %56 = vector.shape_cast %55 : vector<1x1x8x128xf32> to vector<8x128xf32>
        %57 = vector.shape_cast %53 : vector<8x128xf32> to vector<1x1x8x128xf32>
        tpu.vector_store %arg7[%c0_26, %54, %c0_27, %c0_28], %57 {strides = array<i32>} : memref<1x32x8x128xf32, #tpu.memory_space<vmem>>, vector<1x1x8x128xf32>,
        %58 = vector.shape_cast %49 : vector<8x1xi1> to vector<8x1xi1>
        %59 = vector.broadcast %58 : vector<8x1xi1> to vector<8x128xi1>
        %60 = arith.select %59, %46, %arg11 : vector<8x128xi1>, vector<8x128xf32>
        %61 = vector.shape_cast %49 : vector<8x1xi1> to vector<8x1xi1>
        %62 = vector.broadcast %61 : vector<8x1xi1> to vector<8x128xi1>
        %63 = arith.select %62, %44, %arg12 : vector<8x128xi1>, vector<8x128xf32>
        %c1_i32_29 = arith.constant 1 : i32
        %64 = arith.addi %19, %c1_i32_29 : i32
        %c31_i32_30 = arith.constant 31 : i32
        %65 = arith.subi %c31_i32_30, %64 : i32
        %c0_31 = arith.constant 0 : index
        %66 = arith.index_cast %65 : i32 to index
        %c0_32 = arith.constant 0 : index
        %c0_33 = arith.constant 0 : index
        %67 = vector.load %arg3[%c0_31, %66, %c0_32, %c0_33] : memref<1x32x8x512xbf16, #tpu.memory_space<vmem>>, vector<1x1x8x512xbf16>
        %68 = vector.shape_cast %67 : vector<1x1x8x512xbf16> to vector<8x512xbf16>
        %69 = arith.extf %68 : vector<8x512xbf16> to vector<8x512xf32>
        %70 = arith.truncf %60 : vector<8x128xf32> to vector<8x128xbf16>
        %c0_34 = arith.constant 0 : index
        %c0_35 = arith.constant 0 : index
        %c0_36 = arith.constant 0 : index
        %71 = vector.load %arg4[%c0_34, %c0_35, %c0_36] : memref<1x128x512xbf16, #tpu.memory_space<vmem>>, vector<1x128x512xbf16>
        %72 = vector.shape_cast %71 : vector<1x128x512xbf16> to vector<128x512xbf16>
        %cst_37 = arith.constant dense<0.000000e+00> : vector<8x512xf32>
        %73 = tpu.matmul %70, %72, %cst_37 {dimension_numbers = #tpu.dot_dimension_numbers<[1], [0], [0], [1], [0, 0, 1, 1], [], []>} : vector<8x128xbf16>, vector<128x512xbf16>, vector<8x512xf32> -> vector<8x512xf32>
        %74 = arith.addf %69, %73 : vector<8x512xf32>
        %75 = vector.extract_strided_slice %74 {offsets = [0, 0], sizes = [8, 384], strides = [1, 1]} : vector<8x512xf32> to vector<8x384xf32>
        %76 = arith.negf %75 : vector<8x384xf32>
        %77 = math.exp %76 : vector<8x384xf32>
        %cst_38 = arith.constant 1.000000e+00 : f32
        %78 = vector.broadcast %cst_38 : f32 to vector<8x384xf32>
        %79 = arith.addf %78, %77 : vector<8x384xf32>
        %80 = arith.divf %78, %79 : vector<8x384xf32>
        %81 = vector.extract_strided_slice %74 {offsets = [0, 384], sizes = [8, 128], strides = [1, 1]} : vector<8x512xf32> to vector<8x128xf32>
        %82 = math.tanh %81 : vector<8x128xf32>
        %83 = vector.extract_strided_slice %80 {offsets = [0, 0], sizes = [8, 128], strides = [1, 1]} : vector<8x384xf32> to vector<8x128xf32>
        %84 = vector.extract_strided_slice %80 {offsets = [0, 128], sizes = [8, 128], strides = [1, 1]} : vector<8x384xf32> to vector<8x128xf32>
        %85 = vector.extract_strided_slice %80 {offsets = [0, 256], sizes = [8, 128], strides = [1, 1]} : vector<8x384xf32> to vector<8x128xf32>
        %86 = arith.mulf %84, %63 : vector<8x128xf32>
        %87 = arith.mulf %83, %82 : vector<8x128xf32>
        %88 = arith.addf %86, %87 : vector<8x128xf32>
        %89 = math.tanh %88 : vector<8x128xf32>
        %90 = arith.mulf %85, %89 : vector<8x128xf32>
        %91 = arith.addi %11, %65 : i32
        %92 = vector.broadcast %91 : i32 to vector<8x1xi32>
        %93 = arith.cmpi slt, %92, %3 : vector<8x1xi32>
        %cst_39 = arith.constant 0.000000e+00 : f32
        %94 = vector.shape_cast %93 : vector<8x1xi1> to vector<8x1xi1>
        %95 = vector.broadcast %94 : vector<8x1xi1> to vector<8x128xi1>
        %96 = vector.broadcast %cst_39 : f32 to vector<8x128xf32>
        %97 = arith.select %95, %90, %96 : vector<8x128xi1>, vector<8x128xf32>
        %c0_40 = arith.constant 0 : index
        %98 = arith.index_cast %65 : i32 to index
        %c0_41 = arith.constant 0 : index
        %c0_42 = arith.constant 0 : index
        %99 = vector.load %arg7[%c0_40, %98, %c0_41, %c0_42] : memref<1x32x8x128xf32, #tpu.memory_space<vmem>>, vector<1x1x8x128xf32>
        %100 = vector.shape_cast %99 : vector<1x1x8x128xf32> to vector<8x128xf32>
        %101 = vector.shape_cast %97 : vector<8x128xf32> to vector<1x1x8x128xf32>
        tpu.vector_store %arg7[%c0_40, %98, %c0_41, %c0_42], %101 {strides = array<i32>} : memref<1x32x8x128xf32, #tpu.memory_space<vmem>>, vector<1x1x8x128xf32>,
        %102 = vector.shape_cast %93 : vector<8x1xi1> to vector<8x1xi1>
        %103 = vector.broadcast %102 : vector<8x1xi1> to vector<8x128xi1>
        %104 = arith.select %103, %90, %60 : vector<8x128xi1>, vector<8x128xf32>
        %105 = vector.shape_cast %93 : vector<8x1xi1> to vector<8x1xi1>
        %106 = vector.broadcast %105 : vector<8x1xi1> to vector<8x128xi1>
        %107 = arith.select %106, %88, %63 : vector<8x128xi1>, vector<8x128xf32>
        %c2_i32 = arith.constant 2 : i32
        %108 = arith.addi %19, %c2_i32 : i32
        %c31_i32_43 = arith.constant 31 : i32
        %109 = arith.subi %c31_i32_43, %108 : i32
        %c0_44 = arith.constant 0 : index
        %110 = arith.index_cast %109 : i32 to index
        %c0_45 = arith.constant 0 : index
        %c0_46 = arith.constant 0 : index
        %111 = vector.load %arg3[%c0_44, %110, %c0_45, %c0_46] : memref<1x32x8x512xbf16, #tpu.memory_space<vmem>>, vector<1x1x8x512xbf16>
        %112 = vector.shape_cast %111 : vector<1x1x8x512xbf16> to vector<8x512xbf16>
        %113 = arith.extf %112 : vector<8x512xbf16> to vector<8x512xf32>
        %114 = arith.truncf %104 : vector<8x128xf32> to vector<8x128xbf16>
        %c0_47 = arith.constant 0 : index
        %c0_48 = arith.constant 0 : index
        %c0_49 = arith.constant 0 : index
        %115 = vector.load %arg4[%c0_47, %c0_48, %c0_49] : memref<1x128x512xbf16, #tpu.memory_space<vmem>>, vector<1x128x512xbf16>
        %116 = vector.shape_cast %115 : vector<1x128x512xbf16> to vector<128x512xbf16>
        %cst_50 = arith.constant dense<0.000000e+00> : vector<8x512xf32>
        %117 = tpu.matmul %114, %116, %cst_50 {dimension_numbers = #tpu.dot_dimension_numbers<[1], [0], [0], [1], [0, 0, 1, 1], [], []>} : vector<8x128xbf16>, vector<128x512xbf16>, vector<8x512xf32> -> vector<8x512xf32>
        %118 = arith.addf %113, %117 : vector<8x512xf32>
        %119 = vector.extract_strided_slice %118 {offsets = [0, 0], sizes = [8, 384], strides = [1, 1]} : vector<8x512xf32> to vector<8x384xf32>
        %120 = arith.negf %119 : vector<8x384xf32>
        %121 = math.exp %120 : vector<8x384xf32>
        %cst_51 = arith.constant 1.000000e+00 : f32
        %122 = vector.broadcast %cst_51 : f32 to vector<8x384xf32>
        %123 = arith.addf %122, %121 : vector<8x384xf32>
        %124 = arith.divf %122, %123 : vector<8x384xf32>
        %125 = vector.extract_strided_slice %118 {offsets = [0, 384], sizes = [8, 128], strides = [1, 1]} : vector<8x512xf32> to vector<8x128xf32>
        %126 = math.tanh %125 : vector<8x128xf32>
        %127 = vector.extract_strided_slice %124 {offsets = [0, 0], sizes = [8, 128], strides = [1, 1]} : vector<8x384xf32> to vector<8x128xf32>
        %128 = vector.extract_strided_slice %124 {offsets = [0, 128], sizes = [8, 128], strides = [1, 1]} : vector<8x384xf32> to vector<8x128xf32>
        %129 = vector.extract_strided_slice %124 {offsets = [0, 256], sizes = [8, 128], strides = [1, 1]} : vector<8x384xf32> to vector<8x128xf32>
        %130 = arith.mulf %128, %107 : vector<8x128xf32>
        %131 = arith.mulf %127, %126 : vector<8x128xf32>
        %132 = arith.addf %130, %131 : vector<8x128xf32>
        %133 = math.tanh %132 : vector<8x128xf32>
        %134 = arith.mulf %129, %133 : vector<8x128xf32>
        %135 = arith.addi %11, %109 : i32
        %136 = vector.broadcast %135 : i32 to vector<8x1xi32>
        %137 = arith.cmpi slt, %136, %3 : vector<8x1xi32>
        %cst_52 = arith.constant 0.000000e+00 : f32
        %138 = vector.shape_cast %137 : vector<8x1xi1> to vector<8x1xi1>
        %139 = vector.broadcast %138 : vector<8x1xi1> to vector<8x128xi1>
        %140 = vector.broadcast %cst_52 : f32 to vector<8x128xf32>
        %141 = arith.select %139, %134, %140 : vector<8x128xi1>, vector<8x128xf32>
        %c0_53 = arith.constant 0 : index
        %142 = arith.index_cast %109 : i32 to index
        %c0_54 = arith.constant 0 : index
        %c0_55 = arith.constant 0 : index
        %143 = vector.load %arg7[%c0_53, %142, %c0_54, %c0_55] : memref<1x32x8x128xf32, #tpu.memory_space<vmem>>, vector<1x1x8x128xf32>
        %144 = vector.shape_cast %143 : vector<1x1x8x128xf32> to vector<8x128xf32>
        %145 = vector.shape_cast %141 : vector<8x128xf32> to vector<1x1x8x128xf32>
        tpu.vector_store %arg7[%c0_53, %142, %c0_54, %c0_55], %145 {strides = array<i32>} : memref<1x32x8x128xf32, #tpu.memory_space<vmem>>, vector<1x1x8x128xf32>,
        %146 = vector.shape_cast %137 : vector<8x1xi1> to vector<8x1xi1>
        %147 = vector.broadcast %146 : vector<8x1xi1> to vector<8x128xi1>
        %148 = arith.select %147, %134, %104 : vector<8x128xi1>, vector<8x128xf32>
        %149 = vector.shape_cast %137 : vector<8x1xi1> to vector<8x1xi1>
        %150 = vector.broadcast %149 : vector<8x1xi1> to vector<8x128xi1>
        %151 = arith.select %150, %132, %107 : vector<8x128xi1>, vector<8x128xf32>
        %c3_i32 = arith.constant 3 : i32
        %152 = arith.addi %19, %c3_i32 : i32
        %c31_i32_56 = arith.constant 31 : i32
        %153 = arith.subi %c31_i32_56, %152 : i32
        %c0_57 = arith.constant 0 : index
        %154 = arith.index_cast %153 : i32 to index
        %c0_58 = arith.constant 0 : index
        %c0_59 = arith.constant 0 : index
        %155 = vector.load %arg3[%c0_57, %154, %c0_58, %c0_59] : memref<1x32x8x512xbf16, #tpu.memory_space<vmem>>, vector<1x1x8x512xbf16>
        %156 = vector.shape_cast %155 : vector<1x1x8x512xbf16> to vector<8x512xbf16>
        %157 = arith.extf %156 : vector<8x512xbf16> to vector<8x512xf32>
        %158 = arith.truncf %148 : vector<8x128xf32> to vector<8x128xbf16>
        %c0_60 = arith.constant 0 : index
        %c0_61 = arith.constant 0 : index
        %c0_62 = arith.constant 0 : index
        %159 = vector.load %arg4[%c0_60, %c0_61, %c0_62] : memref<1x128x512xbf16, #tpu.memory_space<vmem>>, vector<1x128x512xbf16>
        %160 = vector.shape_cast %159 : vector<1x128x512xbf16> to vector<128x512xbf16>
        %cst_63 = arith.constant dense<0.000000e+00> : vector<8x512xf32>
        %161 = tpu.matmul %158, %160, %cst_63 {dimension_numbers = #tpu.dot_dimension_numbers<[1], [0], [0], [1], [0, 0, 1, 1], [], []>} : vector<8x128xbf16>, vector<128x512xbf16>, vector<8x512xf32> -> vector<8x512xf32>
        %162 = arith.addf %157, %161 : vector<8x512xf32>
        %163 = vector.extract_strided_slice %162 {offsets = [0, 0], sizes = [8, 384], strides = [1, 1]} : vector<8x512xf32> to vector<8x384xf32>
        %164 = arith.negf %163 : vector<8x384xf32>
        %165 = math.exp %164 : vector<8x384xf32>
        %cst_64 = arith.constant 1.000000e+00 : f32
        %166 = vector.broadcast %cst_64 : f32 to vector<8x384xf32>
        %167 = arith.addf %166, %165 : vector<8x384xf32>
        %168 = arith.divf %166, %167 : vector<8x384xf32>
        %169 = vector.extract_strided_slice %162 {offsets = [0, 384], sizes = [8, 128], strides = [1, 1]} : vector<8x512xf32> to vector<8x128xf32>
        %170 = math.tanh %169 : vector<8x128xf32>
        %171 = vector.extract_strided_slice %168 {offsets = [0, 0], sizes = [8, 128], strides = [1, 1]} : vector<8x384xf32> to vector<8x128xf32>
        %172 = vector.extract_strided_slice %168 {offsets = [0, 128], sizes = [8, 128], strides = [1, 1]} : vector<8x384xf32> to vector<8x128xf32>
        %173 = vector.extract_strided_slice %168 {offsets = [0, 256], sizes = [8, 128], strides = [1, 1]} : vector<8x384xf32> to vector<8x128xf32>
        %174 = arith.mulf %172, %151 : vector<8x128xf32>
        %175 = arith.mulf %171, %170 : vector<8x128xf32>
        %176 = arith.addf %174, %175 : vector<8x128xf32>
        %177 = math.tanh %176 : vector<8x128xf32>
        %178 = arith.mulf %173, %177 : vector<8x128xf32>
        %179 = arith.addi %11, %153 : i32
        %180 = vector.broadcast %179 : i32 to vector<8x1xi32>
        %181 = arith.cmpi slt, %180, %3 : vector<8x1xi32>
        %cst_65 = arith.constant 0.000000e+00 : f32
        %182 = vector.shape_cast %181 : vector<8x1xi1> to vector<8x1xi1>
        %183 = vector.broadcast %182 : vector<8x1xi1> to vector<8x128xi1>
        %184 = vector.broadcast %cst_65 : f32 to vector<8x128xf32>
        %185 = arith.select %183, %178, %184 : vector<8x128xi1>, vector<8x128xf32>
        %c0_66 = arith.constant 0 : index
        %186 = arith.index_cast %153 : i32 to index
        %c0_67 = arith.constant 0 : index
        %c0_68 = arith.constant 0 : index
        %187 = vector.load %arg7[%c0_66, %186, %c0_67, %c0_68] : memref<1x32x8x128xf32, #tpu.memory_space<vmem>>, vector<1x1x8x128xf32>
        %188 = vector.shape_cast %187 : vector<1x1x8x128xf32> to vector<8x128xf32>
        %189 = vector.shape_cast %185 : vector<8x128xf32> to vector<1x1x8x128xf32>
        tpu.vector_store %arg7[%c0_66, %186, %c0_67, %c0_68], %189 {strides = array<i32>} : memref<1x32x8x128xf32, #tpu.memory_space<vmem>>, vector<1x1x8x128xf32>,
        %190 = vector.shape_cast %181 : vector<8x1xi1> to vector<8x1xi1>
        %191 = vector.broadcast %190 : vector<8x1xi1> to vector<8x128xi1>
        %192 = arith.select %191, %178, %148 : vector<8x128xi1>, vector<8x128xf32>
        %193 = vector.shape_cast %181 : vector<8x1xi1> to vector<8x1xi1>
        %194 = vector.broadcast %193 : vector<8x1xi1> to vector<8x128xi1>
        %195 = arith.select %194, %176, %151 : vector<8x128xi1>, vector<8x128xf32>
        %c4_i32_69 = arith.constant 4 : i32
        %196 = arith.addi %19, %c4_i32_69 : i32
        %c31_i32_70 = arith.constant 31 : i32
        %197 = arith.subi %c31_i32_70, %196 : i32
        %c0_71 = arith.constant 0 : index
        %198 = arith.index_cast %197 : i32 to index
        %c0_72 = arith.constant 0 : index
        %c0_73 = arith.constant 0 : index
        %199 = vector.load %arg3[%c0_71, %198, %c0_72, %c0_73] : memref<1x32x8x512xbf16, #tpu.memory_space<vmem>>, vector<1x1x8x512xbf16>
        %200 = vector.shape_cast %199 : vector<1x1x8x512xbf16> to vector<8x512xbf16>
        %201 = arith.extf %200 : vector<8x512xbf16> to vector<8x512xf32>
        %202 = arith.truncf %192 : vector<8x128xf32> to vector<8x128xbf16>
        %c0_74 = arith.constant 0 : index
        %c0_75 = arith.constant 0 : index
        %c0_76 = arith.constant 0 : index
        %203 = vector.load %arg4[%c0_74, %c0_75, %c0_76] : memref<1x128x512xbf16, #tpu.memory_space<vmem>>, vector<1x128x512xbf16>
        %204 = vector.shape_cast %203 : vector<1x128x512xbf16> to vector<128x512xbf16>
        %cst_77 = arith.constant dense<0.000000e+00> : vector<8x512xf32>
        %205 = tpu.matmul %202, %204, %cst_77 {dimension_numbers = #tpu.dot_dimension_numbers<[1], [0], [0], [1], [0, 0, 1, 1], [], []>} : vector<8x128xbf16>, vector<128x512xbf16>, vector<8x512xf32> -> vector<8x512xf32>
        %206 = arith.addf %201, %205 : vector<8x512xf32>
        %207 = vector.extract_strided_slice %206 {offsets = [0, 0], sizes = [8, 384], strides = [1, 1]} : vector<8x512xf32> to vector<8x384xf32>
        %208 = arith.negf %207 : vector<8x384xf32>
        %209 = math.exp %208 : vector<8x384xf32>
        %cst_78 = arith.constant 1.000000e+00 : f32
        %210 = vector.broadcast %cst_78 : f32 to vector<8x384xf32>
        %211 = arith.addf %210, %209 : vector<8x384xf32>
        %212 = arith.divf %210, %211 : vector<8x384xf32>
        %213 = vector.extract_strided_slice %206 {offsets = [0, 384], sizes = [8, 128], strides = [1, 1]} : vector<8x512xf32> to vector<8x128xf32>
        %214 = math.tanh %213 : vector<8x128xf32>
        %215 = vector.extract_strided_slice %212 {offsets = [0, 0], sizes = [8, 128], strides = [1, 1]} : vector<8x384xf32> to vector<8x128xf32>
        %216 = vector.extract_strided_slice %212 {offsets = [0, 128], sizes = [8, 128], strides = [1, 1]} : vector<8x384xf32> to vector<8x128xf32>
        %217 = vector.extract_strided_slice %212 {offsets = [0, 256], sizes = [8, 128], strides = [1, 1]} : vector<8x384xf32> to vector<8x128xf32>
        %218 = arith.mulf %216, %195 : vector<8x128xf32>
        %219 = arith.mulf %215, %214 : vector<8x128xf32>
        %220 = arith.addf %218, %219 : vector<8x128xf32>
        %221 = math.tanh %220 : vector<8x128xf32>
        %222 = arith.mulf %217, %221 : vector<8x128xf32>
        %223 = arith.addi %11, %197 : i32
        %224 = vector.broadcast %223 : i32 to vector<8x1xi32>
        %225 = arith.cmpi slt, %224, %3 : vector<8x1xi32>
        %cst_79 = arith.constant 0.000000e+00 : f32
        %226 = vector.shape_cast %225 : vector<8x1xi1> to vector<8x1xi1>
        %227 = vector.broadcast %226 : vector<8x1xi1> to vector<8x128xi1>
        %228 = vector.broadcast %cst_79 : f32 to vector<8x128xf32>
        %229 = arith.select %227, %222, %228 : vector<8x128xi1>, vector<8x128xf32>
        %c0_80 = arith.constant 0 : index
        %230 = arith.index_cast %197 : i32 to index
        %c0_81 = arith.constant 0 : index
        %c0_82 = arith.constant 0 : index
        %231 = vector.load %arg7[%c0_80, %230, %c0_81, %c0_82] : memref<1x32x8x128xf32, #tpu.memory_space<vmem>>, vector<1x1x8x128xf32>
        %232 = vector.shape_cast %231 : vector<1x1x8x128xf32> to vector<8x128xf32>
        %233 = vector.shape_cast %229 : vector<8x128xf32> to vector<1x1x8x128xf32>
        tpu.vector_store %arg7[%c0_80, %230, %c0_81, %c0_82], %233 {strides = array<i32>} : memref<1x32x8x128xf32, #tpu.memory_space<vmem>>, vector<1x1x8x128xf32>,
        %234 = vector.shape_cast %225 : vector<8x1xi1> to vector<8x1xi1>
        %235 = vector.broadcast %234 : vector<8x1xi1> to vector<8x128xi1>
        %236 = arith.select %235, %222, %192 : vector<8x128xi1>, vector<8x128xf32>
        %237 = vector.shape_cast %225 : vector<8x1xi1> to vector<8x1xi1>
        %238 = vector.broadcast %237 : vector<8x1xi1> to vector<8x128xi1>
        %239 = arith.select %238, %220, %195 : vector<8x128xi1>, vector<8x128xf32>
        %c5_i32 = arith.constant 5 : i32
        %240 = arith.addi %19, %c5_i32 : i32
        %c31_i32_83 = arith.constant 31 : i32
        %241 = arith.subi %c31_i32_83, %240 : i32
        %c0_84 = arith.constant 0 : index
        %242 = arith.index_cast %241 : i32 to index
        %c0_85 = arith.constant 0 : index
        %c0_86 = arith.constant 0 : index
        %243 = vector.load %arg3[%c0_84, %242, %c0_85, %c0_86] : memref<1x32x8x512xbf16, #tpu.memory_space<vmem>>, vector<1x1x8x512xbf16>
        %244 = vector.shape_cast %243 : vector<1x1x8x512xbf16> to vector<8x512xbf16>
        %245 = arith.extf %244 : vector<8x512xbf16> to vector<8x512xf32>
        %246 = arith.truncf %236 : vector<8x128xf32> to vector<8x128xbf16>
        %c0_87 = arith.constant 0 : index
        %c0_88 = arith.constant 0 : index
        %c0_89 = arith.constant 0 : index
        %247 = vector.load %arg4[%c0_87, %c0_88, %c0_89] : memref<1x128x512xbf16, #tpu.memory_space<vmem>>, vector<1x128x512xbf16>
        %248 = vector.shape_cast %247 : vector<1x128x512xbf16> to vector<128x512xbf16>
        %cst_90 = arith.constant dense<0.000000e+00> : vector<8x512xf32>
        %249 = tpu.matmul %246, %248, %cst_90 {dimension_numbers = #tpu.dot_dimension_numbers<[1], [0], [0], [1], [0, 0, 1, 1], [], []>} : vector<8x128xbf16>, vector<128x512xbf16>, vector<8x512xf32> -> vector<8x512xf32>
        %250 = arith.addf %245, %249 : vector<8x512xf32>
        %251 = vector.extract_strided_slice %250 {offsets = [0, 0], sizes = [8, 384], strides = [1, 1]} : vector<8x512xf32> to vector<8x384xf32>
        %252 = arith.negf %251 : vector<8x384xf32>
        %253 = math.exp %252 : vector<8x384xf32>
        %cst_91 = arith.constant 1.000000e+00 : f32
        %254 = vector.broadcast %cst_91 : f32 to vector<8x384xf32>
        %255 = arith.addf %254, %253 : vector<8x384xf32>
        %256 = arith.divf %254, %255 : vector<8x384xf32>
        %257 = vector.extract_strided_slice %250 {offsets = [0, 384], sizes = [8, 128], strides = [1, 1]} : vector<8x512xf32> to vector<8x128xf32>
        %258 = math.tanh %257 : vector<8x128xf32>
        %259 = vector.extract_strided_slice %256 {offsets = [0, 0], sizes = [8, 128], strides = [1, 1]} : vector<8x384xf32> to vector<8x128xf32>
        %260 = vector.extract_strided_slice %256 {offsets = [0, 128], sizes = [8, 128], strides = [1, 1]} : vector<8x384xf32> to vector<8x128xf32>
        %261 = vector.extract_strided_slice %256 {offsets = [0, 256], sizes = [8, 128], strides = [1, 1]} : vector<8x384xf32> to vector<8x128xf32>
        %262 = arith.mulf %260, %239 : vector<8x128xf32>
        %263 = arith.mulf %259, %258 : vector<8x128xf32>
        %264 = arith.addf %262, %263 : vector<8x128xf32>
        %265 = math.tanh %264 : vector<8x128xf32>
        %266 = arith.mulf %261, %265 : vector<8x128xf32>
        %267 = arith.addi %11, %241 : i32
        %268 = vector.broadcast %267 : i32 to vector<8x1xi32>
        %269 = arith.cmpi slt, %268, %3 : vector<8x1xi32>
        %cst_92 = arith.constant 0.000000e+00 : f32
        %270 = vector.shape_cast %269 : vector<8x1xi1> to vector<8x1xi1>
        %271 = vector.broadcast %270 : vector<8x1xi1> to vector<8x128xi1>
        %272 = vector.broadcast %cst_92 : f32 to vector<8x128xf32>
        %273 = arith.select %271, %266, %272 : vector<8x128xi1>, vector<8x128xf32>
        %c0_93 = arith.constant 0 : index
        %274 = arith.index_cast %241 : i32 to index
        %c0_94 = arith.constant 0 : index
        %c0_95 = arith.constant 0 : index
        %275 = vector.load %arg7[%c0_93, %274, %c0_94, %c0_95] : memref<1x32x8x128xf32, #tpu.memory_space<vmem>>, vector<1x1x8x128xf32>
        %276 = vector.shape_cast %275 : vector<1x1x8x128xf32> to vector<8x128xf32>
        %277 = vector.shape_cast %273 : vector<8x128xf32> to vector<1x1x8x128xf32>
        tpu.vector_store %arg7[%c0_93, %274, %c0_94, %c0_95], %277 {strides = array<i32>} : memref<1x32x8x128xf32, #tpu.memory_space<vmem>>, vector<1x1x8x128xf32>,
        %278 = vector.shape_cast %269 : vector<8x1xi1> to vector<8x1xi1>
        %279 = vector.broadcast %278 : vector<8x1xi1> to vector<8x128xi1>
        %280 = arith.select %279, %266, %236 : vector<8x128xi1>, vector<8x128xf32>
        %281 = vector.shape_cast %269 : vector<8x1xi1> to vector<8x1xi1>
        %282 = vector.broadcast %281 : vector<8x1xi1> to vector<8x128xi1>
        %283 = arith.select %282, %264, %239 : vector<8x128xi1>, vector<8x128xf32>
        %c6_i32 = arith.constant 6 : i32
        %284 = arith.addi %19, %c6_i32 : i32
        %c31_i32_96 = arith.constant 31 : i32
        %285 = arith.subi %c31_i32_96, %284 : i32
        %c0_97 = arith.constant 0 : index
        %286 = arith.index_cast %285 : i32 to index
        %c0_98 = arith.constant 0 : index
        %c0_99 = arith.constant 0 : index
        %287 = vector.load %arg3[%c0_97, %286, %c0_98, %c0_99] : memref<1x32x8x512xbf16, #tpu.memory_space<vmem>>, vector<1x1x8x512xbf16>
        %288 = vector.shape_cast %287 : vector<1x1x8x512xbf16> to vector<8x512xbf16>
        %289 = arith.extf %288 : vector<8x512xbf16> to vector<8x512xf32>
        %290 = arith.truncf %280 : vector<8x128xf32> to vector<8x128xbf16>
        %c0_100 = arith.constant 0 : index
        %c0_101 = arith.constant 0 : index
        %c0_102 = arith.constant 0 : index
        %291 = vector.load %arg4[%c0_100, %c0_101, %c0_102] : memref<1x128x512xbf16, #tpu.memory_space<vmem>>, vector<1x128x512xbf16>
        %292 = vector.shape_cast %291 : vector<1x128x512xbf16> to vector<128x512xbf16>
        %cst_103 = arith.constant dense<0.000000e+00> : vector<8x512xf32>
        %293 = tpu.matmul %290, %292, %cst_103 {dimension_numbers = #tpu.dot_dimension_numbers<[1], [0], [0], [1], [0, 0, 1, 1], [], []>} : vector<8x128xbf16>, vector<128x512xbf16>, vector<8x512xf32> -> vector<8x512xf32>
        %294 = arith.addf %289, %293 : vector<8x512xf32>
        %295 = vector.extract_strided_slice %294 {offsets = [0, 0], sizes = [8, 384], strides = [1, 1]} : vector<8x512xf32> to vector<8x384xf32>
        %296 = arith.negf %295 : vector<8x384xf32>
        %297 = math.exp %296 : vector<8x384xf32>
        %cst_104 = arith.constant 1.000000e+00 : f32
        %298 = vector.broadcast %cst_104 : f32 to vector<8x384xf32>
        %299 = arith.addf %298, %297 : vector<8x384xf32>
        %300 = arith.divf %298, %299 : vector<8x384xf32>
        %301 = vector.extract_strided_slice %294 {offsets = [0, 384], sizes = [8, 128], strides = [1, 1]} : vector<8x512xf32> to vector<8x128xf32>
        %302 = math.tanh %301 : vector<8x128xf32>
        %303 = vector.extract_strided_slice %300 {offsets = [0, 0], sizes = [8, 128], strides = [1, 1]} : vector<8x384xf32> to vector<8x128xf32>
        %304 = vector.extract_strided_slice %300 {offsets = [0, 128], sizes = [8, 128], strides = [1, 1]} : vector<8x384xf32> to vector<8x128xf32>
        %305 = vector.extract_strided_slice %300 {offsets = [0, 256], sizes = [8, 128], strides = [1, 1]} : vector<8x384xf32> to vector<8x128xf32>
        %306 = arith.mulf %304, %283 : vector<8x128xf32>
        %307 = arith.mulf %303, %302 : vector<8x128xf32>
        %308 = arith.addf %306, %307 : vector<8x128xf32>
        %309 = math.tanh %308 : vector<8x128xf32>
        %310 = arith.mulf %305, %309 : vector<8x128xf32>
        %311 = arith.addi %11, %285 : i32
        %312 = vector.broadcast %311 : i32 to vector<8x1xi32>
        %313 = arith.cmpi slt, %312, %3 : vector<8x1xi32>
        %cst_105 = arith.constant 0.000000e+00 : f32
        %314 = vector.shape_cast %313 : vector<8x1xi1> to vector<8x1xi1>
        %315 = vector.broadcast %314 : vector<8x1xi1> to vector<8x128xi1>
        %316 = vector.broadcast %cst_105 : f32 to vector<8x128xf32>
        %317 = arith.select %315, %310, %316 : vector<8x128xi1>, vector<8x128xf32>
        %c0_106 = arith.constant 0 : index
        %318 = arith.index_cast %285 : i32 to index
        %c0_107 = arith.constant 0 : index
        %c0_108 = arith.constant 0 : index
        %319 = vector.load %arg7[%c0_106, %318, %c0_107, %c0_108] : memref<1x32x8x128xf32, #tpu.memory_space<vmem>>, vector<1x1x8x128xf32>
        %320 = vector.shape_cast %319 : vector<1x1x8x128xf32> to vector<8x128xf32>
        %321 = vector.shape_cast %317 : vector<8x128xf32> to vector<1x1x8x128xf32>
        tpu.vector_store %arg7[%c0_106, %318, %c0_107, %c0_108], %321 {strides = array<i32>} : memref<1x32x8x128xf32, #tpu.memory_space<vmem>>, vector<1x1x8x128xf32>,
        %322 = vector.shape_cast %313 : vector<8x1xi1> to vector<8x1xi1>
        %323 = vector.broadcast %322 : vector<8x1xi1> to vector<8x128xi1>
        %324 = arith.select %323, %310, %280 : vector<8x128xi1>, vector<8x128xf32>
        %325 = vector.shape_cast %313 : vector<8x1xi1> to vector<8x1xi1>
        %326 = vector.broadcast %325 : vector<8x1xi1> to vector<8x128xi1>
        %327 = arith.select %326, %308, %283 : vector<8x128xi1>, vector<8x128xf32>
        %c7_i32 = arith.constant 7 : i32
        %328 = arith.addi %19, %c7_i32 : i32
        %c31_i32_109 = arith.constant 31 : i32
        %329 = arith.subi %c31_i32_109, %328 : i32
        %c0_110 = arith.constant 0 : index
        %330 = arith.index_cast %329 : i32 to index
        %c0_111 = arith.constant 0 : index
        %c0_112 = arith.constant 0 : index
        %331 = vector.load %arg3[%c0_110, %330, %c0_111, %c0_112] : memref<1x32x8x512xbf16, #tpu.memory_space<vmem>>, vector<1x1x8x512xbf16>
        %332 = vector.shape_cast %331 : vector<1x1x8x512xbf16> to vector<8x512xbf16>
        %333 = arith.extf %332 : vector<8x512xbf16> to vector<8x512xf32>
        %334 = arith.truncf %324 : vector<8x128xf32> to vector<8x128xbf16>
        %c0_113 = arith.constant 0 : index
        %c0_114 = arith.constant 0 : index
        %c0_115 = arith.constant 0 : index
        %335 = vector.load %arg4[%c0_113, %c0_114, %c0_115] : memref<1x128x512xbf16, #tpu.memory_space<vmem>>, vector<1x128x512xbf16>
        %336 = vector.shape_cast %335 : vector<1x128x512xbf16> to vector<128x512xbf16>
        %cst_116 = arith.constant dense<0.000000e+00> : vector<8x512xf32>
        %337 = tpu.matmul %334, %336, %cst_116 {dimension_numbers = #tpu.dot_dimension_numbers<[1], [0], [0], [1], [0, 0, 1, 1], [], []>} : vector<8x128xbf16>, vector<128x512xbf16>, vector<8x512xf32> -> vector<8x512xf32>
        %338 = arith.addf %333, %337 : vector<8x512xf32>
        %339 = vector.extract_strided_slice %338 {offsets = [0, 0], sizes = [8, 384], strides = [1, 1]} : vector<8x512xf32> to vector<8x384xf32>
        %340 = arith.negf %339 : vector<8x384xf32>
        %341 = math.exp %340 : vector<8x384xf32>
        %cst_117 = arith.constant 1.000000e+00 : f32
        %342 = vector.broadcast %cst_117 : f32 to vector<8x384xf32>
        %343 = arith.addf %342, %341 : vector<8x384xf32>
        %344 = arith.divf %342, %343 : vector<8x384xf32>
        %345 = vector.extract_strided_slice %338 {offsets = [0, 384], sizes = [8, 128], strides = [1, 1]} : vector<8x512xf32> to vector<8x128xf32>
        %346 = math.tanh %345 : vector<8x128xf32>
        %347 = vector.extract_strided_slice %344 {offsets = [0, 0], sizes = [8, 128], strides = [1, 1]} : vector<8x384xf32> to vector<8x128xf32>
        %348 = vector.extract_strided_slice %344 {offsets = [0, 128], sizes = [8, 128], strides = [1, 1]} : vector<8x384xf32> to vector<8x128xf32>
        %349 = vector.extract_strided_slice %344 {offsets = [0, 256], sizes = [8, 128], strides = [1, 1]} : vector<8x384xf32> to vector<8x128xf32>
        %350 = arith.mulf %348, %327 : vector<8x128xf32>
        %351 = arith.mulf %347, %346 : vector<8x128xf32>
        %352 = arith.addf %350, %351 : vector<8x128xf32>
        %353 = math.tanh %352 : vector<8x128xf32>
        %354 = arith.mulf %349, %353 : vector<8x128xf32>
        %355 = arith.addi %11, %329 : i32
        %356 = vector.broadcast %355 : i32 to vector<8x1xi32>
        %357 = arith.cmpi slt, %356, %3 : vector<8x1xi32>
        %cst_118 = arith.constant 0.000000e+00 : f32
        %358 = vector.shape_cast %357 : vector<8x1xi1> to vector<8x1xi1>
        %359 = vector.broadcast %358 : vector<8x1xi1> to vector<8x128xi1>
        %360 = vector.broadcast %cst_118 : f32 to vector<8x128xf32>
        %361 = arith.select %359, %354, %360 : vector<8x128xi1>, vector<8x128xf32>
        %c0_119 = arith.constant 0 : index
        %362 = arith.index_cast %329 : i32 to index
        %c0_120 = arith.constant 0 : index
        %c0_121 = arith.constant 0 : index
        %363 = vector.load %arg7[%c0_119, %362, %c0_120, %c0_121] : memref<1x32x8x128xf32, #tpu.memory_space<vmem>>, vector<1x1x8x128xf32>
        %364 = vector.shape_cast %363 : vector<1x1x8x128xf32> to vector<8x128xf32>
        %365 = vector.shape_cast %361 : vector<8x128xf32> to vector<1x1x8x128xf32>
        tpu.vector_store %arg7[%c0_119, %362, %c0_120, %c0_121], %365 {strides = array<i32>} : memref<1x32x8x128xf32, #tpu.memory_space<vmem>>, vector<1x1x8x128xf32>,
        %366 = vector.shape_cast %357 : vector<8x1xi1> to vector<8x1xi1>
        %367 = vector.broadcast %366 : vector<8x1xi1> to vector<8x128xi1>
        %368 = arith.select %367, %354, %324 : vector<8x128xi1>, vector<8x128xf32>
        %369 = vector.shape_cast %357 : vector<8x1xi1> to vector<8x1xi1>
        %370 = vector.broadcast %369 : vector<8x1xi1> to vector<8x128xi1>
        %371 = arith.select %370, %352, %327 : vector<8x128xi1>, vector<8x128xf32>
        scf.yield %368, %371 : vector<8x128xf32>, vector<8x128xf32>
      }
      %c4_i32_12 = arith.constant 4 : i32
      %c0_13 = arith.constant 0 : index
      %c0_14 = arith.constant 0 : index
      %16 = vector.load %arg8[%c0_13, %c0_14] : memref<8x128xf32, #tpu.memory_space<vmem>>, vector<8x128xf32>
      tpu.vector_store %arg8[%c0_13, %c0_14], %15#0 {strides = array<i32>} : memref<8x128xf32, #tpu.memory_space<vmem>>, vector<8x128xf32>,
      %c0_15 = arith.constant 0 : index
      %c0_16 = arith.constant 0 : index
      %17 = vector.load %arg9[%c0_15, %c0_16] : memref<8x128xf32, #tpu.memory_space<vmem>>, vector<8x128xf32>
      tpu.vector_store %arg9[%c0_15, %c0_16], %15#1 {strides = array<i32>} : memref<8x128xf32, #tpu.memory_space<vmem>>, vector<8x128xf32>,
    } else {
    }
    return
  }
  func.func @transform_0(%arg0: i32, %arg1: i32) -> (i32, i32) {
    %c0_i32 = arith.constant 0 : i32
    %c0_i32_0 = arith.constant 0 : i32
    %c0_i32_1 = arith.constant 0 : i32
    return %c0_i32, %c0_i32_0 : i32, i32
  }
  func.func @transform_1(%arg0: i32, %arg1: i32) -> (i32, i32, i32, i32) {
    %c2_i32 = arith.constant 2 : i32
    %0 = arith.muli %c2_i32, %arg1 : i32
    %c0_i32 = arith.constant 0 : i32
    %1 = arith.subi %c0_i32, %0 : i32
    %2 = arith.muli %arg0, %1 : i32
    %3 = arith.addi %arg1, %2 : i32
    %c0_i32_0 = arith.constant 0 : i32
    %c0_i32_1 = arith.constant 0 : i32
    %c0_i32_2 = arith.constant 0 : i32
    return %arg0, %3, %c0_i32_0, %c0_i32_1 : i32, i32, i32, i32
  }
  func.func @transform_2(%arg0: i32, %arg1: i32) -> (i32, i32, i32) {
    %c0_i32 = arith.constant 0 : i32
    %c0_i32_0 = arith.constant 0 : i32
    %c0_i32_1 = arith.constant 0 : i32
    return %arg0, %c0_i32, %c0_i32_0 : i32, i32, i32
  }
  func.func @transform_3(%arg0: i32, %arg1: i32) -> (i32, i32, i32) {
    %c0_i32 = arith.constant 0 : i32
    %c0_i32_0 = arith.constant 0 : i32
    %c0_i32_1 = arith.constant 0 : i32
    return %arg0, %c0_i32, %c0_i32_0 : i32, i32, i32
  }
  func.func @transform_4(%arg0: i32, %arg1: i32) -> (i32, i32, i32) {
    %c0_i32 = arith.constant 0 : i32
    %c0_i32_0 = arith.constant 0 : i32
    %c0_i32_1 = arith.constant 0 : i32
    return %arg0, %c0_i32, %c0_i32_0 : i32, i32, i32
  }
  func.func @transform_5(%arg0: i32, %arg1: i32) -> (i32, i32, i32, i32) {
    %c2_i32 = arith.constant 2 : i32
    %0 = arith.muli %c2_i32, %arg1 : i32
    %c0_i32 = arith.constant 0 : i32
    %1 = arith.subi %c0_i32, %0 : i32
    %2 = arith.muli %arg0, %1 : i32
    %3 = arith.addi %arg1, %2 : i32
    %c0_i32_0 = arith.constant 0 : i32
    %c0_i32_1 = arith.constant 0 : i32
    %c0_i32_2 = arith.constant 0 : i32
    return %arg0, %3, %c0_i32_0, %c0_i32_1 : i32, i32, i32, i32
  }
}

</mosaic_0001>

<llo_original>
// kernel: tpu_custom_call.1
$region0: #{tpu_custom_call.1}
  #allocation0 [shape = 'u32[]', space=smem, size = 0x4, offset = 0x4, fixed_abs, tag = 'smem constant byte address 0x4 - core index']
  #allocation1 [shape = 'u32[72,128]{1,0:T(1,128)}', space=vmem, size = 0x9000, scoped, tag = 'internal scratch']
  #allocation2 [shape = 'f32[8,128]{1,0:T(8,128)}', space=vmem, size = 0x1000, scoped, tag = 'scratch operand']
  #allocation3 [shape = 'f32[8,128]{1,0:T(8,128)}', space=vmem, size = 0x1000, scoped, tag = 'scratch operand']
  %s0 = inlined_call_operand.vmem [shape: s32[8,1], index: 0, kind: input, shape index: {}]
  %s1 = inlined_call_operand.hbm [shape: bf16[2,32,8,512], index: 1, kind: input, shape index: {}]
  %s2 = inlined_call_operand.hbm [shape: bf16[2,128,512], index: 2, kind: input, shape index: {}]
  %s3 = inlined_call_operand.hbm [shape: f32[2,8,128], index: 3, kind: input, shape index: {}]
  %s4 = inlined_call_operand.hbm [shape: f32[2,8,128], index: 4, kind: input, shape index: {}]
  %s5 = inlined_call_operand.hbm [shape: f32[2,32,8,128], index: 5, kind: output, shape index: {}]
  %s6 = sld [smem:[#allocation0]]
  $region95: #{tpu_custom_call.1} parent=0
    _
  %s8 = ssub.s32 1, %s6
  %s9 = scalar_select 0, %s8, %s6
  $region1: #{tpu_custom_call.1} parent=0
    #allocation4 [shape = 'u8[524288]{0}', space=vmem, size = 0x80000, scoped, tag = 'input window, operand 1']
    #allocation5 [shape = 's32[2]{0}', space=sflag, size = 0x8, scoped, tag = 'scoped memory for tpu_custom_call.1']
    #allocation6 [shape = 's32[2]{0}', space=sflag, size = 0x8, scoped, tag = 'scoped memory for tpu_custom_call.1']
    #allocation7 [shape = 'u8[262144]{0}', space=vmem, size = 0x40000, scoped, tag = 'input window, operand 2']
    #allocation8 [shape = 's32[2]{0}', space=sflag, size = 0x8, scoped, tag = 'scoped memory for tpu_custom_call.1']
    #allocation9 [shape = 'u8[8192]{0}', space=vmem, size = 0x2000, scoped, tag = 'input window, operand 3']
    #allocation10 [shape = 'u8[8192]{0}', space=vmem, size = 0x2000, scoped, tag = 'input window, operand 4']
    #allocation11 [shape = 's32[2]{0}', space=sflag, size = 0x8, scoped, tag = 'scoped memory for tpu_custom_call.1']
    #allocation12 [shape = 'u8[262144]{0}', space=vmem, size = 0x40000, scoped, tag = 'output window, operand 0']
    %10 = vsyncpa [#allocation5], 0
    %s11 = scalar_lea.sflag [#allocation5], 1
    %12 = vsyncpa %s11, 0
    %13 = vsyncpa [#allocation8], 0
    %s14 = scalar_lea.sflag [#allocation8], 1
    %15 = vsyncpa %s14, 0
    %16 = vsyncpa [#allocation11], 0
    %s17 = scalar_lea.sflag [#allocation11], 1
    %18 = vsyncpa %s17, 0
    %19 = vsyncpa [#allocation6], 0
    %s20 = scalar_lea.sflag [#allocation6], 1
    %21 = vsyncpa %s20, 0
    loop: start=0, step=1, limit=4
    $region2: #{tpu_custom_call.1} parent=1 // loop_pre_header
      _
    $region3: #{tpu_custom_call.1} parent=1 // loop_header
      %s23 = sphi 0, %s27
      %p24 = scmp.ge.s32.totalorder %s23, 4
      %s30 = sphi 0, %s42
      %s31 = sphi 0, %s38
      %s32 = sphi 0, %s30
      %s33 = sphi 0, %s31
      %s34 = sphi 0, %s32
      %s35 = sphi 0, %s33
      %s43 = sphi 0, %s43
      %s45 = sphi 0, %s43
      %s46 = sphi 0, %s45
      %s60 = sphi 0, %s46
      %s76 = sphi 0, %s78
      %s79 = sphi 0, %s76
      %s80 = sphi 0, %s79
      %s96 = sphi 0, %s80
      %s102 = sphi 0, %s104
      %s105 = sphi 0, %s102
      %s106 = sphi 0, %s105
      %s122 = sphi 0, %s106
      %s128 = sphi 0, %s130
      %s131 = sphi 0, %s128
      %s132 = sphi 0, %s131
      %s148 = sphi 0, %s132
      %s154 = sphi 0, %s156
      %s157 = sphi 0, %s154
      %s158 = sphi 0, %s157
      %s174 = sphi 0, %s158
      %s190 = sphi 0, %s192
      %s193 = sphi 0, %s190
      %s194 = sphi 0, %s193
      %s210 = sphi 0, %s194
    $region4: #{tpu_custom_call.1} parent=1 // loop_header_branch
      %26 = sbr.rel (%p24) target = $region8
    $region5: #{tpu_custom_call.1} parent=1 // loop_body
      %s28 = ssub.s32 %s23, 1
      %s29 = ssub.s32 %s23, 2
      %s36 = sadd.s32 1, %s31
      %p37 = scmp.ge.s32.totalorder %s36, 1
      %s38 = scalar_select %p37, 0, %s36
      %s39 = sadd.s32 1, %s30
      %s40 = scalar_select %p37, %s39, %s30
      %p41 = scmp.ge.s32.totalorder %s40, 2
      %s42 = scalar_select %p41, 0, %s40
      %s44 = sadd.s32 %s43, 1
      %p47 = scmp.eq.s32.totalorder %s23, 1
      %p48 = scmp.ne.s32.totalorder %s43, %s45
      %p49 = scmp.eq.s32.totalorder %s23, 0
      %p50 = por %p48, %p49
      %p51 = scmp.ne.s32.totalorder %s43, %s45
      %p52 = scmp.eq.s32.totalorder %s28, 1
      %p53 = por %p51, %p52
      %p54 = scmp.ne.s32.totalorder %s45, %s46
      %p55 = scmp.eq.s32.totalorder %s28, 0
      %p56 = por %p54, %p55
      %p57 = scmp.ne.s32.totalorder %s45, %s46
      %p58 = scmp.eq.s32.totalorder %s29, 1
      %p59 = por %p57, %p58
      %p61 = scmp.ne.s32.totalorder %s46, %s60
      %p62 = scmp.eq.s32.totalorder %s29, 0
      %p63 = por %p61, %p62
      %s64 = smul.u32 %s31, 2
      %s65 = ssub.s32 0, %s64
      %s66 = smul.u32 %s30, %s65
      %s67 = sadd.s32 %s31, %s66
      %s68 = smul.u32 %s38, 2
      %s69 = ssub.s32 0, %s68
      %s70 = smul.u32 %s42, %s69
      %s71 = sadd.s32 %s38, %s70
      %s72 = ssub.s32 %s30, %s42
      %s73 = ssub.s32 %s67, %s71
      %s74 = sor.u32 %s72, %s73
      %p75 = scmp.eq.s32.totalorder %s74, 0
      %s77 = sadd.s32 %s76, 1
      %s78 = scalar_select %p75, %s76, %s77
      %p81 = pneg %p75
      %p82 = scmp.eq.s32.totalorder %s23, 1
      %p83 = por %p81, %p82
      %p84 = scmp.ne.s32.totalorder %s76, %s79
      %p85 = scmp.eq.s32.totalorder %s23, 0
      %p86 = por %p84, %p85
      %p87 = scmp.ne.s32.totalorder %s76, %s79
      %p88 = scmp.eq.s32.totalorder %s28, 1
      %p89 = por %p87, %p88
      %p90 = scmp.ne.s32.totalorder %s79, %s80
      %p91 = scmp.eq.s32.totalorder %s28, 0
      %p92 = por %p90, %p91
      %p93 = scmp.ne.s32.totalorder %s79, %s80
      %p94 = scmp.eq.s32.totalorder %s29, 1
      %p95 = por %p93, %p94
      %p97 = scmp.ne.s32.totalorder %s80, %s96
      %p98 = scmp.eq.s32.totalorder %s29, 0
      %p99 = por %p97, %p98
      %s100 = ssub.s32 %s30, %s42
      %p101 = scmp.eq.s32.totalorder %s100, 0
      %s103 = sadd.s32 %s102, 1
      %s104 = scalar_select %p101, %s102, %s103
      %p107 = pneg %p101
      %p108 = scmp.eq.s32.totalorder %s23, 1
      %p109 = por %p107, %p108
      %p110 = scmp.ne.s32.totalorder %s102, %s105
      %p111 = scmp.eq.s32.totalorder %s23, 0
      %p112 = por %p110, %p111
      %p113 = scmp.ne.s32.totalorder %s102, %s105
      %p114 = scmp.eq.s32.totalorder %s28, 1
      %p115 = por %p113, %p114
      %p116 = scmp.ne.s32.totalorder %s105, %s106
      %p117 = scmp.eq.s32.totalorder %s28, 0
      %p118 = por %p116, %p117
      %p119 = scmp.ne.s32.totalorder %s105, %s106
      %p120 = scmp.eq.s32.totalorder %s29, 1
      %p121 = por %p119, %p120
      %p123 = scmp.ne.s32.totalorder %s106, %s122
      %p124 = scmp.eq.s32.totalorder %s29, 0
      %p125 = por %p123, %p124
      %s126 = ssub.s32 %s30, %s42
      %p127 = scmp.eq.s32.totalorder %s126, 0
      %s129 = sadd.s32 %s128, 1
      %s130 = scalar_select %p127, %s128, %s129
      %p133 = pneg %p127
      %p134 = scmp.eq.s32.totalorder %s23, 1
      %p135 = por %p133, %p134
      %p136 = scmp.ne.s32.totalorder %s128, %s131
      %p137 = scmp.eq.s32.totalorder %s23, 0
      %p138 = por %p136, %p137
      %p139 = scmp.ne.s32.totalorder %s128, %s131
      %p140 = scmp.eq.s32.totalorder %s28, 1
      %p141 = por %p139, %p140
      %p142 = scmp.ne.s32.totalorder %s131, %s132
      %p143 = scmp.eq.s32.totalorder %s28, 0
      %p144 = por %p142, %p143
      %p145 = scmp.ne.s32.totalorder %s131, %s132
      %p146 = scmp.eq.s32.totalorder %s29, 1
      %p147 = por %p145, %p146
      %p149 = scmp.ne.s32.totalorder %s132, %s148
      %p150 = scmp.eq.s32.totalorder %s29, 0
      %p151 = por %p149, %p150
      %s152 = ssub.s32 %s30, %s42
      %p153 = scmp.eq.s32.totalorder %s152, 0
      %s155 = sadd.s32 %s154, 1
      %s156 = scalar_select %p153, %s154, %s155
      %p159 = pneg %p153
      %p160 = scmp.eq.s32.totalorder %s23, 1
      %p161 = por %p159, %p160
      %p162 = scmp.ne.s32.totalorder %s154, %s157
      %p163 = scmp.eq.s32.totalorder %s23, 0
      %p164 = por %p162, %p163
      %p165 = scmp.ne.s32.totalorder %s154, %s157
      %p166 = scmp.eq.s32.totalorder %s28, 1
      %p167 = por %p165, %p166
      %p168 = scmp.ne.s32.totalorder %s157, %s158
      %p169 = scmp.eq.s32.totalorder %s28, 0
      %p170 = por %p168, %p169
      %p171 = scmp.ne.s32.totalorder %s157, %s158
      %p172 = scmp.eq.s32.totalorder %s29, 1
      %p173 = por %p171, %p172
      %p175 = scmp.ne.s32.totalorder %s158, %s174
      %p176 = scmp.eq.s32.totalorder %s29, 0
      %p177 = por %p175, %p176
      %s178 = smul.u32 %s31, 2
      %s179 = ssub.s32 0, %s178
      %s180 = smul.u32 %s30, %s179
      %s181 = sadd.s32 %s31, %s180
      %s182 = smul.u32 %s38, 2
      %s183 = ssub.s32 0, %s182
      %s184 = smul.u32 %s42, %s183
      %s185 = sadd.s32 %s38, %s184
      %s186 = ssub.s32 %s30, %s42
      %s187 = ssub.s32 %s181, %s185
      %s188 = sor.u32 %s186, %s187
      %p189 = scmp.eq.s32.totalorder %s188, 0
      %s191 = sadd.s32 %s190, 1
      %s192 = scalar_select %p189, %s190, %s191
      %p195 = pneg %p189
      %p196 = scmp.eq.s32.totalorder %s23, 1
      %p197 = por %p195, %p196
      %p198 = scmp.ne.s32.totalorder %s190, %s193
      %p199 = scmp.eq.s32.totalorder %s23, 0
      %p200 = por %p198, %p199
      %p201 = scmp.ne.s32.totalorder %s190, %s193
      %p202 = scmp.eq.s32.totalorder %s28, 1
      %p203 = por %p201, %p202
      %p204 = scmp.ne.s32.totalorder %s193, %s194
      %p205 = scmp.eq.s32.totalorder %s28, 0
      %p206 = por %p204, %p205
      %p207 = scmp.ne.s32.totalorder %s193, %s194
      %p208 = scmp.eq.s32.totalorder %s29, 1
      %p209 = por %p207, %p208
      %p211 = scmp.ne.s32.totalorder %s194, %s210
      %p212 = scmp.eq.s32.totalorder %s29, 0
      %p213 = por %p211, %p212
      %p214 = scmp.le.s32.totalorder 1, %s23
      %p215 = scmp.lt.s32.totalorder %s23, 3
      %p216 = pnand %p214, %p215
      %p217 = pneg %p216
      // Predicated region
      $region9: #{tpu_custom_call.1} parent=5 // pred_check
        _
      $region10: #{tpu_custom_call.1} parent=5 // pred_check_branch
        %219 = sbr.rel (%p216) target = $region12
      $region11: #{tpu_custom_call.1} parent=5 // pred_region
        %s220 = ssub.s32 %s23, 1
        // Predicated region
        $region13: #{tpu_custom_call.1} parent=11 // pred_check
          %p221 = pneg %p56
        $region14: #{tpu_custom_call.1} parent=11 // pred_check_branch
          %223 = sbr.rel (%p221) target = $region16
        $region15: #{tpu_custom_call.1} parent=11 // pred_region
          _
        $region16: #{tpu_custom_call.1} parent=11 // pred_fallthru
          _
      $region12: #{tpu_custom_call.1} parent=5 // pred_fallthru
        _
      %p224 = scmp.lt.s32.totalorder %s23, 2
      // Predicated region
      $region17: #{tpu_custom_call.1} parent=5 // pred_check
        %p225 = pneg %p224
      $region18: #{tpu_custom_call.1} parent=5 // pred_check_branch
        %227 = sbr.rel (%p225) target = $region20
      $region19: #{tpu_custom_call.1} parent=5 // pred_region
        // Predicated region
        $region21: #{tpu_custom_call.1} parent=19 // pred_check
          %p228 = pneg %p86
        $region22: #{tpu_custom_call.1} parent=19 // pred_check_branch
          %230 = sbr.rel (%p228) target = $region24
        $region23: #{tpu_custom_call.1} parent=19 // pred_region
          %s231 = sand.u32 %s76, 1
          %s232 = scalar_lea.sflag [#allocation5], %s231
          %s233 = sand.u32 %s76, 1
          %s234 = smul.addr %s233, 512
          %s235 = scalar_lea.vmem [#allocation4], %s234
          %s236 = smul.u32 %s31, 2
          %s237 = ssub.s32 0, %s236
          %s238 = smul.u32 %s30, %s237
          %s239 = sadd.s32 %s31, %s238
          %s240 = smul.u32 32, %s239
          %242 = vsyncadd %s232, 0
          %s243 = smul.addr %s240, 4
          %s244 = smul.addr %s30, 128
          %s245 = sadd.s32 %s243, %s244
          %s246 = smul.addr %s245, 4
          %s247 = scalar_lea.hbm %s1, %s246
          %s248 = sshll.u32 %s247, 4
          %s249 = int_to_ptr.hbm [resolvable:$true] %s248
          %s250 = sshll.u32 %s235, 4
          %s251 = int_to_ptr.vmem [resolvable:$true] %s250
          %256 = dma.hbm_to_vmem [thread:$0]  %s249, 8192, %s251, %s232, 256, 256, 16
        $region24: #{tpu_custom_call.1} parent=19 // pred_fallthru
          _
        // Predicated region
        $region25: #{tpu_custom_call.1} parent=19 // pred_check
          %p257 = pneg %p112
        $region26: #{tpu_custom_call.1} parent=19 // pred_check_branch
          %259 = sbr.rel (%p257) target = $region28
        $region27: #{tpu_custom_call.1} parent=19 // pred_region
          %s260 = sand.u32 %s23, 1
          %s261 = scalar_lea.sflag [#allocation8], %s260
          %s262 = sand.u32 %s102, 1
          %s263 = smul.addr %s262, 256
          %s264 = scalar_lea.vmem [#allocation7], %s263
          %266 = vsyncadd %s261, 0
          %s267 = smul.addr %s30, 64
          %s268 = smul.addr %s267, 4
          %s269 = scalar_lea.hbm %s2, %s268
          %s270 = sshll.u32 %s269, 4
          %s271 = int_to_ptr.hbm [resolvable:$true] %s270
          %s272 = sshll.u32 %s264, 4
          %s273 = int_to_ptr.vmem [resolvable:$true] %s272
          %278 = dma.hbm_to_vmem [thread:$0]  %s271, 4096, %s273, %s261, 256, 256, 16
        $region28: #{tpu_custom_call.1} parent=19 // pred_fallthru
          _
        // Predicated region
        $region29: #{tpu_custom_call.1} parent=19 // pred_check
          %p279 = pneg %p138
        $region30: #{tpu_custom_call.1} parent=19 // pred_check_branch
          %281 = sbr.rel (%p279) target = $region32
        $region31: #{tpu_custom_call.1} parent=19 // pred_region
          %s282 = sand.u32 %s23, 1
          %s283 = scalar_lea.sflag [#allocation8], %s282
          %s284 = sand.u32 %s128, 1
          %s285 = smul.addr %s284, 8
          %s286 = scalar_lea.vmem [#allocation9], %s285
          %288 = vsyncadd %s283, 0
          %s289 = smul.addr %s30, 8
          %s290 = scalar_lea.hbm %s3, %s289
          %s292 = sshll.u32 %s290, 4
          %s293 = int_to_ptr.hbm [resolvable:$true] %s292
          %s294 = sshll.u32 %s286, 4
          %s295 = int_to_ptr.vmem [resolvable:$true] %s294
          %297 = dma.hbm_to_vmem [thread:$0]  %s293, 128, %s295, %s283
        $region32: #{tpu_custom_call.1} parent=19 // pred_fallthru
          _
        // Predicated region
        $region33: #{tpu_custom_call.1} parent=19 // pred_check
          %p298 = pneg %p164
        $region34: #{tpu_custom_call.1} parent=19 // pred_check_branch
          %300 = sbr.rel (%p298) target = $region36
        $region35: #{tpu_custom_call.1} parent=19 // pred_region
          %s301 = sand.u32 %s154, 1
          %s302 = scalar_lea.sflag [#allocation11], %s301
          %s303 = sand.u32 %s154, 1
          %s304 = smul.addr %s303, 8
          %s305 = scalar_lea.vmem [#allocation10], %s304
          %307 = vsyncadd %s302, 0
          %s308 = smul.addr %s30, 8
          %s309 = scalar_lea.hbm %s4, %s308
          %s311 = sshll.u32 %s309, 4
          %s312 = int_to_ptr.hbm [resolvable:$true] %s311
          %s313 = sshll.u32 %s305, 4
          %s314 = int_to_ptr.vmem [resolvable:$true] %s313
          %316 = dma.hbm_to_vmem [thread:$0]  %s312, 128, %s314, %s302
        $region36: #{tpu_custom_call.1} parent=19 // pred_fallthru
          _
      $region20: #{tpu_custom_call.1} parent=5 // pred_fallthru
        _
      %p317 = scmp.le.s32.totalorder 1, %s23
      %p318 = scmp.lt.s32.totalorder %s23, 3
      %p319 = pnand %p317, %p318
      %p320 = pneg %p319
      // Predicated region
      $region37: #{tpu_custom_call.1} parent=5 // pred_check
        _
      $region38: #{tpu_custom_call.1} parent=5 // pred_check_branch
        %322 = sbr.rel (%p319) target = $region40
      $region39: #{tpu_custom_call.1} parent=5 // pred_region
        %s323 = ssub.s32 %s23, 1
        %s324 = sand.u32 %s79, 1
        %s325 = scalar_lea.sflag [#allocation5], %s324
        %s326 = sand.u32 %s79, 1
        %s327 = smul.addr %s326, 512
        %s328 = scalar_lea.vmem [#allocation4], %s327
        // Predicated region
        $region41: #{tpu_custom_call.1} parent=39 // pred_check
          %p329 = pneg %p92
        $region42: #{tpu_custom_call.1} parent=39 // pred_check_branch
          %331 = sbr.rel (%p329) target = $region44
        $region43: #{tpu_custom_call.1} parent=39 // pred_region
          %333 = dma.done %s325, 8192
        $region44: #{tpu_custom_call.1} parent=39 // pred_fallthru
          _
        %s334 = sand.u32 %s28, 1
        %s335 = scalar_lea.sflag [#allocation8], %s334
        %s336 = sand.u32 %s105, 1
        %s337 = smul.addr %s336, 256
        %s338 = scalar_lea.vmem [#allocation7], %s337
        // Predicated region
        $region45: #{tpu_custom_call.1} parent=39 // pred_check
          %p339 = pneg %p118
        $region46: #{tpu_custom_call.1} parent=39 // pred_check_branch
          %341 = sbr.rel (%p339) target = $region48
        $region47: #{tpu_custom_call.1} parent=39 // pred_region
          %343 = dma.done %s335, 4096
        $region48: #{tpu_custom_call.1} parent=39 // pred_fallthru
          _
        %s344 = sand.u32 %s28, 1
        %s345 = scalar_lea.sflag [#allocation8], %s344
        %s346 = sand.u32 %s131, 1
        %s347 = smul.addr %s346, 8
        %s348 = scalar_lea.vmem [#allocation9], %s347
        // Predicated region
        $region49: #{tpu_custom_call.1} parent=39 // pred_check
          %p349 = pneg %p144
        $region50: #{tpu_custom_call.1} parent=39 // pred_check_branch
          %351 = sbr.rel (%p349) target = $region52
        $region51: #{tpu_custom_call.1} parent=39 // pred_region
          %353 = dma.done %s345, 128
        $region52: #{tpu_custom_call.1} parent=39 // pred_fallthru
          _
        %s354 = sand.u32 %s157, 1
        %s355 = scalar_lea.sflag [#allocation11], %s354
        %s356 = sand.u32 %s157, 1
        %s357 = smul.addr %s356, 8
        %s358 = scalar_lea.vmem [#allocation10], %s357
        // Predicated region
        $region53: #{tpu_custom_call.1} parent=39 // pred_check
          %p359 = pneg %p170
        $region54: #{tpu_custom_call.1} parent=39 // pred_check_branch
          %361 = sbr.rel (%p359) target = $region56
        $region55: #{tpu_custom_call.1} parent=39 // pred_region
          %363 = dma.done %s355, 128
        $region56: #{tpu_custom_call.1} parent=39 // pred_fallthru
          _
        %p364 = pneg %p56
        %p365 = pneg %p53
        %s366 = sand.u32 %s79, 1
        %s367 = scalar_lea.sflag [#allocation5], %s366
        %s368 = sand.u32 %s79, 1
        %s369 = smul.addr %s368, 512
        %s370 = scalar_lea.vmem [#allocation4], %s369
        %p371 = pneg %p92
        %p372 = pneg %p89
        %s373 = sand.u32 %s28, 1
        %s374 = scalar_lea.sflag [#allocation8], %s373
        %s375 = sand.u32 %s105, 1
        %s376 = smul.addr %s375, 256
        %s377 = scalar_lea.vmem [#allocation7], %s376
        %p378 = pneg %p118
        %p379 = pneg %p115
        %s380 = sand.u32 %s28, 1
        %s381 = scalar_lea.sflag [#allocation8], %s380
        %s382 = sand.u32 %s131, 1
        %s383 = smul.addr %s382, 8
        %s384 = scalar_lea.vmem [#allocation9], %s383
        %p385 = pneg %p144
        %p386 = pneg %p141
        %s387 = sand.u32 %s157, 1
        %s388 = scalar_lea.sflag [#allocation11], %s387
        %s389 = sand.u32 %s157, 1
        %s390 = smul.addr %s389, 8
        %s391 = scalar_lea.vmem [#allocation10], %s390
        %p392 = pneg %p170
        %p393 = pneg %p167
        %p394 = pneg %p206
        %p395 = pneg %p203
        %s396 = sand.u32 %s193, 1
        %s397 = scalar_lea.sflag [#allocation6], %s396
        %s398 = sand.u32 %s193, 1
        %s399 = smul.addr %s398, 256
        %s400 = scalar_lea.vmem [#allocation12], %s399
        %s401 = smul.u32 %s33, 2
        %s402 = ssub.s32 0, %s401
        %s403 = smul.u32 %s32, %s402
        %s404 = sadd.s32 %s33, %s403
        %s405 = smul.u32 32, %s404
        %s406 = smul.u32 %s33, 2
        %s407 = ssub.s32 0, %s406
        %s408 = smul.u32 %s32, %s407
        %s409 = sadd.s32 %s33, %s408
        %s410 = smul.u32 32, %s409
        %p411 = scmp.eq.s32.totalorder %s33, 0
        // Predicated region
        $region57: #{tpu_custom_call.1} parent=39 // pred_check
          %p412 = pneg %p411
        $region58: #{tpu_custom_call.1} parent=39 // pred_check_branch
          %414 = sbr.rel (%p412) target = $region60
        $region59: #{tpu_custom_call.1} parent=39 // pred_region
          %v415 = vld [vmem:[%s348] sm:$0xff]
          %416 = vst [vmem:[#allocation2] sm:$0xff] %v415
          %v417 = vld [vmem:[%s358] sm:$0xff]
          %418 = vst [vmem:[#allocation3] sm:$0xff] %v417
        $region60: #{tpu_custom_call.1} parent=39 // pred_fallthru
          _
        %v419 = vld [vmem:[%s0] sm:$0xff]
        %p420 = scmp.eq.s32.totalorder %s32, 0
        // Predicated region
        $region61: #{tpu_custom_call.1} parent=39 // pred_check
          %p421 = pneg %p420
        $region62: #{tpu_custom_call.1} parent=39 // pred_check_branch
          %423 = sbr.rel (%p421) target = $region64
        $region63: #{tpu_custom_call.1} parent=39 // pred_region
          %s424 = smul.u32 %s33, 32
          %v425 = vld [vmem:[#allocation2] sm:$0xff]
          %v426 = vld [vmem:[#allocation3] sm:$0xff]
          loop: start=0, step=1, limit=4
          $region65: #{tpu_custom_call.1} parent=63 // loop_pre_header
            _
          $region66: #{tpu_custom_call.1} parent=63 // loop_header
            %s428 = sphi 0, %s432
            %p429 = scmp.ge.s32.totalorder %s428, 4
            %v433 = vphi %v425, %v3121
            %v434 = vphi %v426, %v3122
          $region67: #{tpu_custom_call.1} parent=63 // loop_header_branch
            %431 = sbr.rel (%p429) target = $region71
          $region68: #{tpu_custom_call.1} parent=63 // loop_body
            %s435 = smul.u32 %s428, 8
            %s436 = smul.u32 %s435, 4
            %s437 = smul.addr %s436, 4
            %s438 = scalar_lea.vmem %s328, %s437 [#allocation4]
            %v439 = vld [vmem:[%s438] sm:$0xff]
            %v440 = vld [vmem:[%s438 + $0x8] sm:$0xff]
            %v441 = vunpack.c.l.bf16 %v439
            %v442 = vunpack.c.h.bf16 %v439
            %v443 = vunpack.c.l.bf16 %v440
            %v444 = vunpack.c.h.bf16 %v440
            %v445 = vpack.c.bf16 %v433, %v433
            %v446 = vld [vmem:[%s338] sm:$0xff]
            %v447 = vld [vmem:[%s338 + $0x8] sm:$0xff]
            %v448 = vld [vmem:[%s338 + $0x10] sm:$0xff]
            %v449 = vld [vmem:[%s338 + $0x18] sm:$0xff]
            %v450 = vld [vmem:[%s338 + $0x20] sm:$0xff]
            %v451 = vld [vmem:[%s338 + $0x28] sm:$0xff]
            %v452 = vld [vmem:[%s338 + $0x30] sm:$0xff]
            %v453 = vld [vmem:[%s338 + $0x38] sm:$0xff]
            %v454 = vld [vmem:[%s338 + $0x40] sm:$0xff]
            %v455 = vld [vmem:[%s338 + $0x48] sm:$0xff]
            %v456 = vld [vmem:[%s338 + $0x50] sm:$0xff]
            %v457 = vld [vmem:[%s338 + $0x58] sm:$0xff]
            %v458 = vld [vmem:[%s338 + $0x60] sm:$0xff]
            %v459 = vld [vmem:[%s338 + $0x68] sm:$0xff]
            %v460 = vld [vmem:[%s338 + $0x70] sm:$0xff]
            %v461 = vld [vmem:[%s338 + $0x78] sm:$0xff]
            %v462 = vld [vmem:[%s338 + $0x80] sm:$0xff]
            %v463 = vld [vmem:[%s338 + $0x88] sm:$0xff]
            %v464 = vld [vmem:[%s338 + $0x90] sm:$0xff]
            %v465 = vld [vmem:[%s338 + $0x98] sm:$0xff]
            %v466 = vld [vmem:[%s338 + $0xa0] sm:$0xff]
            %v467 = vld [vmem:[%s338 + $0xa8] sm:$0xff]
            %v468 = vld [vmem:[%s338 + $0xb0] sm:$0xff]
            %v469 = vld [vmem:[%s338 + $0xb8] sm:$0xff]
            %v470 = vld [vmem:[%s338 + $0xc0] sm:$0xff]
            %v471 = vld [vmem:[%s338 + $0xc8] sm:$0xff]
            %v472 = vld [vmem:[%s338 + $0xd0] sm:$0xff]
            %v473 = vld [vmem:[%s338 + $0xd8] sm:$0xff]
            %v474 = vld [vmem:[%s338 + $0xe0] sm:$0xff]
            %v475 = vld [vmem:[%s338 + $0xe8] sm:$0xff]
            %v476 = vld [vmem:[%s338 + $0xf0] sm:$0xff]
            %v477 = vld [vmem:[%s338 + $0xf8] sm:$0xff]
            %v510 = vunpack.c.l.b16 %v446
            %v511 = vunpack.c.h.b16 %v446
            %v512 = vunpack.c.l.b16 %v447
            %v513 = vunpack.c.h.b16 %v447
            %v514 = vunpack.c.l.b16 %v448
            %v515 = vunpack.c.h.b16 %v448
            %v516 = vunpack.c.l.b16 %v449
            %v517 = vunpack.c.h.b16 %v449
            %v518 = vunpack.c.l.b16 %v450
            %v519 = vunpack.c.h.b16 %v450
            %v520 = vunpack.c.l.b16 %v451
            %v521 = vunpack.c.h.b16 %v451
            %v522 = vunpack.c.l.b16 %v452
            %v523 = vunpack.c.h.b16 %v452
            %v524 = vunpack.c.l.b16 %v453
            %v525 = vunpack.c.h.b16 %v453
            %v526 = vunpack.c.l.b16 %v454
            %v527 = vunpack.c.h.b16 %v454
            %v528 = vunpack.c.l.b16 %v455
            %v529 = vunpack.c.h.b16 %v455
            %v530 = vunpack.c.l.b16 %v456
            %v531 = vunpack.c.h.b16 %v456
            %v532 = vunpack.c.l.b16 %v457
            %v533 = vunpack.c.h.b16 %v457
            %v534 = vunpack.c.l.b16 %v458
            %v535 = vunpack.c.h.b16 %v458
            %v536 = vunpack.c.l.b16 %v459
            %v537 = vunpack.c.h.b16 %v459
            %v538 = vunpack.c.l.b16 %v460
            %v539 = vunpack.c.h.b16 %v460
            %v540 = vunpack.c.l.b16 %v461
            %v541 = vunpack.c.h.b16 %v461
            %v542 = vunpack.c.l.b16 %v462
            %v543 = vunpack.c.h.b16 %v462
            %v544 = vunpack.c.l.b16 %v463
            %v545 = vunpack.c.h.b16 %v463
            %v546 = vunpack.c.l.b16 %v464
            %v547 = vunpack.c.h.b16 %v464
            %v548 = vunpack.c.l.b16 %v465
            %v549 = vunpack.c.h.b16 %v465
            %v550 = vunpack.c.l.b16 %v466
            %v551 = vunpack.c.h.b16 %v466
            %v552 = vunpack.c.l.b16 %v467
            %v553 = vunpack.c.h.b16 %v467
            %v554 = vunpack.c.l.b16 %v468
            %v555 = vunpack.c.h.b16 %v468
            %v556 = vunpack.c.l.b16 %v469
            %v557 = vunpack.c.h.b16 %v469
            %v558 = vunpack.c.l.b16 %v470
            %v559 = vunpack.c.h.b16 %v470
            %v560 = vunpack.c.l.b16 %v471
            %v561 = vunpack.c.h.b16 %v471
            %v562 = vunpack.c.l.b16 %v472
            %v563 = vunpack.c.h.b16 %v472
            %v564 = vunpack.c.l.b16 %v473
            %v565 = vunpack.c.h.b16 %v473
            %v566 = vunpack.c.l.b16 %v474
            %v567 = vunpack.c.h.b16 %v474
            %v568 = vunpack.c.l.b16 %v475
            %v569 = vunpack.c.h.b16 %v475
            %v570 = vunpack.c.l.b16 %v476
            %v571 = vunpack.c.h.b16 %v476
            %v572 = vunpack.c.l.b16 %v477
            %v573 = vunpack.c.h.b16 %v477
            %v574 = vpack.c.b16 %v514, %v510
            %v575 = vpack.c.b16 %v515, %v511
            %v576 = vpack.c.b16 %v516, %v512
            %v577 = vpack.c.b16 %v517, %v513
            %v578 = vpack.c.b16 %v522, %v518
            %v579 = vpack.c.b16 %v523, %v519
            %v580 = vpack.c.b16 %v524, %v520
            %v581 = vpack.c.b16 %v525, %v521
            %v582 = vpack.c.b16 %v530, %v526
            %v583 = vpack.c.b16 %v531, %v527
            %v584 = vpack.c.b16 %v532, %v528
            %v585 = vpack.c.b16 %v533, %v529
            %v586 = vpack.c.b16 %v538, %v534
            %v587 = vpack.c.b16 %v539, %v535
            %v588 = vpack.c.b16 %v540, %v536
            %v589 = vpack.c.b16 %v541, %v537
            %v590 = vpack.c.b16 %v546, %v542
            %v591 = vpack.c.b16 %v547, %v543
            %v592 = vpack.c.b16 %v548, %v544
            %v593 = vpack.c.b16 %v549, %v545
            %v594 = vpack.c.b16 %v554, %v550
            %v595 = vpack.c.b16 %v555, %v551
            %v596 = vpack.c.b16 %v556, %v552
            %v597 = vpack.c.b16 %v557, %v553
            %v598 = vpack.c.b16 %v562, %v558
            %v599 = vpack.c.b16 %v563, %v559
            %v600 = vpack.c.b16 %v564, %v560
            %v601 = vpack.c.b16 %v565, %v561
            %v602 = vpack.c.b16 %v570, %v566
            %v603 = vpack.c.b16 %v571, %v567
            %v604 = vpack.c.b16 %v572, %v568
            %v605 = vpack.c.b16 %v573, %v569
            %638 = vmatpush.bf16.msra.mxu0 %v602
            %639 = vmatpush.bf16.msra.mxu0 %v598
            %640 = vmatpush.bf16.msra.mxu0 %v594
            %641 = vmatpush.bf16.msra.mxu0 %v590
            %642 = vmatpush.bf16.msra.mxu0 %v586
            %643 = vmatpush.bf16.msra.mxu0 %v582
            %644 = vmatpush.bf16.msra.mxu0 %v578
            %645 = vmatpush.bf16.msra.mxu0 %v574
            %646 = vmatmul.bf16.gmra.mxu0 %v445
            %v647 = vpop.f32.mrf.mxu0
            %v648 = vadd.f32 0.0, %v647
            %v649 = vpop.f32.mrf.mxu0
            %650 = vdwg.mxu0
            %651 = vmatpush.bf16.msra.mxu0 %v603
            %652 = vmatpush.bf16.msra.mxu0 %v599
            %653 = vmatpush.bf16.msra.mxu0 %v595
            %654 = vmatpush.bf16.msra.mxu0 %v591
            %655 = vmatpush.bf16.msra.mxu0 %v587
            %656 = vmatpush.bf16.msra.mxu0 %v583
            %657 = vmatpush.bf16.msra.mxu0 %v579
            %658 = vmatpush.bf16.msra.mxu0 %v575
            %659 = vmatmul.bf16.gmra.mxu0 %v445
            %v660 = vpop.f32.mrf.mxu0
            %v661 = vadd.f32 0.0, %v660
            %v662 = vpop.f32.mrf.mxu0
            %663 = vdwg.mxu0
            %664 = vmatpush.bf16.msra.mxu0 %v604
            %665 = vmatpush.bf16.msra.mxu0 %v600
            %666 = vmatpush.bf16.msra.mxu0 %v596
            %667 = vmatpush.bf16.msra.mxu0 %v592
            %668 = vmatpush.bf16.msra.mxu0 %v588
            %669 = vmatpush.bf16.msra.mxu0 %v584
            %670 = vmatpush.bf16.msra.mxu0 %v580
            %671 = vmatpush.bf16.msra.mxu0 %v576
            %672 = vmatmul.bf16.gmra.mxu0 %v445
            %v673 = vpop.f32.mrf.mxu0
            %v674 = vadd.f32 0.0, %v673
            %v675 = vpop.f32.mrf.mxu0
            %676 = vdwg.mxu0
            %677 = vmatpush.bf16.msra.mxu0 %v605
            %678 = vmatpush.bf16.msra.mxu0 %v601
            %679 = vmatpush.bf16.msra.mxu0 %v597
            %680 = vmatpush.bf16.msra.mxu0 %v593
            %681 = vmatpush.bf16.msra.mxu0 %v589
            %682 = vmatpush.bf16.msra.mxu0 %v585
            %683 = vmatpush.bf16.msra.mxu0 %v581
            %684 = vmatpush.bf16.msra.mxu0 %v577
            %685 = vmatmul.bf16.gmra.mxu0 %v445
            %v686 = vpop.f32.mrf.mxu0
            %v687 = vadd.f32 0.0, %v686
            %v688 = vpop.f32.mrf.mxu0
            %689 = vdwg.mxu0
            %v690 = vadd.f32 %v441, %v648
            %v691 = vadd.f32 %v442, %v661
            %v692 = vadd.f32 %v443, %v674
            %v693 = vadd.f32 %v444, %v687
            %v694 = vxor.u32 %v690, 2147483648
            %v695 = vxor.u32 %v691, 2147483648
            %v696 = vxor.u32 %v692, 2147483648
            %v697 = vmul.f32 %v694, 1.442695
            %v698 = vpow.pop %v697
            %v699 = vmul.f32 %v695, 1.442695
            %v700 = vpow.pop %v699
            %v701 = vmul.f32 %v696, 1.442695
            %v702 = vpow.pop %v701
            %v703 = vadd.f32 %v698, 1.0
            %v704 = vadd.f32 %v700, 1.0
            %v705 = vadd.f32 %v702, 1.0
            %v706 = vrcp.pop %v703
            %v707 = vmul.f32 %v703, %v706
            %v708 = vsub.f32 1.0, %v707
            %v709 = vmul.f32 %v706, %v708
            %v710 = vadd.f32 %v706, %v709
            %vm711 = vweird.f32 %v703
            %vm712 = vweird.f32 %v706
            %vm713 = vmor %vm711, %vm712
            %v714 = vsel %vm713, %v706, %v710
            %v715 = vand.u32 2147483647, %v703
            %vm716 = vcmp.eq.f32.partialorder %v715, 8.507059e+37
            %v717 = vand.u32 %v703, 2147483648
            %v718 = vor.u32 1.1754944e-38, %v717
            %v719 = vsel %vm716, %v718, %v714
            %v720 = vmul.f32 1.0, %v719
            %v721 = vrcp.pop %v704
            %v722 = vmul.f32 %v704, %v721
            %v723 = vsub.f32 1.0, %v722
            %v724 = vmul.f32 %v721, %v723
            %v725 = vadd.f32 %v721, %v724
            %vm726 = vweird.f32 %v704
            %vm727 = vweird.f32 %v721
            %vm728 = vmor %vm726, %vm727
            %v729 = vsel %vm728, %v721, %v725
            %v730 = vand.u32 2147483647, %v704
            %vm731 = vcmp.eq.f32.partialorder %v730, 8.507059e+37
            %v732 = vand.u32 %v704, 2147483648
            %v733 = vor.u32 1.1754944e-38, %v732
            %v734 = vsel %vm731, %v733, %v729
            %v735 = vmul.f32 1.0, %v734
            %v736 = vrcp.pop %v705
            %v737 = vmul.f32 %v705, %v736
            %v738 = vsub.f32 1.0, %v737
            %v739 = vmul.f32 %v736, %v738
            %v740 = vadd.f32 %v736, %v739
            %vm741 = vweird.f32 %v705
            %vm742 = vweird.f32 %v736
            %vm743 = vmor %vm741, %vm742
            %v744 = vsel %vm743, %v736, %v740
            %v745 = vand.u32 2147483647, %v705
            %vm746 = vcmp.eq.f32.partialorder %v745, 8.507059e+37
            %v747 = vand.u32 %v705, 2147483648
            %v748 = vor.u32 1.1754944e-38, %v747
            %v749 = vsel %vm746, %v748, %v744
            %v750 = vmul.f32 1.0, %v749
            %v751 = vtanh.pop %v693
            %v752 = vmul.f32 %v735, %v434
            %v753 = vmul.f32 %v720, %v751
            %v754 = vadd.f32 %v752, %v753
            %v755 = vtanh.pop %v754
            %v756 = vmul.f32 %v750, %v755
            %s757 = sadd.s32 %s424, %s435
            %v758 = vstv %s757
            %vm759 = vcmp.lt.s32.totalorder %v758, %v419
            %v760 = vsel %vm759, 1, 0
            %761 = vset.pattern.permute.xlu0 0
            %762 = vperm.xlu0 %761, %v760
            %v763 = vpop.permute.xlu0 %762
            %vm764 = vcmp.eq.s32.totalorder %v763, 1
            %v765 = vsel %vm764, %v756, 0.0
            %s766 = smul.u32 %s435, 8
            %s767 = scalar_lea.vmem %s400, %s766 [#allocation12]
            %768 = vst [vmem:[%s767] sm:$0xff] %v765
            %v769 = vsel %vm764, %v756, %v433
            %v770 = vsel %vm764, %v754, %v434
            %s771 = sadd.s32 %s435, 1
            %s772 = smul.u32 %s771, 4
            %s773 = smul.addr %s772, 4
            %s774 = scalar_lea.vmem %s328, %s773 [#allocation4]
            %v775 = vld [vmem:[%s774] sm:$0xff]
            %v776 = vld [vmem:[%s774 + $0x8] sm:$0xff]
            %v777 = vunpack.c.l.bf16 %v775
            %v778 = vunpack.c.h.bf16 %v775
            %v779 = vunpack.c.l.bf16 %v776
            %v780 = vunpack.c.h.bf16 %v776
            %v781 = vpack.c.bf16 %v769, %v769
            %v782 = vld [vmem:[%s338] sm:$0xff]
            %v783 = vld [vmem:[%s338 + $0x8] sm:$0xff]
            %v784 = vld [vmem:[%s338 + $0x10] sm:$0xff]
            %v785 = vld [vmem:[%s338 + $0x18] sm:$0xff]
            %v786 = vld [vmem:[%s338 + $0x20] sm:$0xff]
            %v787 = vld [vmem:[%s338 + $0x28] sm:$0xff]
            %v788 = vld [vmem:[%s338 + $0x30] sm:$0xff]
            %v789 = vld [vmem:[%s338 + $0x38] sm:$0xff]
            %v790 = vld [vmem:[%s338 + $0x40] sm:$0xff]
            %v791 = vld [vmem:[%s338 + $0x48] sm:$0xff]
            %v792 = vld [vmem:[%s338 + $0x50] sm:$0xff]
            %v793 = vld [vmem:[%s338 + $0x58] sm:$0xff]
            %v794 = vld [vmem:[%s338 + $0x60] sm:$0xff]
            %v795 = vld [vmem:[%s338 + $0x68] sm:$0xff]
            %v796 = vld [vmem:[%s338 + $0x70] sm:$0xff]
            %v797 = vld [vmem:[%s338 + $0x78] sm:$0xff]
            %v798 = vld [vmem:[%s338 + $0x80] sm:$0xff]
            %v799 = vld [vmem:[%s338 + $0x88] sm:$0xff]
            %v800 = vld [vmem:[%s338 + $0x90] sm:$0xff]
            %v801 = vld [vmem:[%s338 + $0x98] sm:$0xff]
            %v802 = vld [vmem:[%s338 + $0xa0] sm:$0xff]
            %v803 = vld [vmem:[%s338 + $0xa8] sm:$0xff]
            %v804 = vld [vmem:[%s338 + $0xb0] sm:$0xff]
            %v805 = vld [vmem:[%s338 + $0xb8] sm:$0xff]
            %v806 = vld [vmem:[%s338 + $0xc0] sm:$0xff]
            %v807 = vld [vmem:[%s338 + $0xc8] sm:$0xff]
            %v808 = vld [vmem:[%s338 + $0xd0] sm:$0xff]
            %v809 = vld [vmem:[%s338 + $0xd8] sm:$0xff]
            %v810 = vld [vmem:[%s338 + $0xe0] sm:$0xff]
            %v811 = vld [vmem:[%s338 + $0xe8] sm:$0xff]
            %v812 = vld [vmem:[%s338 + $0xf0] sm:$0xff]
            %v813 = vld [vmem:[%s338 + $0xf8] sm:$0xff]
            %v846 = vunpack.c.l.b16 %v782
            %v847 = vunpack.c.h.b16 %v782
            %v848 = vunpack.c.l.b16 %v783
            %v849 = vunpack.c.h.b16 %v783
            %v850 = vunpack.c.l.b16 %v784
            %v851 = vunpack.c.h.b16 %v784
            %v852 = vunpack.c.l.b16 %v785
            %v853 = vunpack.c.h.b16 %v785
            %v854 = vunpack.c.l.b16 %v786
            %v855 = vunpack.c.h.b16 %v786
            %v856 = vunpack.c.l.b16 %v787
            %v857 = vunpack.c.h.b16 %v787
            %v858 = vunpack.c.l.b16 %v788
            %v859 = vunpack.c.h.b16 %v788
            %v860 = vunpack.c.l.b16 %v789
            %v861 = vunpack.c.h.b16 %v789
            %v862 = vunpack.c.l.b16 %v790
            %v863 = vunpack.c.h.b16 %v790
            %v864 = vunpack.c.l.b16 %v791
            %v865 = vunpack.c.h.b16 %v791
            %v866 = vunpack.c.l.b16 %v792
            %v867 = vunpack.c.h.b16 %v792
            %v868 = vunpack.c.l.b16 %v793
            %v869 = vunpack.c.h.b16 %v793
            %v870 = vunpack.c.l.b16 %v794
            %v871 = vunpack.c.h.b16 %v794
            %v872 = vunpack.c.l.b16 %v795
            %v873 = vunpack.c.h.b16 %v795
            %v874 = vunpack.c.l.b16 %v796
            %v875 = vunpack.c.h.b16 %v796
            %v876 = vunpack.c.l.b16 %v797
            %v877 = vunpack.c.h.b16 %v797
            %v878 = vunpack.c.l.b16 %v798
            %v879 = vunpack.c.h.b16 %v798
            %v880 = vunpack.c.l.b16 %v799
            %v881 = vunpack.c.h.b16 %v799
            %v882 = vunpack.c.l.b16 %v800
            %v883 = vunpack.c.h.b16 %v800
            %v884 = vunpack.c.l.b16 %v801
            %v885 = vunpack.c.h.b16 %v801
            %v886 = vunpack.c.l.b16 %v802
            %v887 = vunpack.c.h.b16 %v802
            %v888 = vunpack.c.l.b16 %v803
            %v889 = vunpack.c.h.b16 %v803
            %v890 = vunpack.c.l.b16 %v804
            %v891 = vunpack.c.h.b16 %v804
            %v892 = vunpack.c.l.b16 %v805
            %v893 = vunpack.c.h.b16 %v805
            %v894 = vunpack.c.l.b16 %v806
            %v895 = vunpack.c.h.b16 %v806
            %v896 = vunpack.c.l.b16 %v807
            %v897 = vunpack.c.h.b16 %v807
            %v898 = vunpack.c.l.b16 %v808
            %v899 = vunpack.c.h.b16 %v808
            %v900 = vunpack.c.l.b16 %v809
            %v901 = vunpack.c.h.b16 %v809
            %v902 = vunpack.c.l.b16 %v810
            %v903 = vunpack.c.h.b16 %v810
            %v904 = vunpack.c.l.b16 %v811
            %v905 = vunpack.c.h.b16 %v811
            %v906 = vunpack.c.l.b16 %v812
            %v907 = vunpack.c.h.b16 %v812
            %v908 = vunpack.c.l.b16 %v813
            %v909 = vunpack.c.h.b16 %v813
            %v910 = vpack.c.b16 %v850, %v846
            %v911 = vpack.c.b16 %v851, %v847
            %v912 = vpack.c.b16 %v852, %v848
            %v913 = vpack.c.b16 %v853, %v849
            %v914 = vpack.c.b16 %v858, %v854
            %v915 = vpack.c.b16 %v859, %v855
            %v916 = vpack.c.b16 %v860, %v856
            %v917 = vpack.c.b16 %v861, %v857
            %v918 = vpack.c.b16 %v866, %v862
            %v919 = vpack.c.b16 %v867, %v863
            %v920 = vpack.c.b16 %v868, %v864
            %v921 = vpack.c.b16 %v869, %v865
            %v922 = vpack.c.b16 %v874, %v870
            %v923 = vpack.c.b16 %v875, %v871
            %v924 = vpack.c.b16 %v876, %v872
            %v925 = vpack.c.b16 %v877, %v873
            %v926 = vpack.c.b16 %v882, %v878
            %v927 = vpack.c.b16 %v883, %v879
            %v928 = vpack.c.b16 %v884, %v880
            %v929 = vpack.c.b16 %v885, %v881
            %v930 = vpack.c.b16 %v890, %v886
            %v931 = vpack.c.b16 %v891, %v887
            %v932 = vpack.c.b16 %v892, %v888
            %v933 = vpack.c.b16 %v893, %v889
            %v934 = vpack.c.b16 %v898, %v894
            %v935 = vpack.c.b16 %v899, %v895
            %v936 = vpack.c.b16 %v900, %v896
            %v937 = vpack.c.b16 %v901, %v897
            %v938 = vpack.c.b16 %v906, %v902
            %v939 = vpack.c.b16 %v907, %v903
            %v940 = vpack.c.b16 %v908, %v904
            %v941 = vpack.c.b16 %v909, %v905
            %974 = vmatpush.bf16.msra.mxu0 %v938
            %975 = vmatpush.bf16.msra.mxu0 %v934
            %976 = vmatpush.bf16.msra.mxu0 %v930
            %977 = vmatpush.bf16.msra.mxu0 %v926
            %978 = vmatpush.bf16.msra.mxu0 %v922
            %979 = vmatpush.bf16.msra.mxu0 %v918
            %980 = vmatpush.bf16.msra.mxu0 %v914
            %981 = vmatpush.bf16.msra.mxu0 %v910
            %982 = vmatmul.bf16.gmra.mxu0 %v781
            %v983 = vpop.f32.mrf.mxu0
            %v984 = vadd.f32 0.0, %v983
            %v985 = vpop.f32.mrf.mxu0
            %986 = vdwg.mxu0
            %987 = vmatpush.bf16.msra.mxu0 %v939
            %988 = vmatpush.bf16.msra.mxu0 %v935
            %989 = vmatpush.bf16.msra.mxu0 %v931
            %990 = vmatpush.bf16.msra.mxu0 %v927
            %991 = vmatpush.bf16.msra.mxu0 %v923
            %992 = vmatpush.bf16.msra.mxu0 %v919
            %993 = vmatpush.bf16.msra.mxu0 %v915
            %994 = vmatpush.bf16.msra.mxu0 %v911
            %995 = vmatmul.bf16.gmra.mxu0 %v781
            %v996 = vpop.f32.mrf.mxu0
            %v997 = vadd.f32 0.0, %v996
            %v998 = vpop.f32.mrf.mxu0
            %999 = vdwg.mxu0
            %1000 = vmatpush.bf16.msra.mxu0 %v940
            %1001 = vmatpush.bf16.msra.mxu0 %v936
            %1002 = vmatpush.bf16.msra.mxu0 %v932
            %1003 = vmatpush.bf16.msra.mxu0 %v928
            %1004 = vmatpush.bf16.msra.mxu0 %v924
            %1005 = vmatpush.bf16.msra.mxu0 %v920
            %1006 = vmatpush.bf16.msra.mxu0 %v916
            %1007 = vmatpush.bf16.msra.mxu0 %v912
            %1008 = vmatmul.bf16.gmra.mxu0 %v781
            %v1009 = vpop.f32.mrf.mxu0
            %v1010 = vadd.f32 0.0, %v1009
            %v1011 = vpop.f32.mrf.mxu0
            %1012 = vdwg.mxu0
            %1013 = vmatpush.bf16.msra.mxu0 %v941
            %1014 = vmatpush.bf16.msra.mxu0 %v937
            %1015 = vmatpush.bf16.msra.mxu0 %v933
            %1016 = vmatpush.bf16.msra.mxu0 %v929
            %1017 = vmatpush.bf16.msra.mxu0 %v925
            %1018 = vmatpush.bf16.msra.mxu0 %v921
            %1019 = vmatpush.bf16.msra.mxu0 %v917
            %1020 = vmatpush.bf16.msra.mxu0 %v913
            %1021 = vmatmul.bf16.gmra.mxu0 %v781
            %v1022 = vpop.f32.mrf.mxu0
            %v1023 = vadd.f32 0.0, %v1022
            %v1024 = vpop.f32.mrf.mxu0
            %1025 = vdwg.mxu0
            %v1026 = vadd.f32 %v777, %v984
            %v1027 = vadd.f32 %v778, %v997
            %v1028 = vadd.f32 %v779, %v1010
            %v1029 = vadd.f32 %v780, %v1023
            %v1030 = vxor.u32 %v1026, 2147483648
            %v1031 = vxor.u32 %v1027, 2147483648
            %v1032 = vxor.u32 %v1028, 2147483648
            %v1033 = vmul.f32 %v1030, 1.442695
            %v1034 = vpow.pop %v1033
            %v1035 = vmul.f32 %v1031, 1.442695
            %v1036 = vpow.pop %v1035
            %v1037 = vmul.f32 %v1032, 1.442695
            %v1038 = vpow.pop %v1037
            %v1039 = vadd.f32 %v1034, 1.0
            %v1040 = vadd.f32 %v1036, 1.0
            %v1041 = vadd.f32 %v1038, 1.0
            %v1042 = vrcp.pop %v1039
            %v1043 = vmul.f32 %v1039, %v1042
            %v1044 = vsub.f32 1.0, %v1043
            %v1045 = vmul.f32 %v1042, %v1044
            %v1046 = vadd.f32 %v1042, %v1045
            %vm1047 = vweird.f32 %v1039
            %vm1048 = vweird.f32 %v1042
            %vm1049 = vmor %vm1047, %vm1048
            %v1050 = vsel %vm1049, %v1042, %v1046
            %v1051 = vand.u32 2147483647, %v1039
            %vm1052 = vcmp.eq.f32.partialorder %v1051, 8.507059e+37
            %v1053 = vand.u32 %v1039, 2147483648
            %v1054 = vor.u32 1.1754944e-38, %v1053
            %v1055 = vsel %vm1052, %v1054, %v1050
            %v1056 = vmul.f32 1.0, %v1055
            %v1057 = vrcp.pop %v1040
            %v1058 = vmul.f32 %v1040, %v1057
            %v1059 = vsub.f32 1.0, %v1058
            %v1060 = vmul.f32 %v1057, %v1059
            %v1061 = vadd.f32 %v1057, %v1060
            %vm1062 = vweird.f32 %v1040
            %vm1063 = vweird.f32 %v1057
            %vm1064 = vmor %vm1062, %vm1063
            %v1065 = vsel %vm1064, %v1057, %v1061
            %v1066 = vand.u32 2147483647, %v1040
            %vm1067 = vcmp.eq.f32.partialorder %v1066, 8.507059e+37
            %v1068 = vand.u32 %v1040, 2147483648
            %v1069 = vor.u32 1.1754944e-38, %v1068
            %v1070 = vsel %vm1067, %v1069, %v1065
            %v1071 = vmul.f32 1.0, %v1070
            %v1072 = vrcp.pop %v1041
            %v1073 = vmul.f32 %v1041, %v1072
            %v1074 = vsub.f32 1.0, %v1073
            %v1075 = vmul.f32 %v1072, %v1074
            %v1076 = vadd.f32 %v1072, %v1075
            %vm1077 = vweird.f32 %v1041
            %vm1078 = vweird.f32 %v1072
            %vm1079 = vmor %vm1077, %vm1078
            %v1080 = vsel %vm1079, %v1072, %v1076
            %v1081 = vand.u32 2147483647, %v1041
            %vm1082 = vcmp.eq.f32.partialorder %v1081, 8.507059e+37
            %v1083 = vand.u32 %v1041, 2147483648
            %v1084 = vor.u32 1.1754944e-38, %v1083
            %v1085 = vsel %vm1082, %v1084, %v1080
            %v1086 = vmul.f32 1.0, %v1085
            %v1087 = vtanh.pop %v1029
            %v1088 = vmul.f32 %v1071, %v770
            %v1089 = vmul.f32 %v1056, %v1087
            %v1090 = vadd.f32 %v1088, %v1089
            %v1091 = vtanh.pop %v1090
            %v1092 = vmul.f32 %v1086, %v1091
            %s1093 = sadd.s32 %s424, %s771
            %v1094 = vstv %s1093
            %vm1095 = vcmp.lt.s32.totalorder %v1094, %v419
            %v1096 = vsel %vm1095, 1, 0
            %1097 = vset.pattern.permute.xlu0 0
            %1098 = vperm.xlu0 %1097, %v1096
            %v1099 = vpop.permute.xlu0 %1098
            %vm1100 = vcmp.eq.s32.totalorder %v1099, 1
            %v1101 = vsel %vm1100, %v1092, 0.0
            %s1102 = smul.u32 %s771, 8
            %s1103 = scalar_lea.vmem %s400, %s1102 [#allocation12]
            %1104 = vst [vmem:[%s1103] sm:$0xff] %v1101
            %v1105 = vsel %vm1100, %v1092, %v769
            %v1106 = vsel %vm1100, %v1090, %v770
            %s1107 = sadd.s32 %s435, 2
            %s1108 = smul.u32 %s1107, 4
            %s1109 = smul.addr %s1108, 4
            %s1110 = scalar_lea.vmem %s328, %s1109 [#allocation4]
            %v1111 = vld [vmem:[%s1110] sm:$0xff]
            %v1112 = vld [vmem:[%s1110 + $0x8] sm:$0xff]
            %v1113 = vunpack.c.l.bf16 %v1111
            %v1114 = vunpack.c.h.bf16 %v1111
            %v1115 = vunpack.c.l.bf16 %v1112
            %v1116 = vunpack.c.h.bf16 %v1112
            %v1117 = vpack.c.bf16 %v1105, %v1105
            %v1118 = vld [vmem:[%s338] sm:$0xff]
            %v1119 = vld [vmem:[%s338 + $0x8] sm:$0xff]
            %v1120 = vld [vmem:[%s338 + $0x10] sm:$0xff]
            %v1121 = vld [vmem:[%s338 + $0x18] sm:$0xff]
            %v1122 = vld [vmem:[%s338 + $0x20] sm:$0xff]
            %v1123 = vld [vmem:[%s338 + $0x28] sm:$0xff]
            %v1124 = vld [vmem:[%s338 + $0x30] sm:$0xff]
            %v1125 = vld [vmem:[%s338 + $0x38] sm:$0xff]
            %v1126 = vld [vmem:[%s338 + $0x40] sm:$0xff]
            %v1127 = vld [vmem:[%s338 + $0x48] sm:$0xff]
            %v1128 = vld [vmem:[%s338 + $0x50] sm:$0xff]
            %v1129 = vld [vmem:[%s338 + $0x58] sm:$0xff]
            %v1130 = vld [vmem:[%s338 + $0x60] sm:$0xff]
            %v1131 = vld [vmem:[%s338 + $0x68] sm:$0xff]
            %v1132 = vld [vmem:[%s338 + $0x70] sm:$0xff]
            %v1133 = vld [vmem:[%s338 + $0x78] sm:$0xff]
            %v1134 = vld [vmem:[%s338 + $0x80] sm:$0xff]
            %v1135 = vld [vmem:[%s338 + $0x88] sm:$0xff]
            %v1136 = vld [vmem:[%s338 + $0x90] sm:$0xff]
            %v1137 = vld [vmem:[%s338 + $0x98] sm:$0xff]
            %v1138 = vld [vmem:[%s338 + $0xa0] sm:$0xff]
            %v1139 = vld [vmem:[%s338 + $0xa8] sm:$0xff]
            %v1140 = vld [vmem:[%s338 + $0xb0] sm:$0xff]
            %v1141 = vld [vmem:[%s338 + $0xb8] sm:$0xff]
            %v1142 = vld [vmem:[%s338 + $0xc0] sm:$0xff]
            %v1143 = vld [vmem:[%s338 + $0xc8] sm:$0xff]
            %v1144 = vld [vmem:[%s338 + $0xd0] sm:$0xff]
            %v1145 = vld [vmem:[%s338 + $0xd8] sm:$0xff]
            %v1146 = vld [vmem:[%s338 + $0xe0] sm:$0xff]
            %v1147 = vld [vmem:[%s338 + $0xe8] sm:$0xff]
            %v1148 = vld [vmem:[%s338 + $0xf0] sm:$0xff]
            %v1149 = vld [vmem:[%s338 + $0xf8] sm:$0xff]
            %v1182 = vunpack.c.l.b16 %v1118
            %v1183 = vunpack.c.h.b16 %v1118
            %v1184 = vunpack.c.l.b16 %v1119
            %v1185 = vunpack.c.h.b16 %v1119
            %v1186 = vunpack.c.l.b16 %v1120
            %v1187 = vunpack.c.h.b16 %v1120
            %v1188 = vunpack.c.l.b16 %v1121
            %v1189 = vunpack.c.h.b16 %v1121
            %v1190 = vunpack.c.l.b16 %v1122
            %v1191 = vunpack.c.h.b16 %v1122
            %v1192 = vunpack.c.l.b16 %v1123
            %v1193 = vunpack.c.h.b16 %v1123
            %v1194 = vunpack.c.l.b16 %v1124
            %v1195 = vunpack.c.h.b16 %v1124
            %v1196 = vunpack.c.l.b16 %v1125
            %v1197 = vunpack.c.h.b16 %v1125
            %v1198 = vunpack.c.l.b16 %v1126
            %v1199 = vunpack.c.h.b16 %v1126
            %v1200 = vunpack.c.l.b16 %v1127
            %v1201 = vunpack.c.h.b16 %v1127
            %v1202 = vunpack.c.l.b16 %v1128
            %v1203 = vunpack.c.h.b16 %v1128
            %v1204 = vunpack.c.l.b16 %v1129
            %v1205 = vunpack.c.h.b16 %v1129
            %v1206 = vunpack.c.l.b16 %v1130
            %v1207 = vunpack.c.h.b16 %v1130
            %v1208 = vunpack.c.l.b16 %v1131
            %v1209 = vunpack.c.h.b16 %v1131
            %v1210 = vunpack.c.l.b16 %v1132
            %v1211 = vunpack.c.h.b16 %v1132
            %v1212 = vunpack.c.l.b16 %v1133
            %v1213 = vunpack.c.h.b16 %v1133
            %v1214 = vunpack.c.l.b16 %v1134
            %v1215 = vunpack.c.h.b16 %v1134
            %v1216 = vunpack.c.l.b16 %v1135
            %v1217 = vunpack.c.h.b16 %v1135
            %v1218 = vunpack.c.l.b16 %v1136
            %v1219 = vunpack.c.h.b16 %v1136
            %v1220 = vunpack.c.l.b16 %v1137
            %v1221 = vunpack.c.h.b16 %v1137
            %v1222 = vunpack.c.l.b16 %v1138
            %v1223 = vunpack.c.h.b16 %v1138
            %v1224 = vunpack.c.l.b16 %v1139
            %v1225 = vunpack.c.h.b16 %v1139
            %v1226 = vunpack.c.l.b16 %v1140
            %v1227 = vunpack.c.h.b16 %v1140
            %v1228 = vunpack.c.l.b16 %v1141
            %v1229 = vunpack.c.h.b16 %v1141
            %v1230 = vunpack.c.l.b16 %v1142
            %v1231 = vunpack.c.h.b16 %v1142
            %v1232 = vunpack.c.l.b16 %v1143
            %v1233 = vunpack.c.h.b16 %v1143
            %v1234 = vunpack.c.l.b16 %v1144
            %v1235 = vunpack.c.h.b16 %v1144
            %v1236 = vunpack.c.l.b16 %v1145
            %v1237 = vunpack.c.h.b16 %v1145
            %v1238 = vunpack.c.l.b16 %v1146
            %v1239 = vunpack.c.h.b16 %v1146
            %v1240 = vunpack.c.l.b16 %v1147
            %v1241 = vunpack.c.h.b16 %v1147
            %v1242 = vunpack.c.l.b16 %v1148
            %v1243 = vunpack.c.h.b16 %v1148
            %v1244 = vunpack.c.l.b16 %v1149
            %v1245 = vunpack.c.h.b16 %v1149
            %v1246 = vpack.c.b16 %v1186, %v1182
            %v1247 = vpack.c.b16 %v1187, %v1183
            %v1248 = vpack.c.b16 %v1188, %v1184
            %v1249 = vpack.c.b16 %v1189, %v1185
            %v1250 = vpack.c.b16 %v1194, %v1190
            %v1251 = vpack.c.b16 %v1195, %v1191
            %v1252 = vpack.c.b16 %v1196, %v1192
            %v1253 = vpack.c.b16 %v1197, %v1193
            %v1254 = vpack.c.b16 %v1202, %v1198
            %v1255 = vpack.c.b16 %v1203, %v1199
            %v1256 = vpack.c.b16 %v1204, %v1200
            %v1257 = vpack.c.b16 %v1205, %v1201
            %v1258 = vpack.c.b16 %v1210, %v1206
            %v1259 = vpack.c.b16 %v1211, %v1207
            %v1260 = vpack.c.b16 %v1212, %v1208
            %v1261 = vpack.c.b16 %v1213, %v1209
            %v1262 = vpack.c.b16 %v1218, %v1214
            %v1263 = vpack.c.b16 %v1219, %v1215
            %v1264 = vpack.c.b16 %v1220, %v1216
            %v1265 = vpack.c.b16 %v1221, %v1217
            %v1266 = vpack.c.b16 %v1226, %v1222
            %v1267 = vpack.c.b16 %v1227, %v1223
            %v1268 = vpack.c.b16 %v1228, %v1224
            %v1269 = vpack.c.b16 %v1229, %v1225
            %v1270 = vpack.c.b16 %v1234, %v1230
            %v1271 = vpack.c.b16 %v1235, %v1231
            %v1272 = vpack.c.b16 %v1236, %v1232
            %v1273 = vpack.c.b16 %v1237, %v1233
            %v1274 = vpack.c.b16 %v1242, %v1238
            %v1275 = vpack.c.b16 %v1243, %v1239
            %v1276 = vpack.c.b16 %v1244, %v1240
            %v1277 = vpack.c.b16 %v1245, %v1241
            %1310 = vmatpush.bf16.msra.mxu0 %v1274
            %1311 = vmatpush.bf16.msra.mxu0 %v1270
            %1312 = vmatpush.bf16.msra.mxu0 %v1266
            %1313 = vmatpush.bf16.msra.mxu0 %v1262
            %1314 = vmatpush.bf16.msra.mxu0 %v1258
            %1315 = vmatpush.bf16.msra.mxu0 %v1254
            %1316 = vmatpush.bf16.msra.mxu0 %v1250
            %1317 = vmatpush.bf16.msra.mxu0 %v1246
            %1318 = vmatmul.bf16.gmra.mxu0 %v1117
            %v1319 = vpop.f32.mrf.mxu0
            %v1320 = vadd.f32 0.0, %v1319
            %v1321 = vpop.f32.mrf.mxu0
            %1322 = vdwg.mxu0
            %1323 = vmatpush.bf16.msra.mxu0 %v1275
            %1324 = vmatpush.bf16.msra.mxu0 %v1271
            %1325 = vmatpush.bf16.msra.mxu0 %v1267
            %1326 = vmatpush.bf16.msra.mxu0 %v1263
            %1327 = vmatpush.bf16.msra.mxu0 %v1259
            %1328 = vmatpush.bf16.msra.mxu0 %v1255
            %1329 = vmatpush.bf16.msra.mxu0 %v1251
            %1330 = vmatpush.bf16.msra.mxu0 %v1247
            %1331 = vmatmul.bf16.gmra.mxu0 %v1117
            %v1332 = vpop.f32.mrf.mxu0
            %v1333 = vadd.f32 0.0, %v1332
            %v1334 = vpop.f32.mrf.mxu0
            %1335 = vdwg.mxu0
            %1336 = vmatpush.bf16.msra.mxu0 %v1276
            %1337 = vmatpush.bf16.msra.mxu0 %v1272
            %1338 = vmatpush.bf16.msra.mxu0 %v1268
            %1339 = vmatpush.bf16.msra.mxu0 %v1264
            %1340 = vmatpush.bf16.msra.mxu0 %v1260
            %1341 = vmatpush.bf16.msra.mxu0 %v1256
            %1342 = vmatpush.bf16.msra.mxu0 %v1252
            %1343 = vmatpush.bf16.msra.mxu0 %v1248
            %1344 = vmatmul.bf16.gmra.mxu0 %v1117
            %v1345 = vpop.f32.mrf.mxu0
            %v1346 = vadd.f32 0.0, %v1345
            %v1347 = vpop.f32.mrf.mxu0
            %1348 = vdwg.mxu0
            %1349 = vmatpush.bf16.msra.mxu0 %v1277
            %1350 = vmatpush.bf16.msra.mxu0 %v1273
            %1351 = vmatpush.bf16.msra.mxu0 %v1269
            %1352 = vmatpush.bf16.msra.mxu0 %v1265
            %1353 = vmatpush.bf16.msra.mxu0 %v1261
            %1354 = vmatpush.bf16.msra.mxu0 %v1257
            %1355 = vmatpush.bf16.msra.mxu0 %v1253
            %1356 = vmatpush.bf16.msra.mxu0 %v1249
            %1357 = vmatmul.bf16.gmra.mxu0 %v1117
            %v1358 = vpop.f32.mrf.mxu0
            %v1359 = vadd.f32 0.0, %v1358
            %v1360 = vpop.f32.mrf.mxu0
            %1361 = vdwg.mxu0
            %v1362 = vadd.f32 %v1113, %v1320
            %v1363 = vadd.f32 %v1114, %v1333
            %v1364 = vadd.f32 %v1115, %v1346
            %v1365 = vadd.f32 %v1116, %v1359
            %v1366 = vxor.u32 %v1362, 2147483648
            %v1367 = vxor.u32 %v1363, 2147483648
            %v1368 = vxor.u32 %v1364, 2147483648
            %v1369 = vmul.f32 %v1366, 1.442695
            %v1370 = vpow.pop %v1369
            %v1371 = vmul.f32 %v1367, 1.442695
            %v1372 = vpow.pop %v1371
            %v1373 = vmul.f32 %v1368, 1.442695
            %v1374 = vpow.pop %v1373
            %v1375 = vadd.f32 %v1370, 1.0
            %v1376 = vadd.f32 %v1372, 1.0
            %v1377 = vadd.f32 %v1374, 1.0
            %v1378 = vrcp.pop %v1375
            %v1379 = vmul.f32 %v1375, %v1378
            %v1380 = vsub.f32 1.0, %v1379
            %v1381 = vmul.f32 %v1378, %v1380
            %v1382 = vadd.f32 %v1378, %v1381
            %vm1383 = vweird.f32 %v1375
            %vm1384 = vweird.f32 %v1378
            %vm1385 = vmor %vm1383, %vm1384
            %v1386 = vsel %vm1385, %v1378, %v1382
            %v1387 = vand.u32 2147483647, %v1375
            %vm1388 = vcmp.eq.f32.partialorder %v1387, 8.507059e+37
            %v1389 = vand.u32 %v1375, 2147483648
            %v1390 = vor.u32 1.1754944e-38, %v1389
            %v1391 = vsel %vm1388, %v1390, %v1386
            %v1392 = vmul.f32 1.0, %v1391
            %v1393 = vrcp.pop %v1376
            %v1394 = vmul.f32 %v1376, %v1393
            %v1395 = vsub.f32 1.0, %v1394
            %v1396 = vmul.f32 %v1393, %v1395
            %v1397 = vadd.f32 %v1393, %v1396
            %vm1398 = vweird.f32 %v1376
            %vm1399 = vweird.f32 %v1393
            %vm1400 = vmor %vm1398, %vm1399
            %v1401 = vsel %vm1400, %v1393, %v1397
            %v1402 = vand.u32 2147483647, %v1376
            %vm1403 = vcmp.eq.f32.partialorder %v1402, 8.507059e+37
            %v1404 = vand.u32 %v1376, 2147483648
            %v1405 = vor.u32 1.1754944e-38, %v1404
            %v1406 = vsel %vm1403, %v1405, %v1401
            %v1407 = vmul.f32 1.0, %v1406
            %v1408 = vrcp.pop %v1377
            %v1409 = vmul.f32 %v1377, %v1408
            %v1410 = vsub.f32 1.0, %v1409
            %v1411 = vmul.f32 %v1408, %v1410
            %v1412 = vadd.f32 %v1408, %v1411
            %vm1413 = vweird.f32 %v1377
            %vm1414 = vweird.f32 %v1408
            %vm1415 = vmor %vm1413, %vm1414
            %v1416 = vsel %vm1415, %v1408, %v1412
            %v1417 = vand.u32 2147483647, %v1377
            %vm1418 = vcmp.eq.f32.partialorder %v1417, 8.507059e+37
            %v1419 = vand.u32 %v1377, 2147483648
            %v1420 = vor.u32 1.1754944e-38, %v1419
            %v1421 = vsel %vm1418, %v1420, %v1416
            %v1422 = vmul.f32 1.0, %v1421
            %v1423 = vtanh.pop %v1365
            %v1424 = vmul.f32 %v1407, %v1106
            %v1425 = vmul.f32 %v1392, %v1423
            %v1426 = vadd.f32 %v1424, %v1425
            %v1427 = vtanh.pop %v1426
            %v1428 = vmul.f32 %v1422, %v1427
            %s1429 = sadd.s32 %s424, %s1107
            %v1430 = vstv %s1429
            %vm1431 = vcmp.lt.s32.totalorder %v1430, %v419
            %v1432 = vsel %vm1431, 1, 0
            %1433 = vset.pattern.permute.xlu0 0
            %1434 = vperm.xlu0 %1433, %v1432
            %v1435 = vpop.permute.xlu0 %1434
            %vm1436 = vcmp.eq.s32.totalorder %v1435, 1
            %v1437 = vsel %vm1436, %v1428, 0.0
            %s1438 = smul.u32 %s1107, 8
            %s1439 = scalar_lea.vmem %s400, %s1438 [#allocation12]
            %1440 = vst [vmem:[%s1439] sm:$0xff] %v1437
            %v1441 = vsel %vm1436, %v1428, %v1105
            %v1442 = vsel %vm1436, %v1426, %v1106
            %s1443 = sadd.s32 %s435, 3
            %s1444 = smul.u32 %s1443, 4
            %s1445 = smul.addr %s1444, 4
            %s1446 = scalar_lea.vmem %s328, %s1445 [#allocation4]
            %v1447 = vld [vmem:[%s1446] sm:$0xff]
            %v1448 = vld [vmem:[%s1446 + $0x8] sm:$0xff]
            %v1449 = vunpack.c.l.bf16 %v1447
            %v1450 = vunpack.c.h.bf16 %v1447
            %v1451 = vunpack.c.l.bf16 %v1448
            %v1452 = vunpack.c.h.bf16 %v1448
            %v1453 = vpack.c.bf16 %v1441, %v1441
            %v1454 = vld [vmem:[%s338] sm:$0xff]
            %v1455 = vld [vmem:[%s338 + $0x8] sm:$0xff]
            %v1456 = vld [vmem:[%s338 + $0x10] sm:$0xff]
            %v1457 = vld [vmem:[%s338 + $0x18] sm:$0xff]
            %v1458 = vld [vmem:[%s338 + $0x20] sm:$0xff]
            %v1459 = vld [vmem:[%s338 + $0x28] sm:$0xff]
            %v1460 = vld [vmem:[%s338 + $0x30] sm:$0xff]
            %v1461 = vld [vmem:[%s338 + $0x38] sm:$0xff]
            %v1462 = vld [vmem:[%s338 + $0x40] sm:$0xff]
            %v1463 = vld [vmem:[%s338 + $0x48] sm:$0xff]
            %v1464 = vld [vmem:[%s338 + $0x50] sm:$0xff]
            %v1465 = vld [vmem:[%s338 + $0x58] sm:$0xff]
            %v1466 = vld [vmem:[%s338 + $0x60] sm:$0xff]
            %v1467 = vld [vmem:[%s338 + $0x68] sm:$0xff]
            %v1468 = vld [vmem:[%s338 + $0x70] sm:$0xff]
            %v1469 = vld [vmem:[%s338 + $0x78] sm:$0xff]
            %v1470 = vld [vmem:[%s338 + $0x80] sm:$0xff]
            %v1471 = vld [vmem:[%s338 + $0x88] sm:$0xff]
            %v1472 = vld [vmem:[%s338 + $0x90] sm:$0xff]
            %v1473 = vld [vmem:[%s338 + $0x98] sm:$0xff]
            %v1474 = vld [vmem:[%s338 + $0xa0] sm:$0xff]
            %v1475 = vld [vmem:[%s338 + $0xa8] sm:$0xff]
            %v1476 = vld [vmem:[%s338 + $0xb0] sm:$0xff]
            %v1477 = vld [vmem:[%s338 + $0xb8] sm:$0xff]
            %v1478 = vld [vmem:[%s338 + $0xc0] sm:$0xff]
            %v1479 = vld [vmem:[%s338 + $0xc8] sm:$0xff]
            %v1480 = vld [vmem:[%s338 + $0xd0] sm:$0xff]
            %v1481 = vld [vmem:[%s338 + $0xd8] sm:$0xff]
            %v1482 = vld [vmem:[%s338 + $0xe0] sm:$0xff]
            %v1483 = vld [vmem:[%s338 + $0xe8] sm:$0xff]
            %v1484 = vld [vmem:[%s338 + $0xf0] sm:$0xff]
            %v1485 = vld [vmem:[%s338 + $0xf8] sm:$0xff]
            %v1518 = vunpack.c.l.b16 %v1454
            %v1519 = vunpack.c.h.b16 %v1454
            %v1520 = vunpack.c.l.b16 %v1455
            %v1521 = vunpack.c.h.b16 %v1455
            %v1522 = vunpack.c.l.b16 %v1456
            %v1523 = vunpack.c.h.b16 %v1456
            %v1524 = vunpack.c.l.b16 %v1457
            %v1525 = vunpack.c.h.b16 %v1457
            %v1526 = vunpack.c.l.b16 %v1458
            %v1527 = vunpack.c.h.b16 %v1458
            %v1528 = vunpack.c.l.b16 %v1459
            %v1529 = vunpack.c.h.b16 %v1459
            %v1530 = vunpack.c.l.b16 %v1460
            %v1531 = vunpack.c.h.b16 %v1460
            %v1532 = vunpack.c.l.b16 %v1461
            %v1533 = vunpack.c.h.b16 %v1461
            %v1534 = vunpack.c.l.b16 %v1462
            %v1535 = vunpack.c.h.b16 %v1462
            %v1536 = vunpack.c.l.b16 %v1463
            %v1537 = vunpack.c.h.b16 %v1463
            %v1538 = vunpack.c.l.b16 %v1464
            %v1539 = vunpack.c.h.b16 %v1464
            %v1540 = vunpack.c.l.b16 %v1465
            %v1541 = vunpack.c.h.b16 %v1465
            %v1542 = vunpack.c.l.b16 %v1466
            %v1543 = vunpack.c.h.b16 %v1466
            %v1544 = vunpack.c.l.b16 %v1467
            %v1545 = vunpack.c.h.b16 %v1467
            %v1546 = vunpack.c.l.b16 %v1468
            %v1547 = vunpack.c.h.b16 %v1468
            %v1548 = vunpack.c.l.b16 %v1469
            %v1549 = vunpack.c.h.b16 %v1469
            %v1550 = vunpack.c.l.b16 %v1470
            %v1551 = vunpack.c.h.b16 %v1470
            %v1552 = vunpack.c.l.b16 %v1471
            %v1553 = vunpack.c.h.b16 %v1471
            %v1554 = vunpack.c.l.b16 %v1472
            %v1555 = vunpack.c.h.b16 %v1472
            %v1556 = vunpack.c.l.b16 %v1473
            %v1557 = vunpack.c.h.b16 %v1473
            %v1558 = vunpack.c.l.b16 %v1474
            %v1559 = vunpack.c.h.b16 %v1474
            %v1560 = vunpack.c.l.b16 %v1475
            %v1561 = vunpack.c.h.b16 %v1475
            %v1562 = vunpack.c.l.b16 %v1476
            %v1563 = vunpack.c.h.b16 %v1476
            %v1564 = vunpack.c.l.b16 %v1477
            %v1565 = vunpack.c.h.b16 %v1477
            %v1566 = vunpack.c.l.b16 %v1478
            %v1567 = vunpack.c.h.b16 %v1478
            %v1568 = vunpack.c.l.b16 %v1479
            %v1569 = vunpack.c.h.b16 %v1479
            %v1570 = vunpack.c.l.b16 %v1480
            %v1571 = vunpack.c.h.b16 %v1480
            %v1572 = vunpack.c.l.b16 %v1481
            %v1573 = vunpack.c.h.b16 %v1481
            %v1574 = vunpack.c.l.b16 %v1482
            %v1575 = vunpack.c.h.b16 %v1482
            %v1576 = vunpack.c.l.b16 %v1483
            %v1577 = vunpack.c.h.b16 %v1483
            %v1578 = vunpack.c.l.b16 %v1484
            %v1579 = vunpack.c.h.b16 %v1484
            %v1580 = vunpack.c.l.b16 %v1485
            %v1581 = vunpack.c.h.b16 %v1485
            %v1582 = vpack.c.b16 %v1522, %v1518
            %v1583 = vpack.c.b16 %v1523, %v1519
            %v1584 = vpack.c.b16 %v1524, %v1520
            %v1585 = vpack.c.b16 %v1525, %v1521
            %v1586 = vpack.c.b16 %v1530, %v1526
            %v1587 = vpack.c.b16 %v1531, %v1527
            %v1588 = vpack.c.b16 %v1532, %v1528
            %v1589 = vpack.c.b16 %v1533, %v1529
            %v1590 = vpack.c.b16 %v1538, %v1534
            %v1591 = vpack.c.b16 %v1539, %v1535
            %v1592 = vpack.c.b16 %v1540, %v1536
            %v1593 = vpack.c.b16 %v1541, %v1537
            %v1594 = vpack.c.b16 %v1546, %v1542
            %v1595 = vpack.c.b16 %v1547, %v1543
            %v1596 = vpack.c.b16 %v1548, %v1544
            %v1597 = vpack.c.b16 %v1549, %v1545
            %v1598 = vpack.c.b16 %v1554, %v1550
            %v1599 = vpack.c.b16 %v1555, %v1551
            %v1600 = vpack.c.b16 %v1556, %v1552
            %v1601 = vpack.c.b16 %v1557, %v1553
            %v1602 = vpack.c.b16 %v1562, %v1558
            %v1603 = vpack.c.b16 %v1563, %v1559
            %v1604 = vpack.c.b16 %v1564, %v1560
            %v1605 = vpack.c.b16 %v1565, %v1561
            %v1606 = vpack.c.b16 %v1570, %v1566
            %v1607 = vpack.c.b16 %v1571, %v1567
            %v1608 = vpack.c.b16 %v1572, %v1568
            %v1609 = vpack.c.b16 %v1573, %v1569
            %v1610 = vpack.c.b16 %v1578, %v1574
            %v1611 = vpack.c.b16 %v1579, %v1575
            %v1612 = vpack.c.b16 %v1580, %v1576
            %v1613 = vpack.c.b16 %v1581, %v1577
            %1646 = vmatpush.bf16.msra.mxu0 %v1610
            %1647 = vmatpush.bf16.msra.mxu0 %v1606
            %1648 = vmatpush.bf16.msra.mxu0 %v1602
            %1649 = vmatpush.bf16.msra.mxu0 %v1598
            %1650 = vmatpush.bf16.msra.mxu0 %v1594
            %1651 = vmatpush.bf16.msra.mxu0 %v1590
            %1652 = vmatpush.bf16.msra.mxu0 %v1586
            %1653 = vmatpush.bf16.msra.mxu0 %v1582
            %1654 = vmatmul.bf16.gmra.mxu0 %v1453
            %v1655 = vpop.f32.mrf.mxu0
            %v1656 = vadd.f32 0.0, %v1655
            %v1657 = vpop.f32.mrf.mxu0
            %1658 = vdwg.mxu0
            %1659 = vmatpush.bf16.msra.mxu0 %v1611
            %1660 = vmatpush.bf16.msra.mxu0 %v1607
            %1661 = vmatpush.bf16.msra.mxu0 %v1603
            %1662 = vmatpush.bf16.msra.mxu0 %v1599
            %1663 = vmatpush.bf16.msra.mxu0 %v1595
            %1664 = vmatpush.bf16.msra.mxu0 %v1591
            %1665 = vmatpush.bf16.msra.mxu0 %v1587
            %1666 = vmatpush.bf16.msra.mxu0 %v1583
            %1667 = vmatmul.bf16.gmra.mxu0 %v1453
            %v1668 = vpop.f32.mrf.mxu0
            %v1669 = vadd.f32 0.0, %v1668
            %v1670 = vpop.f32.mrf.mxu0
            %1671 = vdwg.mxu0
            %1672 = vmatpush.bf16.msra.mxu0 %v1612
            %1673 = vmatpush.bf16.msra.mxu0 %v1608
            %1674 = vmatpush.bf16.msra.mxu0 %v1604
            %1675 = vmatpush.bf16.msra.mxu0 %v1600
            %1676 = vmatpush.bf16.msra.mxu0 %v1596
            %1677 = vmatpush.bf16.msra.mxu0 %v1592
            %1678 = vmatpush.bf16.msra.mxu0 %v1588
            %1679 = vmatpush.bf16.msra.mxu0 %v1584
            %1680 = vmatmul.bf16.gmra.mxu0 %v1453
            %v1681 = vpop.f32.mrf.mxu0
            %v1682 = vadd.f32 0.0, %v1681
            %v1683 = vpop.f32.mrf.mxu0
            %1684 = vdwg.mxu0
            %1685 = vmatpush.bf16.msra.mxu0 %v1613
            %1686 = vmatpush.bf16.msra.mxu0 %v1609
            %1687 = vmatpush.bf16.msra.mxu0 %v1605
            %1688 = vmatpush.bf16.msra.mxu0 %v1601
            %1689 = vmatpush.bf16.msra.mxu0 %v1597
            %1690 = vmatpush.bf16.msra.mxu0 %v1593
            %1691 = vmatpush.bf16.msra.mxu0 %v1589
            %1692 = vmatpush.bf16.msra.mxu0 %v1585
            %1693 = vmatmul.bf16.gmra.mxu0 %v1453
            %v1694 = vpop.f32.mrf.mxu0
            %v1695 = vadd.f32 0.0, %v1694
            %v1696 = vpop.f32.mrf.mxu0
            %1697 = vdwg.mxu0
            %v1698 = vadd.f32 %v1449, %v1656
            %v1699 = vadd.f32 %v1450, %v1669
            %v1700 = vadd.f32 %v1451, %v1682
            %v1701 = vadd.f32 %v1452, %v1695
            %v1702 = vxor.u32 %v1698, 2147483648
            %v1703 = vxor.u32 %v1699, 2147483648
            %v1704 = vxor.u32 %v1700, 2147483648
            %v1705 = vmul.f32 %v1702, 1.442695
            %v1706 = vpow.pop %v1705
            %v1707 = vmul.f32 %v1703, 1.442695
            %v1708 = vpow.pop %v1707
            %v1709 = vmul.f32 %v1704, 1.442695
            %v1710 = vpow.pop %v1709
            %v1711 = vadd.f32 %v1706, 1.0
            %v1712 = vadd.f32 %v1708, 1.0
            %v1713 = vadd.f32 %v1710, 1.0
            %v1714 = vrcp.pop %v1711
            %v1715 = vmul.f32 %v1711, %v1714
            %v1716 = vsub.f32 1.0, %v1715
            %v1717 = vmul.f32 %v1714, %v1716
            %v1718 = vadd.f32 %v1714, %v1717
            %vm1719 = vweird.f32 %v1711
            %vm1720 = vweird.f32 %v1714
            %vm1721 = vmor %vm1719, %vm1720
            %v1722 = vsel %vm1721, %v1714, %v1718
            %v1723 = vand.u32 2147483647, %v1711
            %vm1724 = vcmp.eq.f32.partialorder %v1723, 8.507059e+37
            %v1725 = vand.u32 %v1711, 2147483648
            %v1726 = vor.u32 1.1754944e-38, %v1725
            %v1727 = vsel %vm1724, %v1726, %v1722
            %v1728 = vmul.f32 1.0, %v1727
            %v1729 = vrcp.pop %v1712
            %v1730 = vmul.f32 %v1712, %v1729
            %v1731 = vsub.f32 1.0, %v1730
            %v1732 = vmul.f32 %v1729, %v1731
            %v1733 = vadd.f32 %v1729, %v1732
            %vm1734 = vweird.f32 %v1712
            %vm1735 = vweird.f32 %v1729
            %vm1736 = vmor %vm1734, %vm1735
            %v1737 = vsel %vm1736, %v1729, %v1733
            %v1738 = vand.u32 2147483647, %v1712
            %vm1739 = vcmp.eq.f32.partialorder %v1738, 8.507059e+37
            %v1740 = vand.u32 %v1712, 2147483648
            %v1741 = vor.u32 1.1754944e-38, %v1740
            %v1742 = vsel %vm1739, %v1741, %v1737
            %v1743 = vmul.f32 1.0, %v1742
            %v1744 = vrcp.pop %v1713
            %v1745 = vmul.f32 %v1713, %v1744
            %v1746 = vsub.f32 1.0, %v1745
            %v1747 = vmul.f32 %v1744, %v1746
            %v1748 = vadd.f32 %v1744, %v1747
            %vm1749 = vweird.f32 %v1713
            %vm1750 = vweird.f32 %v1744
            %vm1751 = vmor %vm1749, %vm1750
            %v1752 = vsel %vm1751, %v1744, %v1748
            %v1753 = vand.u32 2147483647, %v1713
            %vm1754 = vcmp.eq.f32.partialorder %v1753, 8.507059e+37
            %v1755 = vand.u32 %v1713, 2147483648
            %v1756 = vor.u32 1.1754944e-38, %v1755
            %v1757 = vsel %vm1754, %v1756, %v1752
            %v1758 = vmul.f32 1.0, %v1757
            %v1759 = vtanh.pop %v1701
            %v1760 = vmul.f32 %v1743, %v1442
            %v1761 = vmul.f32 %v1728, %v1759
            %v1762 = vadd.f32 %v1760, %v1761
            %v1763 = vtanh.pop %v1762
            %v1764 = vmul.f32 %v1758, %v1763
            %s1765 = sadd.s32 %s424, %s1443
            %v1766 = vstv %s1765
            %vm1767 = vcmp.lt.s32.totalorder %v1766, %v419
            %v1768 = vsel %vm1767, 1, 0
            %1769 = vset.pattern.permute.xlu0 0
            %1770 = vperm.xlu0 %1769, %v1768
            %v1771 = vpop.permute.xlu0 %1770
            %vm1772 = vcmp.eq.s32.totalorder %v1771, 1
            %v1773 = vsel %vm1772, %v1764, 0.0
            %s1774 = smul.u32 %s1443, 8
            %s1775 = scalar_lea.vmem %s400, %s1774 [#allocation12]
            %1776 = vst [vmem:[%s1775] sm:$0xff] %v1773
            %v1777 = vsel %vm1772, %v1764, %v1441
            %v1778 = vsel %vm1772, %v1762, %v1442
            %s1779 = sadd.s32 %s435, 4
            %s1780 = smul.u32 %s1779, 4
            %s1781 = smul.addr %s1780, 4
            %s1782 = scalar_lea.vmem %s328, %s1781 [#allocation4]
            %v1783 = vld [vmem:[%s1782] sm:$0xff]
            %v1784 = vld [vmem:[%s1782 + $0x8] sm:$0xff]
            %v1785 = vunpack.c.l.bf16 %v1783
            %v1786 = vunpack.c.h.bf16 %v1783
            %v1787 = vunpack.c.l.bf16 %v1784
            %v1788 = vunpack.c.h.bf16 %v1784
            %v1789 = vpack.c.bf16 %v1777, %v1777
            %v1790 = vld [vmem:[%s338] sm:$0xff]
            %v1791 = vld [vmem:[%s338 + $0x8] sm:$0xff]
            %v1792 = vld [vmem:[%s338 + $0x10] sm:$0xff]
            %v1793 = vld [vmem:[%s338 + $0x18] sm:$0xff]
            %v1794 = vld [vmem:[%s338 + $0x20] sm:$0xff]
            %v1795 = vld [vmem:[%s338 + $0x28] sm:$0xff]
            %v1796 = vld [vmem:[%s338 + $0x30] sm:$0xff]
            %v1797 = vld [vmem:[%s338 + $0x38] sm:$0xff]
            %v1798 = vld [vmem:[%s338 + $0x40] sm:$0xff]
            %v1799 = vld [vmem:[%s338 + $0x48] sm:$0xff]
            %v1800 = vld [vmem:[%s338 + $0x50] sm:$0xff]
            %v1801 = vld [vmem:[%s338 + $0x58] sm:$0xff]
            %v1802 = vld [vmem:[%s338 + $0x60] sm:$0xff]
            %v1803 = vld [vmem:[%s338 + $0x68] sm:$0xff]
            %v1804 = vld [vmem:[%s338 + $0x70] sm:$0xff]
            %v1805 = vld [vmem:[%s338 + $0x78] sm:$0xff]
            %v1806 = vld [vmem:[%s338 + $0x80] sm:$0xff]
            %v1807 = vld [vmem:[%s338 + $0x88] sm:$0xff]
            %v1808 = vld [vmem:[%s338 + $0x90] sm:$0xff]
            %v1809 = vld [vmem:[%s338 + $0x98] sm:$0xff]
            %v1810 = vld [vmem:[%s338 + $0xa0] sm:$0xff]
            %v1811 = vld [vmem:[%s338 + $0xa8] sm:$0xff]
            %v1812 = vld [vmem:[%s338 + $0xb0] sm:$0xff]
            %v1813 = vld [vmem:[%s338 + $0xb8] sm:$0xff]
            %v1814 = vld [vmem:[%s338 + $0xc0] sm:$0xff]
            %v1815 = vld [vmem:[%s338 + $0xc8] sm:$0xff]
            %v1816 = vld [vmem:[%s338 + $0xd0] sm:$0xff]
            %v1817 = vld [vmem:[%s338 + $0xd8] sm:$0xff]
            %v1818 = vld [vmem:[%s338 + $0xe0] sm:$0xff]
            %v1819 = vld [vmem:[%s338 + $0xe8] sm:$0xff]
            %v1820 = vld [vmem:[%s338 + $0xf0] sm:$0xff]
            %v1821 = vld [vmem:[%s338 + $0xf8] sm:$0xff]
            %v1854 = vunpack.c.l.b16 %v1790
            %v1855 = vunpack.c.h.b16 %v1790
            %v1856 = vunpack.c.l.b16 %v1791
            %v1857 = vunpack.c.h.b16 %v1791
            %v1858 = vunpack.c.l.b16 %v1792
            %v1859 = vunpack.c.h.b16 %v1792
            %v1860 = vunpack.c.l.b16 %v1793
            %v1861 = vunpack.c.h.b16 %v1793
            %v1862 = vunpack.c.l.b16 %v1794
            %v1863 = vunpack.c.h.b16 %v1794
            %v1864 = vunpack.c.l.b16 %v1795
            %v1865 = vunpack.c.h.b16 %v1795
            %v1866 = vunpack.c.l.b16 %v1796
            %v1867 = vunpack.c.h.b16 %v1796
            %v1868 = vunpack.c.l.b16 %v1797
            %v1869 = vunpack.c.h.b16 %v1797
            %v1870 = vunpack.c.l.b16 %v1798
            %v1871 = vunpack.c.h.b16 %v1798
            %v1872 = vunpack.c.l.b16 %v1799
            %v1873 = vunpack.c.h.b16 %v1799
            %v1874 = vunpack.c.l.b16 %v1800
            %v1875 = vunpack.c.h.b16 %v1800
            %v1876 = vunpack.c.l.b16 %v1801
            %v1877 = vunpack.c.h.b16 %v1801
            %v1878 = vunpack.c.l.b16 %v1802
            %v1879 = vunpack.c.h.b16 %v1802
            %v1880 = vunpack.c.l.b16 %v1803
            %v1881 = vunpack.c.h.b16 %v1803
            %v1882 = vunpack.c.l.b16 %v1804
            %v1883 = vunpack.c.h.b16 %v1804
            %v1884 = vunpack.c.l.b16 %v1805
            %v1885 = vunpack.c.h.b16 %v1805
            %v1886 = vunpack.c.l.b16 %v1806
            %v1887 = vunpack.c.h.b16 %v1806
            %v1888 = vunpack.c.l.b16 %v1807
            %v1889 = vunpack.c.h.b16 %v1807
            %v1890 = vunpack.c.l.b16 %v1808
            %v1891 = vunpack.c.h.b16 %v1808
            %v1892 = vunpack.c.l.b16 %v1809
            %v1893 = vunpack.c.h.b16 %v1809
            %v1894 = vunpack.c.l.b16 %v1810
            %v1895 = vunpack.c.h.b16 %v1810
            %v1896 = vunpack.c.l.b16 %v1811
            %v1897 = vunpack.c.h.b16 %v1811
            %v1898 = vunpack.c.l.b16 %v1812
            %v1899 = vunpack.c.h.b16 %v1812
            %v1900 = vunpack.c.l.b16 %v1813
            %v1901 = vunpack.c.h.b16 %v1813
            %v1902 = vunpack.c.l.b16 %v1814
            %v1903 = vunpack.c.h.b16 %v1814
            %v1904 = vunpack.c.l.b16 %v1815
            %v1905 = vunpack.c.h.b16 %v1815
            %v1906 = vunpack.c.l.b16 %v1816
            %v1907 = vunpack.c.h.b16 %v1816
            %v1908 = vunpack.c.l.b16 %v1817
            %v1909 = vunpack.c.h.b16 %v1817
            %v1910 = vunpack.c.l.b16 %v1818
            %v1911 = vunpack.c.h.b16 %v1818
            %v1912 = vunpack.c.l.b16 %v1819
            %v1913 = vunpack.c.h.b16 %v1819
            %v1914 = vunpack.c.l.b16 %v1820
            %v1915 = vunpack.c.h.b16 %v1820
            %v1916 = vunpack.c.l.b16 %v1821
            %v1917 = vunpack.c.h.b16 %v1821
            %v1918 = vpack.c.b16 %v1858, %v1854
            %v1919 = vpack.c.b16 %v1859, %v1855
            %v1920 = vpack.c.b16 %v1860, %v1856
            %v1921 = vpack.c.b16 %v1861, %v1857
            %v1922 = vpack.c.b16 %v1866, %v1862
            %v1923 = vpack.c.b16 %v1867, %v1863
            %v1924 = vpack.c.b16 %v1868, %v1864
            %v1925 = vpack.c.b16 %v1869, %v1865
            %v1926 = vpack.c.b16 %v1874, %v1870
            %v1927 = vpack.c.b16 %v1875, %v1871
            %v1928 = vpack.c.b16 %v1876, %v1872
            %v1929 = vpack.c.b16 %v1877, %v1873
            %v1930 = vpack.c.b16 %v1882, %v1878
            %v1931 = vpack.c.b16 %v1883, %v1879
            %v1932 = vpack.c.b16 %v1884, %v1880
            %v1933 = vpack.c.b16 %v1885, %v1881
            %v1934 = vpack.c.b16 %v1890, %v1886
            %v1935 = vpack.c.b16 %v1891, %v1887
            %v1936 = vpack.c.b16 %v1892, %v1888
            %v1937 = vpack.c.b16 %v1893, %v1889
            %v1938 = vpack.c.b16 %v1898, %v1894
            %v1939 = vpack.c.b16 %v1899, %v1895
            %v1940 = vpack.c.b16 %v1900, %v1896
            %v1941 = vpack.c.b16 %v1901, %v1897
            %v1942 = vpack.c.b16 %v1906, %v1902
            %v1943 = vpack.c.b16 %v1907, %v1903
            %v1944 = vpack.c.b16 %v1908, %v1904
            %v1945 = vpack.c.b16 %v1909, %v1905
            %v1946 = vpack.c.b16 %v1914, %v1910
            %v1947 = vpack.c.b16 %v1915, %v1911
            %v1948 = vpack.c.b16 %v1916, %v1912
            %v1949 = vpack.c.b16 %v1917, %v1913
            %1982 = vmatpush.bf16.msra.mxu0 %v1946
            %1983 = vmatpush.bf16.msra.mxu0 %v1942
            %1984 = vmatpush.bf16.msra.mxu0 %v1938
            %1985 = vmatpush.bf16.msra.mxu0 %v1934
            %1986 = vmatpush.bf16.msra.mxu0 %v1930
            %1987 = vmatpush.bf16.msra.mxu0 %v1926
            %1988 = vmatpush.bf16.msra.mxu0 %v1922
            %1989 = vmatpush.bf16.msra.mxu0 %v1918
            %1990 = vmatmul.bf16.gmra.mxu0 %v1789
            %v1991 = vpop.f32.mrf.mxu0
            %v1992 = vadd.f32 0.0, %v1991
            %v1993 = vpop.f32.mrf.mxu0
            %1994 = vdwg.mxu0
            %1995 = vmatpush.bf16.msra.mxu0 %v1947
            %1996 = vmatpush.bf16.msra.mxu0 %v1943
            %1997 = vmatpush.bf16.msra.mxu0 %v1939
            %1998 = vmatpush.bf16.msra.mxu0 %v1935
            %1999 = vmatpush.bf16.msra.mxu0 %v1931
            %2000 = vmatpush.bf16.msra.mxu0 %v1927
            %2001 = vmatpush.bf16.msra.mxu0 %v1923
            %2002 = vmatpush.bf16.msra.mxu0 %v1919
            %2003 = vmatmul.bf16.gmra.mxu0 %v1789
            %v2004 = vpop.f32.mrf.mxu0
            %v2005 = vadd.f32 0.0, %v2004
            %v2006 = vpop.f32.mrf.mxu0
            %2007 = vdwg.mxu0
            %2008 = vmatpush.bf16.msra.mxu0 %v1948
            %2009 = vmatpush.bf16.msra.mxu0 %v1944
            %2010 = vmatpush.bf16.msra.mxu0 %v1940
            %2011 = vmatpush.bf16.msra.mxu0 %v1936
            %2012 = vmatpush.bf16.msra.mxu0 %v1932
            %2013 = vmatpush.bf16.msra.mxu0 %v1928
            %2014 = vmatpush.bf16.msra.mxu0 %v1924
            %2015 = vmatpush.bf16.msra.mxu0 %v1920
            %2016 = vmatmul.bf16.gmra.mxu0 %v1789
            %v2017 = vpop.f32.mrf.mxu0
            %v2018 = vadd.f32 0.0, %v2017
            %v2019 = vpop.f32.mrf.mxu0
            %2020 = vdwg.mxu0
            %2021 = vmatpush.bf16.msra.mxu0 %v1949
            %2022 = vmatpush.bf16.msra.mxu0 %v1945
            %2023 = vmatpush.bf16.msra.mxu0 %v1941
            %2024 = vmatpush.bf16.msra.mxu0 %v1937
            %2025 = vmatpush.bf16.msra.mxu0 %v1933
            %2026 = vmatpush.bf16.msra.mxu0 %v1929
            %2027 = vmatpush.bf16.msra.mxu0 %v1925
            %2028 = vmatpush.bf16.msra.mxu0 %v1921
            %2029 = vmatmul.bf16.gmra.mxu0 %v1789
            %v2030 = vpop.f32.mrf.mxu0
            %v2031 = vadd.f32 0.0, %v2030
            %v2032 = vpop.f32.mrf.mxu0
            %2033 = vdwg.mxu0
            %v2034 = vadd.f32 %v1785, %v1992
            %v2035 = vadd.f32 %v1786, %v2005
            %v2036 = vadd.f32 %v1787, %v2018
            %v2037 = vadd.f32 %v1788, %v2031
            %v2038 = vxor.u32 %v2034, 2147483648
            %v2039 = vxor.u32 %v2035, 2147483648
            %v2040 = vxor.u32 %v2036, 2147483648
            %v2041 = vmul.f32 %v2038, 1.442695
            %v2042 = vpow.pop %v2041
            %v2043 = vmul.f32 %v2039, 1.442695
            %v2044 = vpow.pop %v2043
            %v2045 = vmul.f32 %v2040, 1.442695
            %v2046 = vpow.pop %v2045
            %v2047 = vadd.f32 %v2042, 1.0
            %v2048 = vadd.f32 %v2044, 1.0
            %v2049 = vadd.f32 %v2046, 1.0
            %v2050 = vrcp.pop %v2047
            %v2051 = vmul.f32 %v2047, %v2050
            %v2052 = vsub.f32 1.0, %v2051
            %v2053 = vmul.f32 %v2050, %v2052
            %v2054 = vadd.f32 %v2050, %v2053
            %vm2055 = vweird.f32 %v2047
            %vm2056 = vweird.f32 %v2050
            %vm2057 = vmor %vm2055, %vm2056
            %v2058 = vsel %vm2057, %v2050, %v2054
            %v2059 = vand.u32 2147483647, %v2047
            %vm2060 = vcmp.eq.f32.partialorder %v2059, 8.507059e+37
            %v2061 = vand.u32 %v2047, 2147483648
            %v2062 = vor.u32 1.1754944e-38, %v2061
            %v2063 = vsel %vm2060, %v2062, %v2058
            %v2064 = vmul.f32 1.0, %v2063
            %v2065 = vrcp.pop %v2048
            %v2066 = vmul.f32 %v2048, %v2065
            %v2067 = vsub.f32 1.0, %v2066
            %v2068 = vmul.f32 %v2065, %v2067
            %v2069 = vadd.f32 %v2065, %v2068
            %vm2070 = vweird.f32 %v2048
            %vm2071 = vweird.f32 %v2065
            %vm2072 = vmor %vm2070, %vm2071
            %v2073 = vsel %vm2072, %v2065, %v2069
            %v2074 = vand.u32 2147483647, %v2048
            %vm2075 = vcmp.eq.f32.partialorder %v2074, 8.507059e+37
            %v2076 = vand.u32 %v2048, 2147483648
            %v2077 = vor.u32 1.1754944e-38, %v2076
            %v2078 = vsel %vm2075, %v2077, %v2073
            %v2079 = vmul.f32 1.0, %v2078
            %v2080 = vrcp.pop %v2049
            %v2081 = vmul.f32 %v2049, %v2080
            %v2082 = vsub.f32 1.0, %v2081
            %v2083 = vmul.f32 %v2080, %v2082
            %v2084 = vadd.f32 %v2080, %v2083
            %vm2085 = vweird.f32 %v2049
            %vm2086 = vweird.f32 %v2080
            %vm2087 = vmor %vm2085, %vm2086
            %v2088 = vsel %vm2087, %v2080, %v2084
            %v2089 = vand.u32 2147483647, %v2049
            %vm2090 = vcmp.eq.f32.partialorder %v2089, 8.507059e+37
            %v2091 = vand.u32 %v2049, 2147483648
            %v2092 = vor.u32 1.1754944e-38, %v2091
            %v2093 = vsel %vm2090, %v2092, %v2088
            %v2094 = vmul.f32 1.0, %v2093
            %v2095 = vtanh.pop %v2037
            %v2096 = vmul.f32 %v2079, %v1778
            %v2097 = vmul.f32 %v2064, %v2095
            %v2098 = vadd.f32 %v2096, %v2097
            %v2099 = vtanh.pop %v2098
            %v2100 = vmul.f32 %v2094, %v2099
            %s2101 = sadd.s32 %s424, %s1779
            %v2102 = vstv %s2101
            %vm2103 = vcmp.lt.s32.totalorder %v2102, %v419
            %v2104 = vsel %vm2103, 1, 0
            %2105 = vset.pattern.permute.xlu0 0
            %2106 = vperm.xlu0 %2105, %v2104
            %v2107 = vpop.permute.xlu0 %2106
            %vm2108 = vcmp.eq.s32.totalorder %v2107, 1
            %v2109 = vsel %vm2108, %v2100, 0.0
            %s2110 = smul.u32 %s1779, 8
            %s2111 = scalar_lea.vmem %s400, %s2110 [#allocation12]
            %2112 = vst [vmem:[%s2111] sm:$0xff] %v2109
            %v2113 = vsel %vm2108, %v2100, %v1777
            %v2114 = vsel %vm2108, %v2098, %v1778
            %s2115 = sadd.s32 %s435, 5
            %s2116 = smul.u32 %s2115, 4
            %s2117 = smul.addr %s2116, 4
            %s2118 = scalar_lea.vmem %s328, %s2117 [#allocation4]
            %v2119 = vld [vmem:[%s2118] sm:$0xff]
            %v2120 = vld [vmem:[%s2118 + $0x8] sm:$0xff]
            %v2121 = vunpack.c.l.bf16 %v2119
            %v2122 = vunpack.c.h.bf16 %v2119
            %v2123 = vunpack.c.l.bf16 %v2120
            %v2124 = vunpack.c.h.bf16 %v2120
            %v2125 = vpack.c.bf16 %v2113, %v2113
            %v2126 = vld [vmem:[%s338] sm:$0xff]
            %v2127 = vld [vmem:[%s338 + $0x8] sm:$0xff]
            %v2128 = vld [vmem:[%s338 + $0x10] sm:$0xff]
            %v2129 = vld [vmem:[%s338 + $0x18] sm:$0xff]
            %v2130 = vld [vmem:[%s338 + $0x20] sm:$0xff]
            %v2131 = vld [vmem:[%s338 + $0x28] sm:$0xff]
            %v2132 = vld [vmem:[%s338 + $0x30] sm:$0xff]
            %v2133 = vld [vmem:[%s338 + $0x38] sm:$0xff]
            %v2134 = vld [vmem:[%s338 + $0x40] sm:$0xff]
            %v2135 = vld [vmem:[%s338 + $0x48] sm:$0xff]
            %v2136 = vld [vmem:[%s338 + $0x50] sm:$0xff]
            %v2137 = vld [vmem:[%s338 + $0x58] sm:$0xff]
            %v2138 = vld [vmem:[%s338 + $0x60] sm:$0xff]
            %v2139 = vld [vmem:[%s338 + $0x68] sm:$0xff]
            %v2140 = vld [vmem:[%s338 + $0x70] sm:$0xff]
            %v2141 = vld [vmem:[%s338 + $0x78] sm:$0xff]
            %v2142 = vld [vmem:[%s338 + $0x80] sm:$0xff]
            %v2143 = vld [vmem:[%s338 + $0x88] sm:$0xff]
            %v2144 = vld [vmem:[%s338 + $0x90] sm:$0xff]
            %v2145 = vld [vmem:[%s338 + $0x98] sm:$0xff]
            %v2146 = vld [vmem:[%s338 + $0xa0] sm:$0xff]
            %v2147 = vld [vmem:[%s338 + $0xa8] sm:$0xff]
            %v2148 = vld [vmem:[%s338 + $0xb0] sm:$0xff]
            %v2149 = vld [vmem:[%s338 + $0xb8] sm:$0xff]
            %v2150 = vld [vmem:[%s338 + $0xc0] sm:$0xff]
            %v2151 = vld [vmem:[%s338 + $0xc8] sm:$0xff]
            %v2152 = vld [vmem:[%s338 + $0xd0] sm:$0xff]
            %v2153 = vld [vmem:[%s338 + $0xd8] sm:$0xff]
            %v2154 = vld [vmem:[%s338 + $0xe0] sm:$0xff]
            %v2155 = vld [vmem:[%s338 + $0xe8] sm:$0xff]
            %v2156 = vld [vmem:[%s338 + $0xf0] sm:$0xff]
            %v2157 = vld [vmem:[%s338 + $0xf8] sm:$0xff]
            %v2190 = vunpack.c.l.b16 %v2126
            %v2191 = vunpack.c.h.b16 %v2126
            %v2192 = vunpack.c.l.b16 %v2127
            %v2193 = vunpack.c.h.b16 %v2127
            %v2194 = vunpack.c.l.b16 %v2128
            %v2195 = vunpack.c.h.b16 %v2128
            %v2196 = vunpack.c.l.b16 %v2129
            %v2197 = vunpack.c.h.b16 %v2129
            %v2198 = vunpack.c.l.b16 %v2130
            %v2199 = vunpack.c.h.b16 %v2130
            %v2200 = vunpack.c.l.b16 %v2131
            %v2201 = vunpack.c.h.b16 %v2131
            %v2202 = vunpack.c.l.b16 %v2132
            %v2203 = vunpack.c.h.b16 %v2132
            %v2204 = vunpack.c.l.b16 %v2133
            %v2205 = vunpack.c.h.b16 %v2133
            %v2206 = vunpack.c.l.b16 %v2134
            %v2207 = vunpack.c.h.b16 %v2134
            %v2208 = vunpack.c.l.b16 %v2135
            %v2209 = vunpack.c.h.b16 %v2135
            %v2210 = vunpack.c.l.b16 %v2136
            %v2211 = vunpack.c.h.b16 %v2136
            %v2212 = vunpack.c.l.b16 %v2137
            %v2213 = vunpack.c.h.b16 %v2137
            %v2214 = vunpack.c.l.b16 %v2138
            %v2215 = vunpack.c.h.b16 %v2138
            %v2216 = vunpack.c.l.b16 %v2139
            %v2217 = vunpack.c.h.b16 %v2139
            %v2218 = vunpack.c.l.b16 %v2140
            %v2219 = vunpack.c.h.b16 %v2140
            %v2220 = vunpack.c.l.b16 %v2141
            %v2221 = vunpack.c.h.b16 %v2141
            %v2222 = vunpack.c.l.b16 %v2142
            %v2223 = vunpack.c.h.b16 %v2142
            %v2224 = vunpack.c.l.b16 %v2143
            %v2225 = vunpack.c.h.b16 %v2143
            %v2226 = vunpack.c.l.b16 %v2144
            %v2227 = vunpack.c.h.b16 %v2144
            %v2228 = vunpack.c.l.b16 %v2145
            %v2229 = vunpack.c.h.b16 %v2145
            %v2230 = vunpack.c.l.b16 %v2146
            %v2231 = vunpack.c.h.b16 %v2146
            %v2232 = vunpack.c.l.b16 %v2147
            %v2233 = vunpack.c.h.b16 %v2147
            %v2234 = vunpack.c.l.b16 %v2148
            %v2235 = vunpack.c.h.b16 %v2148
            %v2236 = vunpack.c.l.b16 %v2149
            %v2237 = vunpack.c.h.b16 %v2149
            %v2238 = vunpack.c.l.b16 %v2150
            %v2239 = vunpack.c.h.b16 %v2150
            %v2240 = vunpack.c.l.b16 %v2151
            %v2241 = vunpack.c.h.b16 %v2151
            %v2242 = vunpack.c.l.b16 %v2152
            %v2243 = vunpack.c.h.b16 %v2152
            %v2244 = vunpack.c.l.b16 %v2153
            %v2245 = vunpack.c.h.b16 %v2153
            %v2246 = vunpack.c.l.b16 %v2154
            %v2247 = vunpack.c.h.b16 %v2154
            %v2248 = vunpack.c.l.b16 %v2155
            %v2249 = vunpack.c.h.b16 %v2155
            %v2250 = vunpack.c.l.b16 %v2156
            %v2251 = vunpack.c.h.b16 %v2156
            %v2252 = vunpack.c.l.b16 %v2157
            %v2253 = vunpack.c.h.b16 %v2157
            %v2254 = vpack.c.b16 %v2194, %v2190
            %v2255 = vpack.c.b16 %v2195, %v2191
            %v2256 = vpack.c.b16 %v2196, %v2192
            %v2257 = vpack.c.b16 %v2197, %v2193
            %v2258 = vpack.c.b16 %v2202, %v2198
            %v2259 = vpack.c.b16 %v2203, %v2199
            %v2260 = vpack.c.b16 %v2204, %v2200
            %v2261 = vpack.c.b16 %v2205, %v2201
            %v2262 = vpack.c.b16 %v2210, %v2206
            %v2263 = vpack.c.b16 %v2211, %v2207
            %v2264 = vpack.c.b16 %v2212, %v2208
            %v2265 = vpack.c.b16 %v2213, %v2209
            %v2266 = vpack.c.b16 %v2218, %v2214
            %v2267 = vpack.c.b16 %v2219, %v2215
            %v2268 = vpack.c.b16 %v2220, %v2216
            %v2269 = vpack.c.b16 %v2221, %v2217
            %v2270 = vpack.c.b16 %v2226, %v2222
            %v2271 = vpack.c.b16 %v2227, %v2223
            %v2272 = vpack.c.b16 %v2228, %v2224
            %v2273 = vpack.c.b16 %v2229, %v2225
            %v2274 = vpack.c.b16 %v2234, %v2230
            %v2275 = vpack.c.b16 %v2235, %v2231
            %v2276 = vpack.c.b16 %v2236, %v2232
            %v2277 = vpack.c.b16 %v2237, %v2233
            %v2278 = vpack.c.b16 %v2242, %v2238
            %v2279 = vpack.c.b16 %v2243, %v2239
            %v2280 = vpack.c.b16 %v2244, %v2240
            %v2281 = vpack.c.b16 %v2245, %v2241
            %v2282 = vpack.c.b16 %v2250, %v2246
            %v2283 = vpack.c.b16 %v2251, %v2247
            %v2284 = vpack.c.b16 %v2252, %v2248
            %v2285 = vpack.c.b16 %v2253, %v2249
            %2318 = vmatpush.bf16.msra.mxu0 %v2282
            %2319 = vmatpush.bf16.msra.mxu0 %v2278
            %2320 = vmatpush.bf16.msra.mxu0 %v2274
            %2321 = vmatpush.bf16.msra.mxu0 %v2270
            %2322 = vmatpush.bf16.msra.mxu0 %v2266
            %2323 = vmatpush.bf16.msra.mxu0 %v2262
            %2324 = vmatpush.bf16.msra.mxu0 %v2258
            %2325 = vmatpush.bf16.msra.mxu0 %v2254
            %2326 = vmatmul.bf16.gmra.mxu0 %v2125
            %v2327 = vpop.f32.mrf.mxu0
            %v2328 = vadd.f32 0.0, %v2327
            %v2329 = vpop.f32.mrf.mxu0
            %2330 = vdwg.mxu0
            %2331 = vmatpush.bf16.msra.mxu0 %v2283
            %2332 = vmatpush.bf16.msra.mxu0 %v2279
            %2333 = vmatpush.bf16.msra.mxu0 %v2275
            %2334 = vmatpush.bf16.msra.mxu0 %v2271
            %2335 = vmatpush.bf16.msra.mxu0 %v2267
            %2336 = vmatpush.bf16.msra.mxu0 %v2263
            %2337 = vmatpush.bf16.msra.mxu0 %v2259
            %2338 = vmatpush.bf16.msra.mxu0 %v2255
            %2339 = vmatmul.bf16.gmra.mxu0 %v2125
            %v2340 = vpop.f32.mrf.mxu0
            %v2341 = vadd.f32 0.0, %v2340
            %v2342 = vpop.f32.mrf.mxu0
            %2343 = vdwg.mxu0
            %2344 = vmatpush.bf16.msra.mxu0 %v2284
            %2345 = vmatpush.bf16.msra.mxu0 %v2280
            %2346 = vmatpush.bf16.msra.mxu0 %v2276
            %2347 = vmatpush.bf16.msra.mxu0 %v2272
            %2348 = vmatpush.bf16.msra.mxu0 %v2268
            %2349 = vmatpush.bf16.msra.mxu0 %v2264
            %2350 = vmatpush.bf16.msra.mxu0 %v2260
            %2351 = vmatpush.bf16.msra.mxu0 %v2256
            %2352 = vmatmul.bf16.gmra.mxu0 %v2125
            %v2353 = vpop.f32.mrf.mxu0
            %v2354 = vadd.f32 0.0, %v2353
            %v2355 = vpop.f32.mrf.mxu0
            %2356 = vdwg.mxu0
            %2357 = vmatpush.bf16.msra.mxu0 %v2285
            %2358 = vmatpush.bf16.msra.mxu0 %v2281
            %2359 = vmatpush.bf16.msra.mxu0 %v2277
            %2360 = vmatpush.bf16.msra.mxu0 %v2273
            %2361 = vmatpush.bf16.msra.mxu0 %v2269
            %2362 = vmatpush.bf16.msra.mxu0 %v2265
            %2363 = vmatpush.bf16.msra.mxu0 %v2261
            %2364 = vmatpush.bf16.msra.mxu0 %v2257
            %2365 = vmatmul.bf16.gmra.mxu0 %v2125
            %v2366 = vpop.f32.mrf.mxu0
            %v2367 = vadd.f32 0.0, %v2366
            %v2368 = vpop.f32.mrf.mxu0
            %2369 = vdwg.mxu0
            %v2370 = vadd.f32 %v2121, %v2328
            %v2371 = vadd.f32 %v2122, %v2341
            %v2372 = vadd.f32 %v2123, %v2354
            %v2373 = vadd.f32 %v2124, %v2367
            %v2374 = vxor.u32 %v2370, 2147483648
            %v2375 = vxor.u32 %v2371, 2147483648
            %v2376 = vxor.u32 %v2372, 2147483648
            %v2377 = vmul.f32 %v2374, 1.442695
            %v2378 = vpow.pop %v2377
            %v2379 = vmul.f32 %v2375, 1.442695
            %v2380 = vpow.pop %v2379
            %v2381 = vmul.f32 %v2376, 1.442695
            %v2382 = vpow.pop %v2381
            %v2383 = vadd.f32 %v2378, 1.0
            %v2384 = vadd.f32 %v2380, 1.0
            %v2385 = vadd.f32 %v2382, 1.0
            %v2386 = vrcp.pop %v2383
            %v2387 = vmul.f32 %v2383, %v2386
            %v2388 = vsub.f32 1.0, %v2387
            %v2389 = vmul.f32 %v2386, %v2388
            %v2390 = vadd.f32 %v2386, %v2389
            %vm2391 = vweird.f32 %v2383
            %vm2392 = vweird.f32 %v2386
            %vm2393 = vmor %vm2391, %vm2392
            %v2394 = vsel %vm2393, %v2386, %v2390
            %v2395 = vand.u32 2147483647, %v2383
            %vm2396 = vcmp.eq.f32.partialorder %v2395, 8.507059e+37
            %v2397 = vand.u32 %v2383, 2147483648
            %v2398 = vor.u32 1.1754944e-38, %v2397
            %v2399 = vsel %vm2396, %v2398, %v2394
            %v2400 = vmul.f32 1.0, %v2399
            %v2401 = vrcp.pop %v2384
            %v2402 = vmul.f32 %v2384, %v2401
            %v2403 = vsub.f32 1.0, %v2402
            %v2404 = vmul.f32 %v2401, %v2403
            %v2405 = vadd.f32 %v2401, %v2404
            %vm2406 = vweird.f32 %v2384
            %vm2407 = vweird.f32 %v2401
            %vm2408 = vmor %vm2406, %vm2407
            %v2409 = vsel %vm2408, %v2401, %v2405
            %v2410 = vand.u32 2147483647, %v2384
            %vm2411 = vcmp.eq.f32.partialorder %v2410, 8.507059e+37
            %v2412 = vand.u32 %v2384, 2147483648
            %v2413 = vor.u32 1.1754944e-38, %v2412
            %v2414 = vsel %vm2411, %v2413, %v2409
            %v2415 = vmul.f32 1.0, %v2414
            %v2416 = vrcp.pop %v2385
            %v2417 = vmul.f32 %v2385, %v2416
            %v2418 = vsub.f32 1.0, %v2417
            %v2419 = vmul.f32 %v2416, %v2418
            %v2420 = vadd.f32 %v2416, %v2419
            %vm2421 = vweird.f32 %v2385
            %vm2422 = vweird.f32 %v2416
            %vm2423 = vmor %vm2421, %vm2422
            %v2424 = vsel %vm2423, %v2416, %v2420
            %v2425 = vand.u32 2147483647, %v2385
            %vm2426 = vcmp.eq.f32.partialorder %v2425, 8.507059e+37
            %v2427 = vand.u32 %v2385, 2147483648
            %v2428 = vor.u32 1.1754944e-38, %v2427
            %v2429 = vsel %vm2426, %v2428, %v2424
            %v2430 = vmul.f32 1.0, %v2429
            %v2431 = vtanh.pop %v2373
            %v2432 = vmul.f32 %v2415, %v2114
            %v2433 = vmul.f32 %v2400, %v2431
            %v2434 = vadd.f32 %v2432, %v2433
            %v2435 = vtanh.pop %v2434
            %v2436 = vmul.f32 %v2430, %v2435
            %s2437 = sadd.s32 %s424, %s2115
            %v2438 = vstv %s2437
            %vm2439 = vcmp.lt.s32.totalorder %v2438, %v419
            %v2440 = vsel %vm2439, 1, 0
            %2441 = vset.pattern.permute.xlu0 0
            %2442 = vperm.xlu0 %2441, %v2440
            %v2443 = vpop.permute.xlu0 %2442
            %vm2444 = vcmp.eq.s32.totalorder %v2443, 1
            %v2445 = vsel %vm2444, %v2436, 0.0
            %s2446 = smul.u32 %s2115, 8
            %s2447 = scalar_lea.vmem %s400, %s2446 [#allocation12]
            %2448 = vst [vmem:[%s2447] sm:$0xff] %v2445
            %v2449 = vsel %vm2444, %v2436, %v2113
            %v2450 = vsel %vm2444, %v2434, %v2114
            %s2451 = sadd.s32 %s435, 6
            %s2452 = smul.u32 %s2451, 4
            %s2453 = smul.addr %s2452, 4
            %s2454 = scalar_lea.vmem %s328, %s2453 [#allocation4]
            %v2455 = vld [vmem:[%s2454] sm:$0xff]
            %v2456 = vld [vmem:[%s2454 + $0x8] sm:$0xff]
            %v2457 = vunpack.c.l.bf16 %v2455
            %v2458 = vunpack.c.h.bf16 %v2455
            %v2459 = vunpack.c.l.bf16 %v2456
            %v2460 = vunpack.c.h.bf16 %v2456
            %v2461 = vpack.c.bf16 %v2449, %v2449
            %v2462 = vld [vmem:[%s338] sm:$0xff]
            %v2463 = vld [vmem:[%s338 + $0x8] sm:$0xff]
            %v2464 = vld [vmem:[%s338 + $0x10] sm:$0xff]
            %v2465 = vld [vmem:[%s338 + $0x18] sm:$0xff]
            %v2466 = vld [vmem:[%s338 + $0x20] sm:$0xff]
            %v2467 = vld [vmem:[%s338 + $0x28] sm:$0xff]
            %v2468 = vld [vmem:[%s338 + $0x30] sm:$0xff]
            %v2469 = vld [vmem:[%s338 + $0x38] sm:$0xff]
            %v2470 = vld [vmem:[%s338 + $0x40] sm:$0xff]
            %v2471 = vld [vmem:[%s338 + $0x48] sm:$0xff]
            %v2472 = vld [vmem:[%s338 + $0x50] sm:$0xff]
            %v2473 = vld [vmem:[%s338 + $0x58] sm:$0xff]
            %v2474 = vld [vmem:[%s338 + $0x60] sm:$0xff]
            %v2475 = vld [vmem:[%s338 + $0x68] sm:$0xff]
            %v2476 = vld [vmem:[%s338 + $0x70] sm:$0xff]
            %v2477 = vld [vmem:[%s338 + $0x78] sm:$0xff]
            %v2478 = vld [vmem:[%s338 + $0x80] sm:$0xff]
            %v2479 = vld [vmem:[%s338 + $0x88] sm:$0xff]
            %v2480 = vld [vmem:[%s338 + $0x90] sm:$0xff]
            %v2481 = vld [vmem:[%s338 + $0x98] sm:$0xff]
            %v2482 = vld [vmem:[%s338 + $0xa0] sm:$0xff]
            %v2483 = vld [vmem:[%s338 + $0xa8] sm:$0xff]
            %v2484 = vld [vmem:[%s338 + $0xb0] sm:$0xff]
            %v2485 = vld [vmem:[%s338 + $0xb8] sm:$0xff]
            %v2486 = vld [vmem:[%s338 + $0xc0] sm:$0xff]
            %v2487 = vld [vmem:[%s338 + $0xc8] sm:$0xff]
            %v2488 = vld [vmem:[%s338 + $0xd0] sm:$0xff]
            %v2489 = vld [vmem:[%s338 + $0xd8] sm:$0xff]
            %v2490 = vld [vmem:[%s338 + $0xe0] sm:$0xff]
            %v2491 = vld [vmem:[%s338 + $0xe8] sm:$0xff]
            %v2492 = vld [vmem:[%s338 + $0xf0] sm:$0xff]
            %v2493 = vld [vmem:[%s338 + $0xf8] sm:$0xff]
            %v2526 = vunpack.c.l.b16 %v2462
            %v2527 = vunpack.c.h.b16 %v2462
            %v2528 = vunpack.c.l.b16 %v2463
            %v2529 = vunpack.c.h.b16 %v2463
            %v2530 = vunpack.c.l.b16 %v2464
            %v2531 = vunpack.c.h.b16 %v2464
            %v2532 = vunpack.c.l.b16 %v2465
            %v2533 = vunpack.c.h.b16 %v2465
            %v2534 = vunpack.c.l.b16 %v2466
            %v2535 = vunpack.c.h.b16 %v2466
            %v2536 = vunpack.c.l.b16 %v2467
            %v2537 = vunpack.c.h.b16 %v2467
            %v2538 = vunpack.c.l.b16 %v2468
            %v2539 = vunpack.c.h.b16 %v2468
            %v2540 = vunpack.c.l.b16 %v2469
            %v2541 = vunpack.c.h.b16 %v2469
            %v2542 = vunpack.c.l.b16 %v2470
            %v2543 = vunpack.c.h.b16 %v2470
            %v2544 = vunpack.c.l.b16 %v2471
            %v2545 = vunpack.c.h.b16 %v2471
            %v2546 = vunpack.c.l.b16 %v2472
            %v2547 = vunpack.c.h.b16 %v2472
            %v2548 = vunpack.c.l.b16 %v2473
            %v2549 = vunpack.c.h.b16 %v2473
            %v2550 = vunpack.c.l.b16 %v2474
            %v2551 = vunpack.c.h.b16 %v2474
            %v2552 = vunpack.c.l.b16 %v2475
            %v2553 = vunpack.c.h.b16 %v2475
            %v2554 = vunpack.c.l.b16 %v2476
            %v2555 = vunpack.c.h.b16 %v2476
            %v2556 = vunpack.c.l.b16 %v2477
            %v2557 = vunpack.c.h.b16 %v2477
            %v2558 = vunpack.c.l.b16 %v2478
            %v2559 = vunpack.c.h.b16 %v2478
            %v2560 = vunpack.c.l.b16 %v2479
            %v2561 = vunpack.c.h.b16 %v2479
            %v2562 = vunpack.c.l.b16 %v2480
            %v2563 = vunpack.c.h.b16 %v2480
            %v2564 = vunpack.c.l.b16 %v2481
            %v2565 = vunpack.c.h.b16 %v2481
            %v2566 = vunpack.c.l.b16 %v2482
            %v2567 = vunpack.c.h.b16 %v2482
            %v2568 = vunpack.c.l.b16 %v2483
            %v2569 = vunpack.c.h.b16 %v2483
            %v2570 = vunpack.c.l.b16 %v2484
            %v2571 = vunpack.c.h.b16 %v2484
            %v2572 = vunpack.c.l.b16 %v2485
            %v2573 = vunpack.c.h.b16 %v2485
            %v2574 = vunpack.c.l.b16 %v2486
            %v2575 = vunpack.c.h.b16 %v2486
            %v2576 = vunpack.c.l.b16 %v2487
            %v2577 = vunpack.c.h.b16 %v2487
            %v2578 = vunpack.c.l.b16 %v2488
            %v2579 = vunpack.c.h.b16 %v2488
            %v2580 = vunpack.c.l.b16 %v2489
            %v2581 = vunpack.c.h.b16 %v2489
            %v2582 = vunpack.c.l.b16 %v2490
            %v2583 = vunpack.c.h.b16 %v2490
            %v2584 = vunpack.c.l.b16 %v2491
            %v2585 = vunpack.c.h.b16 %v2491
            %v2586 = vunpack.c.l.b16 %v2492
            %v2587 = vunpack.c.h.b16 %v2492
            %v2588 = vunpack.c.l.b16 %v2493
            %v2589 = vunpack.c.h.b16 %v2493
            %v2590 = vpack.c.b16 %v2530, %v2526
            %v2591 = vpack.c.b16 %v2531, %v2527
            %v2592 = vpack.c.b16 %v2532, %v2528
            %v2593 = vpack.c.b16 %v2533, %v2529
            %v2594 = vpack.c.b16 %v2538, %v2534
            %v2595 = vpack.c.b16 %v2539, %v2535
            %v2596 = vpack.c.b16 %v2540, %v2536
            %v2597 = vpack.c.b16 %v2541, %v2537
            %v2598 = vpack.c.b16 %v2546, %v2542
            %v2599 = vpack.c.b16 %v2547, %v2543
            %v2600 = vpack.c.b16 %v2548, %v2544
            %v2601 = vpack.c.b16 %v2549, %v2545
            %v2602 = vpack.c.b16 %v2554, %v2550
            %v2603 = vpack.c.b16 %v2555, %v2551
            %v2604 = vpack.c.b16 %v2556, %v2552
            %v2605 = vpack.c.b16 %v2557, %v2553
            %v2606 = vpack.c.b16 %v2562, %v2558
            %v2607 = vpack.c.b16 %v2563, %v2559
            %v2608 = vpack.c.b16 %v2564, %v2560
            %v2609 = vpack.c.b16 %v2565, %v2561
            %v2610 = vpack.c.b16 %v2570, %v2566
            %v2611 = vpack.c.b16 %v2571, %v2567
            %v2612 = vpack.c.b16 %v2572, %v2568
            %v2613 = vpack.c.b16 %v2573, %v2569
            %v2614 = vpack.c.b16 %v2578, %v2574
            %v2615 = vpack.c.b16 %v2579, %v2575
            %v2616 = vpack.c.b16 %v2580, %v2576
            %v2617 = vpack.c.b16 %v2581, %v2577
            %v2618 = vpack.c.b16 %v2586, %v2582
            %v2619 = vpack.c.b16 %v2587, %v2583
            %v2620 = vpack.c.b16 %v2588, %v2584
            %v2621 = vpack.c.b16 %v2589, %v2585
            %2654 = vmatpush.bf16.msra.mxu0 %v2618
            %2655 = vmatpush.bf16.msra.mxu0 %v2614
            %2656 = vmatpush.bf16.msra.mxu0 %v2610
            %2657 = vmatpush.bf16.msra.mxu0 %v2606
            %2658 = vmatpush.bf16.msra.mxu0 %v2602
            %2659 = vmatpush.bf16.msra.mxu0 %v2598
            %2660 = vmatpush.bf16.msra.mxu0 %v2594
            %2661 = vmatpush.bf16.msra.mxu0 %v2590
            %2662 = vmatmul.bf16.gmra.mxu0 %v2461
            %v2663 = vpop.f32.mrf.mxu0
            %v2664 = vadd.f32 0.0, %v2663
            %v2665 = vpop.f32.mrf.mxu0
            %2666 = vdwg.mxu0
            %2667 = vmatpush.bf16.msra.mxu0 %v2619
            %2668 = vmatpush.bf16.msra.mxu0 %v2615
            %2669 = vmatpush.bf16.msra.mxu0 %v2611
            %2670 = vmatpush.bf16.msra.mxu0 %v2607
            %2671 = vmatpush.bf16.msra.mxu0 %v2603
            %2672 = vmatpush.bf16.msra.mxu0 %v2599
            %2673 = vmatpush.bf16.msra.mxu0 %v2595
            %2674 = vmatpush.bf16.msra.mxu0 %v2591
            %2675 = vmatmul.bf16.gmra.mxu0 %v2461
            %v2676 = vpop.f32.mrf.mxu0
            %v2677 = vadd.f32 0.0, %v2676
            %v2678 = vpop.f32.mrf.mxu0
            %2679 = vdwg.mxu0
            %2680 = vmatpush.bf16.msra.mxu0 %v2620
            %2681 = vmatpush.bf16.msra.mxu0 %v2616
            %2682 = vmatpush.bf16.msra.mxu0 %v2612
            %2683 = vmatpush.bf16.msra.mxu0 %v2608
            %2684 = vmatpush.bf16.msra.mxu0 %v2604
            %2685 = vmatpush.bf16.msra.mxu0 %v2600
            %2686 = vmatpush.bf16.msra.mxu0 %v2596
            %2687 = vmatpush.bf16.msra.mxu0 %v2592
            %2688 = vmatmul.bf16.gmra.mxu0 %v2461
            %v2689 = vpop.f32.mrf.mxu0
            %v2690 = vadd.f32 0.0, %v2689
            %v2691 = vpop.f32.mrf.mxu0
            %2692 = vdwg.mxu0
            %2693 = vmatpush.bf16.msra.mxu0 %v2621
            %2694 = vmatpush.bf16.msra.mxu0 %v2617
            %2695 = vmatpush.bf16.msra.mxu0 %v2613
            %2696 = vmatpush.bf16.msra.mxu0 %v2609
            %2697 = vmatpush.bf16.msra.mxu0 %v2605
            %2698 = vmatpush.bf16.msra.mxu0 %v2601
            %2699 = vmatpush.bf16.msra.mxu0 %v2597
            %2700 = vmatpush.bf16.msra.mxu0 %v2593
            %2701 = vmatmul.bf16.gmra.mxu0 %v2461
            %v2702 = vpop.f32.mrf.mxu0
            %v2703 = vadd.f32 0.0, %v2702
            %v2704 = vpop.f32.mrf.mxu0
            %2705 = vdwg.mxu0
            %v2706 = vadd.f32 %v2457, %v2664
            %v2707 = vadd.f32 %v2458, %v2677
            %v2708 = vadd.f32 %v2459, %v2690
            %v2709 = vadd.f32 %v2460, %v2703
            %v2710 = vxor.u32 %v2706, 2147483648
            %v2711 = vxor.u32 %v2707, 2147483648
            %v2712 = vxor.u32 %v2708, 2147483648
            %v2713 = vmul.f32 %v2710, 1.442695
            %v2714 = vpow.pop %v2713
            %v2715 = vmul.f32 %v2711, 1.442695
            %v2716 = vpow.pop %v2715
            %v2717 = vmul.f32 %v2712, 1.442695
            %v2718 = vpow.pop %v2717
            %v2719 = vadd.f32 %v2714, 1.0
            %v2720 = vadd.f32 %v2716, 1.0
            %v2721 = vadd.f32 %v2718, 1.0
            %v2722 = vrcp.pop %v2719
            %v2723 = vmul.f32 %v2719, %v2722
            %v2724 = vsub.f32 1.0, %v2723
            %v2725 = vmul.f32 %v2722, %v2724
            %v2726 = vadd.f32 %v2722, %v2725
            %vm2727 = vweird.f32 %v2719
            %vm2728 = vweird.f32 %v2722
            %vm2729 = vmor %vm2727, %vm2728
            %v2730 = vsel %vm2729, %v2722, %v2726
            %v2731 = vand.u32 2147483647, %v2719
            %vm2732 = vcmp.eq.f32.partialorder %v2731, 8.507059e+37
            %v2733 = vand.u32 %v2719, 2147483648
            %v2734 = vor.u32 1.1754944e-38, %v2733
            %v2735 = vsel %vm2732, %v2734, %v2730
            %v2736 = vmul.f32 1.0, %v2735
            %v2737 = vrcp.pop %v2720
            %v2738 = vmul.f32 %v2720, %v2737
            %v2739 = vsub.f32 1.0, %v2738
            %v2740 = vmul.f32 %v2737, %v2739
            %v2741 = vadd.f32 %v2737, %v2740
            %vm2742 = vweird.f32 %v2720
            %vm2743 = vweird.f32 %v2737
            %vm2744 = vmor %vm2742, %vm2743
            %v2745 = vsel %vm2744, %v2737, %v2741
            %v2746 = vand.u32 2147483647, %v2720
            %vm2747 = vcmp.eq.f32.partialorder %v2746, 8.507059e+37
            %v2748 = vand.u32 %v2720, 2147483648
            %v2749 = vor.u32 1.1754944e-38, %v2748
            %v2750 = vsel %vm2747, %v2749, %v2745
            %v2751 = vmul.f32 1.0, %v2750
            %v2752 = vrcp.pop %v2721
            %v2753 = vmul.f32 %v2721, %v2752
            %v2754 = vsub.f32 1.0, %v2753
            %v2755 = vmul.f32 %v2752, %v2754
            %v2756 = vadd.f32 %v2752, %v2755
            %vm2757 = vweird.f32 %v2721
            %vm2758 = vweird.f32 %v2752
            %vm2759 = vmor %vm2757, %vm2758
            %v2760 = vsel %vm2759, %v2752, %v2756
            %v2761 = vand.u32 2147483647, %v2721
            %vm2762 = vcmp.eq.f32.partialorder %v2761, 8.507059e+37
            %v2763 = vand.u32 %v2721, 2147483648
            %v2764 = vor.u32 1.1754944e-38, %v2763
            %v2765 = vsel %vm2762, %v2764, %v2760
            %v2766 = vmul.f32 1.0, %v2765
            %v2767 = vtanh.pop %v2709
            %v2768 = vmul.f32 %v2751, %v2450
            %v2769 = vmul.f32 %v2736, %v2767
            %v2770 = vadd.f32 %v2768, %v2769
            %v2771 = vtanh.pop %v2770
            %v2772 = vmul.f32 %v2766, %v2771
            %s2773 = sadd.s32 %s424, %s2451
            %v2774 = vstv %s2773
            %vm2775 = vcmp.lt.s32.totalorder %v2774, %v419
            %v2776 = vsel %vm2775, 1, 0
            %2777 = vset.pattern.permute.xlu0 0
            %2778 = vperm.xlu0 %2777, %v2776
            %v2779 = vpop.permute.xlu0 %2778
            %vm2780 = vcmp.eq.s32.totalorder %v2779, 1
            %v2781 = vsel %vm2780, %v2772, 0.0
            %s2782 = smul.u32 %s2451, 8
            %s2783 = scalar_lea.vmem %s400, %s2782 [#allocation12]
            %2784 = vst [vmem:[%s2783] sm:$0xff] %v2781
            %v2785 = vsel %vm2780, %v2772, %v2449
            %v2786 = vsel %vm2780, %v2770, %v2450
            %s2787 = sadd.s32 %s435, 7
            %s2788 = smul.u32 %s2787, 4
            %s2789 = smul.addr %s2788, 4
            %s2790 = scalar_lea.vmem %s328, %s2789 [#allocation4]
            %v2791 = vld [vmem:[%s2790] sm:$0xff]
            %v2792 = vld [vmem:[%s2790 + $0x8] sm:$0xff]
            %v2793 = vunpack.c.l.bf16 %v2791
            %v2794 = vunpack.c.h.bf16 %v2791
            %v2795 = vunpack.c.l.bf16 %v2792
            %v2796 = vunpack.c.h.bf16 %v2792
            %v2797 = vpack.c.bf16 %v2785, %v2785
            %v2798 = vld [vmem:[%s338] sm:$0xff]
            %v2799 = vld [vmem:[%s338 + $0x8] sm:$0xff]
            %v2800 = vld [vmem:[%s338 + $0x10] sm:$0xff]
            %v2801 = vld [vmem:[%s338 + $0x18] sm:$0xff]
            %v2802 = vld [vmem:[%s338 + $0x20] sm:$0xff]
            %v2803 = vld [vmem:[%s338 + $0x28] sm:$0xff]
            %v2804 = vld [vmem:[%s338 + $0x30] sm:$0xff]
            %v2805 = vld [vmem:[%s338 + $0x38] sm:$0xff]
            %v2806 = vld [vmem:[%s338 + $0x40] sm:$0xff]
            %v2807 = vld [vmem:[%s338 + $0x48] sm:$0xff]
            %v2808 = vld [vmem:[%s338 + $0x50] sm:$0xff]
            %v2809 = vld [vmem:[%s338 + $0x58] sm:$0xff]
            %v2810 = vld [vmem:[%s338 + $0x60] sm:$0xff]
            %v2811 = vld [vmem:[%s338 + $0x68] sm:$0xff]
            %v2812 = vld [vmem:[%s338 + $0x70] sm:$0xff]
            %v2813 = vld [vmem:[%s338 + $0x78] sm:$0xff]
            %v2814 = vld [vmem:[%s338 + $0x80] sm:$0xff]
            %v2815 = vld [vmem:[%s338 + $0x88] sm:$0xff]
            %v2816 = vld [vmem:[%s338 + $0x90] sm:$0xff]
            %v2817 = vld [vmem:[%s338 + $0x98] sm:$0xff]
            %v2818 = vld [vmem:[%s338 + $0xa0] sm:$0xff]
            %v2819 = vld [vmem:[%s338 + $0xa8] sm:$0xff]
            %v2820 = vld [vmem:[%s338 + $0xb0] sm:$0xff]
            %v2821 = vld [vmem:[%s338 + $0xb8] sm:$0xff]
            %v2822 = vld [vmem:[%s338 + $0xc0] sm:$0xff]
            %v2823 = vld [vmem:[%s338 + $0xc8] sm:$0xff]
            %v2824 = vld [vmem:[%s338 + $0xd0] sm:$0xff]
            %v2825 = vld [vmem:[%s338 + $0xd8] sm:$0xff]
            %v2826 = vld [vmem:[%s338 + $0xe0] sm:$0xff]
            %v2827 = vld [vmem:[%s338 + $0xe8] sm:$0xff]
            %v2828 = vld [vmem:[%s338 + $0xf0] sm:$0xff]
            %v2829 = vld [vmem:[%s338 + $0xf8] sm:$0xff]
            %v2862 = vunpack.c.l.b16 %v2798
            %v2863 = vunpack.c.h.b16 %v2798
            %v2864 = vunpack.c.l.b16 %v2799
            %v2865 = vunpack.c.h.b16 %v2799
            %v2866 = vunpack.c.l.b16 %v2800
            %v2867 = vunpack.c.h.b16 %v2800
            %v2868 = vunpack.c.l.b16 %v2801
            %v2869 = vunpack.c.h.b16 %v2801
            %v2870 = vunpack.c.l.b16 %v2802
            %v2871 = vunpack.c.h.b16 %v2802
            %v2872 = vunpack.c.l.b16 %v2803
            %v2873 = vunpack.c.h.b16 %v2803
            %v2874 = vunpack.c.l.b16 %v2804
            %v2875 = vunpack.c.h.b16 %v2804
            %v2876 = vunpack.c.l.b16 %v2805
            %v2877 = vunpack.c.h.b16 %v2805
            %v2878 = vunpack.c.l.b16 %v2806
            %v2879 = vunpack.c.h.b16 %v2806
            %v2880 = vunpack.c.l.b16 %v2807
            %v2881 = vunpack.c.h.b16 %v2807
            %v2882 = vunpack.c.l.b16 %v2808
            %v2883 = vunpack.c.h.b16 %v2808
            %v2884 = vunpack.c.l.b16 %v2809
            %v2885 = vunpack.c.h.b16 %v2809
            %v2886 = vunpack.c.l.b16 %v2810
            %v2887 = vunpack.c.h.b16 %v2810
            %v2888 = vunpack.c.l.b16 %v2811
            %v2889 = vunpack.c.h.b16 %v2811
            %v2890 = vunpack.c.l.b16 %v2812
            %v2891 = vunpack.c.h.b16 %v2812
            %v2892 = vunpack.c.l.b16 %v2813
            %v2893 = vunpack.c.h.b16 %v2813
            %v2894 = vunpack.c.l.b16 %v2814
            %v2895 = vunpack.c.h.b16 %v2814
            %v2896 = vunpack.c.l.b16 %v2815
            %v2897 = vunpack.c.h.b16 %v2815
            %v2898 = vunpack.c.l.b16 %v2816
            %v2899 = vunpack.c.h.b16 %v2816
            %v2900 = vunpack.c.l.b16 %v2817
            %v2901 = vunpack.c.h.b16 %v2817
            %v2902 = vunpack.c.l.b16 %v2818
            %v2903 = vunpack.c.h.b16 %v2818
            %v2904 = vunpack.c.l.b16 %v2819
            %v2905 = vunpack.c.h.b16 %v2819
            %v2906 = vunpack.c.l.b16 %v2820
            %v2907 = vunpack.c.h.b16 %v2820
            %v2908 = vunpack.c.l.b16 %v2821
            %v2909 = vunpack.c.h.b16 %v2821
            %v2910 = vunpack.c.l.b16 %v2822
            %v2911 = vunpack.c.h.b16 %v2822
            %v2912 = vunpack.c.l.b16 %v2823
            %v2913 = vunpack.c.h.b16 %v2823
            %v2914 = vunpack.c.l.b16 %v2824
            %v2915 = vunpack.c.h.b16 %v2824
            %v2916 = vunpack.c.l.b16 %v2825
            %v2917 = vunpack.c.h.b16 %v2825
            %v2918 = vunpack.c.l.b16 %v2826
            %v2919 = vunpack.c.h.b16 %v2826
            %v2920 = vunpack.c.l.b16 %v2827
            %v2921 = vunpack.c.h.b16 %v2827
            %v2922 = vunpack.c.l.b16 %v2828
            %v2923 = vunpack.c.h.b16 %v2828
            %v2924 = vunpack.c.l.b16 %v2829
            %v2925 = vunpack.c.h.b16 %v2829
            %v2926 = vpack.c.b16 %v2866, %v2862
            %v2927 = vpack.c.b16 %v2867, %v2863
            %v2928 = vpack.c.b16 %v2868, %v2864
            %v2929 = vpack.c.b16 %v2869, %v2865
            %v2930 = vpack.c.b16 %v2874, %v2870
            %v2931 = vpack.c.b16 %v2875, %v2871
            %v2932 = vpack.c.b16 %v2876, %v2872
            %v2933 = vpack.c.b16 %v2877, %v2873
            %v2934 = vpack.c.b16 %v2882, %v2878
            %v2935 = vpack.c.b16 %v2883, %v2879
            %v2936 = vpack.c.b16 %v2884, %v2880
            %v2937 = vpack.c.b16 %v2885, %v2881
            %v2938 = vpack.c.b16 %v2890, %v2886
            %v2939 = vpack.c.b16 %v2891, %v2887
            %v2940 = vpack.c.b16 %v2892, %v2888
            %v2941 = vpack.c.b16 %v2893, %v2889
            %v2942 = vpack.c.b16 %v2898, %v2894
            %v2943 = vpack.c.b16 %v2899, %v2895
            %v2944 = vpack.c.b16 %v2900, %v2896
            %v2945 = vpack.c.b16 %v2901, %v2897
            %v2946 = vpack.c.b16 %v2906, %v2902
            %v2947 = vpack.c.b16 %v2907, %v2903
            %v2948 = vpack.c.b16 %v2908, %v2904
            %v2949 = vpack.c.b16 %v2909, %v2905
            %v2950 = vpack.c.b16 %v2914, %v2910
            %v2951 = vpack.c.b16 %v2915, %v2911
            %v2952 = vpack.c.b16 %v2916, %v2912
            %v2953 = vpack.c.b16 %v2917, %v2913
            %v2954 = vpack.c.b16 %v2922, %v2918
            %v2955 = vpack.c.b16 %v2923, %v2919
            %v2956 = vpack.c.b16 %v2924, %v2920
            %v2957 = vpack.c.b16 %v2925, %v2921
            %2990 = vmatpush.bf16.msra.mxu0 %v2954
            %2991 = vmatpush.bf16.msra.mxu0 %v2950
            %2992 = vmatpush.bf16.msra.mxu0 %v2946
            %2993 = vmatpush.bf16.msra.mxu0 %v2942
            %2994 = vmatpush.bf16.msra.mxu0 %v2938
            %2995 = vmatpush.bf16.msra.mxu0 %v2934
            %2996 = vmatpush.bf16.msra.mxu0 %v2930
            %2997 = vmatpush.bf16.msra.mxu0 %v2926
            %2998 = vmatmul.bf16.gmra.mxu0 %v2797
            %v2999 = vpop.f32.mrf.mxu0
            %v3000 = vadd.f32 0.0, %v2999
            %v3001 = vpop.f32.mrf.mxu0
            %3002 = vdwg.mxu0
            %3003 = vmatpush.bf16.msra.mxu0 %v2955
            %3004 = vmatpush.bf16.msra.mxu0 %v2951
            %3005 = vmatpush.bf16.msra.mxu0 %v2947
            %3006 = vmatpush.bf16.msra.mxu0 %v2943
            %3007 = vmatpush.bf16.msra.mxu0 %v2939
            %3008 = vmatpush.bf16.msra.mxu0 %v2935
            %3009 = vmatpush.bf16.msra.mxu0 %v2931
            %3010 = vmatpush.bf16.msra.mxu0 %v2927
            %3011 = vmatmul.bf16.gmra.mxu0 %v2797
            %v3012 = vpop.f32.mrf.mxu0
            %v3013 = vadd.f32 0.0, %v3012
            %v3014 = vpop.f32.mrf.mxu0
            %3015 = vdwg.mxu0
            %3016 = vmatpush.bf16.msra.mxu0 %v2956
            %3017 = vmatpush.bf16.msra.mxu0 %v2952
            %3018 = vmatpush.bf16.msra.mxu0 %v2948
            %3019 = vmatpush.bf16.msra.mxu0 %v2944
            %3020 = vmatpush.bf16.msra.mxu0 %v2940
            %3021 = vmatpush.bf16.msra.mxu0 %v2936
            %3022 = vmatpush.bf16.msra.mxu0 %v2932
            %3023 = vmatpush.bf16.msra.mxu0 %v2928
            %3024 = vmatmul.bf16.gmra.mxu0 %v2797
            %v3025 = vpop.f32.mrf.mxu0
            %v3026 = vadd.f32 0.0, %v3025
            %v3027 = vpop.f32.mrf.mxu0
            %3028 = vdwg.mxu0
            %3029 = vmatpush.bf16.msra.mxu0 %v2957
            %3030 = vmatpush.bf16.msra.mxu0 %v2953
            %3031 = vmatpush.bf16.msra.mxu0 %v2949
            %3032 = vmatpush.bf16.msra.mxu0 %v2945
            %3033 = vmatpush.bf16.msra.mxu0 %v2941
            %3034 = vmatpush.bf16.msra.mxu0 %v2937
            %3035 = vmatpush.bf16.msra.mxu0 %v2933
            %3036 = vmatpush.bf16.msra.mxu0 %v2929
            %3037 = vmatmul.bf16.gmra.mxu0 %v2797
            %v3038 = vpop.f32.mrf.mxu0
            %v3039 = vadd.f32 0.0, %v3038
            %v3040 = vpop.f32.mrf.mxu0
            %3041 = vdwg.mxu0
            %v3042 = vadd.f32 %v2793, %v3000
            %v3043 = vadd.f32 %v2794, %v3013
            %v3044 = vadd.f32 %v2795, %v3026
            %v3045 = vadd.f32 %v2796, %v3039
            %v3046 = vxor.u32 %v3042, 2147483648
            %v3047 = vxor.u32 %v3043, 2147483648
            %v3048 = vxor.u32 %v3044, 2147483648
            %v3049 = vmul.f32 %v3046, 1.442695
            %v3050 = vpow.pop %v3049
            %v3051 = vmul.f32 %v3047, 1.442695
            %v3052 = vpow.pop %v3051
            %v3053 = vmul.f32 %v3048, 1.442695
            %v3054 = vpow.pop %v3053
            %v3055 = vadd.f32 %v3050, 1.0
            %v3056 = vadd.f32 %v3052, 1.0
            %v3057 = vadd.f32 %v3054, 1.0
            %v3058 = vrcp.pop %v3055
            %v3059 = vmul.f32 %v3055, %v3058
            %v3060 = vsub.f32 1.0, %v3059
            %v3061 = vmul.f32 %v3058, %v3060
            %v3062 = vadd.f32 %v3058, %v3061
            %vm3063 = vweird.f32 %v3055
            %vm3064 = vweird.f32 %v3058
            %vm3065 = vmor %vm3063, %vm3064
            %v3066 = vsel %vm3065, %v3058, %v3062
            %v3067 = vand.u32 2147483647, %v3055
            %vm3068 = vcmp.eq.f32.partialorder %v3067, 8.507059e+37
            %v3069 = vand.u32 %v3055, 2147483648
            %v3070 = vor.u32 1.1754944e-38, %v3069
            %v3071 = vsel %vm3068, %v3070, %v3066
            %v3072 = vmul.f32 1.0, %v3071
            %v3073 = vrcp.pop %v3056
            %v3074 = vmul.f32 %v3056, %v3073
            %v3075 = vsub.f32 1.0, %v3074
            %v3076 = vmul.f32 %v3073, %v3075
            %v3077 = vadd.f32 %v3073, %v3076
            %vm3078 = vweird.f32 %v3056
            %vm3079 = vweird.f32 %v3073
            %vm3080 = vmor %vm3078, %vm3079
            %v3081 = vsel %vm3080, %v3073, %v3077
            %v3082 = vand.u32 2147483647, %v3056
            %vm3083 = vcmp.eq.f32.partialorder %v3082, 8.507059e+37
            %v3084 = vand.u32 %v3056, 2147483648
            %v3085 = vor.u32 1.1754944e-38, %v3084
            %v3086 = vsel %vm3083, %v3085, %v3081
            %v3087 = vmul.f32 1.0, %v3086
            %v3088 = vrcp.pop %v3057
            %v3089 = vmul.f32 %v3057, %v3088
            %v3090 = vsub.f32 1.0, %v3089
            %v3091 = vmul.f32 %v3088, %v3090
            %v3092 = vadd.f32 %v3088, %v3091
            %vm3093 = vweird.f32 %v3057
            %vm3094 = vweird.f32 %v3088
            %vm3095 = vmor %vm3093, %vm3094
            %v3096 = vsel %vm3095, %v3088, %v3092
            %v3097 = vand.u32 2147483647, %v3057
            %vm3098 = vcmp.eq.f32.partialorder %v3097, 8.507059e+37
            %v3099 = vand.u32 %v3057, 2147483648
            %v3100 = vor.u32 1.1754944e-38, %v3099
            %v3101 = vsel %vm3098, %v3100, %v3096
            %v3102 = vmul.f32 1.0, %v3101
            %v3103 = vtanh.pop %v3045
            %v3104 = vmul.f32 %v3087, %v2786
            %v3105 = vmul.f32 %v3072, %v3103
            %v3106 = vadd.f32 %v3104, %v3105
            %v3107 = vtanh.pop %v3106
            %v3108 = vmul.f32 %v3102, %v3107
            %s3109 = sadd.s32 %s424, %s2787
            %v3110 = vstv %s3109
            %vm3111 = vcmp.lt.s32.totalorder %v3110, %v419
            %v3112 = vsel %vm3111, 1, 0
            %3113 = vset.pattern.permute.xlu0 0
            %3114 = vperm.xlu0 %3113, %v3112
            %v3115 = vpop.permute.xlu0 %3114
            %vm3116 = vcmp.eq.s32.totalorder %v3115, 1
            %v3117 = vsel %vm3116, %v3108, 0.0
            %s3118 = smul.u32 %s2787, 8
            %s3119 = scalar_lea.vmem %s400, %s3118 [#allocation12]
            %3120 = vst [vmem:[%s3119] sm:$0xff] %v3117
            %v3121 = vsel %vm3116, %v3108, %v2785
            %v3122 = vsel %vm3116, %v3106, %v2786
          $region69: #{tpu_custom_call.1} parent=63 // loop_footer
            %s432 = sadd.s32 1, %s428
          $region70: #{tpu_custom_call.1} parent=63 // loop_footer_branch
            %427 = sbr.rel target = $region66
          $region71: #{tpu_custom_call.1} parent=63 // loop_exit
            _
          %3123 = vst [vmem:[#allocation2] sm:$0xff] %v433
          %3124 = vst [vmem:[#allocation3] sm:$0xff] %v434
        $region64: #{tpu_custom_call.1} parent=39 // pred_fallthru
          _
        %p3125 = scmp.eq.s32.totalorder %s32, 1
        // Predicated region
        $region72: #{tpu_custom_call.1} parent=39 // pred_check
          %p3126 = pneg %p3125
        $region73: #{tpu_custom_call.1} parent=39 // pred_check_branch
          %3128 = sbr.rel (%p3126) target = $region75
        $region74: #{tpu_custom_call.1} parent=39 // pred_region
          %s3129 = ssub.s32 0, %s33
          %s3130 = smul.u32 %s3129, 32
          %v3131 = vld [vmem:[#allocation2] sm:$0xff]
          %v3132 = vld [vmem:[#allocation3] sm:$0xff]
          loop: start=0, step=1, limit=4
          $region76: #{tpu_custom_call.1} parent=74 // loop_pre_header
            _
          $region77: #{tpu_custom_call.1} parent=74 // loop_header
            %s3134 = sphi 0, %s3138
            %p3135 = scmp.ge.s32.totalorder %s3134, 4
            %v3139 = vphi %v3131, %v5828
            %v3140 = vphi %v3132, %v5829
          $region78: #{tpu_custom_call.1} parent=74 // loop_header_branch
            %3137 = sbr.rel (%p3135) target = $region82
          $region79: #{tpu_custom_call.1} parent=74 // loop_body
            %s3141 = smul.u32 %s3134, 8
            %s3142 = ssub.s32 31, %s3141
            %s3143 = smul.u32 %s3142, 4
            %s3144 = smul.addr %s3143, 4
            %s3145 = scalar_lea.vmem %s328, %s3144 [#allocation4]
            %v3146 = vld [vmem:[%s3145] sm:$0xff]
            %v3147 = vld [vmem:[%s3145 + $0x8] sm:$0xff]
            %v3148 = vunpack.c.l.bf16 %v3146
            %v3149 = vunpack.c.h.bf16 %v3146
            %v3150 = vunpack.c.l.bf16 %v3147
            %v3151 = vunpack.c.h.bf16 %v3147
            %v3152 = vpack.c.bf16 %v3139, %v3139
            %v3153 = vld [vmem:[%s338] sm:$0xff]
            %v3154 = vld [vmem:[%s338 + $0x8] sm:$0xff]
            %v3155 = vld [vmem:[%s338 + $0x10] sm:$0xff]
            %v3156 = vld [vmem:[%s338 + $0x18] sm:$0xff]
            %v3157 = vld [vmem:[%s338 + $0x20] sm:$0xff]
            %v3158 = vld [vmem:[%s338 + $0x28] sm:$0xff]
            %v3159 = vld [vmem:[%s338 + $0x30] sm:$0xff]
            %v3160 = vld [vmem:[%s338 + $0x38] sm:$0xff]
            %v3161 = vld [vmem:[%s338 + $0x40] sm:$0xff]
            %v3162 = vld [vmem:[%s338 + $0x48] sm:$0xff]
            %v3163 = vld [vmem:[%s338 + $0x50] sm:$0xff]
            %v3164 = vld [vmem:[%s338 + $0x58] sm:$0xff]
            %v3165 = vld [vmem:[%s338 + $0x60] sm:$0xff]
            %v3166 = vld [vmem:[%s338 + $0x68] sm:$0xff]
            %v3167 = vld [vmem:[%s338 + $0x70] sm:$0xff]
            %v3168 = vld [vmem:[%s338 + $0x78] sm:$0xff]
            %v3169 = vld [vmem:[%s338 + $0x80] sm:$0xff]
            %v3170 = vld [vmem:[%s338 + $0x88] sm:$0xff]
            %v3171 = vld [vmem:[%s338 + $0x90] sm:$0xff]
            %v3172 = vld [vmem:[%s338 + $0x98] sm:$0xff]
            %v3173 = vld [vmem:[%s338 + $0xa0] sm:$0xff]
            %v3174 = vld [vmem:[%s338 + $0xa8] sm:$0xff]
            %v3175 = vld [vmem:[%s338 + $0xb0] sm:$0xff]
            %v3176 = vld [vmem:[%s338 + $0xb8] sm:$0xff]
            %v3177 = vld [vmem:[%s338 + $0xc0] sm:$0xff]
            %v3178 = vld [vmem:[%s338 + $0xc8] sm:$0xff]
            %v3179 = vld [vmem:[%s338 + $0xd0] sm:$0xff]
            %v3180 = vld [vmem:[%s338 + $0xd8] sm:$0xff]
            %v3181 = vld [vmem:[%s338 + $0xe0] sm:$0xff]
            %v3182 = vld [vmem:[%s338 + $0xe8] sm:$0xff]
            %v3183 = vld [vmem:[%s338 + $0xf0] sm:$0xff]
            %v3184 = vld [vmem:[%s338 + $0xf8] sm:$0xff]
            %v3217 = vunpack.c.l.b16 %v3153
            %v3218 = vunpack.c.h.b16 %v3153
            %v3219 = vunpack.c.l.b16 %v3154
            %v3220 = vunpack.c.h.b16 %v3154
            %v3221 = vunpack.c.l.b16 %v3155
            %v3222 = vunpack.c.h.b16 %v3155
            %v3223 = vunpack.c.l.b16 %v3156
            %v3224 = vunpack.c.h.b16 %v3156
            %v3225 = vunpack.c.l.b16 %v3157
            %v3226 = vunpack.c.h.b16 %v3157
            %v3227 = vunpack.c.l.b16 %v3158
            %v3228 = vunpack.c.h.b16 %v3158
            %v3229 = vunpack.c.l.b16 %v3159
            %v3230 = vunpack.c.h.b16 %v3159
            %v3231 = vunpack.c.l.b16 %v3160
            %v3232 = vunpack.c.h.b16 %v3160
            %v3233 = vunpack.c.l.b16 %v3161
            %v3234 = vunpack.c.h.b16 %v3161
            %v3235 = vunpack.c.l.b16 %v3162
            %v3236 = vunpack.c.h.b16 %v3162
            %v3237 = vunpack.c.l.b16 %v3163
            %v3238 = vunpack.c.h.b16 %v3163
            %v3239 = vunpack.c.l.b16 %v3164
            %v3240 = vunpack.c.h.b16 %v3164
            %v3241 = vunpack.c.l.b16 %v3165
            %v3242 = vunpack.c.h.b16 %v3165
            %v3243 = vunpack.c.l.b16 %v3166
            %v3244 = vunpack.c.h.b16 %v3166
            %v3245 = vunpack.c.l.b16 %v3167
            %v3246 = vunpack.c.h.b16 %v3167
            %v3247 = vunpack.c.l.b16 %v3168
            %v3248 = vunpack.c.h.b16 %v3168
            %v3249 = vunpack.c.l.b16 %v3169
            %v3250 = vunpack.c.h.b16 %v3169
            %v3251 = vunpack.c.l.b16 %v3170
            %v3252 = vunpack.c.h.b16 %v3170
            %v3253 = vunpack.c.l.b16 %v3171
            %v3254 = vunpack.c.h.b16 %v3171
            %v3255 = vunpack.c.l.b16 %v3172
            %v3256 = vunpack.c.h.b16 %v3172
            %v3257 = vunpack.c.l.b16 %v3173
            %v3258 = vunpack.c.h.b16 %v3173
            %v3259 = vunpack.c.l.b16 %v3174
            %v3260 = vunpack.c.h.b16 %v3174
            %v3261 = vunpack.c.l.b16 %v3175
            %v3262 = vunpack.c.h.b16 %v3175
            %v3263 = vunpack.c.l.b16 %v3176
            %v3264 = vunpack.c.h.b16 %v3176
            %v3265 = vunpack.c.l.b16 %v3177
            %v3266 = vunpack.c.h.b16 %v3177
            %v3267 = vunpack.c.l.b16 %v3178
            %v3268 = vunpack.c.h.b16 %v3178
            %v3269 = vunpack.c.l.b16 %v3179
            %v3270 = vunpack.c.h.b16 %v3179
            %v3271 = vunpack.c.l.b16 %v3180
            %v3272 = vunpack.c.h.b16 %v3180
            %v3273 = vunpack.c.l.b16 %v3181
            %v3274 = vunpack.c.h.b16 %v3181
            %v3275 = vunpack.c.l.b16 %v3182
            %v3276 = vunpack.c.h.b16 %v3182
            %v3277 = vunpack.c.l.b16 %v3183
            %v3278 = vunpack.c.h.b16 %v3183
            %v3279 = vunpack.c.l.b16 %v3184
            %v3280 = vunpack.c.h.b16 %v3184
            %v3281 = vpack.c.b16 %v3221, %v3217
            %v3282 = vpack.c.b16 %v3222, %v3218
            %v3283 = vpack.c.b16 %v3223, %v3219
            %v3284 = vpack.c.b16 %v3224, %v3220
            %v3285 = vpack.c.b16 %v3229, %v3225
            %v3286 = vpack.c.b16 %v3230, %v3226
            %v3287 = vpack.c.b16 %v3231, %v3227
            %v3288 = vpack.c.b16 %v3232, %v3228
            %v3289 = vpack.c.b16 %v3237, %v3233
            %v3290 = vpack.c.b16 %v3238, %v3234
            %v3291 = vpack.c.b16 %v3239, %v3235
            %v3292 = vpack.c.b16 %v3240, %v3236
            %v3293 = vpack.c.b16 %v3245, %v3241
            %v3294 = vpack.c.b16 %v3246, %v3242
            %v3295 = vpack.c.b16 %v3247, %v3243
            %v3296 = vpack.c.b16 %v3248, %v3244
            %v3297 = vpack.c.b16 %v3253, %v3249
            %v3298 = vpack.c.b16 %v3254, %v3250
            %v3299 = vpack.c.b16 %v3255, %v3251
            %v3300 = vpack.c.b16 %v3256, %v3252
            %v3301 = vpack.c.b16 %v3261, %v3257
            %v3302 = vpack.c.b16 %v3262, %v3258
            %v3303 = vpack.c.b16 %v3263, %v3259
            %v3304 = vpack.c.b16 %v3264, %v3260
            %v3305 = vpack.c.b16 %v3269, %v3265
            %v3306 = vpack.c.b16 %v3270, %v3266
            %v3307 = vpack.c.b16 %v3271, %v3267
            %v3308 = vpack.c.b16 %v3272, %v3268
            %v3309 = vpack.c.b16 %v3277, %v3273
            %v3310 = vpack.c.b16 %v3278, %v3274
            %v3311 = vpack.c.b16 %v3279, %v3275
            %v3312 = vpack.c.b16 %v3280, %v3276
            %3345 = vmatpush.bf16.msra.mxu0 %v3309
            %3346 = vmatpush.bf16.msra.mxu0 %v3305
            %3347 = vmatpush.bf16.msra.mxu0 %v3301
            %3348 = vmatpush.bf16.msra.mxu0 %v3297
            %3349 = vmatpush.bf16.msra.mxu0 %v3293
            %3350 = vmatpush.bf16.msra.mxu0 %v3289
            %3351 = vmatpush.bf16.msra.mxu0 %v3285
            %3352 = vmatpush.bf16.msra.mxu0 %v3281
            %3353 = vmatmul.bf16.gmra.mxu0 %v3152
            %v3354 = vpop.f32.mrf.mxu0
            %v3355 = vadd.f32 0.0, %v3354
            %v3356 = vpop.f32.mrf.mxu0
            %3357 = vdwg.mxu0
            %3358 = vmatpush.bf16.msra.mxu0 %v3310
            %3359 = vmatpush.bf16.msra.mxu0 %v3306
            %3360 = vmatpush.bf16.msra.mxu0 %v3302
            %3361 = vmatpush.bf16.msra.mxu0 %v3298
            %3362 = vmatpush.bf16.msra.mxu0 %v3294
            %3363 = vmatpush.bf16.msra.mxu0 %v3290
            %3364 = vmatpush.bf16.msra.mxu0 %v3286
            %3365 = vmatpush.bf16.msra.mxu0 %v3282
            %3366 = vmatmul.bf16.gmra.mxu0 %v3152
            %v3367 = vpop.f32.mrf.mxu0
            %v3368 = vadd.f32 0.0, %v3367
            %v3369 = vpop.f32.mrf.mxu0
            %3370 = vdwg.mxu0
            %3371 = vmatpush.bf16.msra.mxu0 %v3311
            %3372 = vmatpush.bf16.msra.mxu0 %v3307
            %3373 = vmatpush.bf16.msra.mxu0 %v3303
            %3374 = vmatpush.bf16.msra.mxu0 %v3299
            %3375 = vmatpush.bf16.msra.mxu0 %v3295
            %3376 = vmatpush.bf16.msra.mxu0 %v3291
            %3377 = vmatpush.bf16.msra.mxu0 %v3287
            %3378 = vmatpush.bf16.msra.mxu0 %v3283
            %3379 = vmatmul.bf16.gmra.mxu0 %v3152
            %v3380 = vpop.f32.mrf.mxu0
            %v3381 = vadd.f32 0.0, %v3380
            %v3382 = vpop.f32.mrf.mxu0
            %3383 = vdwg.mxu0
            %3384 = vmatpush.bf16.msra.mxu0 %v3312
            %3385 = vmatpush.bf16.msra.mxu0 %v3308
            %3386 = vmatpush.bf16.msra.mxu0 %v3304
            %3387 = vmatpush.bf16.msra.mxu0 %v3300
            %3388 = vmatpush.bf16.msra.mxu0 %v3296
            %3389 = vmatpush.bf16.msra.mxu0 %v3292
            %3390 = vmatpush.bf16.msra.mxu0 %v3288
            %3391 = vmatpush.bf16.msra.mxu0 %v3284
            %3392 = vmatmul.bf16.gmra.mxu0 %v3152
            %v3393 = vpop.f32.mrf.mxu0
            %v3394 = vadd.f32 0.0, %v3393
            %v3395 = vpop.f32.mrf.mxu0
            %3396 = vdwg.mxu0
            %v3397 = vadd.f32 %v3148, %v3355
            %v3398 = vadd.f32 %v3149, %v3368
            %v3399 = vadd.f32 %v3150, %v3381
            %v3400 = vadd.f32 %v3151, %v3394
            %v3401 = vxor.u32 %v3397, 2147483648
            %v3402 = vxor.u32 %v3398, 2147483648
            %v3403 = vxor.u32 %v3399, 2147483648
            %v3404 = vmul.f32 %v3401, 1.442695
            %v3405 = vpow.pop %v3404
            %v3406 = vmul.f32 %v3402, 1.442695
            %v3407 = vpow.pop %v3406
            %v3408 = vmul.f32 %v3403, 1.442695
            %v3409 = vpow.pop %v3408
            %v3410 = vadd.f32 %v3405, 1.0
            %v3411 = vadd.f32 %v3407, 1.0
            %v3412 = vadd.f32 %v3409, 1.0
            %v3413 = vrcp.pop %v3410
            %v3414 = vmul.f32 %v3410, %v3413
            %v3415 = vsub.f32 1.0, %v3414
            %v3416 = vmul.f32 %v3413, %v3415
            %v3417 = vadd.f32 %v3413, %v3416
            %vm3418 = vweird.f32 %v3410
            %vm3419 = vweird.f32 %v3413
            %vm3420 = vmor %vm3418, %vm3419
            %v3421 = vsel %vm3420, %v3413, %v3417
            %v3422 = vand.u32 2147483647, %v3410
            %vm3423 = vcmp.eq.f32.partialorder %v3422, 8.507059e+37
            %v3424 = vand.u32 %v3410, 2147483648
            %v3425 = vor.u32 1.1754944e-38, %v3424
            %v3426 = vsel %vm3423, %v3425, %v3421
            %v3427 = vmul.f32 1.0, %v3426
            %v3428 = vrcp.pop %v3411
            %v3429 = vmul.f32 %v3411, %v3428
            %v3430 = vsub.f32 1.0, %v3429
            %v3431 = vmul.f32 %v3428, %v3430
            %v3432 = vadd.f32 %v3428, %v3431
            %vm3433 = vweird.f32 %v3411
            %vm3434 = vweird.f32 %v3428
            %vm3435 = vmor %vm3433, %vm3434
            %v3436 = vsel %vm3435, %v3428, %v3432
            %v3437 = vand.u32 2147483647, %v3411
            %vm3438 = vcmp.eq.f32.partialorder %v3437, 8.507059e+37
            %v3439 = vand.u32 %v3411, 2147483648
            %v3440 = vor.u32 1.1754944e-38, %v3439
            %v3441 = vsel %vm3438, %v3440, %v3436
            %v3442 = vmul.f32 1.0, %v3441
            %v3443 = vrcp.pop %v3412
            %v3444 = vmul.f32 %v3412, %v3443
            %v3445 = vsub.f32 1.0, %v3444
            %v3446 = vmul.f32 %v3443, %v3445
            %v3447 = vadd.f32 %v3443, %v3446
            %vm3448 = vweird.f32 %v3412
            %vm3449 = vweird.f32 %v3443
            %vm3450 = vmor %vm3448, %vm3449
            %v3451 = vsel %vm3450, %v3443, %v3447
            %v3452 = vand.u32 2147483647, %v3412
            %vm3453 = vcmp.eq.f32.partialorder %v3452, 8.507059e+37
            %v3454 = vand.u32 %v3412, 2147483648
            %v3455 = vor.u32 1.1754944e-38, %v3454
            %v3456 = vsel %vm3453, %v3455, %v3451
            %v3457 = vmul.f32 1.0, %v3456
            %v3458 = vtanh.pop %v3400
            %v3459 = vmul.f32 %v3442, %v3140
            %v3460 = vmul.f32 %v3427, %v3458
            %v3461 = vadd.f32 %v3459, %v3460
            %v3462 = vtanh.pop %v3461
            %v3463 = vmul.f32 %v3457, %v3462
            %s3464 = sadd.s32 %s3130, %s3142
            %v3465 = vstv %s3464
            %vm3466 = vcmp.lt.s32.totalorder %v3465, %v419
            %v3467 = vsel %vm3466, 1, 0
            %3468 = vset.pattern.permute.xlu0 0
            %3469 = vperm.xlu0 %3468, %v3467
            %v3470 = vpop.permute.xlu0 %3469
            %vm3471 = vcmp.eq.s32.totalorder %v3470, 1
            %v3472 = vsel %vm3471, %v3463, 0.0
            %s3473 = smul.u32 %s3142, 8
            %s3474 = scalar_lea.vmem %s400, %s3473 [#allocation12]
            %3475 = vst [vmem:[%s3474] sm:$0xff] %v3472
            %v3476 = vsel %vm3471, %v3463, %v3139
            %v3477 = vsel %vm3471, %v3461, %v3140
            %s3478 = ssub.s32 30, %s3141
            %s3479 = smul.u32 %s3478, 4
            %s3480 = smul.addr %s3479, 4
            %s3481 = scalar_lea.vmem %s328, %s3480 [#allocation4]
            %v3482 = vld [vmem:[%s3481] sm:$0xff]
            %v3483 = vld [vmem:[%s3481 + $0x8] sm:$0xff]
            %v3484 = vunpack.c.l.bf16 %v3482
            %v3485 = vunpack.c.h.bf16 %v3482
            %v3486 = vunpack.c.l.bf16 %v3483
            %v3487 = vunpack.c.h.bf16 %v3483
            %v3488 = vpack.c.bf16 %v3476, %v3476
            %v3489 = vld [vmem:[%s338] sm:$0xff]
            %v3490 = vld [vmem:[%s338 + $0x8] sm:$0xff]
            %v3491 = vld [vmem:[%s338 + $0x10] sm:$0xff]
            %v3492 = vld [vmem:[%s338 + $0x18] sm:$0xff]
            %v3493 = vld [vmem:[%s338 + $0x20] sm:$0xff]
            %v3494 = vld [vmem:[%s338 + $0x28] sm:$0xff]
            %v3495 = vld [vmem:[%s338 + $0x30] sm:$0xff]
            %v3496 = vld [vmem:[%s338 + $0x38] sm:$0xff]
            %v3497 = vld [vmem:[%s338 + $0x40] sm:$0xff]
            %v3498 = vld [vmem:[%s338 + $0x48] sm:$0xff]
            %v3499 = vld [vmem:[%s338 + $0x50] sm:$0xff]
            %v3500 = vld [vmem:[%s338 + $0x58] sm:$0xff]
            %v3501 = vld [vmem:[%s338 + $0x60] sm:$0xff]
            %v3502 = vld [vmem:[%s338 + $0x68] sm:$0xff]
            %v3503 = vld [vmem:[%s338 + $0x70] sm:$0xff]
            %v3504 = vld [vmem:[%s338 + $0x78] sm:$0xff]
            %v3505 = vld [vmem:[%s338 + $0x80] sm:$0xff]
            %v3506 = vld [vmem:[%s338 + $0x88] sm:$0xff]
            %v3507 = vld [vmem:[%s338 + $0x90] sm:$0xff]
            %v3508 = vld [vmem:[%s338 + $0x98] sm:$0xff]
            %v3509 = vld [vmem:[%s338 + $0xa0] sm:$0xff]
            %v3510 = vld [vmem:[%s338 + $0xa8] sm:$0xff]
            %v3511 = vld [vmem:[%s338 + $0xb0] sm:$0xff]
            %v3512 = vld [vmem:[%s338 + $0xb8] sm:$0xff]
            %v3513 = vld [vmem:[%s338 + $0xc0] sm:$0xff]
            %v3514 = vld [vmem:[%s338 + $0xc8] sm:$0xff]
            %v3515 = vld [vmem:[%s338 + $0xd0] sm:$0xff]
            %v3516 = vld [vmem:[%s338 + $0xd8] sm:$0xff]
            %v3517 = vld [vmem:[%s338 + $0xe0] sm:$0xff]
            %v3518 = vld [vmem:[%s338 + $0xe8] sm:$0xff]
            %v3519 = vld [vmem:[%s338 + $0xf0] sm:$0xff]
            %v3520 = vld [vmem:[%s338 + $0xf8] sm:$0xff]
            %v3553 = vunpack.c.l.b16 %v3489
            %v3554 = vunpack.c.h.b16 %v3489
            %v3555 = vunpack.c.l.b16 %v3490
            %v3556 = vunpack.c.h.b16 %v3490
            %v3557 = vunpack.c.l.b16 %v3491
            %v3558 = vunpack.c.h.b16 %v3491
            %v3559 = vunpack.c.l.b16 %v3492
            %v3560 = vunpack.c.h.b16 %v3492
            %v3561 = vunpack.c.l.b16 %v3493
            %v3562 = vunpack.c.h.b16 %v3493
            %v3563 = vunpack.c.l.b16 %v3494
            %v3564 = vunpack.c.h.b16 %v3494
            %v3565 = vunpack.c.l.b16 %v3495
            %v3566 = vunpack.c.h.b16 %v3495
            %v3567 = vunpack.c.l.b16 %v3496
            %v3568 = vunpack.c.h.b16 %v3496
            %v3569 = vunpack.c.l.b16 %v3497
            %v3570 = vunpack.c.h.b16 %v3497
            %v3571 = vunpack.c.l.b16 %v3498
            %v3572 = vunpack.c.h.b16 %v3498
            %v3573 = vunpack.c.l.b16 %v3499
            %v3574 = vunpack.c.h.b16 %v3499
            %v3575 = vunpack.c.l.b16 %v3500
            %v3576 = vunpack.c.h.b16 %v3500
            %v3577 = vunpack.c.l.b16 %v3501
            %v3578 = vunpack.c.h.b16 %v3501
            %v3579 = vunpack.c.l.b16 %v3502
            %v3580 = vunpack.c.h.b16 %v3502
            %v3581 = vunpack.c.l.b16 %v3503
            %v3582 = vunpack.c.h.b16 %v3503
            %v3583 = vunpack.c.l.b16 %v3504
            %v3584 = vunpack.c.h.b16 %v3504
            %v3585 = vunpack.c.l.b16 %v3505
            %v3586 = vunpack.c.h.b16 %v3505
            %v3587 = vunpack.c.l.b16 %v3506
            %v3588 = vunpack.c.h.b16 %v3506
            %v3589 = vunpack.c.l.b16 %v3507
            %v3590 = vunpack.c.h.b16 %v3507
            %v3591 = vunpack.c.l.b16 %v3508
            %v3592 = vunpack.c.h.b16 %v3508
            %v3593 = vunpack.c.l.b16 %v3509
            %v3594 = vunpack.c.h.b16 %v3509
            %v3595 = vunpack.c.l.b16 %v3510
            %v3596 = vunpack.c.h.b16 %v3510
            %v3597 = vunpack.c.l.b16 %v3511
            %v3598 = vunpack.c.h.b16 %v3511
            %v3599 = vunpack.c.l.b16 %v3512
            %v3600 = vunpack.c.h.b16 %v3512
            %v3601 = vunpack.c.l.b16 %v3513
            %v3602 = vunpack.c.h.b16 %v3513
            %v3603 = vunpack.c.l.b16 %v3514
            %v3604 = vunpack.c.h.b16 %v3514
            %v3605 = vunpack.c.l.b16 %v3515
            %v3606 = vunpack.c.h.b16 %v3515
            %v3607 = vunpack.c.l.b16 %v3516
            %v3608 = vunpack.c.h.b16 %v3516
            %v3609 = vunpack.c.l.b16 %v3517
            %v3610 = vunpack.c.h.b16 %v3517
            %v3611 = vunpack.c.l.b16 %v3518
            %v3612 = vunpack.c.h.b16 %v3518
            %v3613 = vunpack.c.l.b16 %v3519
            %v3614 = vunpack.c.h.b16 %v3519
            %v3615 = vunpack.c.l.b16 %v3520
            %v3616 = vunpack.c.h.b16 %v3520
            %v3617 = vpack.c.b16 %v3557, %v3553
            %v3618 = vpack.c.b16 %v3558, %v3554
            %v3619 = vpack.c.b16 %v3559, %v3555
            %v3620 = vpack.c.b16 %v3560, %v3556
            %v3621 = vpack.c.b16 %v3565, %v3561
            %v3622 = vpack.c.b16 %v3566, %v3562
            %v3623 = vpack.c.b16 %v3567, %v3563
            %v3624 = vpack.c.b16 %v3568, %v3564
            %v3625 = vpack.c.b16 %v3573, %v3569
            %v3626 = vpack.c.b16 %v3574, %v3570
            %v3627 = vpack.c.b16 %v3575, %v3571
            %v3628 = vpack.c.b16 %v3576, %v3572
            %v3629 = vpack.c.b16 %v3581, %v3577
            %v3630 = vpack.c.b16 %v3582, %v3578
            %v3631 = vpack.c.b16 %v3583, %v3579
            %v3632 = vpack.c.b16 %v3584, %v3580
            %v3633 = vpack.c.b16 %v3589, %v3585
            %v3634 = vpack.c.b16 %v3590, %v3586
            %v3635 = vpack.c.b16 %v3591, %v3587
            %v3636 = vpack.c.b16 %v3592, %v3588
            %v3637 = vpack.c.b16 %v3597, %v3593
            %v3638 = vpack.c.b16 %v3598, %v3594
            %v3639 = vpack.c.b16 %v3599, %v3595
            %v3640 = vpack.c.b16 %v3600, %v3596
            %v3641 = vpack.c.b16 %v3605, %v3601
            %v3642 = vpack.c.b16 %v3606, %v3602
            %v3643 = vpack.c.b16 %v3607, %v3603
            %v3644 = vpack.c.b16 %v3608, %v3604
            %v3645 = vpack.c.b16 %v3613, %v3609
            %v3646 = vpack.c.b16 %v3614, %v3610
            %v3647 = vpack.c.b16 %v3615, %v3611
            %v3648 = vpack.c.b16 %v3616, %v3612
            %3681 = vmatpush.bf16.msra.mxu0 %v3645
            %3682 = vmatpush.bf16.msra.mxu0 %v3641
            %3683 = vmatpush.bf16.msra.mxu0 %v3637
            %3684 = vmatpush.bf16.msra.mxu0 %v3633
            %3685 = vmatpush.bf16.msra.mxu0 %v3629
            %3686 = vmatpush.bf16.msra.mxu0 %v3625
            %3687 = vmatpush.bf16.msra.mxu0 %v3621
            %3688 = vmatpush.bf16.msra.mxu0 %v3617
            %3689 = vmatmul.bf16.gmra.mxu0 %v3488
            %v3690 = vpop.f32.mrf.mxu0
            %v3691 = vadd.f32 0.0, %v3690
            %v3692 = vpop.f32.mrf.mxu0
            %3693 = vdwg.mxu0
            %3694 = vmatpush.bf16.msra.mxu0 %v3646
            %3695 = vmatpush.bf16.msra.mxu0 %v3642
            %3696 = vmatpush.bf16.msra.mxu0 %v3638
            %3697 = vmatpush.bf16.msra.mxu0 %v3634
            %3698 = vmatpush.bf16.msra.mxu0 %v3630
            %3699 = vmatpush.bf16.msra.mxu0 %v3626
            %3700 = vmatpush.bf16.msra.mxu0 %v3622
            %3701 = vmatpush.bf16.msra.mxu0 %v3618
            %3702 = vmatmul.bf16.gmra.mxu0 %v3488
            %v3703 = vpop.f32.mrf.mxu0
            %v3704 = vadd.f32 0.0, %v3703
            %v3705 = vpop.f32.mrf.mxu0
            %3706 = vdwg.mxu0
            %3707 = vmatpush.bf16.msra.mxu0 %v3647
            %3708 = vmatpush.bf16.msra.mxu0 %v3643
            %3709 = vmatpush.bf16.msra.mxu0 %v3639
            %3710 = vmatpush.bf16.msra.mxu0 %v3635
            %3711 = vmatpush.bf16.msra.mxu0 %v3631
            %3712 = vmatpush.bf16.msra.mxu0 %v3627
            %3713 = vmatpush.bf16.msra.mxu0 %v3623
            %3714 = vmatpush.bf16.msra.mxu0 %v3619
            %3715 = vmatmul.bf16.gmra.mxu0 %v3488
            %v3716 = vpop.f32.mrf.mxu0
            %v3717 = vadd.f32 0.0, %v3716
            %v3718 = vpop.f32.mrf.mxu0
            %3719 = vdwg.mxu0
            %3720 = vmatpush.bf16.msra.mxu0 %v3648
            %3721 = vmatpush.bf16.msra.mxu0 %v3644
            %3722 = vmatpush.bf16.msra.mxu0 %v3640
            %3723 = vmatpush.bf16.msra.mxu0 %v3636
            %3724 = vmatpush.bf16.msra.mxu0 %v3632
            %3725 = vmatpush.bf16.msra.mxu0 %v3628
            %3726 = vmatpush.bf16.msra.mxu0 %v3624
            %3727 = vmatpush.bf16.msra.mxu0 %v3620
            %3728 = vmatmul.bf16.gmra.mxu0 %v3488
            %v3729 = vpop.f32.mrf.mxu0
            %v3730 = vadd.f32 0.0, %v3729
            %v3731 = vpop.f32.mrf.mxu0
            %3732 = vdwg.mxu0
            %v3733 = vadd.f32 %v3484, %v3691
            %v3734 = vadd.f32 %v3485, %v3704
            %v3735 = vadd.f32 %v3486, %v3717
            %v3736 = vadd.f32 %v3487, %v3730
            %v3737 = vxor.u32 %v3733, 2147483648
            %v3738 = vxor.u32 %v3734, 2147483648
            %v3739 = vxor.u32 %v3735, 2147483648
            %v3740 = vmul.f32 %v3737, 1.442695
            %v3741 = vpow.pop %v3740
            %v3742 = vmul.f32 %v3738, 1.442695
            %v3743 = vpow.pop %v3742
            %v3744 = vmul.f32 %v3739, 1.442695
            %v3745 = vpow.pop %v3744
            %v3746 = vadd.f32 %v3741, 1.0
            %v3747 = vadd.f32 %v3743, 1.0
            %v3748 = vadd.f32 %v3745, 1.0
            %v3749 = vrcp.pop %v3746
            %v3750 = vmul.f32 %v3746, %v3749
            %v3751 = vsub.f32 1.0, %v3750
            %v3752 = vmul.f32 %v3749, %v3751
            %v3753 = vadd.f32 %v3749, %v3752
            %vm3754 = vweird.f32 %v3746
            %vm3755 = vweird.f32 %v3749
            %vm3756 = vmor %vm3754, %vm3755
            %v3757 = vsel %vm3756, %v3749, %v3753
            %v3758 = vand.u32 2147483647, %v3746
            %vm3759 = vcmp.eq.f32.partialorder %v3758, 8.507059e+37
            %v3760 = vand.u32 %v3746, 2147483648
            %v3761 = vor.u32 1.1754944e-38, %v3760
            %v3762 = vsel %vm3759, %v3761, %v3757
            %v3763 = vmul.f32 1.0, %v3762
            %v3764 = vrcp.pop %v3747
            %v3765 = vmul.f32 %v3747, %v3764
            %v3766 = vsub.f32 1.0, %v3765
            %v3767 = vmul.f32 %v3764, %v3766
            %v3768 = vadd.f32 %v3764, %v3767
            %vm3769 = vweird.f32 %v3747
            %vm3770 = vweird.f32 %v3764
            %vm3771 = vmor %vm3769, %vm3770
            %v3772 = vsel %vm3771, %v3764, %v3768
            %v3773 = vand.u32 2147483647, %v3747
            %vm3774 = vcmp.eq.f32.partialorder %v3773, 8.507059e+37
            %v3775 = vand.u32 %v3747, 2147483648
            %v3776 = vor.u32 1.1754944e-38, %v3775
            %v3777 = vsel %vm3774, %v3776, %v3772
            %v3778 = vmul.f32 1.0, %v3777
            %v3779 = vrcp.pop %v3748
            %v3780 = vmul.f32 %v3748, %v3779
            %v3781 = vsub.f32 1.0, %v3780
            %v3782 = vmul.f32 %v3779, %v3781
            %v3783 = vadd.f32 %v3779, %v3782
            %vm3784 = vweird.f32 %v3748
            %vm3785 = vweird.f32 %v3779
            %vm3786 = vmor %vm3784, %vm3785
            %v3787 = vsel %vm3786, %v3779, %v3783
            %v3788 = vand.u32 2147483647, %v3748
            %vm3789 = vcmp.eq.f32.partialorder %v3788, 8.507059e+37
            %v3790 = vand.u32 %v3748, 2147483648
            %v3791 = vor.u32 1.1754944e-38, %v3790
            %v3792 = vsel %vm3789, %v3791, %v3787
            %v3793 = vmul.f32 1.0, %v3792
            %v3794 = vtanh.pop %v3736
            %v3795 = vmul.f32 %v3778, %v3477
            %v3796 = vmul.f32 %v3763, %v3794
            %v3797 = vadd.f32 %v3795, %v3796
            %v3798 = vtanh.pop %v3797
            %v3799 = vmul.f32 %v3793, %v3798
            %s3800 = sadd.s32 %s3130, %s3478
            %v3801 = vstv %s3800
            %vm3802 = vcmp.lt.s32.totalorder %v3801, %v419
            %v3803 = vsel %vm3802, 1, 0
            %3804 = vset.pattern.permute.xlu0 0
            %3805 = vperm.xlu0 %3804, %v3803
            %v3806 = vpop.permute.xlu0 %3805
            %vm3807 = vcmp.eq.s32.totalorder %v3806, 1
            %v3808 = vsel %vm3807, %v3799, 0.0
            %s3809 = smul.u32 %s3478, 8
            %s3810 = scalar_lea.vmem %s400, %s3809 [#allocation12]
            %3811 = vst [vmem:[%s3810] sm:$0xff] %v3808
            %v3812 = vsel %vm3807, %v3799, %v3476
            %v3813 = vsel %vm3807, %v3797, %v3477
            %s3814 = ssub.s32 29, %s3141
            %s3815 = smul.u32 %s3814, 4
            %s3816 = smul.addr %s3815, 4
            %s3817 = scalar_lea.vmem %s328, %s3816 [#allocation4]
            %v3818 = vld [vmem:[%s3817] sm:$0xff]
            %v3819 = vld [vmem:[%s3817 + $0x8] sm:$0xff]
            %v3820 = vunpack.c.l.bf16 %v3818
            %v3821 = vunpack.c.h.bf16 %v3818
            %v3822 = vunpack.c.l.bf16 %v3819
            %v3823 = vunpack.c.h.bf16 %v3819
            %v3824 = vpack.c.bf16 %v3812, %v3812
            %v3825 = vld [vmem:[%s338] sm:$0xff]
            %v3826 = vld [vmem:[%s338 + $0x8] sm:$0xff]
            %v3827 = vld [vmem:[%s338 + $0x10] sm:$0xff]
            %v3828 = vld [vmem:[%s338 + $0x18] sm:$0xff]
            %v3829 = vld [vmem:[%s338 + $0x20] sm:$0xff]
            %v3830 = vld [vmem:[%s338 + $0x28] sm:$0xff]
            %v3831 = vld [vmem:[%s338 + $0x30] sm:$0xff]
            %v3832 = vld [vmem:[%s338 + $0x38] sm:$0xff]
            %v3833 = vld [vmem:[%s338 + $0x40] sm:$0xff]
            %v3834 = vld [vmem:[%s338 + $0x48] sm:$0xff]
            %v3835 = vld [vmem:[%s338 + $0x50] sm:$0xff]
            %v3836 = vld [vmem:[%s338 + $0x58] sm:$0xff]
            %v3837 = vld [vmem:[%s338 + $0x60] sm:$0xff]
            %v3838 = vld [vmem:[%s338 + $0x68] sm:$0xff]
            %v3839 = vld [vmem:[%s338 + $0x70] sm:$0xff]
            %v3840 = vld [vmem:[%s338 + $0x78] sm:$0xff]
            %v3841 = vld [vmem:[%s338 + $0x80] sm:$0xff]
            %v3842 = vld [vmem:[%s338 + $0x88] sm:$0xff]
            %v3843 = vld [vmem:[%s338 + $0x90] sm:$0xff]
            %v3844 = vld [vmem:[%s338 + $0x98] sm:$0xff]
            %v3845 = vld [vmem:[%s338 + $0xa0] sm:$0xff]
            %v3846 = vld [vmem:[%s338 + $0xa8] sm:$0xff]
            %v3847 = vld [vmem:[%s338 + $0xb0] sm:$0xff]
            %v3848 = vld [vmem:[%s338 + $0xb8] sm:$0xff]
            %v3849 = vld [vmem:[%s338 + $0xc0] sm:$0xff]
            %v3850 = vld [vmem:[%s338 + $0xc8] sm:$0xff]
            %v3851 = vld [vmem:[%s338 + $0xd0] sm:$0xff]
            %v3852 = vld [vmem:[%s338 + $0xd8] sm:$0xff]
            %v3853 = vld [vmem:[%s338 + $0xe0] sm:$0xff]
            %v3854 = vld [vmem:[%s338 + $0xe8] sm:$0xff]
            %v3855 = vld [vmem:[%s338 + $0xf0] sm:$0xff]
            %v3856 = vld [vmem:[%s338 + $0xf8] sm:$0xff]
            %v3889 = vunpack.c.l.b16 %v3825
            %v3890 = vunpack.c.h.b16 %v3825
            %v3891 = vunpack.c.l.b16 %v3826
            %v3892 = vunpack.c.h.b16 %v3826
            %v3893 = vunpack.c.l.b16 %v3827
            %v3894 = vunpack.c.h.b16 %v3827
            %v3895 = vunpack.c.l.b16 %v3828
            %v3896 = vunpack.c.h.b16 %v3828
            %v3897 = vunpack.c.l.b16 %v3829
            %v3898 = vunpack.c.h.b16 %v3829
            %v3899 = vunpack.c.l.b16 %v3830
            %v3900 = vunpack.c.h.b16 %v3830
            %v3901 = vunpack.c.l.b16 %v3831
            %v3902 = vunpack.c.h.b16 %v3831
            %v3903 = vunpack.c.l.b16 %v3832
            %v3904 = vunpack.c.h.b16 %v3832
            %v3905 = vunpack.c.l.b16 %v3833
            %v3906 = vunpack.c.h.b16 %v3833
            %v3907 = vunpack.c.l.b16 %v3834
            %v3908 = vunpack.c.h.b16 %v3834
            %v3909 = vunpack.c.l.b16 %v3835
            %v3910 = vunpack.c.h.b16 %v3835
            %v3911 = vunpack.c.l.b16 %v3836
            %v3912 = vunpack.c.h.b16 %v3836
            %v3913 = vunpack.c.l.b16 %v3837
            %v3914 = vunpack.c.h.b16 %v3837
            %v3915 = vunpack.c.l.b16 %v3838
            %v3916 = vunpack.c.h.b16 %v3838
            %v3917 = vunpack.c.l.b16 %v3839
            %v3918 = vunpack.c.h.b16 %v3839
            %v3919 = vunpack.c.l.b16 %v3840
            %v3920 = vunpack.c.h.b16 %v3840
            %v3921 = vunpack.c.l.b16 %v3841
            %v3922 = vunpack.c.h.b16 %v3841
            %v3923 = vunpack.c.l.b16 %v3842
            %v3924 = vunpack.c.h.b16 %v3842
            %v3925 = vunpack.c.l.b16 %v3843
            %v3926 = vunpack.c.h.b16 %v3843
            %v3927 = vunpack.c.l.b16 %v3844
            %v3928 = vunpack.c.h.b16 %v3844
            %v3929 = vunpack.c.l.b16 %v3845
            %v3930 = vunpack.c.h.b16 %v3845
            %v3931 = vunpack.c.l.b16 %v3846
            %v3932 = vunpack.c.h.b16 %v3846
            %v3933 = vunpack.c.l.b16 %v3847
            %v3934 = vunpack.c.h.b16 %v3847
            %v3935 = vunpack.c.l.b16 %v3848
            %v3936 = vunpack.c.h.b16 %v3848
            %v3937 = vunpack.c.l.b16 %v3849
            %v3938 = vunpack.c.h.b16 %v3849
            %v3939 = vunpack.c.l.b16 %v3850
            %v3940 = vunpack.c.h.b16 %v3850
            %v3941 = vunpack.c.l.b16 %v3851
            %v3942 = vunpack.c.h.b16 %v3851
            %v3943 = vunpack.c.l.b16 %v3852
            %v3944 = vunpack.c.h.b16 %v3852
            %v3945 = vunpack.c.l.b16 %v3853
            %v3946 = vunpack.c.h.b16 %v3853
            %v3947 = vunpack.c.l.b16 %v3854
            %v3948 = vunpack.c.h.b16 %v3854
            %v3949 = vunpack.c.l.b16 %v3855
            %v3950 = vunpack.c.h.b16 %v3855
            %v3951 = vunpack.c.l.b16 %v3856
            %v3952 = vunpack.c.h.b16 %v3856
            %v3953 = vpack.c.b16 %v3893, %v3889
            %v3954 = vpack.c.b16 %v3894, %v3890
            %v3955 = vpack.c.b16 %v3895, %v3891
            %v3956 = vpack.c.b16 %v3896, %v3892
            %v3957 = vpack.c.b16 %v3901, %v3897
            %v3958 = vpack.c.b16 %v3902, %v3898
            %v3959 = vpack.c.b16 %v3903, %v3899
            %v3960 = vpack.c.b16 %v3904, %v3900
            %v3961 = vpack.c.b16 %v3909, %v3905
            %v3962 = vpack.c.b16 %v3910, %v3906
            %v3963 = vpack.c.b16 %v3911, %v3907
            %v3964 = vpack.c.b16 %v3912, %v3908
            %v3965 = vpack.c.b16 %v3917, %v3913
            %v3966 = vpack.c.b16 %v3918, %v3914
            %v3967 = vpack.c.b16 %v3919, %v3915
            %v3968 = vpack.c.b16 %v3920, %v3916
            %v3969 = vpack.c.b16 %v3925, %v3921
            %v3970 = vpack.c.b16 %v3926, %v3922
            %v3971 = vpack.c.b16 %v3927, %v3923
            %v3972 = vpack.c.b16 %v3928, %v3924
            %v3973 = vpack.c.b16 %v3933, %v3929
            %v3974 = vpack.c.b16 %v3934, %v3930
            %v3975 = vpack.c.b16 %v3935, %v3931
            %v3976 = vpack.c.b16 %v3936, %v3932
            %v3977 = vpack.c.b16 %v3941, %v3937
            %v3978 = vpack.c.b16 %v3942, %v3938
            %v3979 = vpack.c.b16 %v3943, %v3939
            %v3980 = vpack.c.b16 %v3944, %v3940
            %v3981 = vpack.c.b16 %v3949, %v3945
            %v3982 = vpack.c.b16 %v3950, %v3946
            %v3983 = vpack.c.b16 %v3951, %v3947
            %v3984 = vpack.c.b16 %v3952, %v3948
            %4017 = vmatpush.bf16.msra.mxu0 %v3981
            %4018 = vmatpush.bf16.msra.mxu0 %v3977
            %4019 = vmatpush.bf16.msra.mxu0 %v3973
            %4020 = vmatpush.bf16.msra.mxu0 %v3969
            %4021 = vmatpush.bf16.msra.mxu0 %v3965
            %4022 = vmatpush.bf16.msra.mxu0 %v3961
            %4023 = vmatpush.bf16.msra.mxu0 %v3957
            %4024 = vmatpush.bf16.msra.mxu0 %v3953
            %4025 = vmatmul.bf16.gmra.mxu0 %v3824
            %v4026 = vpop.f32.mrf.mxu0
            %v4027 = vadd.f32 0.0, %v4026
            %v4028 = vpop.f32.mrf.mxu0
            %4029 = vdwg.mxu0
            %4030 = vmatpush.bf16.msra.mxu0 %v3982
            %4031 = vmatpush.bf16.msra.mxu0 %v3978
            %4032 = vmatpush.bf16.msra.mxu0 %v3974
            %4033 = vmatpush.bf16.msra.mxu0 %v3970
            %4034 = vmatpush.bf16.msra.mxu0 %v3966
            %4035 = vmatpush.bf16.msra.mxu0 %v3962
            %4036 = vmatpush.bf16.msra.mxu0 %v3958
            %4037 = vmatpush.bf16.msra.mxu0 %v3954
            %4038 = vmatmul.bf16.gmra.mxu0 %v3824
            %v4039 = vpop.f32.mrf.mxu0
            %v4040 = vadd.f32 0.0, %v4039
            %v4041 = vpop.f32.mrf.mxu0
            %4042 = vdwg.mxu0
            %4043 = vmatpush.bf16.msra.mxu0 %v3983
            %4044 = vmatpush.bf16.msra.mxu0 %v3979
            %4045 = vmatpush.bf16.msra.mxu0 %v3975
            %4046 = vmatpush.bf16.msra.mxu0 %v3971
            %4047 = vmatpush.bf16.msra.mxu0 %v3967
            %4048 = vmatpush.bf16.msra.mxu0 %v3963
            %4049 = vmatpush.bf16.msra.mxu0 %v3959
            %4050 = vmatpush.bf16.msra.mxu0 %v3955
            %4051 = vmatmul.bf16.gmra.mxu0 %v3824
            %v4052 = vpop.f32.mrf.mxu0
            %v4053 = vadd.f32 0.0, %v4052
            %v4054 = vpop.f32.mrf.mxu0
            %4055 = vdwg.mxu0
            %4056 = vmatpush.bf16.msra.mxu0 %v3984
            %4057 = vmatpush.bf16.msra.mxu0 %v3980
            %4058 = vmatpush.bf16.msra.mxu0 %v3976
            %4059 = vmatpush.bf16.msra.mxu0 %v3972
            %4060 = vmatpush.bf16.msra.mxu0 %v3968
            %4061 = vmatpush.bf16.msra.mxu0 %v3964
            %4062 = vmatpush.bf16.msra.mxu0 %v3960
            %4063 = vmatpush.bf16.msra.mxu0 %v3956
            %4064 = vmatmul.bf16.gmra.mxu0 %v3824
            %v4065 = vpop.f32.mrf.mxu0
            %v4066 = vadd.f32 0.0, %v4065
            %v4067 = vpop.f32.mrf.mxu0
            %4068 = vdwg.mxu0
            %v4069 = vadd.f32 %v3820, %v4027
            %v4070 = vadd.f32 %v3821, %v4040
            %v4071 = vadd.f32 %v3822, %v4053
            %v4072 = vadd.f32 %v3823, %v4066
            %v4073 = vxor.u32 %v4069, 2147483648
            %v4074 = vxor.u32 %v4070, 2147483648
            %v4075 = vxor.u32 %v4071, 2147483648
            %v4076 = vmul.f32 %v4073, 1.442695
            %v4077 = vpow.pop %v4076
            %v4078 = vmul.f32 %v4074, 1.442695
            %v4079 = vpow.pop %v4078
            %v4080 = vmul.f32 %v4075, 1.442695
            %v4081 = vpow.pop %v4080
            %v4082 = vadd.f32 %v4077, 1.0
            %v4083 = vadd.f32 %v4079, 1.0
            %v4084 = vadd.f32 %v4081, 1.0
            %v4085 = vrcp.pop %v4082
            %v4086 = vmul.f32 %v4082, %v4085
            %v4087 = vsub.f32 1.0, %v4086
            %v4088 = vmul.f32 %v4085, %v4087
            %v4089 = vadd.f32 %v4085, %v4088
            %vm4090 = vweird.f32 %v4082
            %vm4091 = vweird.f32 %v4085
            %vm4092 = vmor %vm4090, %vm4091
            %v4093 = vsel %vm4092, %v4085, %v4089
            %v4094 = vand.u32 2147483647, %v4082
            %vm4095 = vcmp.eq.f32.partialorder %v4094, 8.507059e+37
            %v4096 = vand.u32 %v4082, 2147483648
            %v4097 = vor.u32 1.1754944e-38, %v4096
            %v4098 = vsel %vm4095, %v4097, %v4093
            %v4099 = vmul.f32 1.0, %v4098
            %v4100 = vrcp.pop %v4083
            %v4101 = vmul.f32 %v4083, %v4100
            %v4102 = vsub.f32 1.0, %v4101
            %v4103 = vmul.f32 %v4100, %v4102
            %v4104 = vadd.f32 %v4100, %v4103
            %vm4105 = vweird.f32 %v4083
            %vm4106 = vweird.f32 %v4100
            %vm4107 = vmor %vm4105, %vm4106
            %v4108 = vsel %vm4107, %v4100, %v4104
            %v4109 = vand.u32 2147483647, %v4083
            %vm4110 = vcmp.eq.f32.partialorder %v4109, 8.507059e+37
            %v4111 = vand.u32 %v4083, 2147483648
            %v4112 = vor.u32 1.1754944e-38, %v4111
            %v4113 = vsel %vm4110, %v4112, %v4108
            %v4114 = vmul.f32 1.0, %v4113
            %v4115 = vrcp.pop %v4084
            %v4116 = vmul.f32 %v4084, %v4115
            %v4117 = vsub.f32 1.0, %v4116
            %v4118 = vmul.f32 %v4115, %v4117
            %v4119 = vadd.f32 %v4115, %v4118
            %vm4120 = vweird.f32 %v4084
            %vm4121 = vweird.f32 %v4115
            %vm4122 = vmor %vm4120, %vm4121
            %v4123 = vsel %vm4122, %v4115, %v4119
            %v4124 = vand.u32 2147483647, %v4084
            %vm4125 = vcmp.eq.f32.partialorder %v4124, 8.507059e+37
            %v4126 = vand.u32 %v4084, 2147483648
            %v4127 = vor.u32 1.1754944e-38, %v4126
            %v4128 = vsel %vm4125, %v4127, %v4123
            %v4129 = vmul.f32 1.0, %v4128
            %v4130 = vtanh.pop %v4072
            %v4131 = vmul.f32 %v4114, %v3813
            %v4132 = vmul.f32 %v4099, %v4130
            %v4133 = vadd.f32 %v4131, %v4132
            %v4134 = vtanh.pop %v4133
            %v4135 = vmul.f32 %v4129, %v4134
            %s4136 = sadd.s32 %s3130, %s3814
            %v4137 = vstv %s4136
            %vm4138 = vcmp.lt.s32.totalorder %v4137, %v419
            %v4139 = vsel %vm4138, 1, 0
            %4140 = vset.pattern.permute.xlu0 0
            %4141 = vperm.xlu0 %4140, %v4139
            %v4142 = vpop.permute.xlu0 %4141
            %vm4143 = vcmp.eq.s32.totalorder %v4142, 1
            %v4144 = vsel %vm4143, %v4135, 0.0
            %s4145 = smul.u32 %s3814, 8
            %s4146 = scalar_lea.vmem %s400, %s4145 [#allocation12]
            %4147 = vst [vmem:[%s4146] sm:$0xff] %v4144
            %v4148 = vsel %vm4143, %v4135, %v3812
            %v4149 = vsel %vm4143, %v4133, %v3813
            %s4150 = ssub.s32 28, %s3141
            %s4151 = smul.u32 %s4150, 4
            %s4152 = smul.addr %s4151, 4
            %s4153 = scalar_lea.vmem %s328, %s4152 [#allocation4]
            %v4154 = vld [vmem:[%s4153] sm:$0xff]
            %v4155 = vld [vmem:[%s4153 + $0x8] sm:$0xff]
            %v4156 = vunpack.c.l.bf16 %v4154
            %v4157 = vunpack.c.h.bf16 %v4154
            %v4158 = vunpack.c.l.bf16 %v4155
            %v4159 = vunpack.c.h.bf16 %v4155
            %v4160 = vpack.c.bf16 %v4148, %v4148
            %v4161 = vld [vmem:[%s338] sm:$0xff]
            %v4162 = vld [vmem:[%s338 + $0x8] sm:$0xff]
            %v4163 = vld [vmem:[%s338 + $0x10] sm:$0xff]
            %v4164 = vld [vmem:[%s338 + $0x18] sm:$0xff]
            %v4165 = vld [vmem:[%s338 + $0x20] sm:$0xff]
            %v4166 = vld [vmem:[%s338 + $0x28] sm:$0xff]
            %v4167 = vld [vmem:[%s338 + $0x30] sm:$0xff]
            %v4168 = vld [vmem:[%s338 + $0x38] sm:$0xff]
            %v4169 = vld [vmem:[%s338 + $0x40] sm:$0xff]
            %v4170 = vld [vmem:[%s338 + $0x48] sm:$0xff]
            %v4171 = vld [vmem:[%s338 + $0x50] sm:$0xff]
            %v4172 = vld [vmem:[%s338 + $0x58] sm:$0xff]
            %v4173 = vld [vmem:[%s338 + $0x60] sm:$0xff]
            %v4174 = vld [vmem:[%s338 + $0x68] sm:$0xff]
            %v4175 = vld [vmem:[%s338 + $0x70] sm:$0xff]
            %v4176 = vld [vmem:[%s338 + $0x78] sm:$0xff]
            %v4177 = vld [vmem:[%s338 + $0x80] sm:$0xff]
            %v4178 = vld [vmem:[%s338 + $0x88] sm:$0xff]
            %v4179 = vld [vmem:[%s338 + $0x90] sm:$0xff]
            %v4180 = vld [vmem:[%s338 + $0x98] sm:$0xff]
            %v4181 = vld [vmem:[%s338 + $0xa0] sm:$0xff]
            %v4182 = vld [vmem:[%s338 + $0xa8] sm:$0xff]
            %v4183 = vld [vmem:[%s338 + $0xb0] sm:$0xff]
            %v4184 = vld [vmem:[%s338 + $0xb8] sm:$0xff]
            %v4185 = vld [vmem:[%s338 + $0xc0] sm:$0xff]
            %v4186 = vld [vmem:[%s338 + $0xc8] sm:$0xff]
            %v4187 = vld [vmem:[%s338 + $0xd0] sm:$0xff]
            %v4188 = vld [vmem:[%s338 + $0xd8] sm:$0xff]
            %v4189 = vld [vmem:[%s338 + $0xe0] sm:$0xff]
            %v4190 = vld [vmem:[%s338 + $0xe8] sm:$0xff]
            %v4191 = vld [vmem:[%s338 + $0xf0] sm:$0xff]
            %v4192 = vld [vmem:[%s338 + $0xf8] sm:$0xff]
            %v4225 = vunpack.c.l.b16 %v4161
            %v4226 = vunpack.c.h.b16 %v4161
            %v4227 = vunpack.c.l.b16 %v4162
            %v4228 = vunpack.c.h.b16 %v4162
            %v4229 = vunpack.c.l.b16 %v4163
            %v4230 = vunpack.c.h.b16 %v4163
            %v4231 = vunpack.c.l.b16 %v4164
            %v4232 = vunpack.c.h.b16 %v4164
            %v4233 = vunpack.c.l.b16 %v4165
            %v4234 = vunpack.c.h.b16 %v4165
            %v4235 = vunpack.c.l.b16 %v4166
            %v4236 = vunpack.c.h.b16 %v4166
            %v4237 = vunpack.c.l.b16 %v4167
            %v4238 = vunpack.c.h.b16 %v4167
            %v4239 = vunpack.c.l.b16 %v4168
            %v4240 = vunpack.c.h.b16 %v4168
            %v4241 = vunpack.c.l.b16 %v4169
            %v4242 = vunpack.c.h.b16 %v4169
            %v4243 = vunpack.c.l.b16 %v4170
            %v4244 = vunpack.c.h.b16 %v4170
            %v4245 = vunpack.c.l.b16 %v4171
            %v4246 = vunpack.c.h.b16 %v4171
            %v4247 = vunpack.c.l.b16 %v4172
            %v4248 = vunpack.c.h.b16 %v4172
            %v4249 = vunpack.c.l.b16 %v4173
            %v4250 = vunpack.c.h.b16 %v4173
            %v4251 = vunpack.c.l.b16 %v4174
            %v4252 = vunpack.c.h.b16 %v4174
            %v4253 = vunpack.c.l.b16 %v4175
            %v4254 = vunpack.c.h.b16 %v4175
            %v4255 = vunpack.c.l.b16 %v4176
            %v4256 = vunpack.c.h.b16 %v4176
            %v4257 = vunpack.c.l.b16 %v4177
            %v4258 = vunpack.c.h.b16 %v4177
            %v4259 = vunpack.c.l.b16 %v4178
            %v4260 = vunpack.c.h.b16 %v4178
            %v4261 = vunpack.c.l.b16 %v4179
            %v4262 = vunpack.c.h.b16 %v4179
            %v4263 = vunpack.c.l.b16 %v4180
            %v4264 = vunpack.c.h.b16 %v4180
            %v4265 = vunpack.c.l.b16 %v4181
            %v4266 = vunpack.c.h.b16 %v4181
            %v4267 = vunpack.c.l.b16 %v4182
            %v4268 = vunpack.c.h.b16 %v4182
            %v4269 = vunpack.c.l.b16 %v4183
            %v4270 = vunpack.c.h.b16 %v4183
            %v4271 = vunpack.c.l.b16 %v4184
            %v4272 = vunpack.c.h.b16 %v4184
            %v4273 = vunpack.c.l.b16 %v4185
            %v4274 = vunpack.c.h.b16 %v4185
            %v4275 = vunpack.c.l.b16 %v4186
            %v4276 = vunpack.c.h.b16 %v4186
            %v4277 = vunpack.c.l.b16 %v4187
            %v4278 = vunpack.c.h.b16 %v4187
            %v4279 = vunpack.c.l.b16 %v4188
            %v4280 = vunpack.c.h.b16 %v4188
            %v4281 = vunpack.c.l.b16 %v4189
            %v4282 = vunpack.c.h.b16 %v4189
            %v4283 = vunpack.c.l.b16 %v4190
            %v4284 = vunpack.c.h.b16 %v4190
            %v4285 = vunpack.c.l.b16 %v4191
            %v4286 = vunpack.c.h.b16 %v4191
            %v4287 = vunpack.c.l.b16 %v4192
            %v4288 = vunpack.c.h.b16 %v4192
            %v4289 = vpack.c.b16 %v4229, %v4225
            %v4290 = vpack.c.b16 %v4230, %v4226
            %v4291 = vpack.c.b16 %v4231, %v4227
            %v4292 = vpack.c.b16 %v4232, %v4228
            %v4293 = vpack.c.b16 %v4237, %v4233
            %v4294 = vpack.c.b16 %v4238, %v4234
            %v4295 = vpack.c.b16 %v4239, %v4235
            %v4296 = vpack.c.b16 %v4240, %v4236
            %v4297 = vpack.c.b16 %v4245, %v4241
            %v4298 = vpack.c.b16 %v4246, %v4242
            %v4299 = vpack.c.b16 %v4247, %v4243
            %v4300 = vpack.c.b16 %v4248, %v4244
            %v4301 = vpack.c.b16 %v4253, %v4249
            %v4302 = vpack.c.b16 %v4254, %v4250
            %v4303 = vpack.c.b16 %v4255, %v4251
            %v4304 = vpack.c.b16 %v4256, %v4252
            %v4305 = vpack.c.b16 %v4261, %v4257
            %v4306 = vpack.c.b16 %v4262, %v4258
            %v4307 = vpack.c.b16 %v4263, %v4259
            %v4308 = vpack.c.b16 %v4264, %v4260
            %v4309 = vpack.c.b16 %v4269, %v4265
            %v4310 = vpack.c.b16 %v4270, %v4266
            %v4311 = vpack.c.b16 %v4271, %v4267
            %v4312 = vpack.c.b16 %v4272, %v4268
            %v4313 = vpack.c.b16 %v4277, %v4273
            %v4314 = vpack.c.b16 %v4278, %v4274
            %v4315 = vpack.c.b16 %v4279, %v4275
            %v4316 = vpack.c.b16 %v4280, %v4276
            %v4317 = vpack.c.b16 %v4285, %v4281
            %v4318 = vpack.c.b16 %v4286, %v4282
            %v4319 = vpack.c.b16 %v4287, %v4283
            %v4320 = vpack.c.b16 %v4288, %v4284
            %4353 = vmatpush.bf16.msra.mxu0 %v4317
            %4354 = vmatpush.bf16.msra.mxu0 %v4313
            %4355 = vmatpush.bf16.msra.mxu0 %v4309
            %4356 = vmatpush.bf16.msra.mxu0 %v4305
            %4357 = vmatpush.bf16.msra.mxu0 %v4301
            %4358 = vmatpush.bf16.msra.mxu0 %v4297
            %4359 = vmatpush.bf16.msra.mxu0 %v4293
            %4360 = vmatpush.bf16.msra.mxu0 %v4289
            %4361 = vmatmul.bf16.gmra.mxu0 %v4160
            %v4362 = vpop.f32.mrf.mxu0
            %v4363 = vadd.f32 0.0, %v4362
            %v4364 = vpop.f32.mrf.mxu0
            %4365 = vdwg.mxu0
            %4366 = vmatpush.bf16.msra.mxu0 %v4318
            %4367 = vmatpush.bf16.msra.mxu0 %v4314
            %4368 = vmatpush.bf16.msra.mxu0 %v4310
            %4369 = vmatpush.bf16.msra.mxu0 %v4306
            %4370 = vmatpush.bf16.msra.mxu0 %v4302
            %4371 = vmatpush.bf16.msra.mxu0 %v4298
            %4372 = vmatpush.bf16.msra.mxu0 %v4294
            %4373 = vmatpush.bf16.msra.mxu0 %v4290
            %4374 = vmatmul.bf16.gmra.mxu0 %v4160
            %v4375 = vpop.f32.mrf.mxu0
            %v4376 = vadd.f32 0.0, %v4375
            %v4377 = vpop.f32.mrf.mxu0
            %4378 = vdwg.mxu0
            %4379 = vmatpush.bf16.msra.mxu0 %v4319
            %4380 = vmatpush.bf16.msra.mxu0 %v4315
            %4381 = vmatpush.bf16.msra.mxu0 %v4311
            %4382 = vmatpush.bf16.msra.mxu0 %v4307
            %4383 = vmatpush.bf16.msra.mxu0 %v4303
            %4384 = vmatpush.bf16.msra.mxu0 %v4299
            %4385 = vmatpush.bf16.msra.mxu0 %v4295
            %4386 = vmatpush.bf16.msra.mxu0 %v4291
            %4387 = vmatmul.bf16.gmra.mxu0 %v4160
            %v4388 = vpop.f32.mrf.mxu0
            %v4389 = vadd.f32 0.0, %v4388
            %v4390 = vpop.f32.mrf.mxu0
            %4391 = vdwg.mxu0
            %4392 = vmatpush.bf16.msra.mxu0 %v4320
            %4393 = vmatpush.bf16.msra.mxu0 %v4316
            %4394 = vmatpush.bf16.msra.mxu0 %v4312
            %4395 = vmatpush.bf16.msra.mxu0 %v4308
            %4396 = vmatpush.bf16.msra.mxu0 %v4304
            %4397 = vmatpush.bf16.msra.mxu0 %v4300
            %4398 = vmatpush.bf16.msra.mxu0 %v4296
            %4399 = vmatpush.bf16.msra.mxu0 %v4292
            %4400 = vmatmul.bf16.gmra.mxu0 %v4160
            %v4401 = vpop.f32.mrf.mxu0
            %v4402 = vadd.f32 0.0, %v4401
            %v4403 = vpop.f32.mrf.mxu0
            %4404 = vdwg.mxu0
            %v4405 = vadd.f32 %v4156, %v4363
            %v4406 = vadd.f32 %v4157, %v4376
            %v4407 = vadd.f32 %v4158, %v4389
            %v4408 = vadd.f32 %v4159, %v4402
            %v4409 = vxor.u32 %v4405, 2147483648
            %v4410 = vxor.u32 %v4406, 2147483648
            %v4411 = vxor.u32 %v4407, 2147483648
            %v4412 = vmul.f32 %v4409, 1.442695
            %v4413 = vpow.pop %v4412
            %v4414 = vmul.f32 %v4410, 1.442695
            %v4415 = vpow.pop %v4414
            %v4416 = vmul.f32 %v4411, 1.442695
            %v4417 = vpow.pop %v4416
            %v4418 = vadd.f32 %v4413, 1.0
            %v4419 = vadd.f32 %v4415, 1.0
            %v4420 = vadd.f32 %v4417, 1.0
            %v4421 = vrcp.pop %v4418
            %v4422 = vmul.f32 %v4418, %v4421
            %v4423 = vsub.f32 1.0, %v4422
            %v4424 = vmul.f32 %v4421, %v4423
            %v4425 = vadd.f32 %v4421, %v4424
            %vm4426 = vweird.f32 %v4418
            %vm4427 = vweird.f32 %v4421
            %vm4428 = vmor %vm4426, %vm4427
            %v4429 = vsel %vm4428, %v4421, %v4425
            %v4430 = vand.u32 2147483647, %v4418
            %vm4431 = vcmp.eq.f32.partialorder %v4430, 8.507059e+37
            %v4432 = vand.u32 %v4418, 2147483648
            %v4433 = vor.u32 1.1754944e-38, %v4432
            %v4434 = vsel %vm4431, %v4433, %v4429
            %v4435 = vmul.f32 1.0, %v4434
            %v4436 = vrcp.pop %v4419
            %v4437 = vmul.f32 %v4419, %v4436
            %v4438 = vsub.f32 1.0, %v4437
            %v4439 = vmul.f32 %v4436, %v4438
            %v4440 = vadd.f32 %v4436, %v4439
            %vm4441 = vweird.f32 %v4419
            %vm4442 = vweird.f32 %v4436
            %vm4443 = vmor %vm4441, %vm4442
            %v4444 = vsel %vm4443, %v4436, %v4440
            %v4445 = vand.u32 2147483647, %v4419
            %vm4446 = vcmp.eq.f32.partialorder %v4445, 8.507059e+37
            %v4447 = vand.u32 %v4419, 2147483648
            %v4448 = vor.u32 1.1754944e-38, %v4447
            %v4449 = vsel %vm4446, %v4448, %v4444
            %v4450 = vmul.f32 1.0, %v4449
            %v4451 = vrcp.pop %v4420
            %v4452 = vmul.f32 %v4420, %v4451
            %v4453 = vsub.f32 1.0, %v4452
            %v4454 = vmul.f32 %v4451, %v4453
            %v4455 = vadd.f32 %v4451, %v4454
            %vm4456 = vweird.f32 %v4420
            %vm4457 = vweird.f32 %v4451
            %vm4458 = vmor %vm4456, %vm4457
            %v4459 = vsel %vm4458, %v4451, %v4455
            %v4460 = vand.u32 2147483647, %v4420
            %vm4461 = vcmp.eq.f32.partialorder %v4460, 8.507059e+37
            %v4462 = vand.u32 %v4420, 2147483648
            %v4463 = vor.u32 1.1754944e-38, %v4462
            %v4464 = vsel %vm4461, %v4463, %v4459
            %v4465 = vmul.f32 1.0, %v4464
            %v4466 = vtanh.pop %v4408
            %v4467 = vmul.f32 %v4450, %v4149
            %v4468 = vmul.f32 %v4435, %v4466
            %v4469 = vadd.f32 %v4467, %v4468
            %v4470 = vtanh.pop %v4469
            %v4471 = vmul.f32 %v4465, %v4470
            %s4472 = sadd.s32 %s3130, %s4150
            %v4473 = vstv %s4472
            %vm4474 = vcmp.lt.s32.totalorder %v4473, %v419
            %v4475 = vsel %vm4474, 1, 0
            %4476 = vset.pattern.permute.xlu0 0
            %4477 = vperm.xlu0 %4476, %v4475
            %v4478 = vpop.permute.xlu0 %4477
            %vm4479 = vcmp.eq.s32.totalorder %v4478, 1
            %v4480 = vsel %vm4479, %v4471, 0.0
            %s4481 = smul.u32 %s4150, 8
            %s4482 = scalar_lea.vmem %s400, %s4481 [#allocation12]
            %4483 = vst [vmem:[%s4482] sm:$0xff] %v4480
            %v4484 = vsel %vm4479, %v4471, %v4148
            %v4485 = vsel %vm4479, %v4469, %v4149
            %s4486 = ssub.s32 27, %s3141
            %s4487 = smul.u32 %s4486, 4
            %s4488 = smul.addr %s4487, 4
            %s4489 = scalar_lea.vmem %s328, %s4488 [#allocation4]
            %v4490 = vld [vmem:[%s4489] sm:$0xff]
            %v4491 = vld [vmem:[%s4489 + $0x8] sm:$0xff]
            %v4492 = vunpack.c.l.bf16 %v4490
            %v4493 = vunpack.c.h.bf16 %v4490
            %v4494 = vunpack.c.l.bf16 %v4491
            %v4495 = vunpack.c.h.bf16 %v4491
            %v4496 = vpack.c.bf16 %v4484, %v4484
            %v4497 = vld [vmem:[%s338] sm:$0xff]
            %v4498 = vld [vmem:[%s338 + $0x8] sm:$0xff]
            %v4499 = vld [vmem:[%s338 + $0x10] sm:$0xff]
            %v4500 = vld [vmem:[%s338 + $0x18] sm:$0xff]
            %v4501 = vld [vmem:[%s338 + $0x20] sm:$0xff]
            %v4502 = vld [vmem:[%s338 + $0x28] sm:$0xff]
            %v4503 = vld [vmem:[%s338 + $0x30] sm:$0xff]
            %v4504 = vld [vmem:[%s338 + $0x38] sm:$0xff]
            %v4505 = vld [vmem:[%s338 + $0x40] sm:$0xff]
            %v4506 = vld [vmem:[%s338 + $0x48] sm:$0xff]
            %v4507 = vld [vmem:[%s338 + $0x50] sm:$0xff]
            %v4508 = vld [vmem:[%s338 + $0x58] sm:$0xff]
            %v4509 = vld [vmem:[%s338 + $0x60] sm:$0xff]
            %v4510 = vld [vmem:[%s338 + $0x68] sm:$0xff]
            %v4511 = vld [vmem:[%s338 + $0x70] sm:$0xff]
            %v4512 = vld [vmem:[%s338 + $0x78] sm:$0xff]
            %v4513 = vld [vmem:[%s338 + $0x80] sm:$0xff]
            %v4514 = vld [vmem:[%s338 + $0x88] sm:$0xff]
            %v4515 = vld [vmem:[%s338 + $0x90] sm:$0xff]
            %v4516 = vld [vmem:[%s338 + $0x98] sm:$0xff]
            %v4517 = vld [vmem:[%s338 + $0xa0] sm:$0xff]
            %v4518 = vld [vmem:[%s338 + $0xa8] sm:$0xff]
            %v4519 = vld [vmem:[%s338 + $0xb0] sm:$0xff]
            %v4520 = vld [vmem:[%s338 + $0xb8] sm:$0xff]
            %v4521 = vld [vmem:[%s338 + $0xc0] sm:$0xff]
            %v4522 = vld [vmem:[%s338 + $0xc8] sm:$0xff]
            %v4523 = vld [vmem:[%s338 + $0xd0] sm:$0xff]
            %v4524 = vld [vmem:[%s338 + $0xd8] sm:$0xff]
            %v4525 = vld [vmem:[%s338 + $0xe0] sm:$0xff]
            %v4526 = vld [vmem:[%s338 + $0xe8] sm:$0xff]
            %v4527 = vld [vmem:[%s338 + $0xf0] sm:$0xff]
            %v4528 = vld [vmem:[%s338 + $0xf8] sm:$0xff]
            %v4561 = vunpack.c.l.b16 %v4497
            %v4562 = vunpack.c.h.b16 %v4497
            %v4563 = vunpack.c.l.b16 %v4498
            %v4564 = vunpack.c.h.b16 %v4498
            %v4565 = vunpack.c.l.b16 %v4499
            %v4566 = vunpack.c.h.b16 %v4499
            %v4567 = vunpack.c.l.b16 %v4500
            %v4568 = vunpack.c.h.b16 %v4500
            %v4569 = vunpack.c.l.b16 %v4501
            %v4570 = vunpack.c.h.b16 %v4501
            %v4571 = vunpack.c.l.b16 %v4502
            %v4572 = vunpack.c.h.b16 %v4502
            %v4573 = vunpack.c.l.b16 %v4503
            %v4574 = vunpack.c.h.b16 %v4503
            %v4575 = vunpack.c.l.b16 %v4504
            %v4576 = vunpack.c.h.b16 %v4504
            %v4577 = vunpack.c.l.b16 %v4505
            %v4578 = vunpack.c.h.b16 %v4505
            %v4579 = vunpack.c.l.b16 %v4506
            %v4580 = vunpack.c.h.b16 %v4506
            %v4581 = vunpack.c.l.b16 %v4507
            %v4582 = vunpack.c.h.b16 %v4507
            %v4583 = vunpack.c.l.b16 %v4508
            %v4584 = vunpack.c.h.b16 %v4508
            %v4585 = vunpack.c.l.b16 %v4509
            %v4586 = vunpack.c.h.b16 %v4509
            %v4587 = vunpack.c.l.b16 %v4510
            %v4588 = vunpack.c.h.b16 %v4510
            %v4589 = vunpack.c.l.b16 %v4511
            %v4590 = vunpack.c.h.b16 %v4511
            %v4591 = vunpack.c.l.b16 %v4512
            %v4592 = vunpack.c.h.b16 %v4512
            %v4593 = vunpack.c.l.b16 %v4513
            %v4594 = vunpack.c.h.b16 %v4513
            %v4595 = vunpack.c.l.b16 %v4514
            %v4596 = vunpack.c.h.b16 %v4514
            %v4597 = vunpack.c.l.b16 %v4515
            %v4598 = vunpack.c.h.b16 %v4515
            %v4599 = vunpack.c.l.b16 %v4516
            %v4600 = vunpack.c.h.b16 %v4516
            %v4601 = vunpack.c.l.b16 %v4517
            %v4602 = vunpack.c.h.b16 %v4517
            %v4603 = vunpack.c.l.b16 %v4518
            %v4604 = vunpack.c.h.b16 %v4518
            %v4605 = vunpack.c.l.b16 %v4519
            %v4606 = vunpack.c.h.b16 %v4519
            %v4607 = vunpack.c.l.b16 %v4520
            %v4608 = vunpack.c.h.b16 %v4520
            %v4609 = vunpack.c.l.b16 %v4521
            %v4610 = vunpack.c.h.b16 %v4521
            %v4611 = vunpack.c.l.b16 %v4522
            %v4612 = vunpack.c.h.b16 %v4522
            %v4613 = vunpack.c.l.b16 %v4523
            %v4614 = vunpack.c.h.b16 %v4523
            %v4615 = vunpack.c.l.b16 %v4524
            %v4616 = vunpack.c.h.b16 %v4524
            %v4617 = vunpack.c.l.b16 %v4525
            %v4618 = vunpack.c.h.b16 %v4525
            %v4619 = vunpack.c.l.b16 %v4526
            %v4620 = vunpack.c.h.b16 %v4526
            %v4621 = vunpack.c.l.b16 %v4527
            %v4622 = vunpack.c.h.b16 %v4527
            %v4623 = vunpack.c.l.b16 %v4528
            %v4624 = vunpack.c.h.b16 %v4528
            %v4625 = vpack.c.b16 %v4565, %v4561
            %v4626 = vpack.c.b16 %v4566, %v4562
            %v4627 = vpack.c.b16 %v4567, %v4563
            %v4628 = vpack.c.b16 %v4568, %v4564
            %v4629 = vpack.c.b16 %v4573, %v4569
            %v4630 = vpack.c.b16 %v4574, %v4570
            %v4631 = vpack.c.b16 %v4575, %v4571
            %v4632 = vpack.c.b16 %v4576, %v4572
            %v4633 = vpack.c.b16 %v4581, %v4577
            %v4634 = vpack.c.b16 %v4582, %v4578
            %v4635 = vpack.c.b16 %v4583, %v4579
            %v4636 = vpack.c.b16 %v4584, %v4580
            %v4637 = vpack.c.b16 %v4589, %v4585
            %v4638 = vpack.c.b16 %v4590, %v4586
            %v4639 = vpack.c.b16 %v4591, %v4587
            %v4640 = vpack.c.b16 %v4592, %v4588
            %v4641 = vpack.c.b16 %v4597, %v4593
            %v4642 = vpack.c.b16 %v4598, %v4594
            %v4643 = vpack.c.b16 %v4599, %v4595
            %v4644 = vpack.c.b16 %v4600, %v4596
            %v4645 = vpack.c.b16 %v4605, %v4601
            %v4646 = vpack.c.b16 %v4606, %v4602
            %v4647 = vpack.c.b16 %v4607, %v4603
            %v4648 = vpack.c.b16 %v4608, %v4604
            %v4649 = vpack.c.b16 %v4613, %v4609
            %v4650 = vpack.c.b16 %v4614, %v4610
            %v4651 = vpack.c.b16 %v4615, %v4611
            %v4652 = vpack.c.b16 %v4616, %v4612
            %v4653 = vpack.c.b16 %v4621, %v4617
            %v4654 = vpack.c.b16 %v4622, %v4618
            %v4655 = vpack.c.b16 %v4623, %v4619
            %v4656 = vpack.c.b16 %v4624, %v4620
            %4689 = vmatpush.bf16.msra.mxu0 %v4653
            %4690 = vmatpush.bf16.msra.mxu0 %v4649
            %4691 = vmatpush.bf16.msra.mxu0 %v4645
            %4692 = vmatpush.bf16.msra.mxu0 %v4641
            %4693 = vmatpush.bf16.msra.mxu0 %v4637
            %4694 = vmatpush.bf16.msra.mxu0 %v4633
            %4695 = vmatpush.bf16.msra.mxu0 %v4629
            %4696 = vmatpush.bf16.msra.mxu0 %v4625
            %4697 = vmatmul.bf16.gmra.mxu0 %v4496
            %v4698 = vpop.f32.mrf.mxu0
            %v4699 = vadd.f32 0.0, %v4698
            %v4700 = vpop.f32.mrf.mxu0
            %4701 = vdwg.mxu0
            %4702 = vmatpush.bf16.msra.mxu0 %v4654
            %4703 = vmatpush.bf16.msra.mxu0 %v4650
            %4704 = vmatpush.bf16.msra.mxu0 %v4646
            %4705 = vmatpush.bf16.msra.mxu0 %v4642
            %4706 = vmatpush.bf16.msra.mxu0 %v4638
            %4707 = vmatpush.bf16.msra.mxu0 %v4634
            %4708 = vmatpush.bf16.msra.mxu0 %v4630
            %4709 = vmatpush.bf16.msra.mxu0 %v4626
            %4710 = vmatmul.bf16.gmra.mxu0 %v4496
            %v4711 = vpop.f32.mrf.mxu0
            %v4712 = vadd.f32 0.0, %v4711
            %v4713 = vpop.f32.mrf.mxu0
            %4714 = vdwg.mxu0
            %4715 = vmatpush.bf16.msra.mxu0 %v4655
            %4716 = vmatpush.bf16.msra.mxu0 %v4651
            %4717 = vmatpush.bf16.msra.mxu0 %v4647
            %4718 = vmatpush.bf16.msra.mxu0 %v4643
            %4719 = vmatpush.bf16.msra.mxu0 %v4639
            %4720 = vmatpush.bf16.msra.mxu0 %v4635
            %4721 = vmatpush.bf16.msra.mxu0 %v4631
            %4722 = vmatpush.bf16.msra.mxu0 %v4627
            %4723 = vmatmul.bf16.gmra.mxu0 %v4496
            %v4724 = vpop.f32.mrf.mxu0
            %v4725 = vadd.f32 0.0, %v4724
            %v4726 = vpop.f32.mrf.mxu0
            %4727 = vdwg.mxu0
            %4728 = vmatpush.bf16.msra.mxu0 %v4656
            %4729 = vmatpush.bf16.msra.mxu0 %v4652
            %4730 = vmatpush.bf16.msra.mxu0 %v4648
            %4731 = vmatpush.bf16.msra.mxu0 %v4644
            %4732 = vmatpush.bf16.msra.mxu0 %v4640
            %4733 = vmatpush.bf16.msra.mxu0 %v4636
            %4734 = vmatpush.bf16.msra.mxu0 %v4632
            %4735 = vmatpush.bf16.msra.mxu0 %v4628
            %4736 = vmatmul.bf16.gmra.mxu0 %v4496
            %v4737 = vpop.f32.mrf.mxu0
            %v4738 = vadd.f32 0.0, %v4737
            %v4739 = vpop.f32.mrf.mxu0
            %4740 = vdwg.mxu0
            %v4741 = vadd.f32 %v4492, %v4699
            %v4742 = vadd.f32 %v4493, %v4712
            %v4743 = vadd.f32 %v4494, %v4725
            %v4744 = vadd.f32 %v4495, %v4738
            %v4745 = vxor.u32 %v4741, 2147483648
            %v4746 = vxor.u32 %v4742, 2147483648
            %v4747 = vxor.u32 %v4743, 2147483648
            %v4748 = vmul.f32 %v4745, 1.442695
            %v4749 = vpow.pop %v4748
            %v4750 = vmul.f32 %v4746, 1.442695
            %v4751 = vpow.pop %v4750
            %v4752 = vmul.f32 %v4747, 1.442695
            %v4753 = vpow.pop %v4752
            %v4754 = vadd.f32 %v4749, 1.0
            %v4755 = vadd.f32 %v4751, 1.0
            %v4756 = vadd.f32 %v4753, 1.0
            %v4757 = vrcp.pop %v4754
            %v4758 = vmul.f32 %v4754, %v4757
            %v4759 = vsub.f32 1.0, %v4758
            %v4760 = vmul.f32 %v4757, %v4759
            %v4761 = vadd.f32 %v4757, %v4760
            %vm4762 = vweird.f32 %v4754
            %vm4763 = vweird.f32 %v4757
            %vm4764 = vmor %vm4762, %vm4763
            %v4765 = vsel %vm4764, %v4757, %v4761
            %v4766 = vand.u32 2147483647, %v4754
            %vm4767 = vcmp.eq.f32.partialorder %v4766, 8.507059e+37
            %v4768 = vand.u32 %v4754, 2147483648
            %v4769 = vor.u32 1.1754944e-38, %v4768
            %v4770 = vsel %vm4767, %v4769, %v4765
            %v4771 = vmul.f32 1.0, %v4770
            %v4772 = vrcp.pop %v4755
            %v4773 = vmul.f32 %v4755, %v4772
            %v4774 = vsub.f32 1.0, %v4773
            %v4775 = vmul.f32 %v4772, %v4774
            %v4776 = vadd.f32 %v4772, %v4775
            %vm4777 = vweird.f32 %v4755
            %vm4778 = vweird.f32 %v4772
            %vm4779 = vmor %vm4777, %vm4778
            %v4780 = vsel %vm4779, %v4772, %v4776
            %v4781 = vand.u32 2147483647, %v4755
            %vm4782 = vcmp.eq.f32.partialorder %v4781, 8.507059e+37
            %v4783 = vand.u32 %v4755, 2147483648
            %v4784 = vor.u32 1.1754944e-38, %v4783
            %v4785 = vsel %vm4782, %v4784, %v4780
            %v4786 = vmul.f32 1.0, %v4785
            %v4787 = vrcp.pop %v4756
            %v4788 = vmul.f32 %v4756, %v4787
            %v4789 = vsub.f32 1.0, %v4788
            %v4790 = vmul.f32 %v4787, %v4789
            %v4791 = vadd.f32 %v4787, %v4790
            %vm4792 = vweird.f32 %v4756
            %vm4793 = vweird.f32 %v4787
            %vm4794 = vmor %vm4792, %vm4793
            %v4795 = vsel %vm4794, %v4787, %v4791
            %v4796 = vand.u32 2147483647, %v4756
            %vm4797 = vcmp.eq.f32.partialorder %v4796, 8.507059e+37
            %v4798 = vand.u32 %v4756, 2147483648
            %v4799 = vor.u32 1.1754944e-38, %v4798
            %v4800 = vsel %vm4797, %v4799, %v4795
            %v4801 = vmul.f32 1.0, %v4800
            %v4802 = vtanh.pop %v4744
            %v4803 = vmul.f32 %v4786, %v4485
            %v4804 = vmul.f32 %v4771, %v4802
            %v4805 = vadd.f32 %v4803, %v4804
            %v4806 = vtanh.pop %v4805
            %v4807 = vmul.f32 %v4801, %v4806
            %s4808 = sadd.s32 %s3130, %s4486
            %v4809 = vstv %s4808
            %vm4810 = vcmp.lt.s32.totalorder %v4809, %v419
            %v4811 = vsel %vm4810, 1, 0
            %4812 = vset.pattern.permute.xlu0 0
            %4813 = vperm.xlu0 %4812, %v4811
            %v4814 = vpop.permute.xlu0 %4813
            %vm4815 = vcmp.eq.s32.totalorder %v4814, 1
            %v4816 = vsel %vm4815, %v4807, 0.0
            %s4817 = smul.u32 %s4486, 8
            %s4818 = scalar_lea.vmem %s400, %s4817 [#allocation12]
            %4819 = vst [vmem:[%s4818] sm:$0xff] %v4816
            %v4820 = vsel %vm4815, %v4807, %v4484
            %v4821 = vsel %vm4815, %v4805, %v4485
            %s4822 = ssub.s32 26, %s3141
            %s4823 = smul.u32 %s4822, 4
            %s4824 = smul.addr %s4823, 4
            %s4825 = scalar_lea.vmem %s328, %s4824 [#allocation4]
            %v4826 = vld [vmem:[%s4825] sm:$0xff]
            %v4827 = vld [vmem:[%s4825 + $0x8] sm:$0xff]
            %v4828 = vunpack.c.l.bf16 %v4826
            %v4829 = vunpack.c.h.bf16 %v4826
            %v4830 = vunpack.c.l.bf16 %v4827
            %v4831 = vunpack.c.h.bf16 %v4827
            %v4832 = vpack.c.bf16 %v4820, %v4820
            %v4833 = vld [vmem:[%s338] sm:$0xff]
            %v4834 = vld [vmem:[%s338 + $0x8] sm:$0xff]
            %v4835 = vld [vmem:[%s338 + $0x10] sm:$0xff]
            %v4836 = vld [vmem:[%s338 + $0x18] sm:$0xff]
            %v4837 = vld [vmem:[%s338 + $0x20] sm:$0xff]
            %v4838 = vld [vmem:[%s338 + $0x28] sm:$0xff]
            %v4839 = vld [vmem:[%s338 + $0x30] sm:$0xff]
            %v4840 = vld [vmem:[%s338 + $0x38] sm:$0xff]
            %v4841 = vld [vmem:[%s338 + $0x40] sm:$0xff]
            %v4842 = vld [vmem:[%s338 + $0x48] sm:$0xff]
            %v4843 = vld [vmem:[%s338 + $0x50] sm:$0xff]
            %v4844 = vld [vmem:[%s338 + $0x58] sm:$0xff]
            %v4845 = vld [vmem:[%s338 + $0x60] sm:$0xff]
            %v4846 = vld [vmem:[%s338 + $0x68] sm:$0xff]
            %v4847 = vld [vmem:[%s338 + $0x70] sm:$0xff]
            %v4848 = vld [vmem:[%s338 + $0x78] sm:$0xff]
            %v4849 = vld [vmem:[%s338 + $0x80] sm:$0xff]
            %v4850 = vld [vmem:[%s338 + $0x88] sm:$0xff]
            %v4851 = vld [vmem:[%s338 + $0x90] sm:$0xff]
            %v4852 = vld [vmem:[%s338 + $0x98] sm:$0xff]
            %v4853 = vld [vmem:[%s338 + $0xa0] sm:$0xff]
            %v4854 = vld [vmem:[%s338 + $0xa8] sm:$0xff]
            %v4855 = vld [vmem:[%s338 + $0xb0] sm:$0xff]
            %v4856 = vld [vmem:[%s338 + $0xb8] sm:$0xff]
            %v4857 = vld [vmem:[%s338 + $0xc0] sm:$0xff]
            %v4858 = vld [vmem:[%s338 + $0xc8] sm:$0xff]
            %v4859 = vld [vmem:[%s338 + $0xd0] sm:$0xff]
            %v4860 = vld [vmem:[%s338 + $0xd8] sm:$0xff]
            %v4861 = vld [vmem:[%s338 + $0xe0] sm:$0xff]
            %v4862 = vld [vmem:[%s338 + $0xe8] sm:$0xff]
            %v4863 = vld [vmem:[%s338 + $0xf0] sm:$0xff]
            %v4864 = vld [vmem:[%s338 + $0xf8] sm:$0xff]
            %v4897 = vunpack.c.l.b16 %v4833
            %v4898 = vunpack.c.h.b16 %v4833
            %v4899 = vunpack.c.l.b16 %v4834
            %v4900 = vunpack.c.h.b16 %v4834
            %v4901 = vunpack.c.l.b16 %v4835
            %v4902 = vunpack.c.h.b16 %v4835
            %v4903 = vunpack.c.l.b16 %v4836
            %v4904 = vunpack.c.h.b16 %v4836
            %v4905 = vunpack.c.l.b16 %v4837
            %v4906 = vunpack.c.h.b16 %v4837
            %v4907 = vunpack.c.l.b16 %v4838
            %v4908 = vunpack.c.h.b16 %v4838
            %v4909 = vunpack.c.l.b16 %v4839
            %v4910 = vunpack.c.h.b16 %v4839
            %v4911 = vunpack.c.l.b16 %v4840
            %v4912 = vunpack.c.h.b16 %v4840
            %v4913 = vunpack.c.l.b16 %v4841
            %v4914 = vunpack.c.h.b16 %v4841
            %v4915 = vunpack.c.l.b16 %v4842
            %v4916 = vunpack.c.h.b16 %v4842
            %v4917 = vunpack.c.l.b16 %v4843
            %v4918 = vunpack.c.h.b16 %v4843
            %v4919 = vunpack.c.l.b16 %v4844
            %v4920 = vunpack.c.h.b16 %v4844
            %v4921 = vunpack.c.l.b16 %v4845
            %v4922 = vunpack.c.h.b16 %v4845
            %v4923 = vunpack.c.l.b16 %v4846
            %v4924 = vunpack.c.h.b16 %v4846
            %v4925 = vunpack.c.l.b16 %v4847
            %v4926 = vunpack.c.h.b16 %v4847
            %v4927 = vunpack.c.l.b16 %v4848
            %v4928 = vunpack.c.h.b16 %v4848
            %v4929 = vunpack.c.l.b16 %v4849
            %v4930 = vunpack.c.h.b16 %v4849
            %v4931 = vunpack.c.l.b16 %v4850
            %v4932 = vunpack.c.h.b16 %v4850
            %v4933 = vunpack.c.l.b16 %v4851
            %v4934 = vunpack.c.h.b16 %v4851
            %v4935 = vunpack.c.l.b16 %v4852
            %v4936 = vunpack.c.h.b16 %v4852
            %v4937 = vunpack.c.l.b16 %v4853
            %v4938 = vunpack.c.h.b16 %v4853
            %v4939 = vunpack.c.l.b16 %v4854
            %v4940 = vunpack.c.h.b16 %v4854
            %v4941 = vunpack.c.l.b16 %v4855
            %v4942 = vunpack.c.h.b16 %v4855
            %v4943 = vunpack.c.l.b16 %v4856
            %v4944 = vunpack.c.h.b16 %v4856
            %v4945 = vunpack.c.l.b16 %v4857
            %v4946 = vunpack.c.h.b16 %v4857
            %v4947 = vunpack.c.l.b16 %v4858
            %v4948 = vunpack.c.h.b16 %v4858
            %v4949 = vunpack.c.l.b16 %v4859
            %v4950 = vunpack.c.h.b16 %v4859
            %v4951 = vunpack.c.l.b16 %v4860
            %v4952 = vunpack.c.h.b16 %v4860
            %v4953 = vunpack.c.l.b16 %v4861
            %v4954 = vunpack.c.h.b16 %v4861
            %v4955 = vunpack.c.l.b16 %v4862
            %v4956 = vunpack.c.h.b16 %v4862
            %v4957 = vunpack.c.l.b16 %v4863
            %v4958 = vunpack.c.h.b16 %v4863
            %v4959 = vunpack.c.l.b16 %v4864
            %v4960 = vunpack.c.h.b16 %v4864
            %v4961 = vpack.c.b16 %v4901, %v4897
            %v4962 = vpack.c.b16 %v4902, %v4898
            %v4963 = vpack.c.b16 %v4903, %v4899
            %v4964 = vpack.c.b16 %v4904, %v4900
            %v4965 = vpack.c.b16 %v4909, %v4905
            %v4966 = vpack.c.b16 %v4910, %v4906
            %v4967 = vpack.c.b16 %v4911, %v4907
            %v4968 = vpack.c.b16 %v4912, %v4908
            %v4969 = vpack.c.b16 %v4917, %v4913
            %v4970 = vpack.c.b16 %v4918, %v4914
            %v4971 = vpack.c.b16 %v4919, %v4915
            %v4972 = vpack.c.b16 %v4920, %v4916
            %v4973 = vpack.c.b16 %v4925, %v4921
            %v4974 = vpack.c.b16 %v4926, %v4922
            %v4975 = vpack.c.b16 %v4927, %v4923
            %v4976 = vpack.c.b16 %v4928, %v4924
            %v4977 = vpack.c.b16 %v4933, %v4929
            %v4978 = vpack.c.b16 %v4934, %v4930
            %v4979 = vpack.c.b16 %v4935, %v4931
            %v4980 = vpack.c.b16 %v4936, %v4932
            %v4981 = vpack.c.b16 %v4941, %v4937
            %v4982 = vpack.c.b16 %v4942, %v4938
            %v4983 = vpack.c.b16 %v4943, %v4939
            %v4984 = vpack.c.b16 %v4944, %v4940
            %v4985 = vpack.c.b16 %v4949, %v4945
            %v4986 = vpack.c.b16 %v4950, %v4946
            %v4987 = vpack.c.b16 %v4951, %v4947
            %v4988 = vpack.c.b16 %v4952, %v4948
            %v4989 = vpack.c.b16 %v4957, %v4953
            %v4990 = vpack.c.b16 %v4958, %v4954
            %v4991 = vpack.c.b16 %v4959, %v4955
            %v4992 = vpack.c.b16 %v4960, %v4956
            %5025 = vmatpush.bf16.msra.mxu0 %v4989
            %5026 = vmatpush.bf16.msra.mxu0 %v4985
            %5027 = vmatpush.bf16.msra.mxu0 %v4981
            %5028 = vmatpush.bf16.msra.mxu0 %v4977
            %5029 = vmatpush.bf16.msra.mxu0 %v4973
            %5030 = vmatpush.bf16.msra.mxu0 %v4969
            %5031 = vmatpush.bf16.msra.mxu0 %v4965
            %5032 = vmatpush.bf16.msra.mxu0 %v4961
            %5033 = vmatmul.bf16.gmra.mxu0 %v4832
            %v5034 = vpop.f32.mrf.mxu0
            %v5035 = vadd.f32 0.0, %v5034
            %v5036 = vpop.f32.mrf.mxu0
            %5037 = vdwg.mxu0
            %5038 = vmatpush.bf16.msra.mxu0 %v4990
            %5039 = vmatpush.bf16.msra.mxu0 %v4986
            %5040 = vmatpush.bf16.msra.mxu0 %v4982
            %5041 = vmatpush.bf16.msra.mxu0 %v4978
            %5042 = vmatpush.bf16.msra.mxu0 %v4974
            %5043 = vmatpush.bf16.msra.mxu0 %v4970
            %5044 = vmatpush.bf16.msra.mxu0 %v4966
            %5045 = vmatpush.bf16.msra.mxu0 %v4962
            %5046 = vmatmul.bf16.gmra.mxu0 %v4832
            %v5047 = vpop.f32.mrf.mxu0
            %v5048 = vadd.f32 0.0, %v5047
            %v5049 = vpop.f32.mrf.mxu0
            %5050 = vdwg.mxu0
            %5051 = vmatpush.bf16.msra.mxu0 %v4991
            %5052 = vmatpush.bf16.msra.mxu0 %v4987
            %5053 = vmatpush.bf16.msra.mxu0 %v4983
            %5054 = vmatpush.bf16.msra.mxu0 %v4979
            %5055 = vmatpush.bf16.msra.mxu0 %v4975
            %5056 = vmatpush.bf16.msra.mxu0 %v4971
            %5057 = vmatpush.bf16.msra.mxu0 %v4967
            %5058 = vmatpush.bf16.msra.mxu0 %v4963
            %5059 = vmatmul.bf16.gmra.mxu0 %v4832
            %v5060 = vpop.f32.mrf.mxu0
            %v5061 = vadd.f32 0.0, %v5060
            %v5062 = vpop.f32.mrf.mxu0
            %5063 = vdwg.mxu0
            %5064 = vmatpush.bf16.msra.mxu0 %v4992
            %5065 = vmatpush.bf16.msra.mxu0 %v4988
            %5066 = vmatpush.bf16.msra.mxu0 %v4984
            %5067 = vmatpush.bf16.msra.mxu0 %v4980
            %5068 = vmatpush.bf16.msra.mxu0 %v4976
            %5069 = vmatpush.bf16.msra.mxu0 %v4972
            %5070 = vmatpush.bf16.msra.mxu0 %v4968
            %5071 = vmatpush.bf16.msra.mxu0 %v4964
            %5072 = vmatmul.bf16.gmra.mxu0 %v4832
            %v5073 = vpop.f32.mrf.mxu0
            %v5074 = vadd.f32 0.0, %v5073
            %v5075 = vpop.f32.mrf.mxu0
            %5076 = vdwg.mxu0
            %v5077 = vadd.f32 %v4828, %v5035
            %v5078 = vadd.f32 %v4829, %v5048
            %v5079 = vadd.f32 %v4830, %v5061
            %v5080 = vadd.f32 %v4831, %v5074
            %v5081 = vxor.u32 %v5077, 2147483648
            %v5082 = vxor.u32 %v5078, 2147483648
            %v5083 = vxor.u32 %v5079, 2147483648
            %v5084 = vmul.f32 %v5081, 1.442695
            %v5085 = vpow.pop %v5084
            %v5086 = vmul.f32 %v5082, 1.442695
            %v5087 = vpow.pop %v5086
            %v5088 = vmul.f32 %v5083, 1.442695
            %v5089 = vpow.pop %v5088
            %v5090 = vadd.f32 %v5085, 1.0
            %v5091 = vadd.f32 %v5087, 1.0
            %v5092 = vadd.f32 %v5089, 1.0
            %v5093 = vrcp.pop %v5090
            %v5094 = vmul.f32 %v5090, %v5093
            %v5095 = vsub.f32 1.0, %v5094
            %v5096 = vmul.f32 %v5093, %v5095
            %v5097 = vadd.f32 %v5093, %v5096
            %vm5098 = vweird.f32 %v5090
            %vm5099 = vweird.f32 %v5093
            %vm5100 = vmor %vm5098, %vm5099
            %v5101 = vsel %vm5100, %v5093, %v5097
            %v5102 = vand.u32 2147483647, %v5090
            %vm5103 = vcmp.eq.f32.partialorder %v5102, 8.507059e+37
            %v5104 = vand.u32 %v5090, 2147483648
            %v5105 = vor.u32 1.1754944e-38, %v5104
            %v5106 = vsel %vm5103, %v5105, %v5101
            %v5107 = vmul.f32 1.0, %v5106
            %v5108 = vrcp.pop %v5091
            %v5109 = vmul.f32 %v5091, %v5108
            %v5110 = vsub.f32 1.0, %v5109
            %v5111 = vmul.f32 %v5108, %v5110
            %v5112 = vadd.f32 %v5108, %v5111
            %vm5113 = vweird.f32 %v5091
            %vm5114 = vweird.f32 %v5108
            %vm5115 = vmor %vm5113, %vm5114
            %v5116 = vsel %vm5115, %v5108, %v5112
            %v5117 = vand.u32 2147483647, %v5091
            %vm5118 = vcmp.eq.f32.partialorder %v5117, 8.507059e+37
            %v5119 = vand.u32 %v5091, 2147483648
            %v5120 = vor.u32 1.1754944e-38, %v5119
            %v5121 = vsel %vm5118, %v5120, %v5116
            %v5122 = vmul.f32 1.0, %v5121
            %v5123 = vrcp.pop %v5092
            %v5124 = vmul.f32 %v5092, %v5123
            %v5125 = vsub.f32 1.0, %v5124
            %v5126 = vmul.f32 %v5123, %v5125
            %v5127 = vadd.f32 %v5123, %v5126
            %vm5128 = vweird.f32 %v5092
            %vm5129 = vweird.f32 %v5123
            %vm5130 = vmor %vm5128, %vm5129
            %v5131 = vsel %vm5130, %v5123, %v5127
            %v5132 = vand.u32 2147483647, %v5092
            %vm5133 = vcmp.eq.f32.partialorder %v5132, 8.507059e+37
            %v5134 = vand.u32 %v5092, 2147483648
            %v5135 = vor.u32 1.1754944e-38, %v5134
            %v5136 = vsel %vm5133, %v5135, %v5131
            %v5137 = vmul.f32 1.0, %v5136
            %v5138 = vtanh.pop %v5080
            %v5139 = vmul.f32 %v5122, %v4821
            %v5140 = vmul.f32 %v5107, %v5138
            %v5141 = vadd.f32 %v5139, %v5140
            %v5142 = vtanh.pop %v5141
            %v5143 = vmul.f32 %v5137, %v5142
            %s5144 = sadd.s32 %s3130, %s4822
            %v5145 = vstv %s5144
            %vm5146 = vcmp.lt.s32.totalorder %v5145, %v419
            %v5147 = vsel %vm5146, 1, 0
            %5148 = vset.pattern.permute.xlu0 0
            %5149 = vperm.xlu0 %5148, %v5147
            %v5150 = vpop.permute.xlu0 %5149
            %vm5151 = vcmp.eq.s32.totalorder %v5150, 1
            %v5152 = vsel %vm5151, %v5143, 0.0
            %s5153 = smul.u32 %s4822, 8
            %s5154 = scalar_lea.vmem %s400, %s5153 [#allocation12]
            %5155 = vst [vmem:[%s5154] sm:$0xff] %v5152
            %v5156 = vsel %vm5151, %v5143, %v4820
            %v5157 = vsel %vm5151, %v5141, %v4821
            %s5158 = ssub.s32 25, %s3141
            %s5159 = smul.u32 %s5158, 4
            %s5160 = smul.addr %s5159, 4
            %s5161 = scalar_lea.vmem %s328, %s5160 [#allocation4]
            %v5162 = vld [vmem:[%s5161] sm:$0xff]
            %v5163 = vld [vmem:[%s5161 + $0x8] sm:$0xff]
            %v5164 = vunpack.c.l.bf16 %v5162
            %v5165 = vunpack.c.h.bf16 %v5162
            %v5166 = vunpack.c.l.bf16 %v5163
            %v5167 = vunpack.c.h.bf16 %v5163
            %v5168 = vpack.c.bf16 %v5156, %v5156
            %v5169 = vld [vmem:[%s338] sm:$0xff]
            %v5170 = vld [vmem:[%s338 + $0x8] sm:$0xff]
            %v5171 = vld [vmem:[%s338 + $0x10] sm:$0xff]
            %v5172 = vld [vmem:[%s338 + $0x18] sm:$0xff]
            %v5173 = vld [vmem:[%s338 + $0x20] sm:$0xff]
            %v5174 = vld [vmem:[%s338 + $0x28] sm:$0xff]
            %v5175 = vld [vmem:[%s338 + $0x30] sm:$0xff]
            %v5176 = vld [vmem:[%s338 + $0x38] sm:$0xff]
            %v5177 = vld [vmem:[%s338 + $0x40] sm:$0xff]
            %v5178 = vld [vmem:[%s338 + $0x48] sm:$0xff]
            %v5179 = vld [vmem:[%s338 + $0x50] sm:$0xff]
            %v5180 = vld [vmem:[%s338 + $0x58] sm:$0xff]
            %v5181 = vld [vmem:[%s338 + $0x60] sm:$0xff]
            %v5182 = vld [vmem:[%s338 + $0x68] sm:$0xff]
            %v5183 = vld [vmem:[%s338 + $0x70] sm:$0xff]
            %v5184 = vld [vmem:[%s338 + $0x78] sm:$0xff]
            %v5185 = vld [vmem:[%s338 + $0x80] sm:$0xff]
            %v5186 = vld [vmem:[%s338 + $0x88] sm:$0xff]
            %v5187 = vld [vmem:[%s338 + $0x90] sm:$0xff]
            %v5188 = vld [vmem:[%s338 + $0x98] sm:$0xff]
            %v5189 = vld [vmem:[%s338 + $0xa0] sm:$0xff]
            %v5190 = vld [vmem:[%s338 + $0xa8] sm:$0xff]
            %v5191 = vld [vmem:[%s338 + $0xb0] sm:$0xff]
            %v5192 = vld [vmem:[%s338 + $0xb8] sm:$0xff]
            %v5193 = vld [vmem:[%s338 + $0xc0] sm:$0xff]
            %v5194 = vld [vmem:[%s338 + $0xc8] sm:$0xff]
            %v5195 = vld [vmem:[%s338 + $0xd0] sm:$0xff]
            %v5196 = vld [vmem:[%s338 + $0xd8] sm:$0xff]
            %v5197 = vld [vmem:[%s338 + $0xe0] sm:$0xff]
            %v5198 = vld [vmem:[%s338 + $0xe8] sm:$0xff]
            %v5199 = vld [vmem:[%s338 + $0xf0] sm:$0xff]
            %v5200 = vld [vmem:[%s338 + $0xf8] sm:$0xff]
            %v5233 = vunpack.c.l.b16 %v5169
            %v5234 = vunpack.c.h.b16 %v5169
            %v5235 = vunpack.c.l.b16 %v5170
            %v5236 = vunpack.c.h.b16 %v5170
            %v5237 = vunpack.c.l.b16 %v5171
            %v5238 = vunpack.c.h.b16 %v5171
            %v5239 = vunpack.c.l.b16 %v5172
            %v5240 = vunpack.c.h.b16 %v5172
            %v5241 = vunpack.c.l.b16 %v5173
            %v5242 = vunpack.c.h.b16 %v5173
            %v5243 = vunpack.c.l.b16 %v5174
            %v5244 = vunpack.c.h.b16 %v5174
            %v5245 = vunpack.c.l.b16 %v5175
            %v5246 = vunpack.c.h.b16 %v5175
            %v5247 = vunpack.c.l.b16 %v5176
            %v5248 = vunpack.c.h.b16 %v5176
            %v5249 = vunpack.c.l.b16 %v5177
            %v5250 = vunpack.c.h.b16 %v5177
            %v5251 = vunpack.c.l.b16 %v5178
            %v5252 = vunpack.c.h.b16 %v5178
            %v5253 = vunpack.c.l.b16 %v5179
            %v5254 = vunpack.c.h.b16 %v5179
            %v5255 = vunpack.c.l.b16 %v5180
            %v5256 = vunpack.c.h.b16 %v5180
            %v5257 = vunpack.c.l.b16 %v5181
            %v5258 = vunpack.c.h.b16 %v5181
            %v5259 = vunpack.c.l.b16 %v5182
            %v5260 = vunpack.c.h.b16 %v5182
            %v5261 = vunpack.c.l.b16 %v5183
            %v5262 = vunpack.c.h.b16 %v5183
            %v5263 = vunpack.c.l.b16 %v5184
            %v5264 = vunpack.c.h.b16 %v5184
            %v5265 = vunpack.c.l.b16 %v5185
            %v5266 = vunpack.c.h.b16 %v5185
            %v5267 = vunpack.c.l.b16 %v5186
            %v5268 = vunpack.c.h.b16 %v5186
            %v5269 = vunpack.c.l.b16 %v5187
            %v5270 = vunpack.c.h.b16 %v5187
            %v5271 = vunpack.c.l.b16 %v5188
            %v5272 = vunpack.c.h.b16 %v5188
            %v5273 = vunpack.c.l.b16 %v5189
            %v5274 = vunpack.c.h.b16 %v5189
            %v5275 = vunpack.c.l.b16 %v5190
            %v5276 = vunpack.c.h.b16 %v5190
            %v5277 = vunpack.c.l.b16 %v5191
            %v5278 = vunpack.c.h.b16 %v5191
            %v5279 = vunpack.c.l.b16 %v5192
            %v5280 = vunpack.c.h.b16 %v5192
            %v5281 = vunpack.c.l.b16 %v5193
            %v5282 = vunpack.c.h.b16 %v5193
            %v5283 = vunpack.c.l.b16 %v5194
            %v5284 = vunpack.c.h.b16 %v5194
            %v5285 = vunpack.c.l.b16 %v5195
            %v5286 = vunpack.c.h.b16 %v5195
            %v5287 = vunpack.c.l.b16 %v5196
            %v5288 = vunpack.c.h.b16 %v5196
            %v5289 = vunpack.c.l.b16 %v5197
            %v5290 = vunpack.c.h.b16 %v5197
            %v5291 = vunpack.c.l.b16 %v5198
            %v5292 = vunpack.c.h.b16 %v5198
            %v5293 = vunpack.c.l.b16 %v5199
            %v5294 = vunpack.c.h.b16 %v5199
            %v5295 = vunpack.c.l.b16 %v5200
            %v5296 = vunpack.c.h.b16 %v5200
            %v5297 = vpack.c.b16 %v5237, %v5233
            %v5298 = vpack.c.b16 %v5238, %v5234
            %v5299 = vpack.c.b16 %v5239, %v5235
            %v5300 = vpack.c.b16 %v5240, %v5236
            %v5301 = vpack.c.b16 %v5245, %v5241
            %v5302 = vpack.c.b16 %v5246, %v5242
            %v5303 = vpack.c.b16 %v5247, %v5243
            %v5304 = vpack.c.b16 %v5248, %v5244
            %v5305 = vpack.c.b16 %v5253, %v5249
            %v5306 = vpack.c.b16 %v5254, %v5250
            %v5307 = vpack.c.b16 %v5255, %v5251
            %v5308 = vpack.c.b16 %v5256, %v5252
            %v5309 = vpack.c.b16 %v5261, %v5257
            %v5310 = vpack.c.b16 %v5262, %v5258
            %v5311 = vpack.c.b16 %v5263, %v5259
            %v5312 = vpack.c.b16 %v5264, %v5260
            %v5313 = vpack.c.b16 %v5269, %v5265
            %v5314 = vpack.c.b16 %v5270, %v5266
            %v5315 = vpack.c.b16 %v5271, %v5267
            %v5316 = vpack.c.b16 %v5272, %v5268
            %v5317 = vpack.c.b16 %v5277, %v5273
            %v5318 = vpack.c.b16 %v5278, %v5274
            %v5319 = vpack.c.b16 %v5279, %v5275
            %v5320 = vpack.c.b16 %v5280, %v5276
            %v5321 = vpack.c.b16 %v5285, %v5281
            %v5322 = vpack.c.b16 %v5286, %v5282
            %v5323 = vpack.c.b16 %v5287, %v5283
            %v5324 = vpack.c.b16 %v5288, %v5284
            %v5325 = vpack.c.b16 %v5293, %v5289
            %v5326 = vpack.c.b16 %v5294, %v5290
            %v5327 = vpack.c.b16 %v5295, %v5291
            %v5328 = vpack.c.b16 %v5296, %v5292
            %5361 = vmatpush.bf16.msra.mxu0 %v5325
            %5362 = vmatpush.bf16.msra.mxu0 %v5321
            %5363 = vmatpush.bf16.msra.mxu0 %v5317
            %5364 = vmatpush.bf16.msra.mxu0 %v5313
            %5365 = vmatpush.bf16.msra.mxu0 %v5309
            %5366 = vmatpush.bf16.msra.mxu0 %v5305
            %5367 = vmatpush.bf16.msra.mxu0 %v5301
            %5368 = vmatpush.bf16.msra.mxu0 %v5297
            %5369 = vmatmul.bf16.gmra.mxu0 %v5168
            %v5370 = vpop.f32.mrf.mxu0
            %v5371 = vadd.f32 0.0, %v5370
            %v5372 = vpop.f32.mrf.mxu0
            %5373 = vdwg.mxu0
            %5374 = vmatpush.bf16.msra.mxu0 %v5326
            %5375 = vmatpush.bf16.msra.mxu0 %v5322
            %5376 = vmatpush.bf16.msra.mxu0 %v5318
            %5377 = vmatpush.bf16.msra.mxu0 %v5314
            %5378 = vmatpush.bf16.msra.mxu0 %v5310
            %5379 = vmatpush.bf16.msra.mxu0 %v5306
            %5380 = vmatpush.bf16.msra.mxu0 %v5302
            %5381 = vmatpush.bf16.msra.mxu0 %v5298
            %5382 = vmatmul.bf16.gmra.mxu0 %v5168
            %v5383 = vpop.f32.mrf.mxu0
            %v5384 = vadd.f32 0.0, %v5383
            %v5385 = vpop.f32.mrf.mxu0
            %5386 = vdwg.mxu0
            %5387 = vmatpush.bf16.msra.mxu0 %v5327
            %5388 = vmatpush.bf16.msra.mxu0 %v5323
            %5389 = vmatpush.bf16.msra.mxu0 %v5319
            %5390 = vmatpush.bf16.msra.mxu0 %v5315
            %5391 = vmatpush.bf16.msra.mxu0 %v5311
            %5392 = vmatpush.bf16.msra.mxu0 %v5307
            %5393 = vmatpush.bf16.msra.mxu0 %v5303
            %5394 = vmatpush.bf16.msra.mxu0 %v5299
            %5395 = vmatmul.bf16.gmra.mxu0 %v5168
            %v5396 = vpop.f32.mrf.mxu0
            %v5397 = vadd.f32 0.0, %v5396
            %v5398 = vpop.f32.mrf.mxu0
            %5399 = vdwg.mxu0
            %5400 = vmatpush.bf16.msra.mxu0 %v5328
            %5401 = vmatpush.bf16.msra.mxu0 %v5324
            %5402 = vmatpush.bf16.msra.mxu0 %v5320
            %5403 = vmatpush.bf16.msra.mxu0 %v5316
            %5404 = vmatpush.bf16.msra.mxu0 %v5312
            %5405 = vmatpush.bf16.msra.mxu0 %v5308
            %5406 = vmatpush.bf16.msra.mxu0 %v5304
            %5407 = vmatpush.bf16.msra.mxu0 %v5300
            %5408 = vmatmul.bf16.gmra.mxu0 %v5168
            %v5409 = vpop.f32.mrf.mxu0
            %v5410 = vadd.f32 0.0, %v5409
            %v5411 = vpop.f32.mrf.mxu0
            %5412 = vdwg.mxu0
            %v5413 = vadd.f32 %v5164, %v5371
            %v5414 = vadd.f32 %v5165, %v5384
            %v5415 = vadd.f32 %v5166, %v5397
            %v5416 = vadd.f32 %v5167, %v5410
            %v5417 = vxor.u32 %v5413, 2147483648
            %v5418 = vxor.u32 %v5414, 2147483648
            %v5419 = vxor.u32 %v5415, 2147483648
            %v5420 = vmul.f32 %v5417, 1.442695
            %v5421 = vpow.pop %v5420
            %v5422 = vmul.f32 %v5418, 1.442695
            %v5423 = vpow.pop %v5422
            %v5424 = vmul.f32 %v5419, 1.442695
            %v5425 = vpow.pop %v5424
            %v5426 = vadd.f32 %v5421, 1.0
            %v5427 = vadd.f32 %v5423, 1.0
            %v5428 = vadd.f32 %v5425, 1.0
            %v5429 = vrcp.pop %v5426
            %v5430 = vmul.f32 %v5426, %v5429
            %v5431 = vsub.f32 1.0, %v5430
            %v5432 = vmul.f32 %v5429, %v5431
            %v5433 = vadd.f32 %v5429, %v5432
            %vm5434 = vweird.f32 %v5426
            %vm5435 = vweird.f32 %v5429
            %vm5436 = vmor %vm5434, %vm5435
            %v5437 = vsel %vm5436, %v5429, %v5433
            %v5438 = vand.u32 2147483647, %v5426
            %vm5439 = vcmp.eq.f32.partialorder %v5438, 8.507059e+37
            %v5440 = vand.u32 %v5426, 2147483648
            %v5441 = vor.u32 1.1754944e-38, %v5440
            %v5442 = vsel %vm5439, %v5441, %v5437
            %v5443 = vmul.f32 1.0, %v5442
            %v5444 = vrcp.pop %v5427
            %v5445 = vmul.f32 %v5427, %v5444
            %v5446 = vsub.f32 1.0, %v5445
            %v5447 = vmul.f32 %v5444, %v5446
            %v5448 = vadd.f32 %v5444, %v5447
            %vm5449 = vweird.f32 %v5427
            %vm5450 = vweird.f32 %v5444
            %vm5451 = vmor %vm5449, %vm5450
            %v5452 = vsel %vm5451, %v5444, %v5448
            %v5453 = vand.u32 2147483647, %v5427
            %vm5454 = vcmp.eq.f32.partialorder %v5453, 8.507059e+37
            %v5455 = vand.u32 %v5427, 2147483648
            %v5456 = vor.u32 1.1754944e-38, %v5455
            %v5457 = vsel %vm5454, %v5456, %v5452
            %v5458 = vmul.f32 1.0, %v5457
            %v5459 = vrcp.pop %v5428
            %v5460 = vmul.f32 %v5428, %v5459
            %v5461 = vsub.f32 1.0, %v5460
            %v5462 = vmul.f32 %v5459, %v5461
            %v5463 = vadd.f32 %v5459, %v5462
            %vm5464 = vweird.f32 %v5428
            %vm5465 = vweird.f32 %v5459
            %vm5466 = vmor %vm5464, %vm5465
            %v5467 = vsel %vm5466, %v5459, %v5463
            %v5468 = vand.u32 2147483647, %v5428
            %vm5469 = vcmp.eq.f32.partialorder %v5468, 8.507059e+37
            %v5470 = vand.u32 %v5428, 2147483648
            %v5471 = vor.u32 1.1754944e-38, %v5470
            %v5472 = vsel %vm5469, %v5471, %v5467
            %v5473 = vmul.f32 1.0, %v5472
            %v5474 = vtanh.pop %v5416
            %v5475 = vmul.f32 %v5458, %v5157
            %v5476 = vmul.f32 %v5443, %v5474
            %v5477 = vadd.f32 %v5475, %v5476
            %v5478 = vtanh.pop %v5477
            %v5479 = vmul.f32 %v5473, %v5478
            %s5480 = sadd.s32 %s3130, %s5158
            %v5481 = vstv %s5480
            %vm5482 = vcmp.lt.s32.totalorder %v5481, %v419
            %v5483 = vsel %vm5482, 1, 0
            %5484 = vset.pattern.permute.xlu0 0
            %5485 = vperm.xlu0 %5484, %v5483
            %v5486 = vpop.permute.xlu0 %5485
            %vm5487 = vcmp.eq.s32.totalorder %v5486, 1
            %v5488 = vsel %vm5487, %v5479, 0.0
            %s5489 = smul.u32 %s5158, 8
            %s5490 = scalar_lea.vmem %s400, %s5489 [#allocation12]
            %5491 = vst [vmem:[%s5490] sm:$0xff] %v5488
            %v5492 = vsel %vm5487, %v5479, %v5156
            %v5493 = vsel %vm5487, %v5477, %v5157
            %s5494 = ssub.s32 24, %s3141
            %s5495 = smul.u32 %s5494, 4
            %s5496 = smul.addr %s5495, 4
            %s5497 = scalar_lea.vmem %s328, %s5496 [#allocation4]
            %v5498 = vld [vmem:[%s5497] sm:$0xff]
            %v5499 = vld [vmem:[%s5497 + $0x8] sm:$0xff]
            %v5500 = vunpack.c.l.bf16 %v5498
            %v5501 = vunpack.c.h.bf16 %v5498
            %v5502 = vunpack.c.l.bf16 %v5499
            %v5503 = vunpack.c.h.bf16 %v5499
            %v5504 = vpack.c.bf16 %v5492, %v5492
            %v5505 = vld [vmem:[%s338] sm:$0xff]
            %v5506 = vld [vmem:[%s338 + $0x8] sm:$0xff]
            %v5507 = vld [vmem:[%s338 + $0x10] sm:$0xff]
            %v5508 = vld [vmem:[%s338 + $0x18] sm:$0xff]
            %v5509 = vld [vmem:[%s338 + $0x20] sm:$0xff]
            %v5510 = vld [vmem:[%s338 + $0x28] sm:$0xff]
            %v5511 = vld [vmem:[%s338 + $0x30] sm:$0xff]
            %v5512 = vld [vmem:[%s338 + $0x38] sm:$0xff]
            %v5513 = vld [vmem:[%s338 + $0x40] sm:$0xff]
            %v5514 = vld [vmem:[%s338 + $0x48] sm:$0xff]
            %v5515 = vld [vmem:[%s338 + $0x50] sm:$0xff]
            %v5516 = vld [vmem:[%s338 + $0x58] sm:$0xff]
            %v5517 = vld [vmem:[%s338 + $0x60] sm:$0xff]
            %v5518 = vld [vmem:[%s338 + $0x68] sm:$0xff]
            %v5519 = vld [vmem:[%s338 + $0x70] sm:$0xff]
            %v5520 = vld [vmem:[%s338 + $0x78] sm:$0xff]
            %v5521 = vld [vmem:[%s338 + $0x80] sm:$0xff]
            %v5522 = vld [vmem:[%s338 + $0x88] sm:$0xff]
            %v5523 = vld [vmem:[%s338 + $0x90] sm:$0xff]
            %v5524 = vld [vmem:[%s338 + $0x98] sm:$0xff]
            %v5525 = vld [vmem:[%s338 + $0xa0] sm:$0xff]
            %v5526 = vld [vmem:[%s338 + $0xa8] sm:$0xff]
            %v5527 = vld [vmem:[%s338 + $0xb0] sm:$0xff]
            %v5528 = vld [vmem:[%s338 + $0xb8] sm:$0xff]
            %v5529 = vld [vmem:[%s338 + $0xc0] sm:$0xff]
            %v5530 = vld [vmem:[%s338 + $0xc8] sm:$0xff]
            %v5531 = vld [vmem:[%s338 + $0xd0] sm:$0xff]
            %v5532 = vld [vmem:[%s338 + $0xd8] sm:$0xff]
            %v5533 = vld [vmem:[%s338 + $0xe0] sm:$0xff]
            %v5534 = vld [vmem:[%s338 + $0xe8] sm:$0xff]
            %v5535 = vld [vmem:[%s338 + $0xf0] sm:$0xff]
            %v5536 = vld [vmem:[%s338 + $0xf8] sm:$0xff]
            %v5569 = vunpack.c.l.b16 %v5505
            %v5570 = vunpack.c.h.b16 %v5505
            %v5571 = vunpack.c.l.b16 %v5506
            %v5572 = vunpack.c.h.b16 %v5506
            %v5573 = vunpack.c.l.b16 %v5507
            %v5574 = vunpack.c.h.b16 %v5507
            %v5575 = vunpack.c.l.b16 %v5508
            %v5576 = vunpack.c.h.b16 %v5508
            %v5577 = vunpack.c.l.b16 %v5509
            %v5578 = vunpack.c.h.b16 %v5509
            %v5579 = vunpack.c.l.b16 %v5510
            %v5580 = vunpack.c.h.b16 %v5510
            %v5581 = vunpack.c.l.b16 %v5511
            %v5582 = vunpack.c.h.b16 %v5511
            %v5583 = vunpack.c.l.b16 %v5512
            %v5584 = vunpack.c.h.b16 %v5512
            %v5585 = vunpack.c.l.b16 %v5513
            %v5586 = vunpack.c.h.b16 %v5513
            %v5587 = vunpack.c.l.b16 %v5514
            %v5588 = vunpack.c.h.b16 %v5514
            %v5589 = vunpack.c.l.b16 %v5515
            %v5590 = vunpack.c.h.b16 %v5515
            %v5591 = vunpack.c.l.b16 %v5516
            %v5592 = vunpack.c.h.b16 %v5516
            %v5593 = vunpack.c.l.b16 %v5517
            %v5594 = vunpack.c.h.b16 %v5517
            %v5595 = vunpack.c.l.b16 %v5518
            %v5596 = vunpack.c.h.b16 %v5518
            %v5597 = vunpack.c.l.b16 %v5519
            %v5598 = vunpack.c.h.b16 %v5519
            %v5599 = vunpack.c.l.b16 %v5520
            %v5600 = vunpack.c.h.b16 %v5520
            %v5601 = vunpack.c.l.b16 %v5521
            %v5602 = vunpack.c.h.b16 %v5521
            %v5603 = vunpack.c.l.b16 %v5522
            %v5604 = vunpack.c.h.b16 %v5522
            %v5605 = vunpack.c.l.b16 %v5523
            %v5606 = vunpack.c.h.b16 %v5523
            %v5607 = vunpack.c.l.b16 %v5524
            %v5608 = vunpack.c.h.b16 %v5524
            %v5609 = vunpack.c.l.b16 %v5525
            %v5610 = vunpack.c.h.b16 %v5525
            %v5611 = vunpack.c.l.b16 %v5526
            %v5612 = vunpack.c.h.b16 %v5526
            %v5613 = vunpack.c.l.b16 %v5527
            %v5614 = vunpack.c.h.b16 %v5527
            %v5615 = vunpack.c.l.b16 %v5528
            %v5616 = vunpack.c.h.b16 %v5528
            %v5617 = vunpack.c.l.b16 %v5529
            %v5618 = vunpack.c.h.b16 %v5529
            %v5619 = vunpack.c.l.b16 %v5530
            %v5620 = vunpack.c.h.b16 %v5530
            %v5621 = vunpack.c.l.b16 %v5531
            %v5622 = vunpack.c.h.b16 %v5531
            %v5623 = vunpack.c.l.b16 %v5532
            %v5624 = vunpack.c.h.b16 %v5532
            %v5625 = vunpack.c.l.b16 %v5533
            %v5626 = vunpack.c.h.b16 %v5533
            %v5627 = vunpack.c.l.b16 %v5534
            %v5628 = vunpack.c.h.b16 %v5534
            %v5629 = vunpack.c.l.b16 %v5535
            %v5630 = vunpack.c.h.b16 %v5535
            %v5631 = vunpack.c.l.b16 %v5536
            %v5632 = vunpack.c.h.b16 %v5536
            %v5633 = vpack.c.b16 %v5573, %v5569
            %v5634 = vpack.c.b16 %v5574, %v5570
            %v5635 = vpack.c.b16 %v5575, %v5571
            %v5636 = vpack.c.b16 %v5576, %v5572
            %v5637 = vpack.c.b16 %v5581, %v5577
            %v5638 = vpack.c.b16 %v5582, %v5578
            %v5639 = vpack.c.b16 %v5583, %v5579
            %v5640 = vpack.c.b16 %v5584, %v5580
            %v5641 = vpack.c.b16 %v5589, %v5585
            %v5642 = vpack.c.b16 %v5590, %v5586
            %v5643 = vpack.c.b16 %v5591, %v5587
            %v5644 = vpack.c.b16 %v5592, %v5588
            %v5645 = vpack.c.b16 %v5597, %v5593
            %v5646 = vpack.c.b16 %v5598, %v5594
            %v5647 = vpack.c.b16 %v5599, %v5595
            %v5648 = vpack.c.b16 %v5600, %v5596
            %v5649 = vpack.c.b16 %v5605, %v5601
            %v5650 = vpack.c.b16 %v5606, %v5602
            %v5651 = vpack.c.b16 %v5607, %v5603
            %v5652 = vpack.c.b16 %v5608, %v5604
            %v5653 = vpack.c.b16 %v5613, %v5609
            %v5654 = vpack.c.b16 %v5614, %v5610
            %v5655 = vpack.c.b16 %v5615, %v5611
            %v5656 = vpack.c.b16 %v5616, %v5612
            %v5657 = vpack.c.b16 %v5621, %v5617
            %v5658 = vpack.c.b16 %v5622, %v5618
            %v5659 = vpack.c.b16 %v5623, %v5619
            %v5660 = vpack.c.b16 %v5624, %v5620
            %v5661 = vpack.c.b16 %v5629, %v5625
            %v5662 = vpack.c.b16 %v5630, %v5626
            %v5663 = vpack.c.b16 %v5631, %v5627
            %v5664 = vpack.c.b16 %v5632, %v5628
            %5697 = vmatpush.bf16.msra.mxu0 %v5661
            %5698 = vmatpush.bf16.msra.mxu0 %v5657
            %5699 = vmatpush.bf16.msra.mxu0 %v5653
            %5700 = vmatpush.bf16.msra.mxu0 %v5649
            %5701 = vmatpush.bf16.msra.mxu0 %v5645
            %5702 = vmatpush.bf16.msra.mxu0 %v5641
            %5703 = vmatpush.bf16.msra.mxu0 %v5637
            %5704 = vmatpush.bf16.msra.mxu0 %v5633
            %5705 = vmatmul.bf16.gmra.mxu0 %v5504
            %v5706 = vpop.f32.mrf.mxu0
            %v5707 = vadd.f32 0.0, %v5706
            %v5708 = vpop.f32.mrf.mxu0
            %5709 = vdwg.mxu0
            %5710 = vmatpush.bf16.msra.mxu0 %v5662
            %5711 = vmatpush.bf16.msra.mxu0 %v5658
            %5712 = vmatpush.bf16.msra.mxu0 %v5654
            %5713 = vmatpush.bf16.msra.mxu0 %v5650
            %5714 = vmatpush.bf16.msra.mxu0 %v5646
            %5715 = vmatpush.bf16.msra.mxu0 %v5642
            %5716 = vmatpush.bf16.msra.mxu0 %v5638
            %5717 = vmatpush.bf16.msra.mxu0 %v5634
            %5718 = vmatmul.bf16.gmra.mxu0 %v5504
            %v5719 = vpop.f32.mrf.mxu0
            %v5720 = vadd.f32 0.0, %v5719
            %v5721 = vpop.f32.mrf.mxu0
            %5722 = vdwg.mxu0
            %5723 = vmatpush.bf16.msra.mxu0 %v5663
            %5724 = vmatpush.bf16.msra.mxu0 %v5659
            %5725 = vmatpush.bf16.msra.mxu0 %v5655
            %5726 = vmatpush.bf16.msra.mxu0 %v5651
            %5727 = vmatpush.bf16.msra.mxu0 %v5647
            %5728 = vmatpush.bf16.msra.mxu0 %v5643
            %5729 = vmatpush.bf16.msra.mxu0 %v5639
            %5730 = vmatpush.bf16.msra.mxu0 %v5635
            %5731 = vmatmul.bf16.gmra.mxu0 %v5504
            %v5732 = vpop.f32.mrf.mxu0
            %v5733 = vadd.f32 0.0, %v5732
            %v5734 = vpop.f32.mrf.mxu0
            %5735 = vdwg.mxu0
            %5736 = vmatpush.bf16.msra.mxu0 %v5664
            %5737 = vmatpush.bf16.msra.mxu0 %v5660
            %5738 = vmatpush.bf16.msra.mxu0 %v5656
            %5739 = vmatpush.bf16.msra.mxu0 %v5652
            %5740 = vmatpush.bf16.msra.mxu0 %v5648
            %5741 = vmatpush.bf16.msra.mxu0 %v5644
            %5742 = vmatpush.bf16.msra.mxu0 %v5640
            %5743 = vmatpush.bf16.msra.mxu0 %v5636
            %5744 = vmatmul.bf16.gmra.mxu0 %v5504
            %v5745 = vpop.f32.mrf.mxu0
            %v5746 = vadd.f32 0.0, %v5745
            %v5747 = vpop.f32.mrf.mxu0
            %5748 = vdwg.mxu0
            %v5749 = vadd.f32 %v5500, %v5707
            %v5750 = vadd.f32 %v5501, %v5720
            %v5751 = vadd.f32 %v5502, %v5733
            %v5752 = vadd.f32 %v5503, %v5746
            %v5753 = vxor.u32 %v5749, 2147483648
            %v5754 = vxor.u32 %v5750, 2147483648
            %v5755 = vxor.u32 %v5751, 2147483648
            %v5756 = vmul.f32 %v5753, 1.442695
            %v5757 = vpow.pop %v5756
            %v5758 = vmul.f32 %v5754, 1.442695
            %v5759 = vpow.pop %v5758
            %v5760 = vmul.f32 %v5755, 1.442695
            %v5761 = vpow.pop %v5760
            %v5762 = vadd.f32 %v5757, 1.0
            %v5763 = vadd.f32 %v5759, 1.0
            %v5764 = vadd.f32 %v5761, 1.0
            %v5765 = vrcp.pop %v5762
            %v5766 = vmul.f32 %v5762, %v5765
            %v5767 = vsub.f32 1.0, %v5766
            %v5768 = vmul.f32 %v5765, %v5767
            %v5769 = vadd.f32 %v5765, %v5768
            %vm5770 = vweird.f32 %v5762
            %vm5771 = vweird.f32 %v5765
            %vm5772 = vmor %vm5770, %vm5771
            %v5773 = vsel %vm5772, %v5765, %v5769
            %v5774 = vand.u32 2147483647, %v5762
            %vm5775 = vcmp.eq.f32.partialorder %v5774, 8.507059e+37
            %v5776 = vand.u32 %v5762, 2147483648
            %v5777 = vor.u32 1.1754944e-38, %v5776
            %v5778 = vsel %vm5775, %v5777, %v5773
            %v5779 = vmul.f32 1.0, %v5778
            %v5780 = vrcp.pop %v5763
            %v5781 = vmul.f32 %v5763, %v5780
            %v5782 = vsub.f32 1.0, %v5781
            %v5783 = vmul.f32 %v5780, %v5782
            %v5784 = vadd.f32 %v5780, %v5783
            %vm5785 = vweird.f32 %v5763
            %vm5786 = vweird.f32 %v5780
            %vm5787 = vmor %vm5785, %vm5786
            %v5788 = vsel %vm5787, %v5780, %v5784
            %v5789 = vand.u32 2147483647, %v5763
            %vm5790 = vcmp.eq.f32.partialorder %v5789, 8.507059e+37
            %v5791 = vand.u32 %v5763, 2147483648
            %v5792 = vor.u32 1.1754944e-38, %v5791
            %v5793 = vsel %vm5790, %v5792, %v5788
            %v5794 = vmul.f32 1.0, %v5793
            %v5795 = vrcp.pop %v5764
            %v5796 = vmul.f32 %v5764, %v5795
            %v5797 = vsub.f32 1.0, %v5796
            %v5798 = vmul.f32 %v5795, %v5797
            %v5799 = vadd.f32 %v5795, %v5798
            %vm5800 = vweird.f32 %v5764
            %vm5801 = vweird.f32 %v5795
            %vm5802 = vmor %vm5800, %vm5801
            %v5803 = vsel %vm5802, %v5795, %v5799
            %v5804 = vand.u32 2147483647, %v5764
            %vm5805 = vcmp.eq.f32.partialorder %v5804, 8.507059e+37
            %v5806 = vand.u32 %v5764, 2147483648
            %v5807 = vor.u32 1.1754944e-38, %v5806
            %v5808 = vsel %vm5805, %v5807, %v5803
            %v5809 = vmul.f32 1.0, %v5808
            %v5810 = vtanh.pop %v5752
            %v5811 = vmul.f32 %v5794, %v5493
            %v5812 = vmul.f32 %v5779, %v5810
            %v5813 = vadd.f32 %v5811, %v5812
            %v5814 = vtanh.pop %v5813
            %v5815 = vmul.f32 %v5809, %v5814
            %s5816 = sadd.s32 %s3130, %s5494
            %v5817 = vstv %s5816
            %vm5818 = vcmp.lt.s32.totalorder %v5817, %v419
            %v5819 = vsel %vm5818, 1, 0
            %5820 = vset.pattern.permute.xlu0 0
            %5821 = vperm.xlu0 %5820, %v5819
            %v5822 = vpop.permute.xlu0 %5821
            %vm5823 = vcmp.eq.s32.totalorder %v5822, 1
            %v5824 = vsel %vm5823, %v5815, 0.0
            %s5825 = smul.u32 %s5494, 8
            %s5826 = scalar_lea.vmem %s400, %s5825 [#allocation12]
            %5827 = vst [vmem:[%s5826] sm:$0xff] %v5824
            %v5828 = vsel %vm5823, %v5815, %v5492
            %v5829 = vsel %vm5823, %v5813, %v5493
          $region80: #{tpu_custom_call.1} parent=74 // loop_footer
            %s3138 = sadd.s32 1, %s3134
          $region81: #{tpu_custom_call.1} parent=74 // loop_footer_branch
            %3133 = sbr.rel target = $region77
          $region82: #{tpu_custom_call.1} parent=74 // loop_exit
            _
          %5830 = vst [vmem:[#allocation2] sm:$0xff] %v3139
          %5831 = vst [vmem:[#allocation3] sm:$0xff] %v3140
        $region75: #{tpu_custom_call.1} parent=39 // pred_fallthru
          _
        %s5832 = sand.u32 %s193, 1
        %s5833 = scalar_lea.sflag [#allocation6], %s5832
        %s5834 = sand.u32 %s193, 1
        %s5835 = smul.addr %s5834, 256
        %s5836 = scalar_lea.vmem [#allocation12], %s5835
        // Predicated region
        $region83: #{tpu_custom_call.1} parent=39 // pred_check
          %p5837 = pneg %p203
        $region84: #{tpu_custom_call.1} parent=39 // pred_check_branch
          %5839 = sbr.rel (%p5837) target = $region86
        $region85: #{tpu_custom_call.1} parent=39 // pred_region
          %s5840 = smul.u32 %s33, 2
          %s5841 = ssub.s32 0, %s5840
          %s5842 = smul.u32 %s32, %s5841
          %s5843 = sadd.s32 %s33, %s5842
          %s5844 = smul.u32 32, %s5843
          %5846 = vsyncadd %s5833, 0
          %s5847 = smul.addr %s32, 32
          %s5848 = sadd.s32 %s5844, %s5847
          %s5849 = smul.addr %s5848, 8
          %s5850 = scalar_lea.hbm %s5, %s5849
          %s5851 = sshll.u32 %s5836, 4
          %s5852 = int_to_ptr.vmem [resolvable:$true] %s5851
          %s5853 = sshll.u32 %s5850, 4
          %s5854 = int_to_ptr.hbm [resolvable:$true] %s5853
          %5859 = dma.vmem_to_hbm [thread:$0]  %s5852, 4096, %s5854, %s5833, 128, 128, 8
        $region86: #{tpu_custom_call.1} parent=39 // pred_fallthru
          _
      $region40: #{tpu_custom_call.1} parent=5 // pred_fallthru
        _
      %p5860 = scmp.le.s32.totalorder 2, %s23
      // Predicated region
      $region87: #{tpu_custom_call.1} parent=5 // pred_check
        %p5861 = pneg %p5860
      $region88: #{tpu_custom_call.1} parent=5 // pred_check_branch
        %5863 = sbr.rel (%p5861) target = $region90
      $region89: #{tpu_custom_call.1} parent=5 // pred_region
        %s5864 = ssub.s32 %s23, 2
        // Predicated region
        $region91: #{tpu_custom_call.1} parent=89 // pred_check
          %p5865 = pneg %p209
        $region92: #{tpu_custom_call.1} parent=89 // pred_check_branch
          %5867 = sbr.rel (%p5865) target = $region94
        $region93: #{tpu_custom_call.1} parent=89 // pred_region
          %s5868 = sand.u32 %s194, 1
          %s5869 = scalar_lea.sflag [#allocation6], %s5868
          %s5870 = sand.u32 %s194, 1
          %s5871 = smul.addr %s5870, 256
          %s5872 = scalar_lea.vmem [#allocation12], %s5871
          %5874 = dma.done %s5869, 4096
        $region94: #{tpu_custom_call.1} parent=89 // pred_fallthru
          _
      $region90: #{tpu_custom_call.1} parent=5 // pred_fallthru
        _
    $region6: #{tpu_custom_call.1} parent=1 // loop_footer
      %s27 = sadd.s32 1, %s23
    $region7: #{tpu_custom_call.1} parent=1 // loop_footer_branch
      %22 = sbr.rel target = $region3
    $region8: #{tpu_custom_call.1} parent=1 // loop_exit
      _
    %5875 = vsyncpa [#allocation5], 1
    %s5876 = scalar_lea.sflag [#allocation5], 1
    %5877 = vsyncpa %s5876, 1
    %5878 = vsyncpa [#allocation8], 1
    %s5879 = scalar_lea.sflag [#allocation8], 1
    %5880 = vsyncpa %s5879, 1
    %5881 = vsyncpa [#allocation11], 1
    %s5882 = scalar_lea.sflag [#allocation11], 1
    %5883 = vsyncpa %s5882, 1
    %5884 = vsyncpa [#allocation6], 1
    %s5885 = scalar_lea.sflag [#allocation6], 1
    %5886 = vsyncpa %s5885, 1

</llo_original>
